<compile_context>
chip_gen: v7x
topology: tpu7x:2x2x1
jax: 0.10.0
libtpu: 0.0.40
codegen_flags: <defaults>
</compile_context>

<pallas_src>
import functools
import math

import jax
import jax.numpy as jnp
from jax.experimental import pallas as pl
from jax.experimental.pallas import tpu as pltpu

GN_GROUPS = 32
GN_EPS = 1e-5


def _vmem_limit_bytes():
    """Per-generation VMEM budget: ~3/4 of physical, with compiler headroom.
    v5e/v6e (128 MiB) -> 96 MiB; v7x (64 MiB) -> 48 MiB; safe fallback 48 MiB."""
    try:
        cap = int(pltpu.get_tpu_info().vmem_capacity_bytes)
    except Exception:
        cap = 64 * 1024 * 1024
    return max(32 * 1024 * 1024, min(cap * 3 // 4, 100 * 1024 * 1024))


def _group_fold(v, cpg):
    """Per-group sums of a (1, C) row, broadcast back to (1, C).

    Channels are laid out [g0c0, g0c1, ..., g1c0, ...].  cpg == 1 is a no-op;
    cpg > 1 uses static lane shifts + selects on a tiny (1, C) array (exact
    in f32, avoids a lane reshape).  Only traced when Cout > 32.
    """
    if cpg == 1:
        return v
    C = v.shape[-1]
    pos = jax.lax.broadcasted_iota(jnp.int32, (1, C), 1) % cpg
    out = v
    for k in range(1, cpg):
        fwd = jnp.roll(v, -k, axis=1)          # fwd[c] = v[c + k]
        bwd = jnp.roll(v, cpg - k, axis=1)     # bwd[c] = v[c - (cpg - k)]
        out = out + jnp.where(pos + k < cpg, fwd, bwd)
    return out


def _group_norm_relu(h, gamma, beta, groups=GN_GROUPS, eps=GN_EPS):
    """GroupNorm(groups) + ReLU on the (H*W, C) f32 activation of ONE sample.

    Two-pass (exact-centered) variance: avoids the E[x^2]-mean^2 cancellation
    flagged in review."""
    HW, C = h.shape
    cpg = C // groups
    inv_n = 1.0 / (HW * cpg)
    mean = _group_fold(jnp.sum(h, axis=0, keepdims=True), cpg) * inv_n
    d = h - mean
    var = _group_fold(jnp.sum(d * d, axis=0, keepdims=True), cpg) * inv_n
    out = d * jax.lax.rsqrt(var + eps) * gamma + beta
    return jnp.maximum(out, 0.0)                   # ReLU


def _pad_hw1(a):
    """Zero-pad a (H, W, C) tile by 1 on both spatial dims (returns a value)."""
    H, W, C = a.shape
    zc = jnp.zeros((H, 1, C), a.dtype)
    rows = jnp.concatenate([zc, a, zc], axis=1)         # (H, W+2, C)
    zr = jnp.zeros((1, W + 2, C), a.dtype)
    return jnp.concatenate([zr, rows, zr], axis=0)      # (H+2, W+2, C)


def _conv3x3_fused(xpad, w, b, H, W):
    """3x3 'same' conv, one K=3*Cin MXU matmul per dx (3 total, not 9).

    xpad: (H+2, W+2, Cin) bf16 value with zero border.
    w:    (3, 3*Cin, Cout) bf16, dx-major, K ordered dy-major then cin.
    b:    (1, Cout) f32 bias (folded into the first accumulation).
    Returns (H*W, Cout) f32."""
    ph, pw, Cin = xpad.shape
    acc = None
    for dx in range(3):
        slab = xpad[:, dx:dx + W, :].reshape(ph * W, Cin)
        lhs = jnp.concatenate(
            [slab[dy * W:(dy + H) * W, :] for dy in range(3)], axis=1)
        part = jnp.dot(lhs, w[dx], preferred_element_type=jnp.float32)
        acc = part + b if acc is None else acc + part
    return acc


def _conv3x3_taps(src_ref, w, b, H, W):
    """Conservative fallback: per-(dy, dx) matmuls reading an f32 zero-padded
    VMEM scratch (same access patterns as the previously validated kernel)."""
    ph, pw, Cin = src_ref.shape
    acc = None
    for dx in range(3):
        slab = src_ref[:, dx:dx + W, :].astype(jnp.bfloat16).reshape(ph * W, Cin)
        for dy in range(3):
            win = slab[dy * W:(dy + H) * W, :]
            part = jnp.dot(win, w[dx, dy * Cin:(dy + 1) * Cin, :],
                           preferred_element_type=jnp.float32)
            acc = part + b if acc is None else acc + part
    return acc


def _resblock_kernel(identity_residual, optimized, lane_dense, *refs):
    if identity_residual:
        (x_ref, temb_ref,
         w1_ref, b1_ref, g1_ref, be1_ref,
         w2_ref, b2_ref, g2_ref, be2_ref,
         out_ref, *scratch) = refs
        wr = br = None
    else:
        (x_ref, temb_ref,
         w1_ref, b1_ref, g1_ref, be1_ref,
         w2_ref, b2_ref, g2_ref, be2_ref,
         wr_ref, br_ref,
         out_ref, *scratch) = refs
        wr = wr_ref[...]
        br = br_ref[...]

    NB, H, W, Cin = x_ref.shape
    Cout = g1_ref.shape[-1]
    ph, pw = H + 2, W + 2

    # constants loaded once per grid step, reused by all NB samples
    w1 = w1_ref[...]; b1 = b1_ref[...]; g1 = g1_ref[...]; be1 = be1_ref[...]
    w2 = w2_ref[...]; b2 = b2_ref[...]; g2 = g2_ref[...]; be2 = be2_ref[...]

    if not optimized:
        xpad_ref, hpad_ref = scratch
        # Re-zero only the 1-pixel border, and only once per grid step
        # (megacore-safe); interiors are fully rewritten per sample below.
        for ref in (xpad_ref, hpad_ref):
            c = ref.shape[-1]
            zr = jnp.zeros((1, pw, c), ref.dtype)
            zc = jnp.zeros((ph, 1, c), ref.dtype)
            ref[0:1, :, :] = zr
            ref[ph - 1:ph, :, :] = zr
            ref[:, 0:1, :] = zc
            ref[:, pw - 1:pw, :] = zc

    for s in range(NB):            # static unroll: NB small, weights resident
        x_f32 = x_ref[s]                             # (H, W, Cin) f32
        x_bf = x_f32.astype(jnp.bfloat16)            # single cast, reused below

        # ---- block1: conv3x3 -> GroupNorm(32) -> ReLU, then + time emb ----
        if optimized:
            h = _conv3x3_fused(_pad_hw1(x_bf), w1, b1, H, W)
        else:
            xpad_ref[1:H + 1, 1:W + 1, :] = x_f32
            h = _conv3x3_taps(xpad_ref, w1, b1, H, W)
        h = _group_norm_relu(h, g1, be1)
        h = h + temb_ref[s]                          # (HW, C) + (1, C)

        # ---- block2: conv3x3 -> GroupNorm(32) -> ReLU ----
        h3 = h.reshape(H, W, Cout)
        if optimized:
            h2 = _conv3x3_fused(_pad_hw1(h3.astype(jnp.bfloat16)), w2, b2, H, W)
        else:
            hpad_ref[1:H + 1, 1:W + 1, :] = h3
            h2 = _conv3x3_taps(hpad_ref, w2, b2, H, W)
        h2 = _group_norm_relu(h2, g2, be2)

        # ---- residual ----
        if identity_residual:
            res = x_f32.reshape(H * W, Cout)         # exact f32 identity path
        else:
            res = jnp.dot(x_bf.reshape(H * W, Cin), wr,
                          preferred_element_type=jnp.float32) + br

        y = (h2 + res).astype(out_ref.dtype)         # (HW, Cout)

        if lane_dense:
            # lane-dense (H, W*Cout) slab -> unmasked vst, dense HBM writeback
            y3 = y.reshape(H, W, Cout)
            out_ref[s] = jnp.concatenate(
                [y3[:, xw, :] for xw in range(W)], axis=1)
        else:
            out_ref[s] = y.reshape(H, W, Cout)


def _resblock_forward(x, t, params, *, samples_per_step=4, optimized=True):
    """x: (N, H, W, Cin) f32, t: (N, Temb) f32  ->  (N, H, W, Cout) f32."""
    N, H, W, Cin = x.shape
    Cout = params["w1"].shape[-1]
    assert Cout % GN_GROUPS == 0, "GroupNorm(32, C) needs C % 32 == 0"
    identity_residual = "wr" not in params

    # Time MLP for the whole batch in the wrapper (tiny K; keeps wt/bt out of VMEM).
    temb = (t @ params["wt"] + params["bt"]).astype(jnp.float32)     # (N, Cout)
    temb3 = temb.reshape(N, 1, Cout)

    # samples per grid step: largest divisor of N that is <= samples_per_step
    NB = 1
    for cand in range(min(N, samples_per_step), 0, -1):
        if N % cand == 0:
            NB = cand
            break

    # Pack 3x3 weights as (dx, dy*Cin, Cout): each dx tap is one K=3*Cin matmul.
    def pack_w(w):
        kh, kw, ci, co = w.shape
        return (jnp.transpose(w, (1, 0, 2, 3))
                .reshape(kw, kh * ci, co).astype(jnp.bfloat16))

    row = lambda v: v.reshape(1, -1).astype(jnp.float32)

    args = [x, temb3,
            pack_w(params["w1"]), row(params["b1"]), row(params["g1"]), row(params["be1"]),
            pack_w(params["w2"]), row(params["b2"]), row(params["g2"]), row(params["be2"])]
    if not identity_residual:
        args += [params["wr"].astype(jnp.bfloat16), row(params["br"])]

    # TODO(synk): pipeline_mode=pl.Buffered(1) here would single-buffer these
    # block-invariant weights (saves VMEM at production C); omitted pending
    # API validation on all target toolchains.
    def const_spec(a):
        return pl.BlockSpec(a.shape, lambda n, _nd=a.ndim: (0,) * _nd)

    in_specs = [
        pl.BlockSpec((NB, H, W, Cin), lambda n: (n, 0, 0, 0)),   # unpadded x
        pl.BlockSpec((NB, 1, Cout), lambda n: (n, 0, 0)),        # time emb row
    ] + [const_spec(a) for a in args[2:]]

    lane_dense = optimized and (W * Cout) % 128 == 0
    if lane_dense:
        out_shape = jax.ShapeDtypeStruct((N, H, W * Cout), x.dtype)
        out_spec = pl.BlockSpec((NB, H, W * Cout), lambda n: (n, 0, 0))
    else:
        out_shape = jax.ShapeDtypeStruct((N, H, W, Cout), x.dtype)
        out_spec = pl.BlockSpec((NB, H, W, Cout), lambda n: (n, 0, 0, 0))

    scratch_shapes = []
    if not optimized:
        scratch_shapes = [pltpu.VMEM((H + 2, W + 2, Cin), jnp.float32),
                          pltpu.VMEM((H + 2, W + 2, Cout), jnp.float32)]

    grid_spec = pltpu.PrefetchScalarGridSpec(
        num_scalar_prefetch=0,
        grid=(N // NB,),
        in_specs=in_specs,
        out_specs=out_spec,
        scratch_shapes=scratch_shapes,
    )

    kernel = functools.partial(
        _resblock_kernel, identity_residual, optimized, lane_dense)

    out = pl.pallas_call(
        kernel,
        out_shape=out_shape,
        grid_spec=grid_spec,
        compiler_params=pltpu.CompilerParams(
            dimension_semantics=("parallel",),
            vmem_limit_bytes=_vmem_limit_bytes(),
        ),
    )(*args)

    if lane_dense:
        out = out.reshape(N, H, W, Cout)   # bit-identical layout; free reshape
    return out


def resblock_forward(x, t, params, *, samples_per_step=4):
    """Fused ResBlock forward (NHWC).  Tries the fully optimized kernel first
    and falls back to a conservative (per-tap matmul, f32-scratch) variant if
    the relayout-heavy path does not lower on the current toolchain."""
    try:
        out = _resblock_forward(x, t, params,
                                samples_per_step=samples_per_step, optimized=True)
        jax.block_until_ready(out)
        return out
    except Exception:
        return _resblock_forward(x, t, params,
                                 samples_per_step=samples_per_step, optimized=False)


def resblock_reference(x, t, params, matmul_dtype=jnp.float32):
    """Pure-JAX NHWC reference.  matmul_dtype=jnp.bfloat16 mirrors the kernel's
    bf16 matmul inputs (with f32 accumulation) for a tight numerical check."""
    cast = lambda a: a.astype(matmul_dtype)

    def conv3x3(h, w, b):
        y = jax.lax.conv_general_dilated(
            cast(h), cast(w), window_strides=(1, 1), padding=((1, 1), (1, 1)),
            dimension_numbers=("NHWC", "HWIO", "NHWC"),
            preferred_element_type=jnp.float32)
        return y + b.reshape(1, 1, 1, -1)

    def gn(h, gamma, beta, groups=GN_GROUPS, eps=GN_EPS):
        N, H, W, C = h.shape
        hg = h.reshape(N, H, W, groups, C // groups)
        mean = hg.mean(axis=(1, 2, 4), keepdims=True)
        var = ((hg - mean) ** 2).mean(axis=(1, 2, 4), keepdims=True)
        hn = ((hg - mean) / jnp.sqrt(var + eps)).reshape(N, H, W, C)
        return hn * gamma.reshape(1, 1, 1, -1) + beta.reshape(1, 1, 1, -1)

    h = jax.nn.relu(gn(conv3x3(x, params["w1"], params["b1"]),
                       params["g1"], params["be1"]))
    t_emb = t @ params["wt"] + params["bt"]
    h = h + t_emb[:, None, None, :]
    h = jax.nn.relu(gn(conv3x3(h, params["w2"], params["b2"]),
                       params["g2"], params["be2"]))
    if "wr" in params:
        res = jnp.einsum("nhwc,cd->nhwd", cast(x), cast(params["wr"]),
                         preferred_element_type=jnp.float32) + params["br"]
    else:
        res = x                                      # identity residual: f32
    return h + res


def _make_params(key, Cin, Cout, Temb):
    ks = jax.random.split(key, 12)
    nrm = lambda k, s, sc: jax.random.normal(k, s, jnp.float32) * sc
    params = {
        "w1": nrm(ks[0], (3, 3, Cin, Cout), 1.0 / math.sqrt(9 * Cin)),
        "b1": nrm(ks[1], (Cout,), 0.02),
        "g1": 1.0 + nrm(ks[2], (Cout,), 0.1),
        "be1": nrm(ks[3], (Cout,), 0.1),
        "wt": nrm(ks[4], (Temb, Cout), 1.0 / math.sqrt(Temb)),
        "bt": nrm(ks[5], (Cout,), 0.02),
        "w2": nrm(ks[6], (3, 3, Cout, Cout), 1.0 / math.sqrt(9 * Cout)),
        "b2": nrm(ks[7], (Cout,), 0.02),
        "g2": 1.0 + nrm(ks[8], (Cout,), 0.1),
        "be2": nrm(ks[9], (Cout,), 0.1),
    }
    if Cin != Cout:  # residual_conv = Conv2d(Cin, Cout, kernel_size=1)
        params["wr"] = nrm(ks[10], (Cin, Cout), 1.0 / math.sqrt(Cin))
        params["br"] = nrm(ks[11], (Cout,), 0.02)
    # else: residual_conv = nn.Identity() -> static identity path in the kernel
    return params


if __name__ == "__main__":
    key = jax.random.PRNGKey(0)
    # GroupNorm(32, C) requires C % 32 == 0.
    configs = [
        dict(N=2, H=8, W=8, Cin=16, Cout=32, Temb=8),   # 1x1 residual conv
        dict(N=2, H=8, W=8, Cin=32, Cout=32, Temb=8),   # identity residual
    ]
    for cfg in configs:
        kp, kx, kt, key = jax.random.split(key, 4)
        params = _make_params(kp, cfg["Cin"], cfg["Cout"], cfg["Temb"])
        x = jax.random.normal(kx, (cfg["N"], cfg["H"], cfg["W"], cfg["Cin"]),
                              jnp.float32)
        t = jax.random.normal(kt, (cfg["N"], cfg["Temb"]), jnp.float32)

        out = jax.block_until_ready(resblock_forward(x, t, params))

        assert out.shape == (cfg["N"], cfg["H"], cfg["W"], cfg["Cout"])
        assert bool(jnp.all(jnp.isfinite(out)))

        # tight check vs. a reference that mirrors the kernel's bf16 matmuls
        ref_bf16 = resblock_reference(x, t, params, matmul_dtype=jnp.bfloat16)
        err_b = float(jnp.max(jnp.abs(out - ref_bf16)))
        assert jnp.allclose(out, ref_bf16, atol=3e-3, rtol=3e-3), \
            f"bf16-consistent ref max_err={err_b}"

        # sanity check vs. the pure-f32 reference (bf16 matmul noise expected)
        ref_f32 = resblock_reference(x, t, params, matmul_dtype=jnp.float32)
        err_f = float(jnp.max(jnp.abs(out - ref_f32)))
        assert jnp.allclose(out, ref_f32, atol=1e-1, rtol=1e-1), \
            f"f32 ref max_err={err_f}"

    print("KERNEL_OK")
</pallas_src>

<mosaic_0001>
module attributes {stable_mosaic.version = 11 : i64} {
  func.func @_resblock_kernel(%arg0: i32, %arg1: memref<2x8x8x16xf32, #tpu.memory_space<vmem>>, %arg2: memref<2x1x32xf32, #tpu.memory_space<vmem>>, %arg3: memref<3x48x32xbf16, #tpu.memory_space<vmem>>, %arg4: memref<1x32xf32, #tpu.memory_space<vmem>>, %arg5: memref<1x32xf32, #tpu.memory_space<vmem>>, %arg6: memref<1x32xf32, #tpu.memory_space<vmem>>, %arg7: memref<3x96x32xbf16, #tpu.memory_space<vmem>>, %arg8: memref<1x32xf32, #tpu.memory_space<vmem>>, %arg9: memref<1x32xf32, #tpu.memory_space<vmem>>, %arg10: memref<1x32xf32, #tpu.memory_space<vmem>>, %arg11: memref<16x32xbf16, #tpu.memory_space<vmem>>, %arg12: memref<1x32xf32, #tpu.memory_space<vmem>>, %arg13: memref<2x8x256xf32, #tpu.memory_space<vmem>>) attributes {dimension_semantics = [#tpu.dimension_semantics<parallel>], iteration_bounds = array<i64: 1>, scalar_prefetch = 0 : i64, scratch_operands = 0 : i64, tpu.core_type = #tpu.core_type<tc>, window_params = [{transform_indices = @transform_0, window_bounds = array<i64: 2, 8, 8, 16>}, {transform_indices = @transform_1, window_bounds = array<i64: 2, 1, 32>}, {pipeline_mode = #tpu.pipeline_mode<synchronous>, transform_indices = @transform_2, window_bounds = array<i64: 3, 48, 32>}, {pipeline_mode = #tpu.pipeline_mode<synchronous>, transform_indices = @transform_3, window_bounds = array<i64: 1, 32>}, {pipeline_mode = #tpu.pipeline_mode<synchronous>, transform_indices = @transform_4, window_bounds = array<i64: 1, 32>}, {pipeline_mode = #tpu.pipeline_mode<synchronous>, transform_indices = @transform_5, window_bounds = array<i64: 1, 32>}, {pipeline_mode = #tpu.pipeline_mode<synchronous>, transform_indices = @transform_6, window_bounds = array<i64: 3, 96, 32>}, {pipeline_mode = #tpu.pipeline_mode<synchronous>, transform_indices = @transform_7, window_bounds = array<i64: 1, 32>}, {pipeline_mode = #tpu.pipeline_mode<synchronous>, transform_indices = @transform_8, window_bounds = array<i64: 1, 32>}, {pipeline_mode = #tpu.pipeline_mode<synchronous>, transform_indices = @transform_9, window_bounds = array<i64: 1, 32>}, {pipeline_mode = #tpu.pipeline_mode<synchronous>, transform_indices = @transform_10, window_bounds = array<i64: 16, 32>}, {pipeline_mode = #tpu.pipeline_mode<synchronous>, transform_indices = @transform_11, window_bounds = array<i64: 1, 32>}, {transform_indices = @transform_12, window_bounds = array<i64: 2, 8, 256>}]} {
    %c0 = arith.constant 0 : index
    %c0_0 = arith.constant 0 : index
    %0 = vector.load %arg11[%c0, %c0_0] : memref<16x32xbf16, #tpu.memory_space<vmem>>, vector<16x32xbf16>
    %c0_1 = arith.constant 0 : index
    %c0_2 = arith.constant 0 : index
    %1 = vector.load %arg12[%c0_1, %c0_2] : memref<1x32xf32, #tpu.memory_space<vmem>>, vector<1x32xf32>
    %c0_3 = arith.constant 0 : index
    %c0_4 = arith.constant 0 : index
    %c0_5 = arith.constant 0 : index
    %2 = vector.load %arg3[%c0_3, %c0_4, %c0_5] : memref<3x48x32xbf16, #tpu.memory_space<vmem>>, vector<3x48x32xbf16>
    %c0_6 = arith.constant 0 : index
    %c0_7 = arith.constant 0 : index
    %3 = vector.load %arg4[%c0_6, %c0_7] : memref<1x32xf32, #tpu.memory_space<vmem>>, vector<1x32xf32>
    %c0_8 = arith.constant 0 : index
    %c0_9 = arith.constant 0 : index
    %4 = vector.load %arg5[%c0_8, %c0_9] : memref<1x32xf32, #tpu.memory_space<vmem>>, vector<1x32xf32>
    %c0_10 = arith.constant 0 : index
    %c0_11 = arith.constant 0 : index
    %5 = vector.load %arg6[%c0_10, %c0_11] : memref<1x32xf32, #tpu.memory_space<vmem>>, vector<1x32xf32>
    %c0_12 = arith.constant 0 : index
    %c0_13 = arith.constant 0 : index
    %c0_14 = arith.constant 0 : index
    %6 = vector.load %arg7[%c0_12, %c0_13, %c0_14] : memref<3x96x32xbf16, #tpu.memory_space<vmem>>, vector<3x96x32xbf16>
    %c0_15 = arith.constant 0 : index
    %c0_16 = arith.constant 0 : index
    %7 = vector.load %arg8[%c0_15, %c0_16] : memref<1x32xf32, #tpu.memory_space<vmem>>, vector<1x32xf32>
    %c0_17 = arith.constant 0 : index
    %c0_18 = arith.constant 0 : index
    %8 = vector.load %arg9[%c0_17, %c0_18] : memref<1x32xf32, #tpu.memory_space<vmem>>, vector<1x32xf32>
    %c0_19 = arith.constant 0 : index
    %c0_20 = arith.constant 0 : index
    %9 = vector.load %arg10[%c0_19, %c0_20] : memref<1x32xf32, #tpu.memory_space<vmem>>, vector<1x32xf32>
    %c0_21 = arith.constant 0 : index
    %c0_22 = arith.constant 0 : index
    %c0_23 = arith.constant 0 : index
    %c0_24 = arith.constant 0 : index
    %10 = vector.load %arg1[%c0_21, %c0_22, %c0_23, %c0_24] : memref<2x8x8x16xf32, #tpu.memory_space<vmem>>, vector<1x8x8x16xf32>
    %11 = vector.shape_cast %10 : vector<1x8x8x16xf32> to vector<8x8x16xf32>
    %12 = arith.truncf %11 : vector<8x8x16xf32> to vector<8x8x16xbf16>
    %cst = arith.constant 0.000000e+00 : bf16
    %13 = vector.broadcast %cst : bf16 to vector<8x1x16xbf16>
    %14 = tpu.concatenate %13, %12, %13 in 1 : vector<8x1x16xbf16>, vector<8x8x16xbf16>, vector<8x1x16xbf16> -> vector<8x10x16xbf16>
    %cst_25 = arith.constant 0.000000e+00 : bf16
    %15 = vector.broadcast %cst_25 : bf16 to vector<1x10x16xbf16>
    %16 = tpu.concatenate %15, %14, %15 in 0 : vector<1x10x16xbf16>, vector<8x10x16xbf16>, vector<1x10x16xbf16> -> vector<10x10x16xbf16>
    %17 = vector.extract_strided_slice %16 {offsets = [0, 0, 0], sizes = [10, 8, 16], strides = [1, 1, 1]} : vector<10x10x16xbf16> to vector<10x8x16xbf16>
    %18 = vector.shape_cast %17 : vector<10x8x16xbf16> to vector<80x16xbf16>
    %19 = vector.extract_strided_slice %18 {offsets = [0, 0], sizes = [64, 16], strides = [1, 1]} : vector<80x16xbf16> to vector<64x16xbf16>
    %20 = vector.extract_strided_slice %18 {offsets = [8, 0], sizes = [64, 16], strides = [1, 1]} : vector<80x16xbf16> to vector<64x16xbf16>
    %21 = vector.extract_strided_slice %18 {offsets = [16, 0], sizes = [64, 16], strides = [1, 1]} : vector<80x16xbf16> to vector<64x16xbf16>
    %22 = tpu.concatenate %19, %20, %21 in 1 : vector<64x16xbf16>, vector<64x16xbf16>, vector<64x16xbf16> -> vector<64x48xbf16>
    %23 = vector.extract_strided_slice %2 {offsets = [0, 0, 0], sizes = [1, 48, 32], strides = [1, 1, 1]} : vector<3x48x32xbf16> to vector<1x48x32xbf16>
    %24 = vector.shape_cast %23 : vector<1x48x32xbf16> to vector<48x32xbf16>
    %cst_26 = arith.constant dense<0.000000e+00> : vector<64x32xf32>
    %25 = tpu.matmul %22, %24, %cst_26 {dimension_numbers = #tpu.dot_dimension_numbers<[1], [0], [0], [1], [0, 0, 1, 1], [], []>} : vector<64x48xbf16>, vector<48x32xbf16>, vector<64x32xf32> -> vector<64x32xf32>
    %26 = vector.broadcast %3 : vector<1x32xf32> to vector<64x32xf32>
    %27 = arith.addf %25, %26 : vector<64x32xf32>
    %28 = vector.extract_strided_slice %16 {offsets = [0, 1, 0], sizes = [10, 8, 16], strides = [1, 1, 1]} : vector<10x10x16xbf16> to vector<10x8x16xbf16>
    %29 = vector.shape_cast %28 : vector<10x8x16xbf16> to vector<80x16xbf16>
    %30 = vector.extract_strided_slice %29 {offsets = [0, 0], sizes = [64, 16], strides = [1, 1]} : vector<80x16xbf16> to vector<64x16xbf16>
    %31 = vector.extract_strided_slice %29 {offsets = [8, 0], sizes = [64, 16], strides = [1, 1]} : vector<80x16xbf16> to vector<64x16xbf16>
    %32 = vector.extract_strided_slice %29 {offsets = [16, 0], sizes = [64, 16], strides = [1, 1]} : vector<80x16xbf16> to vector<64x16xbf16>
    %33 = tpu.concatenate %30, %31, %32 in 1 : vector<64x16xbf16>, vector<64x16xbf16>, vector<64x16xbf16> -> vector<64x48xbf16>
    %34 = vector.extract_strided_slice %2 {offsets = [1, 0, 0], sizes = [1, 48, 32], strides = [1, 1, 1]} : vector<3x48x32xbf16> to vector<1x48x32xbf16>
    %35 = vector.shape_cast %34 : vector<1x48x32xbf16> to vector<48x32xbf16>
    %cst_27 = arith.constant dense<0.000000e+00> : vector<64x32xf32>
    %36 = tpu.matmul %33, %35, %cst_27 {dimension_numbers = #tpu.dot_dimension_numbers<[1], [0], [0], [1], [0, 0, 1, 1], [], []>} : vector<64x48xbf16>, vector<48x32xbf16>, vector<64x32xf32> -> vector<64x32xf32>
    %37 = arith.addf %27, %36 : vector<64x32xf32>
    %38 = vector.extract_strided_slice %16 {offsets = [0, 2, 0], sizes = [10, 8, 16], strides = [1, 1, 1]} : vector<10x10x16xbf16> to vector<10x8x16xbf16>
    %39 = vector.shape_cast %38 : vector<10x8x16xbf16> to vector<80x16xbf16>
    %40 = vector.extract_strided_slice %39 {offsets = [0, 0], sizes = [64, 16], strides = [1, 1]} : vector<80x16xbf16> to vector<64x16xbf16>
    %41 = vector.extract_strided_slice %39 {offsets = [8, 0], sizes = [64, 16], strides = [1, 1]} : vector<80x16xbf16> to vector<64x16xbf16>
    %42 = vector.extract_strided_slice %39 {offsets = [16, 0], sizes = [64, 16], strides = [1, 1]} : vector<80x16xbf16> to vector<64x16xbf16>
    %43 = tpu.concatenate %40, %41, %42 in 1 : vector<64x16xbf16>, vector<64x16xbf16>, vector<64x16xbf16> -> vector<64x48xbf16>
    %44 = vector.extract_strided_slice %2 {offsets = [2, 0, 0], sizes = [1, 48, 32], strides = [1, 1, 1]} : vector<3x48x32xbf16> to vector<1x48x32xbf16>
    %45 = vector.shape_cast %44 : vector<1x48x32xbf16> to vector<48x32xbf16>
    %cst_28 = arith.constant dense<0.000000e+00> : vector<64x32xf32>
    %46 = tpu.matmul %43, %45, %cst_28 {dimension_numbers = #tpu.dot_dimension_numbers<[1], [0], [0], [1], [0, 0, 1, 1], [], []>} : vector<64x48xbf16>, vector<48x32xbf16>, vector<64x32xf32> -> vector<64x32xf32>
    %47 = arith.addf %37, %46 : vector<64x32xf32>
    %cst_29 = arith.constant dense<0.000000e+00> : vector<32xf32>
    %48 = vector.multi_reduction <add>, %47, %cst_29 [0] : vector<64x32xf32> to vector<32xf32>
    %49 = vector.shape_cast %48 : vector<32xf32> to vector<1x32xf32>
    %cst_30 = arith.constant 1.562500e-02 : f32
    %50 = vector.broadcast %cst_30 : f32 to vector<1x32xf32>
    %51 = arith.mulf %49, %50 : vector<1x32xf32>
    %52 = vector.broadcast %51 : vector<1x32xf32> to vector<64x32xf32>
    %53 = arith.subf %47, %52 : vector<64x32xf32>
    %54 = arith.mulf %53, %53 : vector<64x32xf32>
    %cst_31 = arith.constant dense<0.000000e+00> : vector<32xf32>
    %55 = vector.multi_reduction <add>, %54, %cst_31 [0] : vector<64x32xf32> to vector<32xf32>
    %56 = vector.shape_cast %55 : vector<32xf32> to vector<1x32xf32>
    %cst_32 = arith.constant 1.562500e-02 : f32
    %57 = vector.broadcast %cst_32 : f32 to vector<1x32xf32>
    %58 = arith.mulf %56, %57 : vector<1x32xf32>
    %cst_33 = arith.constant 9.99999974E-6 : f32
    %59 = vector.broadcast %cst_33 : f32 to vector<1x32xf32>
    %60 = arith.addf %58, %59 : vector<1x32xf32>
    %61 = math.rsqrt %60 : vector<1x32xf32>
    %62 = vector.broadcast %61 : vector<1x32xf32> to vector<64x32xf32>
    %63 = arith.mulf %53, %62 : vector<64x32xf32>
    %64 = vector.broadcast %4 : vector<1x32xf32> to vector<64x32xf32>
    %65 = arith.mulf %63, %64 : vector<64x32xf32>
    %66 = vector.broadcast %5 : vector<1x32xf32> to vector<64x32xf32>
    %67 = arith.addf %65, %66 : vector<64x32xf32>
    %cst_34 = arith.constant 0.000000e+00 : f32
    %68 = vector.broadcast %cst_34 : f32 to vector<64x32xf32>
    %69 = arith.maximumf %67, %68 : vector<64x32xf32>
    %c0_35 = arith.constant 0 : index
    %c0_36 = arith.constant 0 : index
    %c0_37 = arith.constant 0 : index
    %70 = vector.load %arg2[%c0_35, %c0_36, %c0_37] : memref<2x1x32xf32, #tpu.memory_space<vmem>>, vector<1x1x32xf32>
    %71 = vector.shape_cast %70 : vector<1x1x32xf32> to vector<1x32xf32>
    %72 = vector.broadcast %71 : vector<1x32xf32> to vector<64x32xf32>
    %73 = arith.addf %69, %72 : vector<64x32xf32>
    %74 = vector.shape_cast %73 : vector<64x32xf32> to vector<8x8x32xf32>
    %75 = arith.truncf %74 : vector<8x8x32xf32> to vector<8x8x32xbf16>
    %cst_38 = arith.constant 0.000000e+00 : bf16
    %76 = vector.broadcast %cst_38 : bf16 to vector<8x1x32xbf16>
    %77 = tpu.concatenate %76, %75, %76 in 1 : vector<8x1x32xbf16>, vector<8x8x32xbf16>, vector<8x1x32xbf16> -> vector<8x10x32xbf16>
    %cst_39 = arith.constant 0.000000e+00 : bf16
    %78 = vector.broadcast %cst_39 : bf16 to vector<1x10x32xbf16>
    %79 = tpu.concatenate %78, %77, %78 in 0 : vector<1x10x32xbf16>, vector<8x10x32xbf16>, vector<1x10x32xbf16> -> vector<10x10x32xbf16>
    %80 = vector.extract_strided_slice %79 {offsets = [0, 0, 0], sizes = [10, 8, 32], strides = [1, 1, 1]} : vector<10x10x32xbf16> to vector<10x8x32xbf16>
    %81 = vector.shape_cast %80 : vector<10x8x32xbf16> to vector<80x32xbf16>
    %82 = vector.extract_strided_slice %81 {offsets = [0, 0], sizes = [64, 32], strides = [1, 1]} : vector<80x32xbf16> to vector<64x32xbf16>
    %83 = vector.extract_strided_slice %81 {offsets = [8, 0], sizes = [64, 32], strides = [1, 1]} : vector<80x32xbf16> to vector<64x32xbf16>
    %84 = vector.extract_strided_slice %81 {offsets = [16, 0], sizes = [64, 32], strides = [1, 1]} : vector<80x32xbf16> to vector<64x32xbf16>
    %85 = tpu.concatenate %82, %83, %84 in 1 : vector<64x32xbf16>, vector<64x32xbf16>, vector<64x32xbf16> -> vector<64x96xbf16>
    %86 = vector.extract_strided_slice %6 {offsets = [0, 0, 0], sizes = [1, 96, 32], strides = [1, 1, 1]} : vector<3x96x32xbf16> to vector<1x96x32xbf16>
    %87 = vector.shape_cast %86 : vector<1x96x32xbf16> to vector<96x32xbf16>
    %cst_40 = arith.constant dense<0.000000e+00> : vector<64x32xf32>
    %88 = tpu.matmul %85, %87, %cst_40 {dimension_numbers = #tpu.dot_dimension_numbers<[1], [0], [0], [1], [0, 0, 1, 1], [], []>} : vector<64x96xbf16>, vector<96x32xbf16>, vector<64x32xf32> -> vector<64x32xf32>
    %89 = vector.broadcast %7 : vector<1x32xf32> to vector<64x32xf32>
    %90 = arith.addf %88, %89 : vector<64x32xf32>
    %91 = vector.extract_strided_slice %79 {offsets = [0, 1, 0], sizes = [10, 8, 32], strides = [1, 1, 1]} : vector<10x10x32xbf16> to vector<10x8x32xbf16>
    %92 = vector.shape_cast %91 : vector<10x8x32xbf16> to vector<80x32xbf16>
    %93 = vector.extract_strided_slice %92 {offsets = [0, 0], sizes = [64, 32], strides = [1, 1]} : vector<80x32xbf16> to vector<64x32xbf16>
    %94 = vector.extract_strided_slice %92 {offsets = [8, 0], sizes = [64, 32], strides = [1, 1]} : vector<80x32xbf16> to vector<64x32xbf16>
    %95 = vector.extract_strided_slice %92 {offsets = [16, 0], sizes = [64, 32], strides = [1, 1]} : vector<80x32xbf16> to vector<64x32xbf16>
    %96 = tpu.concatenate %93, %94, %95 in 1 : vector<64x32xbf16>, vector<64x32xbf16>, vector<64x32xbf16> -> vector<64x96xbf16>
    %97 = vector.extract_strided_slice %6 {offsets = [1, 0, 0], sizes = [1, 96, 32], strides = [1, 1, 1]} : vector<3x96x32xbf16> to vector<1x96x32xbf16>
    %98 = vector.shape_cast %97 : vector<1x96x32xbf16> to vector<96x32xbf16>
    %cst_41 = arith.constant dense<0.000000e+00> : vector<64x32xf32>
    %99 = tpu.matmul %96, %98, %cst_41 {dimension_numbers = #tpu.dot_dimension_numbers<[1], [0], [0], [1], [0, 0, 1, 1], [], []>} : vector<64x96xbf16>, vector<96x32xbf16>, vector<64x32xf32> -> vector<64x32xf32>
    %100 = arith.addf %90, %99 : vector<64x32xf32>
    %101 = vector.extract_strided_slice %79 {offsets = [0, 2, 0], sizes = [10, 8, 32], strides = [1, 1, 1]} : vector<10x10x32xbf16> to vector<10x8x32xbf16>
    %102 = vector.shape_cast %101 : vector<10x8x32xbf16> to vector<80x32xbf16>
    %103 = vector.extract_strided_slice %102 {offsets = [0, 0], sizes = [64, 32], strides = [1, 1]} : vector<80x32xbf16> to vector<64x32xbf16>
    %104 = vector.extract_strided_slice %102 {offsets = [8, 0], sizes = [64, 32], strides = [1, 1]} : vector<80x32xbf16> to vector<64x32xbf16>
    %105 = vector.extract_strided_slice %102 {offsets = [16, 0], sizes = [64, 32], strides = [1, 1]} : vector<80x32xbf16> to vector<64x32xbf16>
    %106 = tpu.concatenate %103, %104, %105 in 1 : vector<64x32xbf16>, vector<64x32xbf16>, vector<64x32xbf16> -> vector<64x96xbf16>
    %107 = vector.extract_strided_slice %6 {offsets = [2, 0, 0], sizes = [1, 96, 32], strides = [1, 1, 1]} : vector<3x96x32xbf16> to vector<1x96x32xbf16>
    %108 = vector.shape_cast %107 : vector<1x96x32xbf16> to vector<96x32xbf16>
    %cst_42 = arith.constant dense<0.000000e+00> : vector<64x32xf32>
    %109 = tpu.matmul %106, %108, %cst_42 {dimension_numbers = #tpu.dot_dimension_numbers<[1], [0], [0], [1], [0, 0, 1, 1], [], []>} : vector<64x96xbf16>, vector<96x32xbf16>, vector<64x32xf32> -> vector<64x32xf32>
    %110 = arith.addf %100, %109 : vector<64x32xf32>
    %cst_43 = arith.constant dense<0.000000e+00> : vector<32xf32>
    %111 = vector.multi_reduction <add>, %110, %cst_43 [0] : vector<64x32xf32> to vector<32xf32>
    %112 = vector.shape_cast %111 : vector<32xf32> to vector<1x32xf32>
    %cst_44 = arith.constant 1.562500e-02 : f32
    %113 = vector.broadcast %cst_44 : f32 to vector<1x32xf32>
    %114 = arith.mulf %112, %113 : vector<1x32xf32>
    %115 = vector.broadcast %114 : vector<1x32xf32> to vector<64x32xf32>
    %116 = arith.subf %110, %115 : vector<64x32xf32>
    %117 = arith.mulf %116, %116 : vector<64x32xf32>
    %cst_45 = arith.constant dense<0.000000e+00> : vector<32xf32>
    %118 = vector.multi_reduction <add>, %117, %cst_45 [0] : vector<64x32xf32> to vector<32xf32>
    %119 = vector.shape_cast %118 : vector<32xf32> to vector<1x32xf32>
    %cst_46 = arith.constant 1.562500e-02 : f32
    %120 = vector.broadcast %cst_46 : f32 to vector<1x32xf32>
    %121 = arith.mulf %119, %120 : vector<1x32xf32>
    %cst_47 = arith.constant 9.99999974E-6 : f32
    %122 = vector.broadcast %cst_47 : f32 to vector<1x32xf32>
    %123 = arith.addf %121, %122 : vector<1x32xf32>
    %124 = math.rsqrt %123 : vector<1x32xf32>
    %125 = vector.broadcast %124 : vector<1x32xf32> to vector<64x32xf32>
    %126 = arith.mulf %116, %125 : vector<64x32xf32>
    %127 = vector.broadcast %8 : vector<1x32xf32> to vector<64x32xf32>
    %128 = arith.mulf %126, %127 : vector<64x32xf32>
    %129 = vector.broadcast %9 : vector<1x32xf32> to vector<64x32xf32>
    %130 = arith.addf %128, %129 : vector<64x32xf32>
    %cst_48 = arith.constant 0.000000e+00 : f32
    %131 = vector.broadcast %cst_48 : f32 to vector<64x32xf32>
    %132 = arith.maximumf %130, %131 : vector<64x32xf32>
    %133 = vector.shape_cast %12 : vector<8x8x16xbf16> to vector<64x16xbf16>
    %cst_49 = arith.constant dense<0.000000e+00> : vector<64x32xf32>
    %134 = tpu.matmul %133, %0, %cst_49 {dimension_numbers = #tpu.dot_dimension_numbers<[1], [0], [0], [1], [0, 0, 1, 1], [], []>} : vector<64x16xbf16>, vector<16x32xbf16>, vector<64x32xf32> -> vector<64x32xf32>
    %135 = vector.broadcast %1 : vector<1x32xf32> to vector<64x32xf32>
    %136 = arith.addf %134, %135 : vector<64x32xf32>
    %137 = arith.addf %132, %136 : vector<64x32xf32>
    %138 = vector.shape_cast %137 : vector<64x32xf32> to vector<8x8x32xf32>
    %139 = vector.extract_strided_slice %138 {offsets = [0, 0, 0], sizes = [8, 1, 32], strides = [1, 1, 1]} : vector<8x8x32xf32> to vector<8x1x32xf32>
    %140 = vector.shape_cast %139 : vector<8x1x32xf32> to vector<8x32xf32>
    %141 = vector.extract_strided_slice %138 {offsets = [0, 1, 0], sizes = [8, 1, 32], strides = [1, 1, 1]} : vector<8x8x32xf32> to vector<8x1x32xf32>
    %142 = vector.shape_cast %141 : vector<8x1x32xf32> to vector<8x32xf32>
    %143 = vector.extract_strided_slice %138 {offsets = [0, 2, 0], sizes = [8, 1, 32], strides = [1, 1, 1]} : vector<8x8x32xf32> to vector<8x1x32xf32>
    %144 = vector.shape_cast %143 : vector<8x1x32xf32> to vector<8x32xf32>
    %145 = vector.extract_strided_slice %138 {offsets = [0, 3, 0], sizes = [8, 1, 32], strides = [1, 1, 1]} : vector<8x8x32xf32> to vector<8x1x32xf32>
    %146 = vector.shape_cast %145 : vector<8x1x32xf32> to vector<8x32xf32>
    %147 = vector.extract_strided_slice %138 {offsets = [0, 4, 0], sizes = [8, 1, 32], strides = [1, 1, 1]} : vector<8x8x32xf32> to vector<8x1x32xf32>
    %148 = vector.shape_cast %147 : vector<8x1x32xf32> to vector<8x32xf32>
    %149 = vector.extract_strided_slice %138 {offsets = [0, 5, 0], sizes = [8, 1, 32], strides = [1, 1, 1]} : vector<8x8x32xf32> to vector<8x1x32xf32>
    %150 = vector.shape_cast %149 : vector<8x1x32xf32> to vector<8x32xf32>
    %151 = vector.extract_strided_slice %138 {offsets = [0, 6, 0], sizes = [8, 1, 32], strides = [1, 1, 1]} : vector<8x8x32xf32> to vector<8x1x32xf32>
    %152 = vector.shape_cast %151 : vector<8x1x32xf32> to vector<8x32xf32>
    %153 = vector.extract_strided_slice %138 {offsets = [0, 7, 0], sizes = [8, 1, 32], strides = [1, 1, 1]} : vector<8x8x32xf32> to vector<8x1x32xf32>
    %154 = vector.shape_cast %153 : vector<8x1x32xf32> to vector<8x32xf32>
    %155 = tpu.concatenate %140, %142, %144, %146, %148, %150, %152, %154 in 1 : vector<8x32xf32>, vector<8x32xf32>, vector<8x32xf32>, vector<8x32xf32>, vector<8x32xf32>, vector<8x32xf32>, vector<8x32xf32>, vector<8x32xf32> -> vector<8x256xf32>
    %c0_50 = arith.constant 0 : index
    %c0_51 = arith.constant 0 : index
    %c0_52 = arith.constant 0 : index
    %156 = vector.load %arg13[%c0_50, %c0_51, %c0_52] : memref<2x8x256xf32, #tpu.memory_space<vmem>>, vector<1x8x256xf32>
    %157 = vector.shape_cast %156 : vector<1x8x256xf32> to vector<8x256xf32>
    %158 = vector.shape_cast %155 : vector<8x256xf32> to vector<1x8x256xf32>
    tpu.vector_store %arg13[%c0_50, %c0_51, %c0_52], %158 {strides = array<i32>} : memref<2x8x256xf32, #tpu.memory_space<vmem>>, vector<1x8x256xf32>,
    %c1 = arith.constant 1 : index
    %c0_53 = arith.constant 0 : index
    %c0_54 = arith.constant 0 : index
    %c0_55 = arith.constant 0 : index
    %159 = vector.load %arg1[%c1, %c0_53, %c0_54, %c0_55] : memref<2x8x8x16xf32, #tpu.memory_space<vmem>>, vector<1x8x8x16xf32>
    %160 = vector.shape_cast %159 : vector<1x8x8x16xf32> to vector<8x8x16xf32>
    %161 = arith.truncf %160 : vector<8x8x16xf32> to vector<8x8x16xbf16>
    %cst_56 = arith.constant 0.000000e+00 : bf16
    %162 = vector.broadcast %cst_56 : bf16 to vector<8x1x16xbf16>
    %163 = tpu.concatenate %162, %161, %162 in 1 : vector<8x1x16xbf16>, vector<8x8x16xbf16>, vector<8x1x16xbf16> -> vector<8x10x16xbf16>
    %cst_57 = arith.constant 0.000000e+00 : bf16
    %164 = vector.broadcast %cst_57 : bf16 to vector<1x10x16xbf16>
    %165 = tpu.concatenate %164, %163, %164 in 0 : vector<1x10x16xbf16>, vector<8x10x16xbf16>, vector<1x10x16xbf16> -> vector<10x10x16xbf16>
    %166 = vector.extract_strided_slice %165 {offsets = [0, 0, 0], sizes = [10, 8, 16], strides = [1, 1, 1]} : vector<10x10x16xbf16> to vector<10x8x16xbf16>
    %167 = vector.shape_cast %166 : vector<10x8x16xbf16> to vector<80x16xbf16>
    %168 = vector.extract_strided_slice %167 {offsets = [0, 0], sizes = [64, 16], strides = [1, 1]} : vector<80x16xbf16> to vector<64x16xbf16>
    %169 = vector.extract_strided_slice %167 {offsets = [8, 0], sizes = [64, 16], strides = [1, 1]} : vector<80x16xbf16> to vector<64x16xbf16>
    %170 = vector.extract_strided_slice %167 {offsets = [16, 0], sizes = [64, 16], strides = [1, 1]} : vector<80x16xbf16> to vector<64x16xbf16>
    %171 = tpu.concatenate %168, %169, %170 in 1 : vector<64x16xbf16>, vector<64x16xbf16>, vector<64x16xbf16> -> vector<64x48xbf16>
    %172 = vector.extract_strided_slice %2 {offsets = [0, 0, 0], sizes = [1, 48, 32], strides = [1, 1, 1]} : vector<3x48x32xbf16> to vector<1x48x32xbf16>
    %173 = vector.shape_cast %172 : vector<1x48x32xbf16> to vector<48x32xbf16>
    %cst_58 = arith.constant dense<0.000000e+00> : vector<64x32xf32>
    %174 = tpu.matmul %171, %173, %cst_58 {dimension_numbers = #tpu.dot_dimension_numbers<[1], [0], [0], [1], [0, 0, 1, 1], [], []>} : vector<64x48xbf16>, vector<48x32xbf16>, vector<64x32xf32> -> vector<64x32xf32>
    %175 = vector.broadcast %3 : vector<1x32xf32> to vector<64x32xf32>
    %176 = arith.addf %174, %175 : vector<64x32xf32>
    %177 = vector.extract_strided_slice %165 {offsets = [0, 1, 0], sizes = [10, 8, 16], strides = [1, 1, 1]} : vector<10x10x16xbf16> to vector<10x8x16xbf16>
    %178 = vector.shape_cast %177 : vector<10x8x16xbf16> to vector<80x16xbf16>
    %179 = vector.extract_strided_slice %178 {offsets = [0, 0], sizes = [64, 16], strides = [1, 1]} : vector<80x16xbf16> to vector<64x16xbf16>
    %180 = vector.extract_strided_slice %178 {offsets = [8, 0], sizes = [64, 16], strides = [1, 1]} : vector<80x16xbf16> to vector<64x16xbf16>
    %181 = vector.extract_strided_slice %178 {offsets = [16, 0], sizes = [64, 16], strides = [1, 1]} : vector<80x16xbf16> to vector<64x16xbf16>
    %182 = tpu.concatenate %179, %180, %181 in 1 : vector<64x16xbf16>, vector<64x16xbf16>, vector<64x16xbf16> -> vector<64x48xbf16>
    %183 = vector.extract_strided_slice %2 {offsets = [1, 0, 0], sizes = [1, 48, 32], strides = [1, 1, 1]} : vector<3x48x32xbf16> to vector<1x48x32xbf16>
    %184 = vector.shape_cast %183 : vector<1x48x32xbf16> to vector<48x32xbf16>
    %cst_59 = arith.constant dense<0.000000e+00> : vector<64x32xf32>
    %185 = tpu.matmul %182, %184, %cst_59 {dimension_numbers = #tpu.dot_dimension_numbers<[1], [0], [0], [1], [0, 0, 1, 1], [], []>} : vector<64x48xbf16>, vector<48x32xbf16>, vector<64x32xf32> -> vector<64x32xf32>
    %186 = arith.addf %176, %185 : vector<64x32xf32>
    %187 = vector.extract_strided_slice %165 {offsets = [0, 2, 0], sizes = [10, 8, 16], strides = [1, 1, 1]} : vector<10x10x16xbf16> to vector<10x8x16xbf16>
    %188 = vector.shape_cast %187 : vector<10x8x16xbf16> to vector<80x16xbf16>
    %189 = vector.extract_strided_slice %188 {offsets = [0, 0], sizes = [64, 16], strides = [1, 1]} : vector<80x16xbf16> to vector<64x16xbf16>
    %190 = vector.extract_strided_slice %188 {offsets = [8, 0], sizes = [64, 16], strides = [1, 1]} : vector<80x16xbf16> to vector<64x16xbf16>
    %191 = vector.extract_strided_slice %188 {offsets = [16, 0], sizes = [64, 16], strides = [1, 1]} : vector<80x16xbf16> to vector<64x16xbf16>
    %192 = tpu.concatenate %189, %190, %191 in 1 : vector<64x16xbf16>, vector<64x16xbf16>, vector<64x16xbf16> -> vector<64x48xbf16>
    %193 = vector.extract_strided_slice %2 {offsets = [2, 0, 0], sizes = [1, 48, 32], strides = [1, 1, 1]} : vector<3x48x32xbf16> to vector<1x48x32xbf16>
    %194 = vector.shape_cast %193 : vector<1x48x32xbf16> to vector<48x32xbf16>
    %cst_60 = arith.constant dense<0.000000e+00> : vector<64x32xf32>
    %195 = tpu.matmul %192, %194, %cst_60 {dimension_numbers = #tpu.dot_dimension_numbers<[1], [0], [0], [1], [0, 0, 1, 1], [], []>} : vector<64x48xbf16>, vector<48x32xbf16>, vector<64x32xf32> -> vector<64x32xf32>
    %196 = arith.addf %186, %195 : vector<64x32xf32>
    %cst_61 = arith.constant dense<0.000000e+00> : vector<32xf32>
    %197 = vector.multi_reduction <add>, %196, %cst_61 [0] : vector<64x32xf32> to vector<32xf32>
    %198 = vector.shape_cast %197 : vector<32xf32> to vector<1x32xf32>
    %cst_62 = arith.constant 1.562500e-02 : f32
    %199 = vector.broadcast %cst_62 : f32 to vector<1x32xf32>
    %200 = arith.mulf %198, %199 : vector<1x32xf32>
    %201 = vector.broadcast %200 : vector<1x32xf32> to vector<64x32xf32>
    %202 = arith.subf %196, %201 : vector<64x32xf32>
    %203 = arith.mulf %202, %202 : vector<64x32xf32>
    %cst_63 = arith.constant dense<0.000000e+00> : vector<32xf32>
    %204 = vector.multi_reduction <add>, %203, %cst_63 [0] : vector<64x32xf32> to vector<32xf32>
    %205 = vector.shape_cast %204 : vector<32xf32> to vector<1x32xf32>
    %cst_64 = arith.constant 1.562500e-02 : f32
    %206 = vector.broadcast %cst_64 : f32 to vector<1x32xf32>
    %207 = arith.mulf %205, %206 : vector<1x32xf32>
    %cst_65 = arith.constant 9.99999974E-6 : f32
    %208 = vector.broadcast %cst_65 : f32 to vector<1x32xf32>
    %209 = arith.addf %207, %208 : vector<1x32xf32>
    %210 = math.rsqrt %209 : vector<1x32xf32>
    %211 = vector.broadcast %210 : vector<1x32xf32> to vector<64x32xf32>
    %212 = arith.mulf %202, %211 : vector<64x32xf32>
    %213 = vector.broadcast %4 : vector<1x32xf32> to vector<64x32xf32>
    %214 = arith.mulf %212, %213 : vector<64x32xf32>
    %215 = vector.broadcast %5 : vector<1x32xf32> to vector<64x32xf32>
    %216 = arith.addf %214, %215 : vector<64x32xf32>
    %cst_66 = arith.constant 0.000000e+00 : f32
    %217 = vector.broadcast %cst_66 : f32 to vector<64x32xf32>
    %218 = arith.maximumf %216, %217 : vector<64x32xf32>
    %c1_67 = arith.constant 1 : index
    %c0_68 = arith.constant 0 : index
    %c0_69 = arith.constant 0 : index
    %219 = vector.load %arg2[%c1_67, %c0_68, %c0_69] : memref<2x1x32xf32, #tpu.memory_space<vmem>>, vector<1x1x32xf32>
    %220 = vector.shape_cast %219 : vector<1x1x32xf32> to vector<1x32xf32>
    %221 = vector.broadcast %220 : vector<1x32xf32> to vector<64x32xf32>
    %222 = arith.addf %218, %221 : vector<64x32xf32>
    %223 = vector.shape_cast %222 : vector<64x32xf32> to vector<8x8x32xf32>
    %224 = arith.truncf %223 : vector<8x8x32xf32> to vector<8x8x32xbf16>
    %cst_70 = arith.constant 0.000000e+00 : bf16
    %225 = vector.broadcast %cst_70 : bf16 to vector<8x1x32xbf16>
    %226 = tpu.concatenate %225, %224, %225 in 1 : vector<8x1x32xbf16>, vector<8x8x32xbf16>, vector<8x1x32xbf16> -> vector<8x10x32xbf16>
    %cst_71 = arith.constant 0.000000e+00 : bf16
    %227 = vector.broadcast %cst_71 : bf16 to vector<1x10x32xbf16>
    %228 = tpu.concatenate %227, %226, %227 in 0 : vector<1x10x32xbf16>, vector<8x10x32xbf16>, vector<1x10x32xbf16> -> vector<10x10x32xbf16>
    %229 = vector.extract_strided_slice %228 {offsets = [0, 0, 0], sizes = [10, 8, 32], strides = [1, 1, 1]} : vector<10x10x32xbf16> to vector<10x8x32xbf16>
    %230 = vector.shape_cast %229 : vector<10x8x32xbf16> to vector<80x32xbf16>
    %231 = vector.extract_strided_slice %230 {offsets = [0, 0], sizes = [64, 32], strides = [1, 1]} : vector<80x32xbf16> to vector<64x32xbf16>
    %232 = vector.extract_strided_slice %230 {offsets = [8, 0], sizes = [64, 32], strides = [1, 1]} : vector<80x32xbf16> to vector<64x32xbf16>
    %233 = vector.extract_strided_slice %230 {offsets = [16, 0], sizes = [64, 32], strides = [1, 1]} : vector<80x32xbf16> to vector<64x32xbf16>
    %234 = tpu.concatenate %231, %232, %233 in 1 : vector<64x32xbf16>, vector<64x32xbf16>, vector<64x32xbf16> -> vector<64x96xbf16>
    %235 = vector.extract_strided_slice %6 {offsets = [0, 0, 0], sizes = [1, 96, 32], strides = [1, 1, 1]} : vector<3x96x32xbf16> to vector<1x96x32xbf16>
    %236 = vector.shape_cast %235 : vector<1x96x32xbf16> to vector<96x32xbf16>
    %cst_72 = arith.constant dense<0.000000e+00> : vector<64x32xf32>
    %237 = tpu.matmul %234, %236, %cst_72 {dimension_numbers = #tpu.dot_dimension_numbers<[1], [0], [0], [1], [0, 0, 1, 1], [], []>} : vector<64x96xbf16>, vector<96x32xbf16>, vector<64x32xf32> -> vector<64x32xf32>
    %238 = vector.broadcast %7 : vector<1x32xf32> to vector<64x32xf32>
    %239 = arith.addf %237, %238 : vector<64x32xf32>
    %240 = vector.extract_strided_slice %228 {offsets = [0, 1, 0], sizes = [10, 8, 32], strides = [1, 1, 1]} : vector<10x10x32xbf16> to vector<10x8x32xbf16>
    %241 = vector.shape_cast %240 : vector<10x8x32xbf16> to vector<80x32xbf16>
    %242 = vector.extract_strided_slice %241 {offsets = [0, 0], sizes = [64, 32], strides = [1, 1]} : vector<80x32xbf16> to vector<64x32xbf16>
    %243 = vector.extract_strided_slice %241 {offsets = [8, 0], sizes = [64, 32], strides = [1, 1]} : vector<80x32xbf16> to vector<64x32xbf16>
    %244 = vector.extract_strided_slice %241 {offsets = [16, 0], sizes = [64, 32], strides = [1, 1]} : vector<80x32xbf16> to vector<64x32xbf16>
    %245 = tpu.concatenate %242, %243, %244 in 1 : vector<64x32xbf16>, vector<64x32xbf16>, vector<64x32xbf16> -> vector<64x96xbf16>
    %246 = vector.extract_strided_slice %6 {offsets = [1, 0, 0], sizes = [1, 96, 32], strides = [1, 1, 1]} : vector<3x96x32xbf16> to vector<1x96x32xbf16>
    %247 = vector.shape_cast %246 : vector<1x96x32xbf16> to vector<96x32xbf16>
    %cst_73 = arith.constant dense<0.000000e+00> : vector<64x32xf32>
    %248 = tpu.matmul %245, %247, %cst_73 {dimension_numbers = #tpu.dot_dimension_numbers<[1], [0], [0], [1], [0, 0, 1, 1], [], []>} : vector<64x96xbf16>, vector<96x32xbf16>, vector<64x32xf32> -> vector<64x32xf32>
    %249 = arith.addf %239, %248 : vector<64x32xf32>
    %250 = vector.extract_strided_slice %228 {offsets = [0, 2, 0], sizes = [10, 8, 32], strides = [1, 1, 1]} : vector<10x10x32xbf16> to vector<10x8x32xbf16>
    %251 = vector.shape_cast %250 : vector<10x8x32xbf16> to vector<80x32xbf16>
    %252 = vector.extract_strided_slice %251 {offsets = [0, 0], sizes = [64, 32], strides = [1, 1]} : vector<80x32xbf16> to vector<64x32xbf16>
    %253 = vector.extract_strided_slice %251 {offsets = [8, 0], sizes = [64, 32], strides = [1, 1]} : vector<80x32xbf16> to vector<64x32xbf16>
    %254 = vector.extract_strided_slice %251 {offsets = [16, 0], sizes = [64, 32], strides = [1, 1]} : vector<80x32xbf16> to vector<64x32xbf16>
    %255 = tpu.concatenate %252, %253, %254 in 1 : vector<64x32xbf16>, vector<64x32xbf16>, vector<64x32xbf16> -> vector<64x96xbf16>
    %256 = vector.extract_strided_slice %6 {offsets = [2, 0, 0], sizes = [1, 96, 32], strides = [1, 1, 1]} : vector<3x96x32xbf16> to vector<1x96x32xbf16>
    %257 = vector.shape_cast %256 : vector<1x96x32xbf16> to vector<96x32xbf16>
    %cst_74 = arith.constant dense<0.000000e+00> : vector<64x32xf32>
    %258 = tpu.matmul %255, %257, %cst_74 {dimension_numbers = #tpu.dot_dimension_numbers<[1], [0], [0], [1], [0, 0, 1, 1], [], []>} : vector<64x96xbf16>, vector<96x32xbf16>, vector<64x32xf32> -> vector<64x32xf32>
    %259 = arith.addf %249, %258 : vector<64x32xf32>
    %cst_75 = arith.constant dense<0.000000e+00> : vector<32xf32>
    %260 = vector.multi_reduction <add>, %259, %cst_75 [0] : vector<64x32xf32> to vector<32xf32>
    %261 = vector.shape_cast %260 : vector<32xf32> to vector<1x32xf32>
    %cst_76 = arith.constant 1.562500e-02 : f32
    %262 = vector.broadcast %cst_76 : f32 to vector<1x32xf32>
    %263 = arith.mulf %261, %262 : vector<1x32xf32>
    %264 = vector.broadcast %263 : vector<1x32xf32> to vector<64x32xf32>
    %265 = arith.subf %259, %264 : vector<64x32xf32>
    %266 = arith.mulf %265, %265 : vector<64x32xf32>
    %cst_77 = arith.constant dense<0.000000e+00> : vector<32xf32>
    %267 = vector.multi_reduction <add>, %266, %cst_77 [0] : vector<64x32xf32> to vector<32xf32>
    %268 = vector.shape_cast %267 : vector<32xf32> to vector<1x32xf32>
    %cst_78 = arith.constant 1.562500e-02 : f32
    %269 = vector.broadcast %cst_78 : f32 to vector<1x32xf32>
    %270 = arith.mulf %268, %269 : vector<1x32xf32>
    %cst_79 = arith.constant 9.99999974E-6 : f32
    %271 = vector.broadcast %cst_79 : f32 to vector<1x32xf32>
    %272 = arith.addf %270, %271 : vector<1x32xf32>
    %273 = math.rsqrt %272 : vector<1x32xf32>
    %274 = vector.broadcast %273 : vector<1x32xf32> to vector<64x32xf32>
    %275 = arith.mulf %265, %274 : vector<64x32xf32>
    %276 = vector.broadcast %8 : vector<1x32xf32> to vector<64x32xf32>
    %277 = arith.mulf %275, %276 : vector<64x32xf32>
    %278 = vector.broadcast %9 : vector<1x32xf32> to vector<64x32xf32>
    %279 = arith.addf %277, %278 : vector<64x32xf32>
    %cst_80 = arith.constant 0.000000e+00 : f32
    %280 = vector.broadcast %cst_80 : f32 to vector<64x32xf32>
    %281 = arith.maximumf %279, %280 : vector<64x32xf32>
    %282 = vector.shape_cast %161 : vector<8x8x16xbf16> to vector<64x16xbf16>
    %cst_81 = arith.constant dense<0.000000e+00> : vector<64x32xf32>
    %283 = tpu.matmul %282, %0, %cst_81 {dimension_numbers = #tpu.dot_dimension_numbers<[1], [0], [0], [1], [0, 0, 1, 1], [], []>} : vector<64x16xbf16>, vector<16x32xbf16>, vector<64x32xf32> -> vector<64x32xf32>
    %284 = vector.broadcast %1 : vector<1x32xf32> to vector<64x32xf32>
    %285 = arith.addf %283, %284 : vector<64x32xf32>
    %286 = arith.addf %281, %285 : vector<64x32xf32>
    %287 = vector.shape_cast %286 : vector<64x32xf32> to vector<8x8x32xf32>
    %288 = vector.extract_strided_slice %287 {offsets = [0, 0, 0], sizes = [8, 1, 32], strides = [1, 1, 1]} : vector<8x8x32xf32> to vector<8x1x32xf32>
    %289 = vector.shape_cast %288 : vector<8x1x32xf32> to vector<8x32xf32>
    %290 = vector.extract_strided_slice %287 {offsets = [0, 1, 0], sizes = [8, 1, 32], strides = [1, 1, 1]} : vector<8x8x32xf32> to vector<8x1x32xf32>
    %291 = vector.shape_cast %290 : vector<8x1x32xf32> to vector<8x32xf32>
    %292 = vector.extract_strided_slice %287 {offsets = [0, 2, 0], sizes = [8, 1, 32], strides = [1, 1, 1]} : vector<8x8x32xf32> to vector<8x1x32xf32>
    %293 = vector.shape_cast %292 : vector<8x1x32xf32> to vector<8x32xf32>
    %294 = vector.extract_strided_slice %287 {offsets = [0, 3, 0], sizes = [8, 1, 32], strides = [1, 1, 1]} : vector<8x8x32xf32> to vector<8x1x32xf32>
    %295 = vector.shape_cast %294 : vector<8x1x32xf32> to vector<8x32xf32>
    %296 = vector.extract_strided_slice %287 {offsets = [0, 4, 0], sizes = [8, 1, 32], strides = [1, 1, 1]} : vector<8x8x32xf32> to vector<8x1x32xf32>
    %297 = vector.shape_cast %296 : vector<8x1x32xf32> to vector<8x32xf32>
    %298 = vector.extract_strided_slice %287 {offsets = [0, 5, 0], sizes = [8, 1, 32], strides = [1, 1, 1]} : vector<8x8x32xf32> to vector<8x1x32xf32>
    %299 = vector.shape_cast %298 : vector<8x1x32xf32> to vector<8x32xf32>
    %300 = vector.extract_strided_slice %287 {offsets = [0, 6, 0], sizes = [8, 1, 32], strides = [1, 1, 1]} : vector<8x8x32xf32> to vector<8x1x32xf32>
    %301 = vector.shape_cast %300 : vector<8x1x32xf32> to vector<8x32xf32>
    %302 = vector.extract_strided_slice %287 {offsets = [0, 7, 0], sizes = [8, 1, 32], strides = [1, 1, 1]} : vector<8x8x32xf32> to vector<8x1x32xf32>
    %303 = vector.shape_cast %302 : vector<8x1x32xf32> to vector<8x32xf32>
    %304 = tpu.concatenate %289, %291, %293, %295, %297, %299, %301, %303 in 1 : vector<8x32xf32>, vector<8x32xf32>, vector<8x32xf32>, vector<8x32xf32>, vector<8x32xf32>, vector<8x32xf32>, vector<8x32xf32>, vector<8x32xf32> -> vector<8x256xf32>
    %c1_82 = arith.constant 1 : index
    %c0_83 = arith.constant 0 : index
    %c0_84 = arith.constant 0 : index
    %305 = vector.load %arg13[%c1_82, %c0_83, %c0_84] : memref<2x8x256xf32, #tpu.memory_space<vmem>>, vector<1x8x256xf32>
    %306 = vector.shape_cast %305 : vector<1x8x256xf32> to vector<8x256xf32>
    %307 = vector.shape_cast %304 : vector<8x256xf32> to vector<1x8x256xf32>
    tpu.vector_store %arg13[%c1_82, %c0_83, %c0_84], %307 {strides = array<i32>} : memref<2x8x256xf32, #tpu.memory_space<vmem>>, vector<1x8x256xf32>,
    return
  }
  func.func @transform_0(%arg0: i32) -> (i32, i32, i32, i32) {
    %c0_i32 = arith.constant 0 : i32
    %c0_i32_0 = arith.constant 0 : i32
    %c0_i32_1 = arith.constant 0 : i32
    %c0_i32_2 = arith.constant 0 : i32
    return %arg0, %c0_i32, %c0_i32_0, %c0_i32_1 : i32, i32, i32, i32
  }
  func.func @transform_1(%arg0: i32) -> (i32, i32, i32) {
    %c0_i32 = arith.constant 0 : i32
    %c0_i32_0 = arith.constant 0 : i32
    %c0_i32_1 = arith.constant 0 : i32
    return %arg0, %c0_i32, %c0_i32_0 : i32, i32, i32
  }
  func.func @transform_2(%arg0: i32) -> (i32, i32, i32) {
    %c0_i32 = arith.constant 0 : i32
    %c0_i32_0 = arith.constant 0 : i32
    %c0_i32_1 = arith.constant 0 : i32
    %c0_i32_2 = arith.constant 0 : i32
    return %c0_i32, %c0_i32_0, %c0_i32_1 : i32, i32, i32
  }
  func.func @transform_3(%arg0: i32) -> (i32, i32) {
    %c0_i32 = arith.constant 0 : i32
    %c0_i32_0 = arith.constant 0 : i32
    %c0_i32_1 = arith.constant 0 : i32
    return %c0_i32, %c0_i32_0 : i32, i32
  }
  func.func @transform_4(%arg0: i32) -> (i32, i32) {
    %c0_i32 = arith.constant 0 : i32
    %c0_i32_0 = arith.constant 0 : i32
    %c0_i32_1 = arith.constant 0 : i32
    return %c0_i32, %c0_i32_0 : i32, i32
  }
  func.func @transform_5(%arg0: i32) -> (i32, i32) {
    %c0_i32 = arith.constant 0 : i32
    %c0_i32_0 = arith.constant 0 : i32
    %c0_i32_1 = arith.constant 0 : i32
    return %c0_i32, %c0_i32_0 : i32, i32
  }
  func.func @transform_6(%arg0: i32) -> (i32, i32, i32) {
    %c0_i32 = arith.constant 0 : i32
    %c0_i32_0 = arith.constant 0 : i32
    %c0_i32_1 = arith.constant 0 : i32
    %c0_i32_2 = arith.constant 0 : i32
    return %c0_i32, %c0_i32_0, %c0_i32_1 : i32, i32, i32
  }
  func.func @transform_7(%arg0: i32) -> (i32, i32) {
    %c0_i32 = arith.constant 0 : i32
    %c0_i32_0 = arith.constant 0 : i32
    %c0_i32_1 = arith.constant 0 : i32
    return %c0_i32, %c0_i32_0 : i32, i32
  }
  func.func @transform_8(%arg0: i32) -> (i32, i32) {
    %c0_i32 = arith.constant 0 : i32
    %c0_i32_0 = arith.constant 0 : i32
    %c0_i32_1 = arith.constant 0 : i32
    return %c0_i32, %c0_i32_0 : i32, i32
  }
  func.func @transform_9(%arg0: i32) -> (i32, i32) {
    %c0_i32 = arith.constant 0 : i32
    %c0_i32_0 = arith.constant 0 : i32
    %c0_i32_1 = arith.constant 0 : i32
    return %c0_i32, %c0_i32_0 : i32, i32
  }
  func.func @transform_10(%arg0: i32) -> (i32, i32) {
    %c0_i32 = arith.constant 0 : i32
    %c0_i32_0 = arith.constant 0 : i32
    %c0_i32_1 = arith.constant 0 : i32
    return %c0_i32, %c0_i32_0 : i32, i32
  }
  func.func @transform_11(%arg0: i32) -> (i32, i32) {
    %c0_i32 = arith.constant 0 : i32
    %c0_i32_0 = arith.constant 0 : i32
    %c0_i32_1 = arith.constant 0 : i32
    return %c0_i32, %c0_i32_0 : i32, i32
  }
  func.func @transform_12(%arg0: i32) -> (i32, i32, i32) {
    %c0_i32 = arith.constant 0 : i32
    %c0_i32_0 = arith.constant 0 : i32
    %c0_i32_1 = arith.constant 0 : i32
    return %arg0, %c0_i32, %c0_i32_0 : i32, i32, i32
  }
}

module attributes {stable_mosaic.version = 11 : i64} {
  func.func @_resblock_kernel(%arg0: i32, %arg1: memref<2x8x8x16xf32, #tpu.memory_space<vmem>>, %arg2: memref<2x1x32xf32, #tpu.memory_space<vmem>>, %arg3: memref<3x48x32xbf16, #tpu.memory_space<vmem>>, %arg4: memref<1x32xf32, #tpu.memory_space<vmem>>, %arg5: memref<1x32xf32, #tpu.memory_space<vmem>>, %arg6: memref<1x32xf32, #tpu.memory_space<vmem>>, %arg7: memref<3x96x32xbf16, #tpu.memory_space<vmem>>, %arg8: memref<1x32xf32, #tpu.memory_space<vmem>>, %arg9: memref<1x32xf32, #tpu.memory_space<vmem>>, %arg10: memref<1x32xf32, #tpu.memory_space<vmem>>, %arg11: memref<16x32xbf16, #tpu.memory_space<vmem>>, %arg12: memref<1x32xf32, #tpu.memory_space<vmem>>, %arg13: memref<2x8x8x32xf32, #tpu.memory_space<vmem>>, %arg14: memref<10x10x16xf32, #tpu.memory_space<vmem>>, %arg15: memref<10x10x32xf32, #tpu.memory_space<vmem>>) attributes {dimension_semantics = [#tpu.dimension_semantics<parallel>], iteration_bounds = array<i64: 1>, scalar_prefetch = 0 : i64, scratch_operands = 2 : i64, tpu.core_type = #tpu.core_type<tc>, window_params = [{transform_indices = @transform_0, window_bounds = array<i64: 2, 8, 8, 16>}, {transform_indices = @transform_1, window_bounds = array<i64: 2, 1, 32>}, {pipeline_mode = #tpu.pipeline_mode<synchronous>, transform_indices = @transform_2, window_bounds = array<i64: 3, 48, 32>}, {pipeline_mode = #tpu.pipeline_mode<synchronous>, transform_indices = @transform_3, window_bounds = array<i64: 1, 32>}, {pipeline_mode = #tpu.pipeline_mode<synchronous>, transform_indices = @transform_4, window_bounds = array<i64: 1, 32>}, {pipeline_mode = #tpu.pipeline_mode<synchronous>, transform_indices = @transform_5, window_bounds = array<i64: 1, 32>}, {pipeline_mode = #tpu.pipeline_mode<synchronous>, transform_indices = @transform_6, window_bounds = array<i64: 3, 96, 32>}, {pipeline_mode = #tpu.pipeline_mode<synchronous>, transform_indices = @transform_7, window_bounds = array<i64: 1, 32>}, {pipeline_mode = #tpu.pipeline_mode<synchronous>, transform_indices = @transform_8, window_bounds = array<i64: 1, 32>}, {pipeline_mode = #tpu.pipeline_mode<synchronous>, transform_indices = @transform_9, window_bounds = array<i64: 1, 32>}, {pipeline_mode = #tpu.pipeline_mode<synchronous>, transform_indices = @transform_10, window_bounds = array<i64: 16, 32>}, {pipeline_mode = #tpu.pipeline_mode<synchronous>, transform_indices = @transform_11, window_bounds = array<i64: 1, 32>}, {transform_indices = @transform_12, window_bounds = array<i64: 2, 8, 8, 32>}]} {
    %c0 = arith.constant 0 : index
    %c0_0 = arith.constant 0 : index
    %0 = vector.load %arg11[%c0, %c0_0] : memref<16x32xbf16, #tpu.memory_space<vmem>>, vector<16x32xbf16>
    %c0_1 = arith.constant 0 : index
    %c0_2 = arith.constant 0 : index
    %1 = vector.load %arg12[%c0_1, %c0_2] : memref<1x32xf32, #tpu.memory_space<vmem>>, vector<1x32xf32>
    %c0_3 = arith.constant 0 : index
    %c0_4 = arith.constant 0 : index
    %c0_5 = arith.constant 0 : index
    %2 = vector.load %arg3[%c0_3, %c0_4, %c0_5] : memref<3x48x32xbf16, #tpu.memory_space<vmem>>, vector<3x48x32xbf16>
    %c0_6 = arith.constant 0 : index
    %c0_7 = arith.constant 0 : index
    %3 = vector.load %arg4[%c0_6, %c0_7] : memref<1x32xf32, #tpu.memory_space<vmem>>, vector<1x32xf32>
    %c0_8 = arith.constant 0 : index
    %c0_9 = arith.constant 0 : index
    %4 = vector.load %arg5[%c0_8, %c0_9] : memref<1x32xf32, #tpu.memory_space<vmem>>, vector<1x32xf32>
    %c0_10 = arith.constant 0 : index
    %c0_11 = arith.constant 0 : index
    %5 = vector.load %arg6[%c0_10, %c0_11] : memref<1x32xf32, #tpu.memory_space<vmem>>, vector<1x32xf32>
    %c0_12 = arith.constant 0 : index
    %c0_13 = arith.constant 0 : index
    %c0_14 = arith.constant 0 : index
    %6 = vector.load %arg7[%c0_12, %c0_13, %c0_14] : memref<3x96x32xbf16, #tpu.memory_space<vmem>>, vector<3x96x32xbf16>
    %c0_15 = arith.constant 0 : index
    %c0_16 = arith.constant 0 : index
    %7 = vector.load %arg8[%c0_15, %c0_16] : memref<1x32xf32, #tpu.memory_space<vmem>>, vector<1x32xf32>
    %c0_17 = arith.constant 0 : index
    %c0_18 = arith.constant 0 : index
    %8 = vector.load %arg9[%c0_17, %c0_18] : memref<1x32xf32, #tpu.memory_space<vmem>>, vector<1x32xf32>
    %c0_19 = arith.constant 0 : index
    %c0_20 = arith.constant 0 : index
    %9 = vector.load %arg10[%c0_19, %c0_20] : memref<1x32xf32, #tpu.memory_space<vmem>>, vector<1x32xf32>
    %cst = arith.constant 0.000000e+00 : f32
    %10 = vector.broadcast %cst : f32 to vector<1x10x16xf32>
    %cst_21 = arith.constant 0.000000e+00 : f32
    %11 = vector.broadcast %cst_21 : f32 to vector<10x1x16xf32>
    %c0_22 = arith.constant 0 : index
    %c0_23 = arith.constant 0 : index
    %c0_24 = arith.constant 0 : index
    %12 = vector.load %arg14[%c0_22, %c0_23, %c0_24] : memref<10x10x16xf32, #tpu.memory_space<vmem>>, vector<1x10x16xf32>
    tpu.vector_store %arg14[%c0_22, %c0_23, %c0_24], %10 {strides = array<i32>} : memref<10x10x16xf32, #tpu.memory_space<vmem>>, vector<1x10x16xf32>,
    %c9 = arith.constant 9 : index
    %c0_25 = arith.constant 0 : index
    %c0_26 = arith.constant 0 : index
    %13 = vector.load %arg14[%c9, %c0_25, %c0_26] : memref<10x10x16xf32, #tpu.memory_space<vmem>>, vector<1x10x16xf32>
    tpu.vector_store %arg14[%c9, %c0_25, %c0_26], %10 {strides = array<i32>} : memref<10x10x16xf32, #tpu.memory_space<vmem>>, vector<1x10x16xf32>,
    %c0_27 = arith.constant 0 : index
    %c0_28 = arith.constant 0 : index
    %c0_29 = arith.constant 0 : index
    %14 = vector.load %arg14[%c0_27, %c0_28, %c0_29] : memref<10x10x16xf32, #tpu.memory_space<vmem>>, vector<10x1x16xf32>
    tpu.vector_store %arg14[%c0_27, %c0_28, %c0_29], %11 {strides = array<i32>} : memref<10x10x16xf32, #tpu.memory_space<vmem>>, vector<10x1x16xf32>,
    %c0_30 = arith.constant 0 : index
    %c9_31 = arith.constant 9 : index
    %c0_32 = arith.constant 0 : index
    %15 = vector.load %arg14[%c0_30, %c9_31, %c0_32] : memref<10x10x16xf32, #tpu.memory_space<vmem>>, vector<10x1x16xf32>
    tpu.vector_store %arg14[%c0_30, %c9_31, %c0_32], %11 {strides = array<i32>} : memref<10x10x16xf32, #tpu.memory_space<vmem>>, vector<10x1x16xf32>,
    %cst_33 = arith.constant 0.000000e+00 : f32
    %16 = vector.broadcast %cst_33 : f32 to vector<1x10x32xf32>
    %cst_34 = arith.constant 0.000000e+00 : f32
    %17 = vector.broadcast %cst_34 : f32 to vector<10x1x32xf32>
    %c0_35 = arith.constant 0 : index
    %c0_36 = arith.constant 0 : index
    %c0_37 = arith.constant 0 : index
    %18 = vector.load %arg15[%c0_35, %c0_36, %c0_37] : memref<10x10x32xf32, #tpu.memory_space<vmem>>, vector<1x10x32xf32>
    tpu.vector_store %arg15[%c0_35, %c0_36, %c0_37], %16 {strides = array<i32>} : memref<10x10x32xf32, #tpu.memory_space<vmem>>, vector<1x10x32xf32>,
    %c9_38 = arith.constant 9 : index
    %c0_39 = arith.constant 0 : index
    %c0_40 = arith.constant 0 : index
    %19 = vector.load %arg15[%c9_38, %c0_39, %c0_40] : memref<10x10x32xf32, #tpu.memory_space<vmem>>, vector<1x10x32xf32>
    tpu.vector_store %arg15[%c9_38, %c0_39, %c0_40], %16 {strides = array<i32>} : memref<10x10x32xf32, #tpu.memory_space<vmem>>, vector<1x10x32xf32>,
    %c0_41 = arith.constant 0 : index
    %c0_42 = arith.constant 0 : index
    %c0_43 = arith.constant 0 : index
    %20 = vector.load %arg15[%c0_41, %c0_42, %c0_43] : memref<10x10x32xf32, #tpu.memory_space<vmem>>, vector<10x1x32xf32>
    tpu.vector_store %arg15[%c0_41, %c0_42, %c0_43], %17 {strides = array<i32>} : memref<10x10x32xf32, #tpu.memory_space<vmem>>, vector<10x1x32xf32>,
    %c0_44 = arith.constant 0 : index
    %c9_45 = arith.constant 9 : index
    %c0_46 = arith.constant 0 : index
    %21 = vector.load %arg15[%c0_44, %c9_45, %c0_46] : memref<10x10x32xf32, #tpu.memory_space<vmem>>, vector<10x1x32xf32>
    tpu.vector_store %arg15[%c0_44, %c9_45, %c0_46], %17 {strides = array<i32>} : memref<10x10x32xf32, #tpu.memory_space<vmem>>, vector<10x1x32xf32>,
    %c0_47 = arith.constant 0 : index
    %c0_48 = arith.constant 0 : index
    %c0_49 = arith.constant 0 : index
    %c0_50 = arith.constant 0 : index
    %22 = vector.load %arg1[%c0_47, %c0_48, %c0_49, %c0_50] : memref<2x8x8x16xf32, #tpu.memory_space<vmem>>, vector<1x8x8x16xf32>
    %23 = vector.shape_cast %22 : vector<1x8x8x16xf32> to vector<8x8x16xf32>
    %24 = arith.truncf %23 : vector<8x8x16xf32> to vector<8x8x16xbf16>
    %c1 = arith.constant 1 : index
    %c1_51 = arith.constant 1 : index
    %c0_52 = arith.constant 0 : index
    %25 = vector.load %arg14[%c1, %c1_51, %c0_52] : memref<10x10x16xf32, #tpu.memory_space<vmem>>, vector<8x8x16xf32>
    tpu.vector_store %arg14[%c1, %c1_51, %c0_52], %23 {strides = array<i32>} : memref<10x10x16xf32, #tpu.memory_space<vmem>>, vector<8x8x16xf32>,
    %c0_53 = arith.constant 0 : index
    %c0_54 = arith.constant 0 : index
    %c0_55 = arith.constant 0 : index
    %26 = vector.load %arg14[%c0_53, %c0_54, %c0_55] : memref<10x10x16xf32, #tpu.memory_space<vmem>>, vector<10x8x16xf32>
    %27 = arith.truncf %26 : vector<10x8x16xf32> to vector<10x8x16xbf16>
    %28 = vector.shape_cast %27 : vector<10x8x16xbf16> to vector<80x16xbf16>
    %29 = vector.extract_strided_slice %28 {offsets = [0, 0], sizes = [64, 16], strides = [1, 1]} : vector<80x16xbf16> to vector<64x16xbf16>
    %30 = vector.extract_strided_slice %2 {offsets = [0, 0, 0], sizes = [1, 16, 32], strides = [1, 1, 1]} : vector<3x48x32xbf16> to vector<1x16x32xbf16>
    %31 = vector.shape_cast %30 : vector<1x16x32xbf16> to vector<16x32xbf16>
    %cst_56 = arith.constant dense<0.000000e+00> : vector<64x32xf32>
    %32 = tpu.matmul %29, %31, %cst_56 {dimension_numbers = #tpu.dot_dimension_numbers<[1], [0], [0], [1], [0, 0, 1, 1], [], []>} : vector<64x16xbf16>, vector<16x32xbf16>, vector<64x32xf32> -> vector<64x32xf32>
    %33 = vector.broadcast %3 : vector<1x32xf32> to vector<64x32xf32>
    %34 = arith.addf %32, %33 : vector<64x32xf32>
    %35 = vector.extract_strided_slice %28 {offsets = [8, 0], sizes = [64, 16], strides = [1, 1]} : vector<80x16xbf16> to vector<64x16xbf16>
    %36 = vector.extract_strided_slice %2 {offsets = [0, 16, 0], sizes = [1, 16, 32], strides = [1, 1, 1]} : vector<3x48x32xbf16> to vector<1x16x32xbf16>
    %37 = vector.shape_cast %36 : vector<1x16x32xbf16> to vector<16x32xbf16>
    %cst_57 = arith.constant dense<0.000000e+00> : vector<64x32xf32>
    %38 = tpu.matmul %35, %37, %cst_57 {dimension_numbers = #tpu.dot_dimension_numbers<[1], [0], [0], [1], [0, 0, 1, 1], [], []>} : vector<64x16xbf16>, vector<16x32xbf16>, vector<64x32xf32> -> vector<64x32xf32>
    %39 = arith.addf %34, %38 : vector<64x32xf32>
    %40 = vector.extract_strided_slice %28 {offsets = [16, 0], sizes = [64, 16], strides = [1, 1]} : vector<80x16xbf16> to vector<64x16xbf16>
    %41 = vector.extract_strided_slice %2 {offsets = [0, 32, 0], sizes = [1, 16, 32], strides = [1, 1, 1]} : vector<3x48x32xbf16> to vector<1x16x32xbf16>
    %42 = vector.shape_cast %41 : vector<1x16x32xbf16> to vector<16x32xbf16>
    %cst_58 = arith.constant dense<0.000000e+00> : vector<64x32xf32>
    %43 = tpu.matmul %40, %42, %cst_58 {dimension_numbers = #tpu.dot_dimension_numbers<[1], [0], [0], [1], [0, 0, 1, 1], [], []>} : vector<64x16xbf16>, vector<16x32xbf16>, vector<64x32xf32> -> vector<64x32xf32>
    %44 = arith.addf %39, %43 : vector<64x32xf32>
    %c0_59 = arith.constant 0 : index
    %c1_60 = arith.constant 1 : index
    %c0_61 = arith.constant 0 : index
    %45 = vector.load %arg14[%c0_59, %c1_60, %c0_61] : memref<10x10x16xf32, #tpu.memory_space<vmem>>, vector<10x8x16xf32>
    %46 = arith.truncf %45 : vector<10x8x16xf32> to vector<10x8x16xbf16>
    %47 = vector.shape_cast %46 : vector<10x8x16xbf16> to vector<80x16xbf16>
    %48 = vector.extract_strided_slice %47 {offsets = [0, 0], sizes = [64, 16], strides = [1, 1]} : vector<80x16xbf16> to vector<64x16xbf16>
    %49 = vector.extract_strided_slice %2 {offsets = [1, 0, 0], sizes = [1, 16, 32], strides = [1, 1, 1]} : vector<3x48x32xbf16> to vector<1x16x32xbf16>
    %50 = vector.shape_cast %49 : vector<1x16x32xbf16> to vector<16x32xbf16>
    %cst_62 = arith.constant dense<0.000000e+00> : vector<64x32xf32>
    %51 = tpu.matmul %48, %50, %cst_62 {dimension_numbers = #tpu.dot_dimension_numbers<[1], [0], [0], [1], [0, 0, 1, 1], [], []>} : vector<64x16xbf16>, vector<16x32xbf16>, vector<64x32xf32> -> vector<64x32xf32>
    %52 = arith.addf %44, %51 : vector<64x32xf32>
    %53 = vector.extract_strided_slice %47 {offsets = [8, 0], sizes = [64, 16], strides = [1, 1]} : vector<80x16xbf16> to vector<64x16xbf16>
    %54 = vector.extract_strided_slice %2 {offsets = [1, 16, 0], sizes = [1, 16, 32], strides = [1, 1, 1]} : vector<3x48x32xbf16> to vector<1x16x32xbf16>
    %55 = vector.shape_cast %54 : vector<1x16x32xbf16> to vector<16x32xbf16>
    %cst_63 = arith.constant dense<0.000000e+00> : vector<64x32xf32>
    %56 = tpu.matmul %53, %55, %cst_63 {dimension_numbers = #tpu.dot_dimension_numbers<[1], [0], [0], [1], [0, 0, 1, 1], [], []>} : vector<64x16xbf16>, vector<16x32xbf16>, vector<64x32xf32> -> vector<64x32xf32>
    %57 = arith.addf %52, %56 : vector<64x32xf32>
    %58 = vector.extract_strided_slice %47 {offsets = [16, 0], sizes = [64, 16], strides = [1, 1]} : vector<80x16xbf16> to vector<64x16xbf16>
    %59 = vector.extract_strided_slice %2 {offsets = [1, 32, 0], sizes = [1, 16, 32], strides = [1, 1, 1]} : vector<3x48x32xbf16> to vector<1x16x32xbf16>
    %60 = vector.shape_cast %59 : vector<1x16x32xbf16> to vector<16x32xbf16>
    %cst_64 = arith.constant dense<0.000000e+00> : vector<64x32xf32>
    %61 = tpu.matmul %58, %60, %cst_64 {dimension_numbers = #tpu.dot_dimension_numbers<[1], [0], [0], [1], [0, 0, 1, 1], [], []>} : vector<64x16xbf16>, vector<16x32xbf16>, vector<64x32xf32> -> vector<64x32xf32>
    %62 = arith.addf %57, %61 : vector<64x32xf32>
    %c0_65 = arith.constant 0 : index
    %c2 = arith.constant 2 : index
    %c0_66 = arith.constant 0 : index
    %63 = vector.load %arg14[%c0_65, %c2, %c0_66] : memref<10x10x16xf32, #tpu.memory_space<vmem>>, vector<10x8x16xf32>
    %64 = arith.truncf %63 : vector<10x8x16xf32> to vector<10x8x16xbf16>
    %65 = vector.shape_cast %64 : vector<10x8x16xbf16> to vector<80x16xbf16>
    %66 = vector.extract_strided_slice %65 {offsets = [0, 0], sizes = [64, 16], strides = [1, 1]} : vector<80x16xbf16> to vector<64x16xbf16>
    %67 = vector.extract_strided_slice %2 {offsets = [2, 0, 0], sizes = [1, 16, 32], strides = [1, 1, 1]} : vector<3x48x32xbf16> to vector<1x16x32xbf16>
    %68 = vector.shape_cast %67 : vector<1x16x32xbf16> to vector<16x32xbf16>
    %cst_67 = arith.constant dense<0.000000e+00> : vector<64x32xf32>
    %69 = tpu.matmul %66, %68, %cst_67 {dimension_numbers = #tpu.dot_dimension_numbers<[1], [0], [0], [1], [0, 0, 1, 1], [], []>} : vector<64x16xbf16>, vector<16x32xbf16>, vector<64x32xf32> -> vector<64x32xf32>
    %70 = arith.addf %62, %69 : vector<64x32xf32>
    %71 = vector.extract_strided_slice %65 {offsets = [8, 0], sizes = [64, 16], strides = [1, 1]} : vector<80x16xbf16> to vector<64x16xbf16>
    %72 = vector.extract_strided_slice %2 {offsets = [2, 16, 0], sizes = [1, 16, 32], strides = [1, 1, 1]} : vector<3x48x32xbf16> to vector<1x16x32xbf16>
    %73 = vector.shape_cast %72 : vector<1x16x32xbf16> to vector<16x32xbf16>
    %cst_68 = arith.constant dense<0.000000e+00> : vector<64x32xf32>
    %74 = tpu.matmul %71, %73, %cst_68 {dimension_numbers = #tpu.dot_dimension_numbers<[1], [0], [0], [1], [0, 0, 1, 1], [], []>} : vector<64x16xbf16>, vector<16x32xbf16>, vector<64x32xf32> -> vector<64x32xf32>
    %75 = arith.addf %70, %74 : vector<64x32xf32>
    %76 = vector.extract_strided_slice %65 {offsets = [16, 0], sizes = [64, 16], strides = [1, 1]} : vector<80x16xbf16> to vector<64x16xbf16>
    %77 = vector.extract_strided_slice %2 {offsets = [2, 32, 0], sizes = [1, 16, 32], strides = [1, 1, 1]} : vector<3x48x32xbf16> to vector<1x16x32xbf16>
    %78 = vector.shape_cast %77 : vector<1x16x32xbf16> to vector<16x32xbf16>
    %cst_69 = arith.constant dense<0.000000e+00> : vector<64x32xf32>
    %79 = tpu.matmul %76, %78, %cst_69 {dimension_numbers = #tpu.dot_dimension_numbers<[1], [0], [0], [1], [0, 0, 1, 1], [], []>} : vector<64x16xbf16>, vector<16x32xbf16>, vector<64x32xf32> -> vector<64x32xf32>
    %80 = arith.addf %75, %79 : vector<64x32xf32>
    %cst_70 = arith.constant dense<0.000000e+00> : vector<32xf32>
    %81 = vector.multi_reduction <add>, %80, %cst_70 [0] : vector<64x32xf32> to vector<32xf32>
    %82 = vector.shape_cast %81 : vector<32xf32> to vector<1x32xf32>
    %cst_71 = arith.constant 1.562500e-02 : f32
    %83 = vector.broadcast %cst_71 : f32 to vector<1x32xf32>
    %84 = arith.mulf %82, %83 : vector<1x32xf32>
    %85 = vector.broadcast %84 : vector<1x32xf32> to vector<64x32xf32>
    %86 = arith.subf %80, %85 : vector<64x32xf32>
    %87 = arith.mulf %86, %86 : vector<64x32xf32>
    %cst_72 = arith.constant dense<0.000000e+00> : vector<32xf32>
    %88 = vector.multi_reduction <add>, %87, %cst_72 [0] : vector<64x32xf32> to vector<32xf32>
    %89 = vector.shape_cast %88 : vector<32xf32> to vector<1x32xf32>
    %cst_73 = arith.constant 1.562500e-02 : f32
    %90 = vector.broadcast %cst_73 : f32 to vector<1x32xf32>
    %91 = arith.mulf %89, %90 : vector<1x32xf32>
    %cst_74 = arith.constant 9.99999974E-6 : f32
    %92 = vector.broadcast %cst_74 : f32 to vector<1x32xf32>
    %93 = arith.addf %91, %92 : vector<1x32xf32>
    %94 = math.rsqrt %93 : vector<1x32xf32>
    %95 = vector.broadcast %94 : vector<1x32xf32> to vector<64x32xf32>
    %96 = arith.mulf %86, %95 : vector<64x32xf32>
    %97 = vector.broadcast %4 : vector<1x32xf32> to vector<64x32xf32>
    %98 = arith.mulf %96, %97 : vector<64x32xf32>
    %99 = vector.broadcast %5 : vector<1x32xf32> to vector<64x32xf32>
    %100 = arith.addf %98, %99 : vector<64x32xf32>
    %cst_75 = arith.constant 0.000000e+00 : f32
    %101 = vector.broadcast %cst_75 : f32 to vector<64x32xf32>
    %102 = arith.maximumf %100, %101 : vector<64x32xf32>
    %c0_76 = arith.constant 0 : index
    %c0_77 = arith.constant 0 : index
    %c0_78 = arith.constant 0 : index
    %103 = vector.load %arg2[%c0_76, %c0_77, %c0_78] : memref<2x1x32xf32, #tpu.memory_space<vmem>>, vector<1x1x32xf32>
    %104 = vector.shape_cast %103 : vector<1x1x32xf32> to vector<1x32xf32>
    %105 = vector.broadcast %104 : vector<1x32xf32> to vector<64x32xf32>
    %106 = arith.addf %102, %105 : vector<64x32xf32>
    %107 = vector.shape_cast %106 : vector<64x32xf32> to vector<8x8x32xf32>
    %c1_79 = arith.constant 1 : index
    %c1_80 = arith.constant 1 : index
    %c0_81 = arith.constant 0 : index
    %108 = vector.load %arg15[%c1_79, %c1_80, %c0_81] : memref<10x10x32xf32, #tpu.memory_space<vmem>>, vector<8x8x32xf32>
    tpu.vector_store %arg15[%c1_79, %c1_80, %c0_81], %107 {strides = array<i32>} : memref<10x10x32xf32, #tpu.memory_space<vmem>>, vector<8x8x32xf32>,
    %c0_82 = arith.constant 0 : index
    %c0_83 = arith.constant 0 : index
    %c0_84 = arith.constant 0 : index
    %109 = vector.load %arg15[%c0_82, %c0_83, %c0_84] : memref<10x10x32xf32, #tpu.memory_space<vmem>>, vector<10x8x32xf32>
    %110 = arith.truncf %109 : vector<10x8x32xf32> to vector<10x8x32xbf16>
    %111 = vector.shape_cast %110 : vector<10x8x32xbf16> to vector<80x32xbf16>
    %112 = vector.extract_strided_slice %111 {offsets = [0, 0], sizes = [64, 32], strides = [1, 1]} : vector<80x32xbf16> to vector<64x32xbf16>
    %113 = vector.extract_strided_slice %6 {offsets = [0, 0, 0], sizes = [1, 32, 32], strides = [1, 1, 1]} : vector<3x96x32xbf16> to vector<1x32x32xbf16>
    %114 = vector.shape_cast %113 : vector<1x32x32xbf16> to vector<32x32xbf16>
    %cst_85 = arith.constant dense<0.000000e+00> : vector<64x32xf32>
    %115 = tpu.matmul %112, %114, %cst_85 {dimension_numbers = #tpu.dot_dimension_numbers<[1], [0], [0], [1], [0, 0, 1, 1], [], []>} : vector<64x32xbf16>, vector<32x32xbf16>, vector<64x32xf32> -> vector<64x32xf32>
    %116 = vector.broadcast %7 : vector<1x32xf32> to vector<64x32xf32>
    %117 = arith.addf %115, %116 : vector<64x32xf32>
    %118 = vector.extract_strided_slice %111 {offsets = [8, 0], sizes = [64, 32], strides = [1, 1]} : vector<80x32xbf16> to vector<64x32xbf16>
    %119 = vector.extract_strided_slice %6 {offsets = [0, 32, 0], sizes = [1, 32, 32], strides = [1, 1, 1]} : vector<3x96x32xbf16> to vector<1x32x32xbf16>
    %120 = vector.shape_cast %119 : vector<1x32x32xbf16> to vector<32x32xbf16>
    %cst_86 = arith.constant dense<0.000000e+00> : vector<64x32xf32>
    %121 = tpu.matmul %118, %120, %cst_86 {dimension_numbers = #tpu.dot_dimension_numbers<[1], [0], [0], [1], [0, 0, 1, 1], [], []>} : vector<64x32xbf16>, vector<32x32xbf16>, vector<64x32xf32> -> vector<64x32xf32>
    %122 = arith.addf %117, %121 : vector<64x32xf32>
    %123 = vector.extract_strided_slice %111 {offsets = [16, 0], sizes = [64, 32], strides = [1, 1]} : vector<80x32xbf16> to vector<64x32xbf16>
    %124 = vector.extract_strided_slice %6 {offsets = [0, 64, 0], sizes = [1, 32, 32], strides = [1, 1, 1]} : vector<3x96x32xbf16> to vector<1x32x32xbf16>
    %125 = vector.shape_cast %124 : vector<1x32x32xbf16> to vector<32x32xbf16>
    %cst_87 = arith.constant dense<0.000000e+00> : vector<64x32xf32>
    %126 = tpu.matmul %123, %125, %cst_87 {dimension_numbers = #tpu.dot_dimension_numbers<[1], [0], [0], [1], [0, 0, 1, 1], [], []>} : vector<64x32xbf16>, vector<32x32xbf16>, vector<64x32xf32> -> vector<64x32xf32>
    %127 = arith.addf %122, %126 : vector<64x32xf32>
    %c0_88 = arith.constant 0 : index
    %c1_89 = arith.constant 1 : index
    %c0_90 = arith.constant 0 : index
    %128 = vector.load %arg15[%c0_88, %c1_89, %c0_90] : memref<10x10x32xf32, #tpu.memory_space<vmem>>, vector<10x8x32xf32>
    %129 = arith.truncf %128 : vector<10x8x32xf32> to vector<10x8x32xbf16>
    %130 = vector.shape_cast %129 : vector<10x8x32xbf16> to vector<80x32xbf16>
    %131 = vector.extract_strided_slice %130 {offsets = [0, 0], sizes = [64, 32], strides = [1, 1]} : vector<80x32xbf16> to vector<64x32xbf16>
    %132 = vector.extract_strided_slice %6 {offsets = [1, 0, 0], sizes = [1, 32, 32], strides = [1, 1, 1]} : vector<3x96x32xbf16> to vector<1x32x32xbf16>
    %133 = vector.shape_cast %132 : vector<1x32x32xbf16> to vector<32x32xbf16>
    %cst_91 = arith.constant dense<0.000000e+00> : vector<64x32xf32>
    %134 = tpu.matmul %131, %133, %cst_91 {dimension_numbers = #tpu.dot_dimension_numbers<[1], [0], [0], [1], [0, 0, 1, 1], [], []>} : vector<64x32xbf16>, vector<32x32xbf16>, vector<64x32xf32> -> vector<64x32xf32>
    %135 = arith.addf %127, %134 : vector<64x32xf32>
    %136 = vector.extract_strided_slice %130 {offsets = [8, 0], sizes = [64, 32], strides = [1, 1]} : vector<80x32xbf16> to vector<64x32xbf16>
    %137 = vector.extract_strided_slice %6 {offsets = [1, 32, 0], sizes = [1, 32, 32], strides = [1, 1, 1]} : vector<3x96x32xbf16> to vector<1x32x32xbf16>
    %138 = vector.shape_cast %137 : vector<1x32x32xbf16> to vector<32x32xbf16>
    %cst_92 = arith.constant dense<0.000000e+00> : vector<64x32xf32>
    %139 = tpu.matmul %136, %138, %cst_92 {dimension_numbers = #tpu.dot_dimension_numbers<[1], [0], [0], [1], [0, 0, 1, 1], [], []>} : vector<64x32xbf16>, vector<32x32xbf16>, vector<64x32xf32> -> vector<64x32xf32>
    %140 = arith.addf %135, %139 : vector<64x32xf32>
    %141 = vector.extract_strided_slice %130 {offsets = [16, 0], sizes = [64, 32], strides = [1, 1]} : vector<80x32xbf16> to vector<64x32xbf16>
    %142 = vector.extract_strided_slice %6 {offsets = [1, 64, 0], sizes = [1, 32, 32], strides = [1, 1, 1]} : vector<3x96x32xbf16> to vector<1x32x32xbf16>
    %143 = vector.shape_cast %142 : vector<1x32x32xbf16> to vector<32x32xbf16>
    %cst_93 = arith.constant dense<0.000000e+00> : vector<64x32xf32>
    %144 = tpu.matmul %141, %143, %cst_93 {dimension_numbers = #tpu.dot_dimension_numbers<[1], [0], [0], [1], [0, 0, 1, 1], [], []>} : vector<64x32xbf16>, vector<32x32xbf16>, vector<64x32xf32> -> vector<64x32xf32>
    %145 = arith.addf %140, %144 : vector<64x32xf32>
    %c0_94 = arith.constant 0 : index
    %c2_95 = arith.constant 2 : index
    %c0_96 = arith.constant 0 : index
    %146 = vector.load %arg15[%c0_94, %c2_95, %c0_96] : memref<10x10x32xf32, #tpu.memory_space<vmem>>, vector<10x8x32xf32>
    %147 = arith.truncf %146 : vector<10x8x32xf32> to vector<10x8x32xbf16>
    %148 = vector.shape_cast %147 : vector<10x8x32xbf16> to vector<80x32xbf16>
    %149 = vector.extract_strided_slice %148 {offsets = [0, 0], sizes = [64, 32], strides = [1, 1]} : vector<80x32xbf16> to vector<64x32xbf16>
    %150 = vector.extract_strided_slice %6 {offsets = [2, 0, 0], sizes = [1, 32, 32], strides = [1, 1, 1]} : vector<3x96x32xbf16> to vector<1x32x32xbf16>
    %151 = vector.shape_cast %150 : vector<1x32x32xbf16> to vector<32x32xbf16>
    %cst_97 = arith.constant dense<0.000000e+00> : vector<64x32xf32>
    %152 = tpu.matmul %149, %151, %cst_97 {dimension_numbers = #tpu.dot_dimension_numbers<[1], [0], [0], [1], [0, 0, 1, 1], [], []>} : vector<64x32xbf16>, vector<32x32xbf16>, vector<64x32xf32> -> vector<64x32xf32>
    %153 = arith.addf %145, %152 : vector<64x32xf32>
    %154 = vector.extract_strided_slice %148 {offsets = [8, 0], sizes = [64, 32], strides = [1, 1]} : vector<80x32xbf16> to vector<64x32xbf16>
    %155 = vector.extract_strided_slice %6 {offsets = [2, 32, 0], sizes = [1, 32, 32], strides = [1, 1, 1]} : vector<3x96x32xbf16> to vector<1x32x32xbf16>
    %156 = vector.shape_cast %155 : vector<1x32x32xbf16> to vector<32x32xbf16>
    %cst_98 = arith.constant dense<0.000000e+00> : vector<64x32xf32>
    %157 = tpu.matmul %154, %156, %cst_98 {dimension_numbers = #tpu.dot_dimension_numbers<[1], [0], [0], [1], [0, 0, 1, 1], [], []>} : vector<64x32xbf16>, vector<32x32xbf16>, vector<64x32xf32> -> vector<64x32xf32>
    %158 = arith.addf %153, %157 : vector<64x32xf32>
    %159 = vector.extract_strided_slice %148 {offsets = [16, 0], sizes = [64, 32], strides = [1, 1]} : vector<80x32xbf16> to vector<64x32xbf16>
    %160 = vector.extract_strided_slice %6 {offsets = [2, 64, 0], sizes = [1, 32, 32], strides = [1, 1, 1]} : vector<3x96x32xbf16> to vector<1x32x32xbf16>
    %161 = vector.shape_cast %160 : vector<1x32x32xbf16> to vector<32x32xbf16>
    %cst_99 = arith.constant dense<0.000000e+00> : vector<64x32xf32>
    %162 = tpu.matmul %159, %161, %cst_99 {dimension_numbers = #tpu.dot_dimension_numbers<[1], [0], [0], [1], [0, 0, 1, 1], [], []>} : vector<64x32xbf16>, vector<32x32xbf16>, vector<64x32xf32> -> vector<64x32xf32>
    %163 = arith.addf %158, %162 : vector<64x32xf32>
    %cst_100 = arith.constant dense<0.000000e+00> : vector<32xf32>
    %164 = vector.multi_reduction <add>, %163, %cst_100 [0] : vector<64x32xf32> to vector<32xf32>
    %165 = vector.shape_cast %164 : vector<32xf32> to vector<1x32xf32>
    %cst_101 = arith.constant 1.562500e-02 : f32
    %166 = vector.broadcast %cst_101 : f32 to vector<1x32xf32>
    %167 = arith.mulf %165, %166 : vector<1x32xf32>
    %168 = vector.broadcast %167 : vector<1x32xf32> to vector<64x32xf32>
    %169 = arith.subf %163, %168 : vector<64x32xf32>
    %170 = arith.mulf %169, %169 : vector<64x32xf32>
    %cst_102 = arith.constant dense<0.000000e+00> : vector<32xf32>
    %171 = vector.multi_reduction <add>, %170, %cst_102 [0] : vector<64x32xf32> to vector<32xf32>
    %172 = vector.shape_cast %171 : vector<32xf32> to vector<1x32xf32>
    %cst_103 = arith.constant 1.562500e-02 : f32
    %173 = vector.broadcast %cst_103 : f32 to vector<1x32xf32>
    %174 = arith.mulf %172, %173 : vector<1x32xf32>
    %cst_104 = arith.constant 9.99999974E-6 : f32
    %175 = vector.broadcast %cst_104 : f32 to vector<1x32xf32>
    %176 = arith.addf %174, %175 : vector<1x32xf32>
    %177 = math.rsqrt %176 : vector<1x32xf32>
    %178 = vector.broadcast %177 : vector<1x32xf32> to vector<64x32xf32>
    %179 = arith.mulf %169, %178 : vector<64x32xf32>
    %180 = vector.broadcast %8 : vector<1x32xf32> to vector<64x32xf32>
    %181 = arith.mulf %179, %180 : vector<64x32xf32>
    %182 = vector.broadcast %9 : vector<1x32xf32> to vector<64x32xf32>
    %183 = arith.addf %181, %182 : vector<64x32xf32>
    %cst_105 = arith.constant 0.000000e+00 : f32
    %184 = vector.broadcast %cst_105 : f32 to vector<64x32xf32>
    %185 = arith.maximumf %183, %184 : vector<64x32xf32>
    %186 = vector.shape_cast %24 : vector<8x8x16xbf16> to vector<64x16xbf16>
    %cst_106 = arith.constant dense<0.000000e+00> : vector<64x32xf32>
    %187 = tpu.matmul %186, %0, %cst_106 {dimension_numbers = #tpu.dot_dimension_numbers<[1], [0], [0], [1], [0, 0, 1, 1], [], []>} : vector<64x16xbf16>, vector<16x32xbf16>, vector<64x32xf32> -> vector<64x32xf32>
    %188 = vector.broadcast %1 : vector<1x32xf32> to vector<64x32xf32>
    %189 = arith.addf %187, %188 : vector<64x32xf32>
    %190 = arith.addf %185, %189 : vector<64x32xf32>
    %191 = vector.shape_cast %190 : vector<64x32xf32> to vector<8x8x32xf32>
    %c0_107 = arith.constant 0 : index
    %c0_108 = arith.constant 0 : index
    %c0_109 = arith.constant 0 : index
    %c0_110 = arith.constant 0 : index
    %192 = vector.load %arg13[%c0_107, %c0_108, %c0_109, %c0_110] : memref<2x8x8x32xf32, #tpu.memory_space<vmem>>, vector<1x8x8x32xf32>
    %193 = vector.shape_cast %192 : vector<1x8x8x32xf32> to vector<8x8x32xf32>
    %194 = vector.shape_cast %191 : vector<8x8x32xf32> to vector<1x8x8x32xf32>
    tpu.vector_store %arg13[%c0_107, %c0_108, %c0_109, %c0_110], %194 {strides = array<i32>} : memref<2x8x8x32xf32, #tpu.memory_space<vmem>>, vector<1x8x8x32xf32>,
    %c1_111 = arith.constant 1 : index
    %c0_112 = arith.constant 0 : index
    %c0_113 = arith.constant 0 : index
    %c0_114 = arith.constant 0 : index
    %195 = vector.load %arg1[%c1_111, %c0_112, %c0_113, %c0_114] : memref<2x8x8x16xf32, #tpu.memory_space<vmem>>, vector<1x8x8x16xf32>
    %196 = vector.shape_cast %195 : vector<1x8x8x16xf32> to vector<8x8x16xf32>
    %197 = arith.truncf %196 : vector<8x8x16xf32> to vector<8x8x16xbf16>
    %c1_115 = arith.constant 1 : index
    %c1_116 = arith.constant 1 : index
    %c0_117 = arith.constant 0 : index
    %198 = vector.load %arg14[%c1_115, %c1_116, %c0_117] : memref<10x10x16xf32, #tpu.memory_space<vmem>>, vector<8x8x16xf32>
    tpu.vector_store %arg14[%c1_115, %c1_116, %c0_117], %196 {strides = array<i32>} : memref<10x10x16xf32, #tpu.memory_space<vmem>>, vector<8x8x16xf32>,
    %c0_118 = arith.constant 0 : index
    %c0_119 = arith.constant 0 : index
    %c0_120 = arith.constant 0 : index
    %199 = vector.load %arg14[%c0_118, %c0_119, %c0_120] : memref<10x10x16xf32, #tpu.memory_space<vmem>>, vector<10x8x16xf32>
    %200 = arith.truncf %199 : vector<10x8x16xf32> to vector<10x8x16xbf16>
    %201 = vector.shape_cast %200 : vector<10x8x16xbf16> to vector<80x16xbf16>
    %202 = vector.extract_strided_slice %201 {offsets = [0, 0], sizes = [64, 16], strides = [1, 1]} : vector<80x16xbf16> to vector<64x16xbf16>
    %203 = vector.extract_strided_slice %2 {offsets = [0, 0, 0], sizes = [1, 16, 32], strides = [1, 1, 1]} : vector<3x48x32xbf16> to vector<1x16x32xbf16>
    %204 = vector.shape_cast %203 : vector<1x16x32xbf16> to vector<16x32xbf16>
    %cst_121 = arith.constant dense<0.000000e+00> : vector<64x32xf32>
    %205 = tpu.matmul %202, %204, %cst_121 {dimension_numbers = #tpu.dot_dimension_numbers<[1], [0], [0], [1], [0, 0, 1, 1], [], []>} : vector<64x16xbf16>, vector<16x32xbf16>, vector<64x32xf32> -> vector<64x32xf32>
    %206 = vector.broadcast %3 : vector<1x32xf32> to vector<64x32xf32>
    %207 = arith.addf %205, %206 : vector<64x32xf32>
    %208 = vector.extract_strided_slice %201 {offsets = [8, 0], sizes = [64, 16], strides = [1, 1]} : vector<80x16xbf16> to vector<64x16xbf16>
    %209 = vector.extract_strided_slice %2 {offsets = [0, 16, 0], sizes = [1, 16, 32], strides = [1, 1, 1]} : vector<3x48x32xbf16> to vector<1x16x32xbf16>
    %210 = vector.shape_cast %209 : vector<1x16x32xbf16> to vector<16x32xbf16>
    %cst_122 = arith.constant dense<0.000000e+00> : vector<64x32xf32>
    %211 = tpu.matmul %208, %210, %cst_122 {dimension_numbers = #tpu.dot_dimension_numbers<[1], [0], [0], [1], [0, 0, 1, 1], [], []>} : vector<64x16xbf16>, vector<16x32xbf16>, vector<64x32xf32> -> vector<64x32xf32>
    %212 = arith.addf %207, %211 : vector<64x32xf32>
    %213 = vector.extract_strided_slice %201 {offsets = [16, 0], sizes = [64, 16], strides = [1, 1]} : vector<80x16xbf16> to vector<64x16xbf16>
    %214 = vector.extract_strided_slice %2 {offsets = [0, 32, 0], sizes = [1, 16, 32], strides = [1, 1, 1]} : vector<3x48x32xbf16> to vector<1x16x32xbf16>
    %215 = vector.shape_cast %214 : vector<1x16x32xbf16> to vector<16x32xbf16>
    %cst_123 = arith.constant dense<0.000000e+00> : vector<64x32xf32>
    %216 = tpu.matmul %213, %215, %cst_123 {dimension_numbers = #tpu.dot_dimension_numbers<[1], [0], [0], [1], [0, 0, 1, 1], [], []>} : vector<64x16xbf16>, vector<16x32xbf16>, vector<64x32xf32> -> vector<64x32xf32>
    %217 = arith.addf %212, %216 : vector<64x32xf32>
    %c0_124 = arith.constant 0 : index
    %c1_125 = arith.constant 1 : index
    %c0_126 = arith.constant 0 : index
    %218 = vector.load %arg14[%c0_124, %c1_125, %c0_126] : memref<10x10x16xf32, #tpu.memory_space<vmem>>, vector<10x8x16xf32>
    %219 = arith.truncf %218 : vector<10x8x16xf32> to vector<10x8x16xbf16>
    %220 = vector.shape_cast %219 : vector<10x8x16xbf16> to vector<80x16xbf16>
    %221 = vector.extract_strided_slice %220 {offsets = [0, 0], sizes = [64, 16], strides = [1, 1]} : vector<80x16xbf16> to vector<64x16xbf16>
    %222 = vector.extract_strided_slice %2 {offsets = [1, 0, 0], sizes = [1, 16, 32], strides = [1, 1, 1]} : vector<3x48x32xbf16> to vector<1x16x32xbf16>
    %223 = vector.shape_cast %222 : vector<1x16x32xbf16> to vector<16x32xbf16>
    %cst_127 = arith.constant dense<0.000000e+00> : vector<64x32xf32>
    %224 = tpu.matmul %221, %223, %cst_127 {dimension_numbers = #tpu.dot_dimension_numbers<[1], [0], [0], [1], [0, 0, 1, 1], [], []>} : vector<64x16xbf16>, vector<16x32xbf16>, vector<64x32xf32> -> vector<64x32xf32>
    %225 = arith.addf %217, %224 : vector<64x32xf32>
    %226 = vector.extract_strided_slice %220 {offsets = [8, 0], sizes = [64, 16], strides = [1, 1]} : vector<80x16xbf16> to vector<64x16xbf16>
    %227 = vector.extract_strided_slice %2 {offsets = [1, 16, 0], sizes = [1, 16, 32], strides = [1, 1, 1]} : vector<3x48x32xbf16> to vector<1x16x32xbf16>
    %228 = vector.shape_cast %227 : vector<1x16x32xbf16> to vector<16x32xbf16>
    %cst_128 = arith.constant dense<0.000000e+00> : vector<64x32xf32>
    %229 = tpu.matmul %226, %228, %cst_128 {dimension_numbers = #tpu.dot_dimension_numbers<[1], [0], [0], [1], [0, 0, 1, 1], [], []>} : vector<64x16xbf16>, vector<16x32xbf16>, vector<64x32xf32> -> vector<64x32xf32>
    %230 = arith.addf %225, %229 : vector<64x32xf32>
    %231 = vector.extract_strided_slice %220 {offsets = [16, 0], sizes = [64, 16], strides = [1, 1]} : vector<80x16xbf16> to vector<64x16xbf16>
    %232 = vector.extract_strided_slice %2 {offsets = [1, 32, 0], sizes = [1, 16, 32], strides = [1, 1, 1]} : vector<3x48x32xbf16> to vector<1x16x32xbf16>
    %233 = vector.shape_cast %232 : vector<1x16x32xbf16> to vector<16x32xbf16>
    %cst_129 = arith.constant dense<0.000000e+00> : vector<64x32xf32>
    %234 = tpu.matmul %231, %233, %cst_129 {dimension_numbers = #tpu.dot_dimension_numbers<[1], [0], [0], [1], [0, 0, 1, 1], [], []>} : vector<64x16xbf16>, vector<16x32xbf16>, vector<64x32xf32> -> vector<64x32xf32>
    %235 = arith.addf %230, %234 : vector<64x32xf32>
    %c0_130 = arith.constant 0 : index
    %c2_131 = arith.constant 2 : index
    %c0_132 = arith.constant 0 : index
    %236 = vector.load %arg14[%c0_130, %c2_131, %c0_132] : memref<10x10x16xf32, #tpu.memory_space<vmem>>, vector<10x8x16xf32>
    %237 = arith.truncf %236 : vector<10x8x16xf32> to vector<10x8x16xbf16>
    %238 = vector.shape_cast %237 : vector<10x8x16xbf16> to vector<80x16xbf16>
    %239 = vector.extract_strided_slice %238 {offsets = [0, 0], sizes = [64, 16], strides = [1, 1]} : vector<80x16xbf16> to vector<64x16xbf16>
    %240 = vector.extract_strided_slice %2 {offsets = [2, 0, 0], sizes = [1, 16, 32], strides = [1, 1, 1]} : vector<3x48x32xbf16> to vector<1x16x32xbf16>
    %241 = vector.shape_cast %240 : vector<1x16x32xbf16> to vector<16x32xbf16>
    %cst_133 = arith.constant dense<0.000000e+00> : vector<64x32xf32>
    %242 = tpu.matmul %239, %241, %cst_133 {dimension_numbers = #tpu.dot_dimension_numbers<[1], [0], [0], [1], [0, 0, 1, 1], [], []>} : vector<64x16xbf16>, vector<16x32xbf16>, vector<64x32xf32> -> vector<64x32xf32>
    %243 = arith.addf %235, %242 : vector<64x32xf32>
    %244 = vector.extract_strided_slice %238 {offsets = [8, 0], sizes = [64, 16], strides = [1, 1]} : vector<80x16xbf16> to vector<64x16xbf16>
    %245 = vector.extract_strided_slice %2 {offsets = [2, 16, 0], sizes = [1, 16, 32], strides = [1, 1, 1]} : vector<3x48x32xbf16> to vector<1x16x32xbf16>
    %246 = vector.shape_cast %245 : vector<1x16x32xbf16> to vector<16x32xbf16>
    %cst_134 = arith.constant dense<0.000000e+00> : vector<64x32xf32>
    %247 = tpu.matmul %244, %246, %cst_134 {dimension_numbers = #tpu.dot_dimension_numbers<[1], [0], [0], [1], [0, 0, 1, 1], [], []>} : vector<64x16xbf16>, vector<16x32xbf16>, vector<64x32xf32> -> vector<64x32xf32>
    %248 = arith.addf %243, %247 : vector<64x32xf32>
    %249 = vector.extract_strided_slice %238 {offsets = [16, 0], sizes = [64, 16], strides = [1, 1]} : vector<80x16xbf16> to vector<64x16xbf16>
    %250 = vector.extract_strided_slice %2 {offsets = [2, 32, 0], sizes = [1, 16, 32], strides = [1, 1, 1]} : vector<3x48x32xbf16> to vector<1x16x32xbf16>
    %251 = vector.shape_cast %250 : vector<1x16x32xbf16> to vector<16x32xbf16>
    %cst_135 = arith.constant dense<0.000000e+00> : vector<64x32xf32>
    %252 = tpu.matmul %249, %251, %cst_135 {dimension_numbers = #tpu.dot_dimension_numbers<[1], [0], [0], [1], [0, 0, 1, 1], [], []>} : vector<64x16xbf16>, vector<16x32xbf16>, vector<64x32xf32> -> vector<64x32xf32>
    %253 = arith.addf %248, %252 : vector<64x32xf32>
    %cst_136 = arith.constant dense<0.000000e+00> : vector<32xf32>
    %254 = vector.multi_reduction <add>, %253, %cst_136 [0] : vector<64x32xf32> to vector<32xf32>
    %255 = vector.shape_cast %254 : vector<32xf32> to vector<1x32xf32>
    %cst_137 = arith.constant 1.562500e-02 : f32
    %256 = vector.broadcast %cst_137 : f32 to vector<1x32xf32>
    %257 = arith.mulf %255, %256 : vector<1x32xf32>
    %258 = vector.broadcast %257 : vector<1x32xf32> to vector<64x32xf32>
    %259 = arith.subf %253, %258 : vector<64x32xf32>
    %260 = arith.mulf %259, %259 : vector<64x32xf32>
    %cst_138 = arith.constant dense<0.000000e+00> : vector<32xf32>
    %261 = vector.multi_reduction <add>, %260, %cst_138 [0] : vector<64x32xf32> to vector<32xf32>
    %262 = vector.shape_cast %261 : vector<32xf32> to vector<1x32xf32>
    %cst_139 = arith.constant 1.562500e-02 : f32
    %263 = vector.broadcast %cst_139 : f32 to vector<1x32xf32>
    %264 = arith.mulf %262, %263 : vector<1x32xf32>
    %cst_140 = arith.constant 9.99999974E-6 : f32
    %265 = vector.broadcast %cst_140 : f32 to vector<1x32xf32>
    %266 = arith.addf %264, %265 : vector<1x32xf32>
    %267 = math.rsqrt %266 : vector<1x32xf32>
    %268 = vector.broadcast %267 : vector<1x32xf32> to vector<64x32xf32>
    %269 = arith.mulf %259, %268 : vector<64x32xf32>
    %270 = vector.broadcast %4 : vector<1x32xf32> to vector<64x32xf32>
    %271 = arith.mulf %269, %270 : vector<64x32xf32>
    %272 = vector.broadcast %5 : vector<1x32xf32> to vector<64x32xf32>
    %273 = arith.addf %271, %272 : vector<64x32xf32>
    %cst_141 = arith.constant 0.000000e+00 : f32
    %274 = vector.broadcast %cst_141 : f32 to vector<64x32xf32>
    %275 = arith.maximumf %273, %274 : vector<64x32xf32>
    %c1_142 = arith.constant 1 : index
    %c0_143 = arith.constant 0 : index
    %c0_144 = arith.constant 0 : index
    %276 = vector.load %arg2[%c1_142, %c0_143, %c0_144] : memref<2x1x32xf32, #tpu.memory_space<vmem>>, vector<1x1x32xf32>
    %277 = vector.shape_cast %276 : vector<1x1x32xf32> to vector<1x32xf32>
    %278 = vector.broadcast %277 : vector<1x32xf32> to vector<64x32xf32>
    %279 = arith.addf %275, %278 : vector<64x32xf32>
    %280 = vector.shape_cast %279 : vector<64x32xf32> to vector<8x8x32xf32>
    %c1_145 = arith.constant 1 : index
    %c1_146 = arith.constant 1 : index
    %c0_147 = arith.constant 0 : index
    %281 = vector.load %arg15[%c1_145, %c1_146, %c0_147] : memref<10x10x32xf32, #tpu.memory_space<vmem>>, vector<8x8x32xf32>
    tpu.vector_store %arg15[%c1_145, %c1_146, %c0_147], %280 {strides = array<i32>} : memref<10x10x32xf32, #tpu.memory_space<vmem>>, vector<8x8x32xf32>,
    %c0_148 = arith.constant 0 : index
    %c0_149 = arith.constant 0 : index
    %c0_150 = arith.constant 0 : index
    %282 = vector.load %arg15[%c0_148, %c0_149, %c0_150] : memref<10x10x32xf32, #tpu.memory_space<vmem>>, vector<10x8x32xf32>
    %283 = arith.truncf %282 : vector<10x8x32xf32> to vector<10x8x32xbf16>
    %284 = vector.shape_cast %283 : vector<10x8x32xbf16> to vector<80x32xbf16>
    %285 = vector.extract_strided_slice %284 {offsets = [0, 0], sizes = [64, 32], strides = [1, 1]} : vector<80x32xbf16> to vector<64x32xbf16>
    %286 = vector.extract_strided_slice %6 {offsets = [0, 0, 0], sizes = [1, 32, 32], strides = [1, 1, 1]} : vector<3x96x32xbf16> to vector<1x32x32xbf16>
    %287 = vector.shape_cast %286 : vector<1x32x32xbf16> to vector<32x32xbf16>
    %cst_151 = arith.constant dense<0.000000e+00> : vector<64x32xf32>
    %288 = tpu.matmul %285, %287, %cst_151 {dimension_numbers = #tpu.dot_dimension_numbers<[1], [0], [0], [1], [0, 0, 1, 1], [], []>} : vector<64x32xbf16>, vector<32x32xbf16>, vector<64x32xf32> -> vector<64x32xf32>
    %289 = vector.broadcast %7 : vector<1x32xf32> to vector<64x32xf32>
    %290 = arith.addf %288, %289 : vector<64x32xf32>
    %291 = vector.extract_strided_slice %284 {offsets = [8, 0], sizes = [64, 32], strides = [1, 1]} : vector<80x32xbf16> to vector<64x32xbf16>
    %292 = vector.extract_strided_slice %6 {offsets = [0, 32, 0], sizes = [1, 32, 32], strides = [1, 1, 1]} : vector<3x96x32xbf16> to vector<1x32x32xbf16>
    %293 = vector.shape_cast %292 : vector<1x32x32xbf16> to vector<32x32xbf16>
    %cst_152 = arith.constant dense<0.000000e+00> : vector<64x32xf32>
    %294 = tpu.matmul %291, %293, %cst_152 {dimension_numbers = #tpu.dot_dimension_numbers<[1], [0], [0], [1], [0, 0, 1, 1], [], []>} : vector<64x32xbf16>, vector<32x32xbf16>, vector<64x32xf32> -> vector<64x32xf32>
    %295 = arith.addf %290, %294 : vector<64x32xf32>
    %296 = vector.extract_strided_slice %284 {offsets = [16, 0], sizes = [64, 32], strides = [1, 1]} : vector<80x32xbf16> to vector<64x32xbf16>
    %297 = vector.extract_strided_slice %6 {offsets = [0, 64, 0], sizes = [1, 32, 32], strides = [1, 1, 1]} : vector<3x96x32xbf16> to vector<1x32x32xbf16>
    %298 = vector.shape_cast %297 : vector<1x32x32xbf16> to vector<32x32xbf16>
    %cst_153 = arith.constant dense<0.000000e+00> : vector<64x32xf32>
    %299 = tpu.matmul %296, %298, %cst_153 {dimension_numbers = #tpu.dot_dimension_numbers<[1], [0], [0], [1], [0, 0, 1, 1], [], []>} : vector<64x32xbf16>, vector<32x32xbf16>, vector<64x32xf32> -> vector<64x32xf32>
    %300 = arith.addf %295, %299 : vector<64x32xf32>
    %c0_154 = arith.constant 0 : index
    %c1_155 = arith.constant 1 : index
    %c0_156 = arith.constant 0 : index
    %301 = vector.load %arg15[%c0_154, %c1_155, %c0_156] : memref<10x10x32xf32, #tpu.memory_space<vmem>>, vector<10x8x32xf32>
    %302 = arith.truncf %301 : vector<10x8x32xf32> to vector<10x8x32xbf16>
    %303 = vector.shape_cast %302 : vector<10x8x32xbf16> to vector<80x32xbf16>
    %304 = vector.extract_strided_slice %303 {offsets = [0, 0], sizes = [64, 32], strides = [1, 1]} : vector<80x32xbf16> to vector<64x32xbf16>
    %305 = vector.extract_strided_slice %6 {offsets = [1, 0, 0], sizes = [1, 32, 32], strides = [1, 1, 1]} : vector<3x96x32xbf16> to vector<1x32x32xbf16>
    %306 = vector.shape_cast %305 : vector<1x32x32xbf16> to vector<32x32xbf16>
    %cst_157 = arith.constant dense<0.000000e+00> : vector<64x32xf32>
    %307 = tpu.matmul %304, %306, %cst_157 {dimension_numbers = #tpu.dot_dimension_numbers<[1], [0], [0], [1], [0, 0, 1, 1], [], []>} : vector<64x32xbf16>, vector<32x32xbf16>, vector<64x32xf32> -> vector<64x32xf32>
    %308 = arith.addf %300, %307 : vector<64x32xf32>
    %309 = vector.extract_strided_slice %303 {offsets = [8, 0], sizes = [64, 32], strides = [1, 1]} : vector<80x32xbf16> to vector<64x32xbf16>
    %310 = vector.extract_strided_slice %6 {offsets = [1, 32, 0], sizes = [1, 32, 32], strides = [1, 1, 1]} : vector<3x96x32xbf16> to vector<1x32x32xbf16>
    %311 = vector.shape_cast %310 : vector<1x32x32xbf16> to vector<32x32xbf16>
    %cst_158 = arith.constant dense<0.000000e+00> : vector<64x32xf32>
    %312 = tpu.matmul %309, %311, %cst_158 {dimension_numbers = #tpu.dot_dimension_numbers<[1], [0], [0], [1], [0, 0, 1, 1], [], []>} : vector<64x32xbf16>, vector<32x32xbf16>, vector<64x32xf32> -> vector<64x32xf32>
    %313 = arith.addf %308, %312 : vector<64x32xf32>
    %314 = vector.extract_strided_slice %303 {offsets = [16, 0], sizes = [64, 32], strides = [1, 1]} : vector<80x32xbf16> to vector<64x32xbf16>
    %315 = vector.extract_strided_slice %6 {offsets = [1, 64, 0], sizes = [1, 32, 32], strides = [1, 1, 1]} : vector<3x96x32xbf16> to vector<1x32x32xbf16>
    %316 = vector.shape_cast %315 : vector<1x32x32xbf16> to vector<32x32xbf16>
    %cst_159 = arith.constant dense<0.000000e+00> : vector<64x32xf32>
    %317 = tpu.matmul %314, %316, %cst_159 {dimension_numbers = #tpu.dot_dimension_numbers<[1], [0], [0], [1], [0, 0, 1, 1], [], []>} : vector<64x32xbf16>, vector<32x32xbf16>, vector<64x32xf32> -> vector<64x32xf32>
    %318 = arith.addf %313, %317 : vector<64x32xf32>
    %c0_160 = arith.constant 0 : index
    %c2_161 = arith.constant 2 : index
    %c0_162 = arith.constant 0 : index
    %319 = vector.load %arg15[%c0_160, %c2_161, %c0_162] : memref<10x10x32xf32, #tpu.memory_space<vmem>>, vector<10x8x32xf32>
    %320 = arith.truncf %319 : vector<10x8x32xf32> to vector<10x8x32xbf16>
    %321 = vector.shape_cast %320 : vector<10x8x32xbf16> to vector<80x32xbf16>
    %322 = vector.extract_strided_slice %321 {offsets = [0, 0], sizes = [64, 32], strides = [1, 1]} : vector<80x32xbf16> to vector<64x32xbf16>
    %323 = vector.extract_strided_slice %6 {offsets = [2, 0, 0], sizes = [1, 32, 32], strides = [1, 1, 1]} : vector<3x96x32xbf16> to vector<1x32x32xbf16>
    %324 = vector.shape_cast %323 : vector<1x32x32xbf16> to vector<32x32xbf16>
    %cst_163 = arith.constant dense<0.000000e+00> : vector<64x32xf32>
    %325 = tpu.matmul %322, %324, %cst_163 {dimension_numbers = #tpu.dot_dimension_numbers<[1], [0], [0], [1], [0, 0, 1, 1], [], []>} : vector<64x32xbf16>, vector<32x32xbf16>, vector<64x32xf32> -> vector<64x32xf32>
    %326 = arith.addf %318, %325 : vector<64x32xf32>
    %327 = vector.extract_strided_slice %321 {offsets = [8, 0], sizes = [64, 32], strides = [1, 1]} : vector<80x32xbf16> to vector<64x32xbf16>
    %328 = vector.extract_strided_slice %6 {offsets = [2, 32, 0], sizes = [1, 32, 32], strides = [1, 1, 1]} : vector<3x96x32xbf16> to vector<1x32x32xbf16>
    %329 = vector.shape_cast %328 : vector<1x32x32xbf16> to vector<32x32xbf16>
    %cst_164 = arith.constant dense<0.000000e+00> : vector<64x32xf32>
    %330 = tpu.matmul %327, %329, %cst_164 {dimension_numbers = #tpu.dot_dimension_numbers<[1], [0], [0], [1], [0, 0, 1, 1], [], []>} : vector<64x32xbf16>, vector<32x32xbf16>, vector<64x32xf32> -> vector<64x32xf32>
    %331 = arith.addf %326, %330 : vector<64x32xf32>
    %332 = vector.extract_strided_slice %321 {offsets = [16, 0], sizes = [64, 32], strides = [1, 1]} : vector<80x32xbf16> to vector<64x32xbf16>
    %333 = vector.extract_strided_slice %6 {offsets = [2, 64, 0], sizes = [1, 32, 32], strides = [1, 1, 1]} : vector<3x96x32xbf16> to vector<1x32x32xbf16>
    %334 = vector.shape_cast %333 : vector<1x32x32xbf16> to vector<32x32xbf16>
    %cst_165 = arith.constant dense<0.000000e+00> : vector<64x32xf32>
    %335 = tpu.matmul %332, %334, %cst_165 {dimension_numbers = #tpu.dot_dimension_numbers<[1], [0], [0], [1], [0, 0, 1, 1], [], []>} : vector<64x32xbf16>, vector<32x32xbf16>, vector<64x32xf32> -> vector<64x32xf32>
    %336 = arith.addf %331, %335 : vector<64x32xf32>
    %cst_166 = arith.constant dense<0.000000e+00> : vector<32xf32>
    %337 = vector.multi_reduction <add>, %336, %cst_166 [0] : vector<64x32xf32> to vector<32xf32>
    %338 = vector.shape_cast %337 : vector<32xf32> to vector<1x32xf32>
    %cst_167 = arith.constant 1.562500e-02 : f32
    %339 = vector.broadcast %cst_167 : f32 to vector<1x32xf32>
    %340 = arith.mulf %338, %339 : vector<1x32xf32>
    %341 = vector.broadcast %340 : vector<1x32xf32> to vector<64x32xf32>
    %342 = arith.subf %336, %341 : vector<64x32xf32>
    %343 = arith.mulf %342, %342 : vector<64x32xf32>
    %cst_168 = arith.constant dense<0.000000e+00> : vector<32xf32>
    %344 = vector.multi_reduction <add>, %343, %cst_168 [0] : vector<64x32xf32> to vector<32xf32>
    %345 = vector.shape_cast %344 : vector<32xf32> to vector<1x32xf32>
    %cst_169 = arith.constant 1.562500e-02 : f32
    %346 = vector.broadcast %cst_169 : f32 to vector<1x32xf32>
    %347 = arith.mulf %345, %346 : vector<1x32xf32>
    %cst_170 = arith.constant 9.99999974E-6 : f32
    %348 = vector.broadcast %cst_170 : f32 to vector<1x32xf32>
    %349 = arith.addf %347, %348 : vector<1x32xf32>
    %350 = math.rsqrt %349 : vector<1x32xf32>
    %351 = vector.broadcast %350 : vector<1x32xf32> to vector<64x32xf32>
    %352 = arith.mulf %342, %351 : vector<64x32xf32>
    %353 = vector.broadcast %8 : vector<1x32xf32> to vector<64x32xf32>
    %354 = arith.mulf %352, %353 : vector<64x32xf32>
    %355 = vector.broadcast %9 : vector<1x32xf32> to vector<64x32xf32>
    %356 = arith.addf %354, %355 : vector<64x32xf32>
    %cst_171 = arith.constant 0.000000e+00 : f32
    %357 = vector.broadcast %cst_171 : f32 to vector<64x32xf32>
    %358 = arith.maximumf %356, %357 : vector<64x32xf32>
    %359 = vector.shape_cast %197 : vector<8x8x16xbf16> to vector<64x16xbf16>
    %cst_172 = arith.constant dense<0.000000e+00> : vector<64x32xf32>
    %360 = tpu.matmul %359, %0, %cst_172 {dimension_numbers = #tpu.dot_dimension_numbers<[1], [0], [0], [1], [0, 0, 1, 1], [], []>} : vector<64x16xbf16>, vector<16x32xbf16>, vector<64x32xf32> -> vector<64x32xf32>
    %361 = vector.broadcast %1 : vector<1x32xf32> to vector<64x32xf32>
    %362 = arith.addf %360, %361 : vector<64x32xf32>
    %363 = arith.addf %358, %362 : vector<64x32xf32>
    %364 = vector.shape_cast %363 : vector<64x32xf32> to vector<8x8x32xf32>
    %c1_173 = arith.constant 1 : index
    %c0_174 = arith.constant 0 : index
    %c0_175 = arith.constant 0 : index
    %c0_176 = arith.constant 0 : index
    %365 = vector.load %arg13[%c1_173, %c0_174, %c0_175, %c0_176] : memref<2x8x8x32xf32, #tpu.memory_space<vmem>>, vector<1x8x8x32xf32>
    %366 = vector.shape_cast %365 : vector<1x8x8x32xf32> to vector<8x8x32xf32>
    %367 = vector.shape_cast %364 : vector<8x8x32xf32> to vector<1x8x8x32xf32>
    tpu.vector_store %arg13[%c1_173, %c0_174, %c0_175, %c0_176], %367 {strides = array<i32>} : memref<2x8x8x32xf32, #tpu.memory_space<vmem>>, vector<1x8x8x32xf32>,
    return
  }
  func.func @transform_0(%arg0: i32) -> (i32, i32, i32, i32) {
    %c0_i32 = arith.constant 0 : i32
    %c0_i32_0 = arith.constant 0 : i32
    %c0_i32_1 = arith.constant 0 : i32
    %c0_i32_2 = arith.constant 0 : i32
    return %arg0, %c0_i32, %c0_i32_0, %c0_i32_1 : i32, i32, i32, i32
  }
  func.func @transform_1(%arg0: i32) -> (i32, i32, i32) {
    %c0_i32 = arith.constant 0 : i32
    %c0_i32_0 = arith.constant 0 : i32
    %c0_i32_1 = arith.constant 0 : i32
    return %arg0, %c0_i32, %c0_i32_0 : i32, i32, i32
  }
  func.func @transform_2(%arg0: i32) -> (i32, i32, i32) {
    %c0_i32 = arith.constant 0 : i32
    %c0_i32_0 = arith.constant 0 : i32
    %c0_i32_1 = arith.constant 0 : i32
    %c0_i32_2 = arith.constant 0 : i32
    return %c0_i32, %c0_i32_0, %c0_i32_1 : i32, i32, i32
  }
  func.func @transform_3(%arg0: i32) -> (i32, i32) {
    %c0_i32 = arith.constant 0 : i32
    %c0_i32_0 = arith.constant 0 : i32
    %c0_i32_1 = arith.constant 0 : i32
    return %c0_i32, %c0_i32_0 : i32, i32
  }
  func.func @transform_4(%arg0: i32) -> (i32, i32) {
    %c0_i32 = arith.constant 0 : i32
    %c0_i32_0 = arith.constant 0 : i32
    %c0_i32_1 = arith.constant 0 : i32
    return %c0_i32, %c0_i32_0 : i32, i32
  }
  func.func @transform_5(%arg0: i32) -> (i32, i32) {
    %c0_i32 = arith.constant 0 : i32
    %c0_i32_0 = arith.constant 0 : i32
    %c0_i32_1 = arith.constant 0 : i32
    return %c0_i32, %c0_i32_0 : i32, i32
  }
  func.func @transform_6(%arg0: i32) -> (i32, i32, i32) {
    %c0_i32 = arith.constant 0 : i32
    %c0_i32_0 = arith.constant 0 : i32
    %c0_i32_1 = arith.constant 0 : i32
    %c0_i32_2 = arith.constant 0 : i32
    return %c0_i32, %c0_i32_0, %c0_i32_1 : i32, i32, i32
  }
  func.func @transform_7(%arg0: i32) -> (i32, i32) {
    %c0_i32 = arith.constant 0 : i32
    %c0_i32_0 = arith.constant 0 : i32
    %c0_i32_1 = arith.constant 0 : i32
    return %c0_i32, %c0_i32_0 : i32, i32
  }
  func.func @transform_8(%arg0: i32) -> (i32, i32) {
    %c0_i32 = arith.constant 0 : i32
    %c0_i32_0 = arith.constant 0 : i32
    %c0_i32_1 = arith.constant 0 : i32
    return %c0_i32, %c0_i32_0 : i32, i32
  }
  func.func @transform_9(%arg0: i32) -> (i32, i32) {
    %c0_i32 = arith.constant 0 : i32
    %c0_i32_0 = arith.constant 0 : i32
    %c0_i32_1 = arith.constant 0 : i32
    return %c0_i32, %c0_i32_0 : i32, i32
  }
  func.func @transform_10(%arg0: i32) -> (i32, i32) {
    %c0_i32 = arith.constant 0 : i32
    %c0_i32_0 = arith.constant 0 : i32
    %c0_i32_1 = arith.constant 0 : i32
    return %c0_i32, %c0_i32_0 : i32, i32
  }
  func.func @transform_11(%arg0: i32) -> (i32, i32) {
    %c0_i32 = arith.constant 0 : i32
    %c0_i32_0 = arith.constant 0 : i32
    %c0_i32_1 = arith.constant 0 : i32
    return %c0_i32, %c0_i32_0 : i32, i32
  }
  func.func @transform_12(%arg0: i32) -> (i32, i32, i32, i32) {
    %c0_i32 = arith.constant 0 : i32
    %c0_i32_0 = arith.constant 0 : i32
    %c0_i32_1 = arith.constant 0 : i32
    %c0_i32_2 = arith.constant 0 : i32
    return %arg0, %c0_i32, %c0_i32_0, %c0_i32_1 : i32, i32, i32, i32
  }
}

</mosaic_0001>

<llo_original>
// kernel: tpu_custom_call.1
$region0: #{tpu_custom_call.1}
  #allocation0 [shape = 'u32[]', space=smem, size = 0x4, offset = 0x4, fixed_abs, tag = 'smem constant byte address 0x4 - core index']
  #allocation1 [shape = 'u32[144,128]{1,0:T(1,128)}', space=vmem, size = 0x12000, scoped, tag = 'internal scratch']
  %s0 = inlined_call_operand.vmem [shape: f32[2,8,8,16], index: 0, kind: input, shape index: {}]
  %s1 = inlined_call_operand.vmem [shape: f32[2,1,32], index: 1, kind: input, shape index: {}]
  %s2 = inlined_call_operand.vmem [shape: bf16[3,48,32], index: 2, kind: input, shape index: {}]
  %s3 = inlined_call_operand.vmem [shape: f32[1,32], index: 3, kind: input, shape index: {}]
  %s4 = inlined_call_operand.vmem [shape: f32[1,32], index: 4, kind: input, shape index: {}]
  %s5 = inlined_call_operand.vmem [shape: f32[1,32], index: 5, kind: input, shape index: {}]
  %s6 = inlined_call_operand.vmem [shape: bf16[3,96,32], index: 6, kind: input, shape index: {}]
  %s7 = inlined_call_operand.vmem [shape: f32[1,32], index: 7, kind: input, shape index: {}]
  %s8 = inlined_call_operand.vmem [shape: f32[1,32], index: 8, kind: input, shape index: {}]
  %s9 = inlined_call_operand.vmem [shape: f32[1,32], index: 9, kind: input, shape index: {}]
  %s10 = inlined_call_operand.vmem [shape: bf16[16,32], index: 10, kind: input, shape index: {}]
  %s11 = inlined_call_operand.vmem [shape: f32[1,32], index: 11, kind: input, shape index: {}]
  %s12 = inlined_call_operand.hbm [shape: f32[2,8,256], index: 12, kind: output, shape index: {}]
  %s13 = sld [smem:[#allocation0]]
  $region58: #{tpu_custom_call.1} parent=0
    _
  %s15 = ssub.s32 1, %s13
  %s16 = scalar_select 0, %s15, %s13
  $region1: #{tpu_custom_call.1} parent=0
    #allocation2 [shape = 'u8[16384]{0}', space=vmem, size = 0x4000, scoped, tag = 'output window, operand 0, single buffered']
    #allocation3 [shape = 's32[1]{0}', space=sflag, size = 0x4, scoped, tag = 'scoped memory for tpu_custom_call.1']
    %17 = vsyncpa [#allocation3], 0
    // Predicated region
    $region2: #{tpu_custom_call.1} parent=1 // pred_check
      _
    $region3: #{tpu_custom_call.1} parent=1 // pred_check_branch
      %19 = sbr.rel (0) target = $region5
    $region4: #{tpu_custom_call.1} parent=1 // pred_region
      _
    $region5: #{tpu_custom_call.1} parent=1 // pred_fallthru
      _
    // Predicated region
    $region6: #{tpu_custom_call.1} parent=1 // pred_check
      _
    $region7: #{tpu_custom_call.1} parent=1 // pred_check_branch
      %21 = sbr.rel (0) target = $region9
    $region8: #{tpu_custom_call.1} parent=1 // pred_region
      _
    $region9: #{tpu_custom_call.1} parent=1 // pred_fallthru
      _
    // Predicated region
    $region10: #{tpu_custom_call.1} parent=1 // pred_check
      _
    $region11: #{tpu_custom_call.1} parent=1 // pred_check_branch
      %23 = sbr.rel (0) target = $region13
    $region12: #{tpu_custom_call.1} parent=1 // pred_region
      _
    $region13: #{tpu_custom_call.1} parent=1 // pred_fallthru
      _
    // Predicated region
    $region14: #{tpu_custom_call.1} parent=1 // pred_check
      _
    $region15: #{tpu_custom_call.1} parent=1 // pred_check_branch
      %25 = sbr.rel (0) target = $region17
    $region16: #{tpu_custom_call.1} parent=1 // pred_region
      _
    $region17: #{tpu_custom_call.1} parent=1 // pred_fallthru
      _
    // Predicated region
    $region18: #{tpu_custom_call.1} parent=1 // pred_check
      _
    $region19: #{tpu_custom_call.1} parent=1 // pred_check_branch
      %27 = sbr.rel (0) target = $region21
    $region20: #{tpu_custom_call.1} parent=1 // pred_region
      _
    $region21: #{tpu_custom_call.1} parent=1 // pred_fallthru
      _
    // Predicated region
    $region22: #{tpu_custom_call.1} parent=1 // pred_check
      _
    $region23: #{tpu_custom_call.1} parent=1 // pred_check_branch
      %29 = sbr.rel (0) target = $region25
    $region24: #{tpu_custom_call.1} parent=1 // pred_region
      _
    $region25: #{tpu_custom_call.1} parent=1 // pred_fallthru
      _
    // Predicated region
    $region26: #{tpu_custom_call.1} parent=1 // pred_check
      _
    $region27: #{tpu_custom_call.1} parent=1 // pred_check_branch
      %31 = sbr.rel (0) target = $region29
    $region28: #{tpu_custom_call.1} parent=1 // pred_region
      _
    $region29: #{tpu_custom_call.1} parent=1 // pred_fallthru
      _
    // Predicated region
    $region30: #{tpu_custom_call.1} parent=1 // pred_check
      _
    $region31: #{tpu_custom_call.1} parent=1 // pred_check_branch
      %33 = sbr.rel (0) target = $region33
    $region32: #{tpu_custom_call.1} parent=1 // pred_region
      _
    $region33: #{tpu_custom_call.1} parent=1 // pred_fallthru
      _
    // Predicated region
    $region34: #{tpu_custom_call.1} parent=1 // pred_check
      _
    $region35: #{tpu_custom_call.1} parent=1 // pred_check_branch
      %35 = sbr.rel (0) target = $region37
    $region36: #{tpu_custom_call.1} parent=1 // pred_region
      _
    $region37: #{tpu_custom_call.1} parent=1 // pred_fallthru
      _
    // Predicated region
    $region38: #{tpu_custom_call.1} parent=1 // pred_check
      _
    $region39: #{tpu_custom_call.1} parent=1 // pred_check_branch
      %37 = sbr.rel (0) target = $region41
    $region40: #{tpu_custom_call.1} parent=1 // pred_region
      _
    $region41: #{tpu_custom_call.1} parent=1 // pred_fallthru
      _
    // Predicated region
    $region42: #{tpu_custom_call.1} parent=1 // pred_check
      _
    $region43: #{tpu_custom_call.1} parent=1 // pred_check_branch
      %39 = sbr.rel (0) target = $region45
    $region44: #{tpu_custom_call.1} parent=1 // pred_region
      _
    $region45: #{tpu_custom_call.1} parent=1 // pred_fallthru
      _
    // Predicated region
    $region46: #{tpu_custom_call.1} parent=1 // pred_check
      _
    $region47: #{tpu_custom_call.1} parent=1 // pred_check_branch
      %41 = sbr.rel (0) target = $region49
    $region48: #{tpu_custom_call.1} parent=1 // pred_region
      _
    $region49: #{tpu_custom_call.1} parent=1 // pred_fallthru
      _
    %v43 = vld [vmem:[%s10] sm:$0xf]
    %v44 = vld [vmem:[%s10 + $0x4] sm:$0xf]
    %v45 = vld [vmem:[%s11] sm:$0x1]
    %v46 = vld [vmem:[%s2] sm:$0xf]
    %v47 = vld [vmem:[%s2 + $0x4] sm:$0xf]
    %v48 = vld [vmem:[%s2 + $0x8] sm:$0xf]
    %v49 = vld [vmem:[%s2 + $0xc] sm:$0xf]
    %v50 = vld [vmem:[%s2 + $0x10] sm:$0xf]
    %v51 = vld [vmem:[%s2 + $0x14] sm:$0xf]
    %v52 = vld [vmem:[%s2 + $0x18] sm:$0xf]
    %v53 = vld [vmem:[%s2 + $0x1c] sm:$0xf]
    %v54 = vld [vmem:[%s2 + $0x20] sm:$0xf]
    %v55 = vld [vmem:[%s2 + $0x24] sm:$0xf]
    %v56 = vld [vmem:[%s2 + $0x28] sm:$0xf]
    %v57 = vld [vmem:[%s2 + $0x2c] sm:$0xf]
    %v58 = vld [vmem:[%s2 + $0x30] sm:$0xf]
    %v59 = vld [vmem:[%s2 + $0x34] sm:$0xf]
    %v60 = vld [vmem:[%s2 + $0x38] sm:$0xf]
    %v61 = vld [vmem:[%s2 + $0x3c] sm:$0xf]
    %v62 = vld [vmem:[%s2 + $0x40] sm:$0xf]
    %v63 = vld [vmem:[%s2 + $0x44] sm:$0xf]
    %v64 = vld [vmem:[%s3] sm:$0x1]
    %v65 = vld [vmem:[%s4] sm:$0x1]
    %v66 = vld [vmem:[%s5] sm:$0x1]
    %v67 = vld [vmem:[%s6] sm:$0xf]
    %v68 = vld [vmem:[%s6 + $0x4] sm:$0xf]
    %v69 = vld [vmem:[%s6 + $0x8] sm:$0xf]
    %v70 = vld [vmem:[%s6 + $0xc] sm:$0xf]
    %v71 = vld [vmem:[%s6 + $0x10] sm:$0xf]
    %v72 = vld [vmem:[%s6 + $0x14] sm:$0xf]
    %v73 = vld [vmem:[%s6 + $0x18] sm:$0xf]
    %v74 = vld [vmem:[%s6 + $0x1c] sm:$0xf]
    %v75 = vld [vmem:[%s6 + $0x20] sm:$0xf]
    %v76 = vld [vmem:[%s6 + $0x24] sm:$0xf]
    %v77 = vld [vmem:[%s6 + $0x28] sm:$0xf]
    %v78 = vld [vmem:[%s6 + $0x2c] sm:$0xf]
    %v79 = vld [vmem:[%s6 + $0x30] sm:$0xf]
    %v80 = vld [vmem:[%s6 + $0x34] sm:$0xf]
    %v81 = vld [vmem:[%s6 + $0x38] sm:$0xf]
    %v82 = vld [vmem:[%s6 + $0x3c] sm:$0xf]
    %v83 = vld [vmem:[%s6 + $0x40] sm:$0xf]
    %v84 = vld [vmem:[%s6 + $0x44] sm:$0xf]
    %v85 = vld [vmem:[%s6 + $0x48] sm:$0xf]
    %v86 = vld [vmem:[%s6 + $0x4c] sm:$0xf]
    %v87 = vld [vmem:[%s6 + $0x50] sm:$0xf]
    %v88 = vld [vmem:[%s6 + $0x54] sm:$0xf]
    %v89 = vld [vmem:[%s6 + $0x58] sm:$0xf]
    %v90 = vld [vmem:[%s6 + $0x5c] sm:$0xf]
    %v91 = vld [vmem:[%s6 + $0x60] sm:$0xf]
    %v92 = vld [vmem:[%s6 + $0x64] sm:$0xf]
    %v93 = vld [vmem:[%s6 + $0x68] sm:$0xf]
    %v94 = vld [vmem:[%s6 + $0x6c] sm:$0xf]
    %v95 = vld [vmem:[%s6 + $0x70] sm:$0xf]
    %v96 = vld [vmem:[%s6 + $0x74] sm:$0xf]
    %v97 = vld [vmem:[%s6 + $0x78] sm:$0xf]
    %v98 = vld [vmem:[%s6 + $0x7c] sm:$0xf]
    %v99 = vld [vmem:[%s6 + $0x80] sm:$0xf]
    %v100 = vld [vmem:[%s6 + $0x84] sm:$0xf]
    %v101 = vld [vmem:[%s6 + $0x88] sm:$0xf]
    %v102 = vld [vmem:[%s6 + $0x8c] sm:$0xf]
    %v103 = vld [vmem:[%s7] sm:$0x1]
    %v104 = vld [vmem:[%s8] sm:$0x1]
    %v105 = vld [vmem:[%s9] sm:$0x1]
    %v106 = vld [vmem:[%s0] sm:$0xff]
    %v107 = vld [vmem:[%s0 + $0x8] sm:$0xff]
    %v108 = vld [vmem:[%s0 + $0x10] sm:$0xff]
    %v109 = vld [vmem:[%s0 + $0x18] sm:$0xff]
    %v110 = vld [vmem:[%s0 + $0x20] sm:$0xff]
    %v111 = vld [vmem:[%s0 + $0x28] sm:$0xff]
    %v112 = vld [vmem:[%s0 + $0x30] sm:$0xff]
    %v113 = vld [vmem:[%s0 + $0x38] sm:$0xff]
    %v114 = vpack.c.bf16 %v106, %v106
    %v115 = vpack.c.bf16 %v107, %v107
    %v116 = vpack.c.bf16 %v108, %v108
    %v117 = vpack.c.bf16 %v109, %v109
    %v118 = vpack.c.bf16 %v110, %v110
    %v119 = vpack.c.bf16 %v111, %v111
    %v120 = vpack.c.bf16 %v112, %v112
    %v121 = vpack.c.bf16 %v113, %v113
    %v123 = vshrl.u32 %v114, 16
    %v125 = vrot.slane %v123, 7
    %v126 = vshll.u32 %v114, 16
    %v128 = vor.u32 %v125, %v126
    %v130 = vshrl.u32 %v115, 16
    %v132 = vrot.slane %v130, 7
    %v133 = vshll.u32 %v115, 16
    %v135 = vor.u32 %v132, %v133
    %v137 = vshrl.u32 %v116, 16
    %v139 = vrot.slane %v137, 7
    %v140 = vshll.u32 %v116, 16
    %v142 = vor.u32 %v139, %v140
    %v144 = vshrl.u32 %v117, 16
    %v146 = vrot.slane %v144, 7
    %v147 = vshll.u32 %v117, 16
    %v149 = vor.u32 %v146, %v147
    %v151 = vshrl.u32 %v118, 16
    %v153 = vrot.slane %v151, 7
    %v154 = vshll.u32 %v118, 16
    %v156 = vor.u32 %v153, %v154
    %v158 = vshrl.u32 %v119, 16
    %v160 = vrot.slane %v158, 7
    %v161 = vshll.u32 %v119, 16
    %v163 = vor.u32 %v160, %v161
    %v165 = vshrl.u32 %v120, 16
    %v167 = vrot.slane %v165, 7
    %v168 = vshll.u32 %v120, 16
    %v170 = vor.u32 %v167, %v168
    %v172 = vshrl.u32 %v121, 16
    %v174 = vrot.slane %v172, 7
    %v175 = vshll.u32 %v121, 16
    %v177 = vor.u32 %v174, %v175
    %vm186 = vcmask 1040384
    %vm187 = vsmask.f32 256
    %vm188 = vmand %vm186, %vm187
    %v189 = vsel %vm188, 0, %v128
    %v190 = vsel %vm188, 0, %v135
    %v191 = vsel %vm188, 0, %v142
    %v192 = vsel %vm188, 0, %v149
    %v193 = vsel %vm188, 0, %v156
    %v194 = vsel %vm188, 0, %v163
    %v195 = vsel %vm188, 0, %v170
    %v196 = vsel %vm188, 0, %v177
    %vm197 = vcmask 1044480
    %vm198 = vsmask.f32 4352
    %vm199 = vmand %vm197, %vm198
    %v200 = vsel %vm199, %v189, 0
    %v201 = vsel %vm199, %v190, 0
    %v202 = vsel %vm199, %v191, 0
    %v203 = vsel %vm199, %v192, 0
    %v204 = vsel %vm199, %v193, 0
    %v205 = vsel %vm199, %v194, 0
    %v206 = vsel %vm199, %v195, 0
    %v207 = vsel %vm199, %v196, 0
    %v216 = vunpack.c.l.b16 0
    %v217 = vunpack.c.l.b16 %v200
    %v218 = vunpack.c.l.b16 %v201
    %v219 = vunpack.c.l.b16 %v202
    %v220 = vunpack.c.l.b16 %v203
    %v221 = vunpack.c.l.b16 %v204
    %v222 = vunpack.c.l.b16 %v205
    %v223 = vunpack.c.l.b16 %v206
    %v224 = vpack.c.b16 %v217, %v216
    %v225 = vpack.c.b16 %v219, %v218
    %v226 = vpack.c.b16 %v221, %v220
    %v227 = vpack.c.b16 %v223, %v222
    %v229 = vunpack.c.l.b16 %v207
    %v230 = vpack.c.b16 %v218, %v217
    %v231 = vpack.c.b16 %v220, %v219
    %v232 = vpack.c.b16 %v222, %v221
    %v233 = vpack.c.b16 %v229, %v223
    %234 = vrot.lane.b32.xlu0 %v230, 16
    %v235 = vpop.permute.xlu0 %234
    %236 = vrot.lane.b32.xlu0 %v231, 16
    %v237 = vpop.permute.xlu0 %236
    %238 = vrot.lane.b32.xlu0 %v232, 16
    %v239 = vpop.permute.xlu0 %238
    %240 = vrot.lane.b32.xlu0 %v233, 16
    %v241 = vpop.permute.xlu0 %240
    %v242 = vpack.c.b16 %v216, %v229
    %243 = vrot.lane.b32.xlu0 %v225, 32
    %v244 = vpop.permute.xlu0 %243
    %245 = vrot.lane.b32.xlu0 %v226, 32
    %v246 = vpop.permute.xlu0 %245
    %247 = vrot.lane.b32.xlu0 %v227, 32
    %v248 = vpop.permute.xlu0 %247
    %249 = vrot.lane.b32.xlu0 %v242, 32
    %v250 = vpop.permute.xlu0 %249
    %vm251 = vcmask 130048
    %v254 = vsel %vm251, %v224, %v235
    %v257 = vsel %vm251, %v225, %v237
    %v260 = vsel %vm251, %v226, %v239
    %v263 = vsel %vm251, %v227, %v241
    %vm264 = vcmask 261120
    %v266 = vsel %vm264, %v254, %v244
    %v268 = vsel %vm264, %v257, %v246
    %v270 = vsel %vm264, %v260, %v248
    %v272 = vsel %vm264, %v263, %v250
    %v274 = vlaneseq
    %v275 = vshrl.u32 %v274, 7
    %v276 = vsub.s32 0, %v275
    %v277 = vrot.slane %v64, %v276
    %v285 = vunpack.c.l.b16 %v46
    %v286 = vunpack.c.l.b16 %v47
    %v287 = vunpack.c.l.b16 %v48
    %v288 = vunpack.c.l.b16 %v49
    %v289 = vunpack.c.l.b16 %v50
    %v290 = vunpack.c.l.b16 %v51
    %v291 = vpack.c.b16 %v286, %v285
    %v292 = vpack.c.b16 %v288, %v287
    %v293 = vpack.c.b16 %v290, %v289
    %vm297 = vcmask 392192
    %v298 = vsel %vm297, %v266, 0
    %v300 = vsel %vm297, %v268, 0
    %v302 = vsel %vm297, %v270, 0
    %v304 = vsel %vm297, %v272, 0
    %306 = vmatprep.subr.bf16.mxu0 0
    %307 = vmatpush1.bf16.msra.mxu0 %v291
    %308 = vmatprep.subr.bf16.mxu0 0
    %309 = vmatpush1.bf16.msra.mxu0 %v292
    %310 = vmatprep.subr.bf16.mxu0 0
    %311 = vmatpush1.bf16.msra.mxu0 %v293
    %312 = vmatprep.subr.bf16.mxu0 0
    %313 = vmatpush1.bf16.msra.mxu0 0
    %314 = vmatprep.subr.bf16.mxu0 0
    %315 = vmatpush1.bf16.msra.mxu0 0
    %316 = vmatprep.subr.bf16.mxu0 0
    %317 = vmatpush1.bf16.msra.mxu0 0
    %318 = vmatprep.subr.bf16.mxu0 0
    %319 = vmatpush1.bf16.msra.mxu0 0
    %320 = vmatprep.subr.bf16.mxu0 0
    %321 = vmatpush1.bf16.msra.mxu0 0
    %322 = vmatprep.subr.bf16.mxu0 0
    %323 = vmatpush1.bf16.msra.mxu0 0
    %324 = vmatprep.subr.bf16.mxu0 0
    %325 = vmatpush1.bf16.msra.mxu0 0
    %326 = vmatprep.subr.bf16.mxu0 0
    %327 = vmatpush1.bf16.msra.mxu0 0
    %328 = vmatprep.subr.bf16.mxu0 0
    %329 = vmatpush1.bf16.msra.mxu0 0
    %330 = vmatprep.subr.bf16.mxu0 0
    %331 = vmatpush1.bf16.msra.mxu0 0
    %332 = vmatprep.subr.bf16.mxu0 0
    %333 = vmatpush1.bf16.msra.mxu0 0
    %334 = vmatprep.subr.bf16.mxu0 0
    %335 = vmatpush1.bf16.msra.mxu0 0
    %336 = vmatprep.subr.bf16.mxu0 0
    %337 = vmatpush1.bf16.msra.mxu0 0
    %338 = vmatprep.mubr.bf16.mxu0 0
    %339 = vmatmul.mubr.bf16.gmra.mrb[0].mxu0 %v298
    %v340 = vpop.f32.mrb[0].mxu0
    %v341 = vadd.f32 %v277, %v340
    %v342 = vpop.f32.mrb[0].mxu0
    %v343 = vpop.f32.mrb[0].mxu0
    %v344 = vadd.f32 %v277, %v343
    %v345 = vpop.f32.mrb[0].mxu0
    %346 = vmatprep.mubr.bf16.mxu0 0
    %347 = vmatmul.mubr.bf16.gmra.mrb[0].mxu0 %v300
    %v348 = vpop.f32.mrb[0].mxu0
    %v349 = vadd.f32 %v277, %v348
    %v350 = vpop.f32.mrb[0].mxu0
    %v351 = vpop.f32.mrb[0].mxu0
    %v352 = vadd.f32 %v277, %v351
    %v353 = vpop.f32.mrb[0].mxu0
    %354 = vmatprep.mubr.bf16.mxu0 0
    %355 = vmatmul.mubr.bf16.gmra.mrb[0].mxu0 %v302
    %v356 = vpop.f32.mrb[0].mxu0
    %v357 = vadd.f32 %v277, %v356
    %v358 = vpop.f32.mrb[0].mxu0
    %v359 = vpop.f32.mrb[0].mxu0
    %v360 = vadd.f32 %v277, %v359
    %v361 = vpop.f32.mrb[0].mxu0
    %362 = vmatprep.mubr.bf16.mxu0 0
    %363 = vmatmul.mubr.bf16.gmra.mrb[0].mxu0 %v304
    %v364 = vpop.f32.mrb[0].mxu0
    %v365 = vadd.f32 %v277, %v364
    %v366 = vpop.f32.mrb[0].mxu0
    %v367 = vpop.f32.mrb[0].mxu0
    %v368 = vadd.f32 %v277, %v367
    %v369 = vpop.f32.mrb[0].mxu0
    %370 = vdwg.mxu0
    %v371 = vunpack.c.h.b16 0
    %v372 = vunpack.c.h.b16 %v200
    %v373 = vunpack.c.h.b16 %v201
    %v374 = vunpack.c.h.b16 %v202
    %v375 = vunpack.c.h.b16 %v203
    %v376 = vunpack.c.h.b16 %v204
    %v377 = vunpack.c.h.b16 %v205
    %v378 = vunpack.c.h.b16 %v206
    %v379 = vunpack.c.h.b16 %v207
    %v380 = vpack.c.b16 %v216, %v216
    %v381 = vpack.c.b16 %v371, %v371
    %v382 = vpack.c.b16 %v217, %v217
    %v383 = vpack.c.b16 %v372, %v372
    %v384 = vpack.c.b16 %v218, %v218
    %v385 = vpack.c.b16 %v373, %v373
    %v386 = vpack.c.b16 %v219, %v219
    %v387 = vpack.c.b16 %v374, %v374
    %v388 = vpack.c.b16 %v220, %v220
    %v389 = vpack.c.b16 %v375, %v375
    %v390 = vpack.c.b16 %v221, %v221
    %v391 = vpack.c.b16 %v376, %v376
    %v392 = vpack.c.b16 %v222, %v222
    %v393 = vpack.c.b16 %v377, %v377
    %v394 = vpack.c.b16 %v223, %v223
    %v395 = vpack.c.b16 %v378, %v378
    %v396 = vpack.c.b16 %v229, %v229
    %v397 = vpack.c.b16 %v379, %v379
    %vm398 = vsmask.f32 3328
    %vm399 = vsmask.f32 7440
    %vm400 = vmor %vm398, %vm399
    %v402 = vshrl.u32 %v380, 16
    %v404 = vrot.slane %v402, 4
    %v405 = vshll.u32 %v380, 16
    %v407 = vrot.slane %v405, 5
    %v408 = vor.u32 %v404, %v407
    %v409 = vrot.slane %v408, 4
    %v411 = vshll.u32 %v381, 16
    %v413 = vrot.slane %v411, 5
    %v414 = vsel %vm400, %v409, %v413
    %v416 = vshrl.u32 %v382, 16
    %v418 = vrot.slane %v416, 4
    %v419 = vshll.u32 %v382, 16
    %v421 = vrot.slane %v419, 5
    %v422 = vor.u32 %v418, %v421
    %v423 = vrot.slane %v422, 4
    %v425 = vshll.u32 %v383, 16
    %v427 = vrot.slane %v425, 5
    %v428 = vsel %vm400, %v423, %v427
    %v430 = vshrl.u32 %v384, 16
    %v432 = vrot.slane %v430, 4
    %v433 = vshll.u32 %v384, 16
    %v435 = vrot.slane %v433, 5
    %v436 = vor.u32 %v432, %v435
    %v437 = vrot.slane %v436, 4
    %v439 = vshll.u32 %v385, 16
    %v441 = vrot.slane %v439, 5
    %v442 = vsel %vm400, %v437, %v441
    %v444 = vshrl.u32 %v386, 16
    %v446 = vrot.slane %v444, 4
    %v447 = vshll.u32 %v386, 16
    %v449 = vrot.slane %v447, 5
    %v450 = vor.u32 %v446, %v449
    %v451 = vrot.slane %v450, 4
    %v453 = vshll.u32 %v387, 16
    %v455 = vrot.slane %v453, 5
    %v456 = vsel %vm400, %v451, %v455
    %v458 = vshrl.u32 %v388, 16
    %v460 = vrot.slane %v458, 4
    %v461 = vshll.u32 %v388, 16
    %v463 = vrot.slane %v461, 5
    %v464 = vor.u32 %v460, %v463
    %v465 = vrot.slane %v464, 4
    %v467 = vshll.u32 %v389, 16
    %v469 = vrot.slane %v467, 5
    %v470 = vsel %vm400, %v465, %v469
    %v472 = vshrl.u32 %v390, 16
    %v474 = vrot.slane %v472, 4
    %v475 = vshll.u32 %v390, 16
    %v477 = vrot.slane %v475, 5
    %v478 = vor.u32 %v474, %v477
    %v479 = vrot.slane %v478, 4
    %v481 = vshll.u32 %v391, 16
    %v483 = vrot.slane %v481, 5
    %v484 = vsel %vm400, %v479, %v483
    %v486 = vshrl.u32 %v392, 16
    %v488 = vrot.slane %v486, 4
    %v489 = vshll.u32 %v392, 16
    %v491 = vrot.slane %v489, 5
    %v492 = vor.u32 %v488, %v491
    %v493 = vrot.slane %v492, 4
    %v495 = vshll.u32 %v393, 16
    %v497 = vrot.slane %v495, 5
    %v498 = vsel %vm400, %v493, %v497
    %v500 = vshrl.u32 %v394, 16
    %v502 = vrot.slane %v500, 4
    %v503 = vshll.u32 %v394, 16
    %v505 = vrot.slane %v503, 5
    %v506 = vor.u32 %v502, %v505
    %v507 = vrot.slane %v506, 4
    %v509 = vshll.u32 %v395, 16
    %v511 = vrot.slane %v509, 5
    %v512 = vsel %vm400, %v507, %v511
    %v514 = vshrl.u32 %v396, 16
    %v516 = vrot.slane %v514, 4
    %v517 = vshll.u32 %v396, 16
    %v519 = vrot.slane %v517, 5
    %v520 = vor.u32 %v516, %v519
    %v521 = vrot.slane %v520, 4
    %v523 = vshll.u32 %v397, 16
    %v525 = vrot.slane %v523, 5
    %v526 = vsel %vm400, %v521, %v525
    %v527 = vunpack.c.l.b16 %v414
    %v528 = vunpack.c.l.b16 %v428
    %v529 = vunpack.c.l.b16 %v442
    %v530 = vunpack.c.l.b16 %v456
    %v531 = vunpack.c.l.b16 %v470
    %v532 = vunpack.c.l.b16 %v484
    %v533 = vunpack.c.l.b16 %v498
    %v534 = vunpack.c.l.b16 %v512
    %v535 = vpack.c.b16 %v528, %v527
    %v536 = vpack.c.b16 %v530, %v529
    %v537 = vpack.c.b16 %v532, %v531
    %v538 = vpack.c.b16 %v534, %v533
    %v539 = vunpack.c.l.b16 %v526
    %v540 = vpack.c.b16 %v529, %v528
    %v541 = vpack.c.b16 %v531, %v530
    %v542 = vpack.c.b16 %v533, %v532
    %v543 = vpack.c.b16 %v539, %v534
    %544 = vrot.lane.b32.xlu0 %v540, 16
    %v545 = vpop.permute.xlu0 %544
    %546 = vrot.lane.b32.xlu0 %v541, 16
    %v547 = vpop.permute.xlu0 %546
    %548 = vrot.lane.b32.xlu0 %v542, 16
    %v549 = vpop.permute.xlu0 %548
    %550 = vrot.lane.b32.xlu0 %v543, 16
    %v551 = vpop.permute.xlu0 %550
    %v552 = vpack.c.b16 %v527, %v539
    %553 = vrot.lane.b32.xlu0 %v536, 32
    %v554 = vpop.permute.xlu0 %553
    %555 = vrot.lane.b32.xlu0 %v537, 32
    %v556 = vpop.permute.xlu0 %555
    %557 = vrot.lane.b32.xlu0 %v538, 32
    %v558 = vpop.permute.xlu0 %557
    %559 = vrot.lane.b32.xlu0 %v552, 32
    %v560 = vpop.permute.xlu0 %559
    %v563 = vsel %vm251, %v535, %v545
    %v566 = vsel %vm251, %v536, %v547
    %v569 = vsel %vm251, %v537, %v549
    %v572 = vsel %vm251, %v538, %v551
    %v574 = vsel %vm264, %v563, %v554
    %v576 = vsel %vm264, %v566, %v556
    %v578 = vsel %vm264, %v569, %v558
    %v580 = vsel %vm264, %v572, %v560
    %v587 = vunpack.c.l.b16 %v52
    %v588 = vunpack.c.l.b16 %v53
    %v589 = vunpack.c.l.b16 %v54
    %v590 = vunpack.c.l.b16 %v55
    %v591 = vunpack.c.l.b16 %v56
    %v592 = vunpack.c.l.b16 %v57
    %v593 = vpack.c.b16 %v588, %v587
    %v594 = vpack.c.b16 %v590, %v589
    %v595 = vpack.c.b16 %v592, %v591
    %v599 = vsel %vm297, %v574, 0
    %v601 = vsel %vm297, %v576, 0
    %v603 = vsel %vm297, %v578, 0
    %v605 = vsel %vm297, %v580, 0
    %607 = vmatprep.subr.bf16.mxu0 0
    %608 = vmatpush1.bf16.msra.mxu0 %v593
    %609 = vmatprep.subr.bf16.mxu0 0
    %610 = vmatpush1.bf16.msra.mxu0 %v594
    %611 = vmatprep.subr.bf16.mxu0 0
    %612 = vmatpush1.bf16.msra.mxu0 %v595
    %613 = vmatprep.subr.bf16.mxu0 0
    %614 = vmatpush1.bf16.msra.mxu0 0
    %615 = vmatprep.subr.bf16.mxu0 0
    %616 = vmatpush1.bf16.msra.mxu0 0
    %617 = vmatprep.subr.bf16.mxu0 0
    %618 = vmatpush1.bf16.msra.mxu0 0
    %619 = vmatprep.subr.bf16.mxu0 0
    %620 = vmatpush1.bf16.msra.mxu0 0
    %621 = vmatprep.subr.bf16.mxu0 0
    %622 = vmatpush1.bf16.msra.mxu0 0
    %623 = vmatprep.subr.bf16.mxu0 0
    %624 = vmatpush1.bf16.msra.mxu0 0
    %625 = vmatprep.subr.bf16.mxu0 0
    %626 = vmatpush1.bf16.msra.mxu0 0
    %627 = vmatprep.subr.bf16.mxu0 0
    %628 = vmatpush1.bf16.msra.mxu0 0
    %629 = vmatprep.subr.bf16.mxu0 0
    %630 = vmatpush1.bf16.msra.mxu0 0
    %631 = vmatprep.subr.bf16.mxu0 0
    %632 = vmatpush1.bf16.msra.mxu0 0
    %633 = vmatprep.subr.bf16.mxu0 0
    %634 = vmatpush1.bf16.msra.mxu0 0
    %635 = vmatprep.subr.bf16.mxu0 0
    %636 = vmatpush1.bf16.msra.mxu0 0
    %637 = vmatprep.subr.bf16.mxu0 0
    %638 = vmatpush1.bf16.msra.mxu0 0
    %639 = vmatprep.mubr.bf16.mxu0 0
    %640 = vmatmul.mubr.bf16.gmra.mrb[0].mxu0 %v599
    %v641 = vpop.f32.mrb[0].mxu0
    %v642 = vadd.f32 0.0, %v641
    %v643 = vpop.f32.mrb[0].mxu0
    %v644 = vpop.f32.mrb[0].mxu0
    %v645 = vadd.f32 0.0, %v644
    %v646 = vpop.f32.mrb[0].mxu0
    %647 = vmatprep.mubr.bf16.mxu0 0
    %648 = vmatmul.mubr.bf16.gmra.mrb[0].mxu0 %v601
    %v649 = vpop.f32.mrb[0].mxu0
    %v650 = vadd.f32 0.0, %v649
    %v651 = vpop.f32.mrb[0].mxu0
    %v652 = vpop.f32.mrb[0].mxu0
    %v653 = vadd.f32 0.0, %v652
    %v654 = vpop.f32.mrb[0].mxu0
    %655 = vmatprep.mubr.bf16.mxu0 0
    %656 = vmatmul.mubr.bf16.gmra.mrb[0].mxu0 %v603
    %v657 = vpop.f32.mrb[0].mxu0
    %v658 = vadd.f32 0.0, %v657
    %v659 = vpop.f32.mrb[0].mxu0
    %v660 = vpop.f32.mrb[0].mxu0
    %v661 = vadd.f32 0.0, %v660
    %v662 = vpop.f32.mrb[0].mxu0
    %663 = vmatprep.mubr.bf16.mxu0 0
    %664 = vmatmul.mubr.bf16.gmra.mrb[0].mxu0 %v605
    %v665 = vpop.f32.mrb[0].mxu0
    %v666 = vadd.f32 0.0, %v665
    %v667 = vpop.f32.mrb[0].mxu0
    %v668 = vpop.f32.mrb[0].mxu0
    %v669 = vadd.f32 0.0, %v668
    %v670 = vpop.f32.mrb[0].mxu0
    %671 = vdwg.mxu0
    %v672 = vadd.f32 %v341, %v642
    %v673 = vadd.f32 %v344, %v645
    %v674 = vadd.f32 %v349, %v650
    %v675 = vadd.f32 %v352, %v653
    %v676 = vadd.f32 %v357, %v658
    %v677 = vadd.f32 %v360, %v661
    %v678 = vadd.f32 %v365, %v666
    %v679 = vadd.f32 %v368, %v669
    %vm680 = vcmask 1042432
    %vm681 = vcmask 1046532
    %vm682 = vmor %vm680, %vm681
    %v683 = vrot.slane %v380, 5
    %v684 = vrot.slane %v683, 4
    %v685 = vrot.slane %v381, 5
    %v686 = vsel %vm682, %v684, %v685
    %v687 = vrot.slane %v382, 5
    %v688 = vrot.slane %v687, 4
    %v689 = vrot.slane %v383, 5
    %v690 = vsel %vm682, %v688, %v689
    %v691 = vrot.slane %v384, 5
    %v692 = vrot.slane %v691, 4
    %v693 = vrot.slane %v385, 5
    %v694 = vsel %vm682, %v692, %v693
    %v695 = vrot.slane %v386, 5
    %v696 = vrot.slane %v695, 4
    %v697 = vrot.slane %v387, 5
    %v698 = vsel %vm682, %v696, %v697
    %v699 = vrot.slane %v388, 5
    %v700 = vrot.slane %v699, 4
    %v701 = vrot.slane %v389, 5
    %v702 = vsel %vm682, %v700, %v701
    %v703 = vrot.slane %v390, 5
    %v704 = vrot.slane %v703, 4
    %v705 = vrot.slane %v391, 5
    %v706 = vsel %vm682, %v704, %v705
    %v707 = vrot.slane %v392, 5
    %v708 = vrot.slane %v707, 4
    %v709 = vrot.slane %v393, 5
    %v710 = vsel %vm682, %v708, %v709
    %v711 = vrot.slane %v394, 5
    %v712 = vrot.slane %v711, 4
    %v713 = vrot.slane %v395, 5
    %v714 = vsel %vm682, %v712, %v713
    %v715 = vrot.slane %v396, 5
    %v716 = vrot.slane %v715, 4
    %v717 = vrot.slane %v397, 5
    %v718 = vsel %vm682, %v716, %v717
    %v719 = vunpack.c.l.b16 %v686
    %v720 = vunpack.c.l.b16 %v690
    %v721 = vunpack.c.l.b16 %v694
    %v722 = vunpack.c.l.b16 %v698
    %v723 = vunpack.c.l.b16 %v702
    %v724 = vunpack.c.l.b16 %v706
    %v725 = vunpack.c.l.b16 %v710
    %v726 = vunpack.c.l.b16 %v714
    %v727 = vpack.c.b16 %v720, %v719
    %v728 = vpack.c.b16 %v722, %v721
    %v729 = vpack.c.b16 %v724, %v723
    %v730 = vpack.c.b16 %v726, %v725
    %v731 = vunpack.c.l.b16 %v718
    %v732 = vpack.c.b16 %v721, %v720
    %v733 = vpack.c.b16 %v723, %v722
    %v734 = vpack.c.b16 %v725, %v724
    %v735 = vpack.c.b16 %v731, %v726
    %736 = vrot.lane.b32.xlu0 %v732, 16
    %v737 = vpop.permute.xlu0 %736
    %738 = vrot.lane.b32.xlu0 %v733, 16
    %v739 = vpop.permute.xlu0 %738
    %740 = vrot.lane.b32.xlu0 %v734, 16
    %v741 = vpop.permute.xlu0 %740
    %742 = vrot.lane.b32.xlu0 %v735, 16
    %v743 = vpop.permute.xlu0 %742
    %v744 = vpack.c.b16 %v719, %v731
    %745 = vrot.lane.b32.xlu0 %v728, 32
    %v746 = vpop.permute.xlu0 %745
    %747 = vrot.lane.b32.xlu0 %v729, 32
    %v748 = vpop.permute.xlu0 %747
    %749 = vrot.lane.b32.xlu0 %v730, 32
    %v750 = vpop.permute.xlu0 %749
    %751 = vrot.lane.b32.xlu0 %v744, 32
    %v752 = vpop.permute.xlu0 %751
    %v755 = vsel %vm251, %v727, %v737
    %v758 = vsel %vm251, %v728, %v739
    %v761 = vsel %vm251, %v729, %v741
    %v764 = vsel %vm251, %v730, %v743
    %v766 = vsel %vm264, %v755, %v746
    %v768 = vsel %vm264, %v758, %v748
    %v770 = vsel %vm264, %v761, %v750
    %v772 = vsel %vm264, %v764, %v752
    %v779 = vunpack.c.l.b16 %v58
    %v780 = vunpack.c.l.b16 %v59
    %v781 = vunpack.c.l.b16 %v60
    %v782 = vunpack.c.l.b16 %v61
    %v783 = vunpack.c.l.b16 %v62
    %v784 = vunpack.c.l.b16 %v63
    %v785 = vpack.c.b16 %v780, %v779
    %v786 = vpack.c.b16 %v782, %v781
    %v787 = vpack.c.b16 %v784, %v783
    %v791 = vsel %vm297, %v766, 0
    %v793 = vsel %vm297, %v768, 0
    %v795 = vsel %vm297, %v770, 0
    %v797 = vsel %vm297, %v772, 0
    %799 = vmatprep.subr.bf16.mxu0 0
    %800 = vmatpush1.bf16.msra.mxu0 %v785
    %801 = vmatprep.subr.bf16.mxu0 0
    %802 = vmatpush1.bf16.msra.mxu0 %v786
    %803 = vmatprep.subr.bf16.mxu0 0
    %804 = vmatpush1.bf16.msra.mxu0 %v787
    %805 = vmatprep.subr.bf16.mxu0 0
    %806 = vmatpush1.bf16.msra.mxu0 0
    %807 = vmatprep.subr.bf16.mxu0 0
    %808 = vmatpush1.bf16.msra.mxu0 0
    %809 = vmatprep.subr.bf16.mxu0 0
    %810 = vmatpush1.bf16.msra.mxu0 0
    %811 = vmatprep.subr.bf16.mxu0 0
    %812 = vmatpush1.bf16.msra.mxu0 0
    %813 = vmatprep.subr.bf16.mxu0 0
    %814 = vmatpush1.bf16.msra.mxu0 0
    %815 = vmatprep.subr.bf16.mxu0 0
    %816 = vmatpush1.bf16.msra.mxu0 0
    %817 = vmatprep.subr.bf16.mxu0 0
    %818 = vmatpush1.bf16.msra.mxu0 0
    %819 = vmatprep.subr.bf16.mxu0 0
    %820 = vmatpush1.bf16.msra.mxu0 0
    %821 = vmatprep.subr.bf16.mxu0 0
    %822 = vmatpush1.bf16.msra.mxu0 0
    %823 = vmatprep.subr.bf16.mxu0 0
    %824 = vmatpush1.bf16.msra.mxu0 0
    %825 = vmatprep.subr.bf16.mxu0 0
    %826 = vmatpush1.bf16.msra.mxu0 0
    %827 = vmatprep.subr.bf16.mxu0 0
    %828 = vmatpush1.bf16.msra.mxu0 0
    %829 = vmatprep.subr.bf16.mxu0 0
    %830 = vmatpush1.bf16.msra.mxu0 0
    %831 = vmatprep.mubr.bf16.mxu0 0
    %832 = vmatmul.mubr.bf16.gmra.mrb[0].mxu0 %v791
    %v833 = vpop.f32.mrb[0].mxu0
    %v834 = vadd.f32 0.0, %v833
    %v835 = vpop.f32.mrb[0].mxu0
    %v836 = vpop.f32.mrb[0].mxu0
    %v837 = vadd.f32 0.0, %v836
    %v838 = vpop.f32.mrb[0].mxu0
    %839 = vmatprep.mubr.bf16.mxu0 0
    %840 = vmatmul.mubr.bf16.gmra.mrb[0].mxu0 %v793
    %v841 = vpop.f32.mrb[0].mxu0
    %v842 = vadd.f32 0.0, %v841
    %v843 = vpop.f32.mrb[0].mxu0
    %v844 = vpop.f32.mrb[0].mxu0
    %v845 = vadd.f32 0.0, %v844
    %v846 = vpop.f32.mrb[0].mxu0
    %847 = vmatprep.mubr.bf16.mxu0 0
    %848 = vmatmul.mubr.bf16.gmra.mrb[0].mxu0 %v795
    %v849 = vpop.f32.mrb[0].mxu0
    %v850 = vadd.f32 0.0, %v849
    %v851 = vpop.f32.mrb[0].mxu0
    %v852 = vpop.f32.mrb[0].mxu0
    %v853 = vadd.f32 0.0, %v852
    %v854 = vpop.f32.mrb[0].mxu0
    %855 = vmatprep.mubr.bf16.mxu0 0
    %856 = vmatmul.mubr.bf16.gmra.mrb[0].mxu0 %v797
    %v857 = vpop.f32.mrb[0].mxu0
    %v858 = vadd.f32 0.0, %v857
    %v859 = vpop.f32.mrb[0].mxu0
    %v860 = vpop.f32.mrb[0].mxu0
    %v861 = vadd.f32 0.0, %v860
    %v862 = vpop.f32.mrb[0].mxu0
    %863 = vdwg.mxu0
    %v864 = vadd.f32 %v672, %v834
    %v865 = vadd.f32 %v673, %v837
    %v866 = vadd.f32 %v674, %v842
    %v867 = vadd.f32 %v675, %v845
    %v868 = vadd.f32 %v676, %v850
    %v869 = vadd.f32 %v677, %v853
    %v870 = vadd.f32 %v678, %v858
    %v871 = vadd.f32 %v679, %v861
    %v872 = vsel %vm264, %v864, 0.0
    %v873 = vsel %vm264, %v865, 0.0
    %v874 = vadd.f32 %v872, %v873
    %v875 = vsel %vm264, %v866, 0.0
    %v876 = vadd.f32 %v874, %v875
    %v877 = vsel %vm264, %v867, 0.0
    %v878 = vadd.f32 %v876, %v877
    %v879 = vsel %vm264, %v868, 0.0
    %v880 = vadd.f32 %v878, %v879
    %v881 = vsel %vm264, %v869, 0.0
    %v882 = vadd.f32 %v880, %v881
    %v883 = vsel %vm264, %v870, 0.0
    %v884 = vadd.f32 %v882, %v883
    %v885 = vsel %vm264, %v871, 0.0
    %v886 = vadd.f32 %v884, %v885
    %v887 = vrot.slane %v886, 4
    %v888 = vadd.f32 %v886, %v887
    %v889 = vrot.slane %v888, 2
    %v890 = vadd.f32 %v888, %v889
    %v891 = vrot.slane %v890, 1
    %v892 = vadd.f32 %v890, %v891
    %v893 = vmul.f32 %v892, 0.015625
    %v894 = vsub.f32 %v864, %v893
    %v895 = vsub.f32 %v865, %v893
    %v896 = vsub.f32 %v866, %v893
    %v897 = vsub.f32 %v867, %v893
    %v898 = vsub.f32 %v868, %v893
    %v899 = vsub.f32 %v869, %v893
    %v900 = vsub.f32 %v870, %v893
    %v901 = vsub.f32 %v871, %v893
    %v902 = vmul.f32 %v894, %v894
    %v903 = vmul.f32 %v895, %v895
    %v904 = vmul.f32 %v896, %v896
    %v905 = vmul.f32 %v897, %v897
    %v906 = vmul.f32 %v898, %v898
    %v907 = vmul.f32 %v899, %v899
    %v908 = vmul.f32 %v900, %v900
    %v909 = vmul.f32 %v901, %v901
    %v910 = vsel %vm264, %v902, 0.0
    %v911 = vsel %vm264, %v903, 0.0
    %v912 = vadd.f32 %v910, %v911
    %v913 = vsel %vm264, %v904, 0.0
    %v914 = vadd.f32 %v912, %v913
    %v915 = vsel %vm264, %v905, 0.0
    %v916 = vadd.f32 %v914, %v915
    %v917 = vsel %vm264, %v906, 0.0
    %v918 = vadd.f32 %v916, %v917
    %v919 = vsel %vm264, %v907, 0.0
    %v920 = vadd.f32 %v918, %v919
    %v921 = vsel %vm264, %v908, 0.0
    %v922 = vadd.f32 %v920, %v921
    %v923 = vsel %vm264, %v909, 0.0
    %v924 = vadd.f32 %v922, %v923
    %v925 = vrot.slane %v924, 4
    %v926 = vadd.f32 %v924, %v925
    %v927 = vrot.slane %v926, 2
    %v928 = vadd.f32 %v926, %v927
    %v929 = vrot.slane %v928, 1
    %v930 = vadd.f32 %v928, %v929
    %v931 = vmul.f32 %v930, 0.015625
    %v932 = vadd.f32 %v931, 1e-05
    %v933 = vrsqrt.pop %v932
    %v934 = vmul.f32 %v894, %v933
    %v935 = vmul.f32 %v895, %v933
    %v936 = vmul.f32 %v896, %v933
    %v937 = vmul.f32 %v897, %v933
    %v938 = vmul.f32 %v898, %v933
    %v939 = vmul.f32 %v899, %v933
    %v940 = vmul.f32 %v900, %v933
    %v941 = vmul.f32 %v901, %v933
    %v943 = vlaneseq
    %v944 = vshrl.u32 %v943, 7
    %v945 = vsub.s32 0, %v944
    %v946 = vrot.slane %v65, %v945
    %v948 = vmul.f32 %v934, %v946
    %v949 = vmul.f32 %v935, %v946
    %v950 = vmul.f32 %v936, %v946
    %v951 = vmul.f32 %v937, %v946
    %v952 = vmul.f32 %v938, %v946
    %v953 = vmul.f32 %v939, %v946
    %v954 = vmul.f32 %v940, %v946
    %v955 = vmul.f32 %v941, %v946
    %v957 = vlaneseq
    %v958 = vshrl.u32 %v957, 7
    %v959 = vsub.s32 0, %v958
    %v960 = vrot.slane %v66, %v959
    %v962 = vadd.f32 %v948, %v960
    %v963 = vadd.f32 %v949, %v960
    %v964 = vadd.f32 %v950, %v960
    %v965 = vadd.f32 %v951, %v960
    %v966 = vadd.f32 %v952, %v960
    %v967 = vadd.f32 %v953, %v960
    %v968 = vadd.f32 %v954, %v960
    %v969 = vadd.f32 %v955, %v960
    %v970 = vmax.f32 %v962, 0.0
    %v971 = vmax.f32 %v963, 0.0
    %v972 = vmax.f32 %v964, 0.0
    %v973 = vmax.f32 %v965, 0.0
    %v974 = vmax.f32 %v966, 0.0
    %v975 = vmax.f32 %v967, 0.0
    %v976 = vmax.f32 %v968, 0.0
    %v977 = vmax.f32 %v969, 0.0
    %v978 = vld [vmem:[%s1] sm:$0x1]
    %v980 = vlaneseq
    %v981 = vshrl.u32 %v980, 7
    %v982 = vsub.s32 0, %v981
    %v983 = vrot.slane %v978, %v982
    %v985 = vadd.f32 %v970, %v983
    %v986 = vadd.f32 %v971, %v983
    %v987 = vadd.f32 %v972, %v983
    %v988 = vadd.f32 %v973, %v983
    %v989 = vadd.f32 %v974, %v983
    %v990 = vadd.f32 %v975, %v983
    %v991 = vadd.f32 %v976, %v983
    %v992 = vadd.f32 %v977, %v983
    %v993 = vpack.c.bf16 %v985, %v985
    %v994 = vpack.c.bf16 %v986, %v986
    %v995 = vpack.c.bf16 %v987, %v987
    %v996 = vpack.c.bf16 %v988, %v988
    %v997 = vpack.c.bf16 %v989, %v989
    %v998 = vpack.c.bf16 %v990, %v990
    %v999 = vpack.c.bf16 %v991, %v991
    %v1000 = vpack.c.bf16 %v992, %v992
    %v1002 = vshrl.u32 %v993, 16
    %v1004 = vrot.slane %v1002, 7
    %v1005 = vshll.u32 %v993, 16
    %v1007 = vor.u32 %v1004, %v1005
    %v1009 = vshrl.u32 %v994, 16
    %v1011 = vrot.slane %v1009, 7
    %v1012 = vshll.u32 %v994, 16
    %v1014 = vor.u32 %v1011, %v1012
    %v1016 = vshrl.u32 %v995, 16
    %v1018 = vrot.slane %v1016, 7
    %v1019 = vshll.u32 %v995, 16
    %v1021 = vor.u32 %v1018, %v1019
    %v1023 = vshrl.u32 %v996, 16
    %v1025 = vrot.slane %v1023, 7
    %v1026 = vshll.u32 %v996, 16
    %v1028 = vor.u32 %v1025, %v1026
    %v1030 = vshrl.u32 %v997, 16
    %v1032 = vrot.slane %v1030, 7
    %v1033 = vshll.u32 %v997, 16
    %v1035 = vor.u32 %v1032, %v1033
    %v1037 = vshrl.u32 %v998, 16
    %v1039 = vrot.slane %v1037, 7
    %v1040 = vshll.u32 %v998, 16
    %v1042 = vor.u32 %v1039, %v1040
    %v1044 = vshrl.u32 %v999, 16
    %v1046 = vrot.slane %v1044, 7
    %v1047 = vshll.u32 %v999, 16
    %v1049 = vor.u32 %v1046, %v1047
    %v1051 = vshrl.u32 %v1000, 16
    %v1053 = vrot.slane %v1051, 7
    %v1054 = vshll.u32 %v1000, 16
    %v1056 = vor.u32 %v1053, %v1054
    %v1065 = vsel %vm188, 0, %v1007
    %v1066 = vsel %vm188, 0, %v1014
    %v1067 = vsel %vm188, 0, %v1021
    %v1068 = vsel %vm188, 0, %v1028
    %v1069 = vsel %vm188, 0, %v1035
    %v1070 = vsel %vm188, 0, %v1042
    %v1071 = vsel %vm188, 0, %v1049
    %v1072 = vsel %vm188, 0, %v1056
    %v1073 = vsel %vm199, %v1065, 0
    %v1074 = vsel %vm199, %v1066, 0
    %v1075 = vsel %vm199, %v1067, 0
    %v1076 = vsel %vm199, %v1068, 0
    %v1077 = vsel %vm199, %v1069, 0
    %v1078 = vsel %vm199, %v1070, 0
    %v1079 = vsel %vm199, %v1071, 0
    %v1080 = vsel %vm199, %v1072, 0
    %v1088 = vunpack.c.l.b16 %v1073
    %v1089 = vunpack.c.l.b16 %v1074
    %v1090 = vunpack.c.l.b16 %v1075
    %v1091 = vunpack.c.l.b16 %v1076
    %v1092 = vunpack.c.l.b16 %v1077
    %v1093 = vunpack.c.l.b16 %v1078
    %v1094 = vunpack.c.l.b16 %v1079
    %v1095 = vpack.c.b16 %v1088, %v216
    %v1096 = vpack.c.b16 %v1090, %v1089
    %v1097 = vpack.c.b16 %v1092, %v1091
    %v1098 = vpack.c.b16 %v1094, %v1093
    %v1100 = vunpack.c.l.b16 %v1080
    %v1101 = vpack.c.b16 %v1089, %v1088
    %v1102 = vpack.c.b16 %v1091, %v1090
    %v1103 = vpack.c.b16 %v1093, %v1092
    %v1104 = vpack.c.b16 %v1100, %v1094
    %1105 = vrot.lane.b32.xlu0 %v1101, 32
    %v1106 = vpop.permute.xlu0 %1105
    %1107 = vrot.lane.b32.xlu0 %v1102, 32
    %v1108 = vpop.permute.xlu0 %1107
    %1109 = vrot.lane.b32.xlu0 %v1103, 32
    %v1110 = vpop.permute.xlu0 %1109
    %1111 = vrot.lane.b32.xlu0 %v1104, 32
    %v1112 = vpop.permute.xlu0 %1111
    %v1113 = vpack.c.b16 %v216, %v1100
    %1114 = vrot.lane.b32.xlu0 %v1096, 64
    %v1115 = vpop.permute.xlu0 %1114
    %1116 = vrot.lane.b32.xlu0 %v1097, 64
    %v1117 = vpop.permute.xlu0 %1116
    %1118 = vrot.lane.b32.xlu0 %v1098, 64
    %v1119 = vpop.permute.xlu0 %1118
    %1120 = vrot.lane.b32.xlu0 %v1113, 64
    %v1121 = vpop.permute.xlu0 %1120
    %v1124 = vsel %vm264, %v1095, %v1106
    %v1127 = vsel %vm264, %v1096, %v1108
    %v1130 = vsel %vm264, %v1097, %v1110
    %v1133 = vsel %vm264, %v1098, %v1112
    %vm1134 = vcmask 523264
    %v1136 = vsel %vm1134, %v1124, %v1115
    %v1138 = vsel %vm1134, %v1127, %v1117
    %v1140 = vsel %vm1134, %v1130, %v1119
    %v1142 = vsel %vm1134, %v1133, %v1121
    %v1144 = vlaneseq
    %v1145 = vshrl.u32 %v1144, 7
    %v1146 = vsub.s32 0, %v1145
    %v1147 = vrot.slane %v103, %v1146
    %v1161 = vunpack.c.l.b16 %v67
    %v1162 = vunpack.c.l.b16 %v68
    %v1163 = vunpack.c.l.b16 %v69
    %v1164 = vunpack.c.l.b16 %v70
    %v1165 = vunpack.c.l.b16 %v71
    %v1166 = vunpack.c.l.b16 %v72
    %v1167 = vunpack.c.l.b16 %v73
    %v1168 = vunpack.c.l.b16 %v74
    %v1169 = vunpack.c.l.b16 %v75
    %v1170 = vunpack.c.l.b16 %v76
    %v1171 = vunpack.c.l.b16 %v77
    %v1172 = vunpack.c.l.b16 %v78
    %v1173 = vpack.c.b16 %v1162, %v1161
    %v1174 = vpack.c.b16 %v1164, %v1163
    %v1175 = vpack.c.b16 %v1166, %v1165
    %v1176 = vpack.c.b16 %v1168, %v1167
    %v1177 = vpack.c.b16 %v1170, %v1169
    %v1178 = vpack.c.b16 %v1172, %v1171
    %vm1185 = vcmask 785408
    %v1186 = vsel %vm1185, %v1136, 0
    %v1188 = vsel %vm1185, %v1138, 0
    %v1190 = vsel %vm1185, %v1140, 0
    %v1192 = vsel %vm1185, %v1142, 0
    %1194 = vmatprep.subr.bf16.mxu0 0
    %1195 = vmatpush1.bf16.msra.mxu0 %v1173
    %1196 = vmatprep.subr.bf16.mxu0 0
    %1197 = vmatpush1.bf16.msra.mxu0 %v1174
    %1198 = vmatprep.subr.bf16.mxu0 0
    %1199 = vmatpush1.bf16.msra.mxu0 %v1175
    %1200 = vmatprep.subr.bf16.mxu0 0
    %1201 = vmatpush1.bf16.msra.mxu0 %v1176
    %1202 = vmatprep.subr.bf16.mxu0 0
    %1203 = vmatpush1.bf16.msra.mxu0 %v1177
    %1204 = vmatprep.subr.bf16.mxu0 0
    %1205 = vmatpush1.bf16.msra.mxu0 %v1178
    %1206 = vmatprep.subr.bf16.mxu0 0
    %1207 = vmatpush1.bf16.msra.mxu0 0
    %1208 = vmatprep.subr.bf16.mxu0 0
    %1209 = vmatpush1.bf16.msra.mxu0 0
    %1210 = vmatprep.subr.bf16.mxu0 0
    %1211 = vmatpush1.bf16.msra.mxu0 0
    %1212 = vmatprep.subr.bf16.mxu0 0
    %1213 = vmatpush1.bf16.msra.mxu0 0
    %1214 = vmatprep.subr.bf16.mxu0 0
    %1215 = vmatpush1.bf16.msra.mxu0 0
    %1216 = vmatprep.subr.bf16.mxu0 0
    %1217 = vmatpush1.bf16.msra.mxu0 0
    %1218 = vmatprep.subr.bf16.mxu0 0
    %1219 = vmatpush1.bf16.msra.mxu0 0
    %1220 = vmatprep.subr.bf16.mxu0 0
    %1221 = vmatpush1.bf16.msra.mxu0 0
    %1222 = vmatprep.subr.bf16.mxu0 0
    %1223 = vmatpush1.bf16.msra.mxu0 0
    %1224 = vmatprep.subr.bf16.mxu0 0
    %1225 = vmatpush1.bf16.msra.mxu0 0
    %1226 = vmatprep.mubr.bf16.mxu0 0
    %1227 = vmatmul.mubr.bf16.gmra.mrb[0].mxu0 %v1186
    %v1228 = vpop.f32.mrb[0].mxu0
    %v1229 = vadd.f32 %v1147, %v1228
    %v1230 = vpop.f32.mrb[0].mxu0
    %v1231 = vpop.f32.mrb[0].mxu0
    %v1232 = vadd.f32 %v1147, %v1231
    %v1233 = vpop.f32.mrb[0].mxu0
    %1234 = vmatprep.mubr.bf16.mxu0 0
    %1235 = vmatmul.mubr.bf16.gmra.mrb[0].mxu0 %v1188
    %v1236 = vpop.f32.mrb[0].mxu0
    %v1237 = vadd.f32 %v1147, %v1236
    %v1238 = vpop.f32.mrb[0].mxu0
    %v1239 = vpop.f32.mrb[0].mxu0
    %v1240 = vadd.f32 %v1147, %v1239
    %v1241 = vpop.f32.mrb[0].mxu0
    %1242 = vmatprep.mubr.bf16.mxu0 0
    %1243 = vmatmul.mubr.bf16.gmra.mrb[0].mxu0 %v1190
    %v1244 = vpop.f32.mrb[0].mxu0
    %v1245 = vadd.f32 %v1147, %v1244
    %v1246 = vpop.f32.mrb[0].mxu0
    %v1247 = vpop.f32.mrb[0].mxu0
    %v1248 = vadd.f32 %v1147, %v1247
    %v1249 = vpop.f32.mrb[0].mxu0
    %1250 = vmatprep.mubr.bf16.mxu0 0
    %1251 = vmatmul.mubr.bf16.gmra.mrb[0].mxu0 %v1192
    %v1252 = vpop.f32.mrb[0].mxu0
    %v1253 = vadd.f32 %v1147, %v1252
    %v1254 = vpop.f32.mrb[0].mxu0
    %v1255 = vpop.f32.mrb[0].mxu0
    %v1256 = vadd.f32 %v1147, %v1255
    %v1257 = vpop.f32.mrb[0].mxu0
    %1258 = vdwg.mxu0
    %v1259 = vunpack.c.h.b16 %v1073
    %v1260 = vunpack.c.h.b16 %v1074
    %v1261 = vunpack.c.h.b16 %v1075
    %v1262 = vunpack.c.h.b16 %v1076
    %v1263 = vunpack.c.h.b16 %v1077
    %v1264 = vunpack.c.h.b16 %v1078
    %v1265 = vunpack.c.h.b16 %v1079
    %v1266 = vunpack.c.h.b16 %v1080
    %v1267 = vpack.c.b16 %v1088, %v1088
    %v1268 = vpack.c.b16 %v1259, %v1259
    %v1269 = vpack.c.b16 %v1089, %v1089
    %v1270 = vpack.c.b16 %v1260, %v1260
    %v1271 = vpack.c.b16 %v1090, %v1090
    %v1272 = vpack.c.b16 %v1261, %v1261
    %v1273 = vpack.c.b16 %v1091, %v1091
    %v1274 = vpack.c.b16 %v1262, %v1262
    %v1275 = vpack.c.b16 %v1092, %v1092
    %v1276 = vpack.c.b16 %v1263, %v1263
    %v1277 = vpack.c.b16 %v1093, %v1093
    %v1278 = vpack.c.b16 %v1264, %v1264
    %v1279 = vpack.c.b16 %v1094, %v1094
    %v1280 = vpack.c.b16 %v1265, %v1265
    %v1281 = vpack.c.b16 %v1100, %v1100
    %v1282 = vpack.c.b16 %v1266, %v1266
    %v1284 = vshrl.u32 %v1267, 16
    %v1286 = vrot.slane %v1284, 4
    %v1287 = vshll.u32 %v1267, 16
    %v1289 = vrot.slane %v1287, 5
    %v1290 = vor.u32 %v1286, %v1289
    %v1291 = vrot.slane %v1290, 4
    %v1293 = vshll.u32 %v1268, 16
    %v1295 = vrot.slane %v1293, 5
    %v1296 = vsel %vm400, %v1291, %v1295
    %v1298 = vshrl.u32 %v1269, 16
    %v1300 = vrot.slane %v1298, 4
    %v1301 = vshll.u32 %v1269, 16
    %v1303 = vrot.slane %v1301, 5
    %v1304 = vor.u32 %v1300, %v1303
    %v1305 = vrot.slane %v1304, 4
    %v1307 = vshll.u32 %v1270, 16
    %v1309 = vrot.slane %v1307, 5
    %v1310 = vsel %vm400, %v1305, %v1309
    %v1312 = vshrl.u32 %v1271, 16
    %v1314 = vrot.slane %v1312, 4
    %v1315 = vshll.u32 %v1271, 16
    %v1317 = vrot.slane %v1315, 5
    %v1318 = vor.u32 %v1314, %v1317
    %v1319 = vrot.slane %v1318, 4
    %v1321 = vshll.u32 %v1272, 16
    %v1323 = vrot.slane %v1321, 5
    %v1324 = vsel %vm400, %v1319, %v1323
    %v1326 = vshrl.u32 %v1273, 16
    %v1328 = vrot.slane %v1326, 4
    %v1329 = vshll.u32 %v1273, 16
    %v1331 = vrot.slane %v1329, 5
    %v1332 = vor.u32 %v1328, %v1331
    %v1333 = vrot.slane %v1332, 4
    %v1335 = vshll.u32 %v1274, 16
    %v1337 = vrot.slane %v1335, 5
    %v1338 = vsel %vm400, %v1333, %v1337
    %v1340 = vshrl.u32 %v1275, 16
    %v1342 = vrot.slane %v1340, 4
    %v1343 = vshll.u32 %v1275, 16
    %v1345 = vrot.slane %v1343, 5
    %v1346 = vor.u32 %v1342, %v1345
    %v1347 = vrot.slane %v1346, 4
    %v1349 = vshll.u32 %v1276, 16
    %v1351 = vrot.slane %v1349, 5
    %v1352 = vsel %vm400, %v1347, %v1351
    %v1354 = vshrl.u32 %v1277, 16
    %v1356 = vrot.slane %v1354, 4
    %v1357 = vshll.u32 %v1277, 16
    %v1359 = vrot.slane %v1357, 5
    %v1360 = vor.u32 %v1356, %v1359
    %v1361 = vrot.slane %v1360, 4
    %v1363 = vshll.u32 %v1278, 16
    %v1365 = vrot.slane %v1363, 5
    %v1366 = vsel %vm400, %v1361, %v1365
    %v1368 = vshrl.u32 %v1279, 16
    %v1370 = vrot.slane %v1368, 4
    %v1371 = vshll.u32 %v1279, 16
    %v1373 = vrot.slane %v1371, 5
    %v1374 = vor.u32 %v1370, %v1373
    %v1375 = vrot.slane %v1374, 4
    %v1377 = vshll.u32 %v1280, 16
    %v1379 = vrot.slane %v1377, 5
    %v1380 = vsel %vm400, %v1375, %v1379
    %v1382 = vshrl.u32 %v1281, 16
    %v1384 = vrot.slane %v1382, 4
    %v1385 = vshll.u32 %v1281, 16
    %v1387 = vrot.slane %v1385, 5
    %v1388 = vor.u32 %v1384, %v1387
    %v1389 = vrot.slane %v1388, 4
    %v1391 = vshll.u32 %v1282, 16
    %v1393 = vrot.slane %v1391, 5
    %v1394 = vsel %vm400, %v1389, %v1393
    %v1395 = vunpack.c.l.b16 %v1296
    %v1396 = vunpack.c.l.b16 %v1310
    %v1397 = vunpack.c.l.b16 %v1324
    %v1398 = vunpack.c.l.b16 %v1338
    %v1399 = vunpack.c.l.b16 %v1352
    %v1400 = vunpack.c.l.b16 %v1366
    %v1401 = vunpack.c.l.b16 %v1380
    %v1402 = vpack.c.b16 %v1395, %v527
    %v1403 = vpack.c.b16 %v1397, %v1396
    %v1404 = vpack.c.b16 %v1399, %v1398
    %v1405 = vpack.c.b16 %v1401, %v1400
    %v1406 = vunpack.c.l.b16 %v1394
    %v1407 = vpack.c.b16 %v1396, %v1395
    %v1408 = vpack.c.b16 %v1398, %v1397
    %v1409 = vpack.c.b16 %v1400, %v1399
    %v1410 = vpack.c.b16 %v1406, %v1401
    %1411 = vrot.lane.b32.xlu0 %v1407, 32
    %v1412 = vpop.permute.xlu0 %1411
    %1413 = vrot.lane.b32.xlu0 %v1408, 32
    %v1414 = vpop.permute.xlu0 %1413
    %1415 = vrot.lane.b32.xlu0 %v1409, 32
    %v1416 = vpop.permute.xlu0 %1415
    %1417 = vrot.lane.b32.xlu0 %v1410, 32
    %v1418 = vpop.permute.xlu0 %1417
    %v1419 = vpack.c.b16 %v527, %v1406
    %1420 = vrot.lane.b32.xlu0 %v1403, 64
    %v1421 = vpop.permute.xlu0 %1420
    %1422 = vrot.lane.b32.xlu0 %v1404, 64
    %v1423 = vpop.permute.xlu0 %1422
    %1424 = vrot.lane.b32.xlu0 %v1405, 64
    %v1425 = vpop.permute.xlu0 %1424
    %1426 = vrot.lane.b32.xlu0 %v1419, 64
    %v1427 = vpop.permute.xlu0 %1426
    %v1430 = vsel %vm264, %v1402, %v1412
    %v1433 = vsel %vm264, %v1403, %v1414
    %v1436 = vsel %vm264, %v1404, %v1416
    %v1439 = vsel %vm264, %v1405, %v1418
    %v1441 = vsel %vm1134, %v1430, %v1421
    %v1443 = vsel %vm1134, %v1433, %v1423
    %v1445 = vsel %vm1134, %v1436, %v1425
    %v1447 = vsel %vm1134, %v1439, %v1427
    %v1460 = vunpack.c.l.b16 %v79
    %v1461 = vunpack.c.l.b16 %v80
    %v1462 = vunpack.c.l.b16 %v81
    %v1463 = vunpack.c.l.b16 %v82
    %v1464 = vunpack.c.l.b16 %v83
    %v1465 = vunpack.c.l.b16 %v84
    %v1466 = vunpack.c.l.b16 %v85
    %v1467 = vunpack.c.l.b16 %v86
    %v1468 = vunpack.c.l.b16 %v87
    %v1469 = vunpack.c.l.b16 %v88
    %v1470 = vunpack.c.l.b16 %v89
    %v1471 = vunpack.c.l.b16 %v90
    %v1472 = vpack.c.b16 %v1461, %v1460
    %v1473 = vpack.c.b16 %v1463, %v1462
    %v1474 = vpack.c.b16 %v1465, %v1464
    %v1475 = vpack.c.b16 %v1467, %v1466
    %v1476 = vpack.c.b16 %v1469, %v1468
    %v1477 = vpack.c.b16 %v1471, %v1470
    %v1484 = vsel %vm1185, %v1441, 0
    %v1486 = vsel %vm1185, %v1443, 0
    %v1488 = vsel %vm1185, %v1445, 0
    %v1490 = vsel %vm1185, %v1447, 0
    %1492 = vmatprep.subr.bf16.mxu0 0
    %1493 = vmatpush1.bf16.msra.mxu0 %v1472
    %1494 = vmatprep.subr.bf16.mxu0 0
    %1495 = vmatpush1.bf16.msra.mxu0 %v1473
    %1496 = vmatprep.subr.bf16.mxu0 0
    %1497 = vmatpush1.bf16.msra.mxu0 %v1474
    %1498 = vmatprep.subr.bf16.mxu0 0
    %1499 = vmatpush1.bf16.msra.mxu0 %v1475
    %1500 = vmatprep.subr.bf16.mxu0 0
    %1501 = vmatpush1.bf16.msra.mxu0 %v1476
    %1502 = vmatprep.subr.bf16.mxu0 0
    %1503 = vmatpush1.bf16.msra.mxu0 %v1477
    %1504 = vmatprep.subr.bf16.mxu0 0
    %1505 = vmatpush1.bf16.msra.mxu0 0
    %1506 = vmatprep.subr.bf16.mxu0 0
    %1507 = vmatpush1.bf16.msra.mxu0 0
    %1508 = vmatprep.subr.bf16.mxu0 0
    %1509 = vmatpush1.bf16.msra.mxu0 0
    %1510 = vmatprep.subr.bf16.mxu0 0
    %1511 = vmatpush1.bf16.msra.mxu0 0
    %1512 = vmatprep.subr.bf16.mxu0 0
    %1513 = vmatpush1.bf16.msra.mxu0 0
    %1514 = vmatprep.subr.bf16.mxu0 0
    %1515 = vmatpush1.bf16.msra.mxu0 0
    %1516 = vmatprep.subr.bf16.mxu0 0
    %1517 = vmatpush1.bf16.msra.mxu0 0
    %1518 = vmatprep.subr.bf16.mxu0 0
    %1519 = vmatpush1.bf16.msra.mxu0 0
    %1520 = vmatprep.subr.bf16.mxu0 0
    %1521 = vmatpush1.bf16.msra.mxu0 0
    %1522 = vmatprep.subr.bf16.mxu0 0
    %1523 = vmatpush1.bf16.msra.mxu0 0
    %1524 = vmatprep.mubr.bf16.mxu0 0
    %1525 = vmatmul.mubr.bf16.gmra.mrb[0].mxu0 %v1484
    %v1526 = vpop.f32.mrb[0].mxu0
    %v1527 = vadd.f32 0.0, %v1526
    %v1528 = vpop.f32.mrb[0].mxu0
    %v1529 = vpop.f32.mrb[0].mxu0
    %v1530 = vadd.f32 0.0, %v1529
    %v1531 = vpop.f32.mrb[0].mxu0
    %1532 = vmatprep.mubr.bf16.mxu0 0
    %1533 = vmatmul.mubr.bf16.gmra.mrb[0].mxu0 %v1486
    %v1534 = vpop.f32.mrb[0].mxu0
    %v1535 = vadd.f32 0.0, %v1534
    %v1536 = vpop.f32.mrb[0].mxu0
    %v1537 = vpop.f32.mrb[0].mxu0
    %v1538 = vadd.f32 0.0, %v1537
    %v1539 = vpop.f32.mrb[0].mxu0
    %1540 = vmatprep.mubr.bf16.mxu0 0
    %1541 = vmatmul.mubr.bf16.gmra.mrb[0].mxu0 %v1488
    %v1542 = vpop.f32.mrb[0].mxu0
    %v1543 = vadd.f32 0.0, %v1542
    %v1544 = vpop.f32.mrb[0].mxu0
    %v1545 = vpop.f32.mrb[0].mxu0
    %v1546 = vadd.f32 0.0, %v1545
    %v1547 = vpop.f32.mrb[0].mxu0
    %1548 = vmatprep.mubr.bf16.mxu0 0
    %1549 = vmatmul.mubr.bf16.gmra.mrb[0].mxu0 %v1490
    %v1550 = vpop.f32.mrb[0].mxu0
    %v1551 = vadd.f32 0.0, %v1550
    %v1552 = vpop.f32.mrb[0].mxu0
    %v1553 = vpop.f32.mrb[0].mxu0
    %v1554 = vadd.f32 0.0, %v1553
    %v1555 = vpop.f32.mrb[0].mxu0
    %1556 = vdwg.mxu0
    %v1557 = vadd.f32 %v1229, %v1527
    %v1558 = vadd.f32 %v1232, %v1530
    %v1559 = vadd.f32 %v1237, %v1535
    %v1560 = vadd.f32 %v1240, %v1538
    %v1561 = vadd.f32 %v1245, %v1543
    %v1562 = vadd.f32 %v1248, %v1546
    %v1563 = vadd.f32 %v1253, %v1551
    %v1564 = vadd.f32 %v1256, %v1554
    %v1565 = vrot.slane %v1267, 5
    %v1566 = vrot.slane %v1565, 4
    %v1567 = vrot.slane %v1268, 5
    %v1568 = vsel %vm682, %v1566, %v1567
    %v1569 = vrot.slane %v1269, 5
    %v1570 = vrot.slane %v1569, 4
    %v1571 = vrot.slane %v1270, 5
    %v1572 = vsel %vm682, %v1570, %v1571
    %v1573 = vrot.slane %v1271, 5
    %v1574 = vrot.slane %v1573, 4
    %v1575 = vrot.slane %v1272, 5
    %v1576 = vsel %vm682, %v1574, %v1575
    %v1577 = vrot.slane %v1273, 5
    %v1578 = vrot.slane %v1577, 4
    %v1579 = vrot.slane %v1274, 5
    %v1580 = vsel %vm682, %v1578, %v1579
    %v1581 = vrot.slane %v1275, 5
    %v1582 = vrot.slane %v1581, 4
    %v1583 = vrot.slane %v1276, 5
    %v1584 = vsel %vm682, %v1582, %v1583
    %v1585 = vrot.slane %v1277, 5
    %v1586 = vrot.slane %v1585, 4
    %v1587 = vrot.slane %v1278, 5
    %v1588 = vsel %vm682, %v1586, %v1587
    %v1589 = vrot.slane %v1279, 5
    %v1590 = vrot.slane %v1589, 4
    %v1591 = vrot.slane %v1280, 5
    %v1592 = vsel %vm682, %v1590, %v1591
    %v1593 = vrot.slane %v1281, 5
    %v1594 = vrot.slane %v1593, 4
    %v1595 = vrot.slane %v1282, 5
    %v1596 = vsel %vm682, %v1594, %v1595
    %v1597 = vunpack.c.l.b16 %v1568
    %v1598 = vunpack.c.l.b16 %v1572
    %v1599 = vunpack.c.l.b16 %v1576
    %v1600 = vunpack.c.l.b16 %v1580
    %v1601 = vunpack.c.l.b16 %v1584
    %v1602 = vunpack.c.l.b16 %v1588
    %v1603 = vunpack.c.l.b16 %v1592
    %v1604 = vpack.c.b16 %v1597, %v719
    %v1605 = vpack.c.b16 %v1599, %v1598
    %v1606 = vpack.c.b16 %v1601, %v1600
    %v1607 = vpack.c.b16 %v1603, %v1602
    %v1608 = vunpack.c.l.b16 %v1596
    %v1609 = vpack.c.b16 %v1598, %v1597
    %v1610 = vpack.c.b16 %v1600, %v1599
    %v1611 = vpack.c.b16 %v1602, %v1601
    %v1612 = vpack.c.b16 %v1608, %v1603
    %1613 = vrot.lane.b32.xlu0 %v1609, 32
    %v1614 = vpop.permute.xlu0 %1613
    %1615 = vrot.lane.b32.xlu0 %v1610, 32
    %v1616 = vpop.permute.xlu0 %1615
    %1617 = vrot.lane.b32.xlu0 %v1611, 32
    %v1618 = vpop.permute.xlu0 %1617
    %1619 = vrot.lane.b32.xlu0 %v1612, 32
    %v1620 = vpop.permute.xlu0 %1619
    %v1621 = vpack.c.b16 %v719, %v1608
    %1622 = vrot.lane.b32.xlu0 %v1605, 64
    %v1623 = vpop.permute.xlu0 %1622
    %1624 = vrot.lane.b32.xlu0 %v1606, 64
    %v1625 = vpop.permute.xlu0 %1624
    %1626 = vrot.lane.b32.xlu0 %v1607, 64
    %v1627 = vpop.permute.xlu0 %1626
    %1628 = vrot.lane.b32.xlu0 %v1621, 64
    %v1629 = vpop.permute.xlu0 %1628
    %v1632 = vsel %vm264, %v1604, %v1614
    %v1635 = vsel %vm264, %v1605, %v1616
    %v1638 = vsel %vm264, %v1606, %v1618
    %v1641 = vsel %vm264, %v1607, %v1620
    %v1643 = vsel %vm1134, %v1632, %v1623
    %v1645 = vsel %vm1134, %v1635, %v1625
    %v1647 = vsel %vm1134, %v1638, %v1627
    %v1649 = vsel %vm1134, %v1641, %v1629
    %v1662 = vunpack.c.l.b16 %v91
    %v1663 = vunpack.c.l.b16 %v92
    %v1664 = vunpack.c.l.b16 %v93
    %v1665 = vunpack.c.l.b16 %v94
    %v1666 = vunpack.c.l.b16 %v95
    %v1667 = vunpack.c.l.b16 %v96
    %v1668 = vunpack.c.l.b16 %v97
    %v1669 = vunpack.c.l.b16 %v98
    %v1670 = vunpack.c.l.b16 %v99
    %v1671 = vunpack.c.l.b16 %v100
    %v1672 = vunpack.c.l.b16 %v101
    %v1673 = vunpack.c.l.b16 %v102
    %v1674 = vpack.c.b16 %v1663, %v1662
    %v1675 = vpack.c.b16 %v1665, %v1664
    %v1676 = vpack.c.b16 %v1667, %v1666
    %v1677 = vpack.c.b16 %v1669, %v1668
    %v1678 = vpack.c.b16 %v1671, %v1670
    %v1679 = vpack.c.b16 %v1673, %v1672
    %v1686 = vsel %vm1185, %v1643, 0
    %v1688 = vsel %vm1185, %v1645, 0
    %v1690 = vsel %vm1185, %v1647, 0
    %v1692 = vsel %vm1185, %v1649, 0
    %1694 = vmatprep.subr.bf16.mxu0 0
    %1695 = vmatpush1.bf16.msra.mxu0 %v1674
    %1696 = vmatprep.subr.bf16.mxu0 0
    %1697 = vmatpush1.bf16.msra.mxu0 %v1675
    %1698 = vmatprep.subr.bf16.mxu0 0
    %1699 = vmatpush1.bf16.msra.mxu0 %v1676
    %1700 = vmatprep.subr.bf16.mxu0 0
    %1701 = vmatpush1.bf16.msra.mxu0 %v1677
    %1702 = vmatprep.subr.bf16.mxu0 0
    %1703 = vmatpush1.bf16.msra.mxu0 %v1678
    %1704 = vmatprep.subr.bf16.mxu0 0
    %1705 = vmatpush1.bf16.msra.mxu0 %v1679
    %1706 = vmatprep.subr.bf16.mxu0 0
    %1707 = vmatpush1.bf16.msra.mxu0 0
    %1708 = vmatprep.subr.bf16.mxu0 0
    %1709 = vmatpush1.bf16.msra.mxu0 0
    %1710 = vmatprep.subr.bf16.mxu0 0
    %1711 = vmatpush1.bf16.msra.mxu0 0
    %1712 = vmatprep.subr.bf16.mxu0 0
    %1713 = vmatpush1.bf16.msra.mxu0 0
    %1714 = vmatprep.subr.bf16.mxu0 0
    %1715 = vmatpush1.bf16.msra.mxu0 0
    %1716 = vmatprep.subr.bf16.mxu0 0
    %1717 = vmatpush1.bf16.msra.mxu0 0
    %1718 = vmatprep.subr.bf16.mxu0 0
    %1719 = vmatpush1.bf16.msra.mxu0 0
    %1720 = vmatprep.subr.bf16.mxu0 0
    %1721 = vmatpush1.bf16.msra.mxu0 0
    %1722 = vmatprep.subr.bf16.mxu0 0
    %1723 = vmatpush1.bf16.msra.mxu0 0
    %1724 = vmatprep.subr.bf16.mxu0 0
    %1725 = vmatpush1.bf16.msra.mxu0 0
    %1726 = vmatprep.mubr.bf16.mxu0 0
    %1727 = vmatmul.mubr.bf16.gmra.mrb[0].mxu0 %v1686
    %v1728 = vpop.f32.mrb[0].mxu0
    %v1729 = vadd.f32 0.0, %v1728
    %v1730 = vpop.f32.mrb[0].mxu0
    %v1731 = vpop.f32.mrb[0].mxu0
    %v1732 = vadd.f32 0.0, %v1731
    %v1733 = vpop.f32.mrb[0].mxu0
    %1734 = vmatprep.mubr.bf16.mxu0 0
    %1735 = vmatmul.mubr.bf16.gmra.mrb[0].mxu0 %v1688
    %v1736 = vpop.f32.mrb[0].mxu0
    %v1737 = vadd.f32 0.0, %v1736
    %v1738 = vpop.f32.mrb[0].mxu0
    %v1739 = vpop.f32.mrb[0].mxu0
    %v1740 = vadd.f32 0.0, %v1739
    %v1741 = vpop.f32.mrb[0].mxu0
    %1742 = vmatprep.mubr.bf16.mxu0 0
    %1743 = vmatmul.mubr.bf16.gmra.mrb[0].mxu0 %v1690
    %v1744 = vpop.f32.mrb[0].mxu0
    %v1745 = vadd.f32 0.0, %v1744
    %v1746 = vpop.f32.mrb[0].mxu0
    %v1747 = vpop.f32.mrb[0].mxu0
    %v1748 = vadd.f32 0.0, %v1747
    %v1749 = vpop.f32.mrb[0].mxu0
    %1750 = vmatprep.mubr.bf16.mxu0 0
    %1751 = vmatmul.mubr.bf16.gmra.mrb[0].mxu0 %v1692
    %v1752 = vpop.f32.mrb[0].mxu0
    %v1753 = vadd.f32 0.0, %v1752
    %v1754 = vpop.f32.mrb[0].mxu0
    %v1755 = vpop.f32.mrb[0].mxu0
    %v1756 = vadd.f32 0.0, %v1755
    %v1757 = vpop.f32.mrb[0].mxu0
    %1758 = vdwg.mxu0
    %v1759 = vadd.f32 %v1557, %v1729
    %v1760 = vadd.f32 %v1558, %v1732
    %v1761 = vadd.f32 %v1559, %v1737
    %v1762 = vadd.f32 %v1560, %v1740
    %v1763 = vadd.f32 %v1561, %v1745
    %v1764 = vadd.f32 %v1562, %v1748
    %v1765 = vadd.f32 %v1563, %v1753
    %v1766 = vadd.f32 %v1564, %v1756
    %v1767 = vsel %vm264, %v1759, 0.0
    %v1768 = vsel %vm264, %v1760, 0.0
    %v1769 = vadd.f32 %v1767, %v1768
    %v1770 = vsel %vm264, %v1761, 0.0
    %v1771 = vadd.f32 %v1769, %v1770
    %v1772 = vsel %vm264, %v1762, 0.0
    %v1773 = vadd.f32 %v1771, %v1772
    %v1774 = vsel %vm264, %v1763, 0.0
    %v1775 = vadd.f32 %v1773, %v1774
    %v1776 = vsel %vm264, %v1764, 0.0
    %v1777 = vadd.f32 %v1775, %v1776
    %v1778 = vsel %vm264, %v1765, 0.0
    %v1779 = vadd.f32 %v1777, %v1778
    %v1780 = vsel %vm264, %v1766, 0.0
    %v1781 = vadd.f32 %v1779, %v1780
    %v1782 = vrot.slane %v1781, 4
    %v1783 = vadd.f32 %v1781, %v1782
    %v1784 = vrot.slane %v1783, 2
    %v1785 = vadd.f32 %v1783, %v1784
    %v1786 = vrot.slane %v1785, 1
    %v1787 = vadd.f32 %v1785, %v1786
    %v1788 = vmul.f32 %v1787, 0.015625
    %v1789 = vsub.f32 %v1759, %v1788
    %v1790 = vsub.f32 %v1760, %v1788
    %v1791 = vsub.f32 %v1761, %v1788
    %v1792 = vsub.f32 %v1762, %v1788
    %v1793 = vsub.f32 %v1763, %v1788
    %v1794 = vsub.f32 %v1764, %v1788
    %v1795 = vsub.f32 %v1765, %v1788
    %v1796 = vsub.f32 %v1766, %v1788
    %v1797 = vmul.f32 %v1789, %v1789
    %v1798 = vmul.f32 %v1790, %v1790
    %v1799 = vmul.f32 %v1791, %v1791
    %v1800 = vmul.f32 %v1792, %v1792
    %v1801 = vmul.f32 %v1793, %v1793
    %v1802 = vmul.f32 %v1794, %v1794
    %v1803 = vmul.f32 %v1795, %v1795
    %v1804 = vmul.f32 %v1796, %v1796
    %v1805 = vsel %vm264, %v1797, 0.0
    %v1806 = vsel %vm264, %v1798, 0.0
    %v1807 = vadd.f32 %v1805, %v1806
    %v1808 = vsel %vm264, %v1799, 0.0
    %v1809 = vadd.f32 %v1807, %v1808
    %v1810 = vsel %vm264, %v1800, 0.0
    %v1811 = vadd.f32 %v1809, %v1810
    %v1812 = vsel %vm264, %v1801, 0.0
    %v1813 = vadd.f32 %v1811, %v1812
    %v1814 = vsel %vm264, %v1802, 0.0
    %v1815 = vadd.f32 %v1813, %v1814
    %v1816 = vsel %vm264, %v1803, 0.0
    %v1817 = vadd.f32 %v1815, %v1816
    %v1818 = vsel %vm264, %v1804, 0.0
    %v1819 = vadd.f32 %v1817, %v1818
    %v1820 = vrot.slane %v1819, 4
    %v1821 = vadd.f32 %v1819, %v1820
    %v1822 = vrot.slane %v1821, 2
    %v1823 = vadd.f32 %v1821, %v1822
    %v1824 = vrot.slane %v1823, 1
    %v1825 = vadd.f32 %v1823, %v1824
    %v1826 = vmul.f32 %v1825, 0.015625
    %v1827 = vadd.f32 %v1826, 1e-05
    %v1828 = vrsqrt.pop %v1827
    %v1829 = vmul.f32 %v1789, %v1828
    %v1830 = vmul.f32 %v1790, %v1828
    %v1831 = vmul.f32 %v1791, %v1828
    %v1832 = vmul.f32 %v1792, %v1828
    %v1833 = vmul.f32 %v1793, %v1828
    %v1834 = vmul.f32 %v1794, %v1828
    %v1835 = vmul.f32 %v1795, %v1828
    %v1836 = vmul.f32 %v1796, %v1828
    %v1838 = vlaneseq
    %v1839 = vshrl.u32 %v1838, 7
    %v1840 = vsub.s32 0, %v1839
    %v1841 = vrot.slane %v104, %v1840
    %v1843 = vmul.f32 %v1829, %v1841
    %v1844 = vmul.f32 %v1830, %v1841
    %v1845 = vmul.f32 %v1831, %v1841
    %v1846 = vmul.f32 %v1832, %v1841
    %v1847 = vmul.f32 %v1833, %v1841
    %v1848 = vmul.f32 %v1834, %v1841
    %v1849 = vmul.f32 %v1835, %v1841
    %v1850 = vmul.f32 %v1836, %v1841
    %v1852 = vlaneseq
    %v1853 = vshrl.u32 %v1852, 7
    %v1854 = vsub.s32 0, %v1853
    %v1855 = vrot.slane %v105, %v1854
    %v1857 = vadd.f32 %v1843, %v1855
    %v1858 = vadd.f32 %v1844, %v1855
    %v1859 = vadd.f32 %v1845, %v1855
    %v1860 = vadd.f32 %v1846, %v1855
    %v1861 = vadd.f32 %v1847, %v1855
    %v1862 = vadd.f32 %v1848, %v1855
    %v1863 = vadd.f32 %v1849, %v1855
    %v1864 = vadd.f32 %v1850, %v1855
    %v1865 = vmax.f32 %v1857, 0.0
    %v1866 = vmax.f32 %v1858, 0.0
    %v1867 = vmax.f32 %v1859, 0.0
    %v1868 = vmax.f32 %v1860, 0.0
    %v1869 = vmax.f32 %v1861, 0.0
    %v1870 = vmax.f32 %v1862, 0.0
    %v1871 = vmax.f32 %v1863, 0.0
    %v1872 = vmax.f32 %v1864, 0.0
    %v1874 = vlaneseq
    %v1875 = vshrl.u32 %v1874, 7
    %v1876 = vsub.s32 0, %v1875
    %v1877 = vrot.slane %v45, %v1876
    %v1887 = vunpack.c.l.b16 %v114
    %v1888 = vunpack.c.l.b16 %v115
    %v1889 = vunpack.c.l.b16 %v116
    %v1890 = vunpack.c.l.b16 %v117
    %v1891 = vunpack.c.l.b16 %v118
    %v1892 = vunpack.c.l.b16 %v119
    %v1893 = vunpack.c.l.b16 %v120
    %v1894 = vunpack.c.l.b16 %v121
    %v1895 = vpack.c.b16 %v1888, %v1887
    %v1896 = vpack.c.b16 %v1890, %v1889
    %v1897 = vpack.c.b16 %v1892, %v1891
    %v1898 = vpack.c.b16 %v1894, %v1893
    %v1901 = vunpack.c.l.b16 %v43
    %v1902 = vunpack.c.l.b16 %v44
    %v1903 = vpack.c.b16 %v1902, %v1901
    %v1906 = vsel %vm251, %v1895, 0
    %v1909 = vsel %vm251, %v1896, 0
    %v1912 = vsel %vm251, %v1897, 0
    %v1915 = vsel %vm251, %v1898, 0
    %1917 = vmatprep.subr.bf16.mxu0 0
    %1918 = vmatpush1.bf16.msra.mxu0 %v1903
    %1919 = vmatprep.subr.bf16.mxu0 0
    %1920 = vmatpush1.bf16.msra.mxu0 0
    %1921 = vmatprep.subr.bf16.mxu0 0
    %1922 = vmatpush1.bf16.msra.mxu0 0
    %1923 = vmatprep.subr.bf16.mxu0 0
    %1924 = vmatpush1.bf16.msra.mxu0 0
    %1925 = vmatprep.subr.bf16.mxu0 0
    %1926 = vmatpush1.bf16.msra.mxu0 0
    %1927 = vmatprep.subr.bf16.mxu0 0
    %1928 = vmatpush1.bf16.msra.mxu0 0
    %1929 = vmatprep.subr.bf16.mxu0 0
    %1930 = vmatpush1.bf16.msra.mxu0 0
    %1931 = vmatprep.subr.bf16.mxu0 0
    %1932 = vmatpush1.bf16.msra.mxu0 0
    %1933 = vmatprep.subr.bf16.mxu0 0
    %1934 = vmatpush1.bf16.msra.mxu0 0
    %1935 = vmatprep.subr.bf16.mxu0 0
    %1936 = vmatpush1.bf16.msra.mxu0 0
    %1937 = vmatprep.subr.bf16.mxu0 0
    %1938 = vmatpush1.bf16.msra.mxu0 0
    %1939 = vmatprep.subr.bf16.mxu0 0
    %1940 = vmatpush1.bf16.msra.mxu0 0
    %1941 = vmatprep.subr.bf16.mxu0 0
    %1942 = vmatpush1.bf16.msra.mxu0 0
    %1943 = vmatprep.subr.bf16.mxu0 0
    %1944 = vmatpush1.bf16.msra.mxu0 0
    %1945 = vmatprep.subr.bf16.mxu0 0
    %1946 = vmatpush1.bf16.msra.mxu0 0
    %1947 = vmatprep.subr.bf16.mxu0 0
    %1948 = vmatpush1.bf16.msra.mxu0 0
    %1949 = vmatprep.mubr.bf16.mxu0 0
    %1950 = vmatmul.mubr.bf16.gmra.mrb[0].mxu0 %v1906
    %v1951 = vpop.f32.mrb[0].mxu0
    %v1952 = vadd.f32 %v1877, %v1951
    %v1953 = vpop.f32.mrb[0].mxu0
    %v1954 = vpop.f32.mrb[0].mxu0
    %v1955 = vadd.f32 %v1877, %v1954
    %v1956 = vpop.f32.mrb[0].mxu0
    %1957 = vmatprep.mubr.bf16.mxu0 0
    %1958 = vmatmul.mubr.bf16.gmra.mrb[0].mxu0 %v1909
    %v1959 = vpop.f32.mrb[0].mxu0
    %v1960 = vadd.f32 %v1877, %v1959
    %v1961 = vpop.f32.mrb[0].mxu0
    %v1962 = vpop.f32.mrb[0].mxu0
    %v1963 = vadd.f32 %v1877, %v1962
    %v1964 = vpop.f32.mrb[0].mxu0
    %1965 = vmatprep.mubr.bf16.mxu0 0
    %1966 = vmatmul.mubr.bf16.gmra.mrb[0].mxu0 %v1912
    %v1967 = vpop.f32.mrb[0].mxu0
    %v1968 = vadd.f32 %v1877, %v1967
    %v1969 = vpop.f32.mrb[0].mxu0
    %v1970 = vpop.f32.mrb[0].mxu0
    %v1971 = vadd.f32 %v1877, %v1970
    %v1972 = vpop.f32.mrb[0].mxu0
    %1973 = vmatprep.mubr.bf16.mxu0 0
    %1974 = vmatmul.mubr.bf16.gmra.mrb[0].mxu0 %v1915
    %v1975 = vpop.f32.mrb[0].mxu0
    %v1976 = vadd.f32 %v1877, %v1975
    %v1977 = vpop.f32.mrb[0].mxu0
    %v1978 = vpop.f32.mrb[0].mxu0
    %v1979 = vadd.f32 %v1877, %v1978
    %v1980 = vpop.f32.mrb[0].mxu0
    %1981 = vdwg.mxu0
    %v1982 = vadd.f32 %v1865, %v1952
    %v1983 = vadd.f32 %v1866, %v1955
    %v1984 = vadd.f32 %v1867, %v1960
    %v1985 = vadd.f32 %v1868, %v1963
    %v1986 = vadd.f32 %v1869, %v1968
    %v1987 = vadd.f32 %v1870, %v1971
    %v1988 = vadd.f32 %v1871, %v1976
    %v1989 = vadd.f32 %v1872, %v1979
    %v1998 = vrot.slane %v1983, 7
    %vm1999 = vcmask 1041409
    %v2000 = vsel %vm1999, %v1998, %v1982
    %v2001 = vrot.slane %v1984, 6
    %vm2002 = vcmask 1042434
    %v2003 = vsel %vm2002, %v2001, %v2000
    %v2004 = vrot.slane %v1985, 5
    %vm2005 = vcmask 1043459
    %v2006 = vsel %vm2005, %v2004, %v2003
    %v2007 = vrot.slane %v1986, 4
    %vm2008 = vcmask 1044484
    %v2009 = vsel %vm2008, %v2007, %v2006
    %v2010 = vrot.slane %v1987, 3
    %vm2011 = vcmask 1045509
    %v2012 = vsel %vm2011, %v2010, %v2009
    %v2013 = vrot.slane %v1988, 2
    %vm2014 = vcmask 1046534
    %v2015 = vsel %vm2014, %v2013, %v2012
    %v2016 = vrot.slane %v1989, 1
    %vm2017 = vcmask 1047559
    %v2018 = vsel %vm2017, %v2016, %v2015
    %v2020 = vrot.slane %v1982, 1
    %v2021 = vsel %vm1999, %v1983, %v2020
    %v2022 = vrot.slane %v1984, 7
    %v2023 = vsel %vm2002, %v2022, %v2021
    %v2024 = vrot.slane %v1985, 6
    %v2025 = vsel %vm2005, %v2024, %v2023
    %v2026 = vrot.slane %v1986, 5
    %v2027 = vsel %vm2008, %v2026, %v2025
    %v2028 = vrot.slane %v1987, 4
    %v2029 = vsel %vm2011, %v2028, %v2027
    %v2030 = vrot.slane %v1988, 3
    %v2031 = vsel %vm2014, %v2030, %v2029
    %v2032 = vrot.slane %v1989, 2
    %v2033 = vsel %vm2017, %v2032, %v2031
    %2034 = vrot.lane.b32.xlu0 %v2033, 32
    %v2035 = vpop.permute.xlu0 %2034
    %v2037 = vrot.slane %v1982, 2
    %v2038 = vrot.slane %v1983, 1
    %v2039 = vsel %vm1999, %v2038, %v2037
    %v2040 = vsel %vm2002, %v1984, %v2039
    %v2041 = vrot.slane %v1985, 7
    %v2042 = vsel %vm2005, %v2041, %v2040
    %v2043 = vrot.slane %v1986, 6
    %v2044 = vsel %vm2008, %v2043, %v2042
    %v2045 = vrot.slane %v1987, 5
    %v2046 = vsel %vm2011, %v2045, %v2044
    %v2047 = vrot.slane %v1988, 4
    %v2048 = vsel %vm2014, %v2047, %v2046
    %v2049 = vrot.slane %v1989, 3
    %v2050 = vsel %vm2017, %v2049, %v2048
    %2051 = vrot.lane.b32.xlu0 %v2050, 64
    %v2052 = vpop.permute.xlu0 %2051
    %v2054 = vrot.slane %v1982, 3
    %v2055 = vrot.slane %v1983, 2
    %v2056 = vsel %vm1999, %v2055, %v2054
    %v2057 = vrot.slane %v1984, 1
    %v2058 = vsel %vm2002, %v2057, %v2056
    %v2059 = vsel %vm2005, %v1985, %v2058
    %v2060 = vrot.slane %v1986, 7
    %v2061 = vsel %vm2008, %v2060, %v2059
    %v2062 = vrot.slane %v1987, 6
    %v2063 = vsel %vm2011, %v2062, %v2061
    %v2064 = vrot.slane %v1988, 5
    %v2065 = vsel %vm2014, %v2064, %v2063
    %v2066 = vrot.slane %v1989, 4
    %v2067 = vsel %vm2017, %v2066, %v2065
    %2068 = vrot.lane.b32.xlu0 %v2067, 96
    %v2069 = vpop.permute.xlu0 %2068
    %v2071 = vrot.slane %v1982, 4
    %v2072 = vrot.slane %v1983, 3
    %v2073 = vsel %vm1999, %v2072, %v2071
    %v2074 = vrot.slane %v1984, 2
    %v2075 = vsel %vm2002, %v2074, %v2073
    %v2076 = vrot.slane %v1985, 1
    %v2077 = vsel %vm2005, %v2076, %v2075
    %v2078 = vsel %vm2008, %v1986, %v2077
    %v2079 = vrot.slane %v1987, 7
    %v2080 = vsel %vm2011, %v2079, %v2078
    %v2081 = vrot.slane %v1988, 6
    %v2082 = vsel %vm2014, %v2081, %v2080
    %v2083 = vrot.slane %v1989, 5
    %v2084 = vsel %vm2017, %v2083, %v2082
    %v2086 = vrot.slane %v1982, 5
    %v2087 = vrot.slane %v1983, 4
    %v2088 = vsel %vm1999, %v2087, %v2086
    %v2089 = vrot.slane %v1984, 3
    %v2090 = vsel %vm2002, %v2089, %v2088
    %v2091 = vrot.slane %v1985, 2
    %v2092 = vsel %vm2005, %v2091, %v2090
    %v2093 = vrot.slane %v1986, 1
    %v2094 = vsel %vm2008, %v2093, %v2092
    %v2095 = vsel %vm2011, %v1987, %v2094
    %v2096 = vrot.slane %v1988, 7
    %v2097 = vsel %vm2014, %v2096, %v2095
    %v2098 = vrot.slane %v1989, 6
    %v2099 = vsel %vm2017, %v2098, %v2097
    %2100 = vrot.lane.b32.xlu0 %v2099, 32
    %v2101 = vpop.permute.xlu0 %2100
    %v2103 = vrot.slane %v1982, 6
    %v2104 = vrot.slane %v1983, 5
    %v2105 = vsel %vm1999, %v2104, %v2103
    %v2106 = vrot.slane %v1984, 4
    %v2107 = vsel %vm2002, %v2106, %v2105
    %v2108 = vrot.slane %v1985, 3
    %v2109 = vsel %vm2005, %v2108, %v2107
    %v2110 = vrot.slane %v1986, 2
    %v2111 = vsel %vm2008, %v2110, %v2109
    %v2112 = vrot.slane %v1987, 1
    %v2113 = vsel %vm2011, %v2112, %v2111
    %v2114 = vsel %vm2014, %v1988, %v2113
    %v2115 = vrot.slane %v1989, 7
    %v2116 = vsel %vm2017, %v2115, %v2114
    %2117 = vrot.lane.b32.xlu0 %v2116, 64
    %v2118 = vpop.permute.xlu0 %2117
    %v2120 = vrot.slane %v1982, 7
    %v2121 = vrot.slane %v1983, 6
    %v2122 = vsel %vm1999, %v2121, %v2120
    %v2123 = vrot.slane %v1984, 5
    %v2124 = vsel %vm2002, %v2123, %v2122
    %v2125 = vrot.slane %v1985, 4
    %v2126 = vsel %vm2005, %v2125, %v2124
    %v2127 = vrot.slane %v1986, 3
    %v2128 = vsel %vm2008, %v2127, %v2126
    %v2129 = vrot.slane %v1987, 2
    %v2130 = vsel %vm2011, %v2129, %v2128
    %v2131 = vrot.slane %v1988, 1
    %v2132 = vsel %vm2014, %v2131, %v2130
    %v2133 = vsel %vm2017, %v1989, %v2132
    %2134 = vrot.lane.b32.xlu0 %v2133, 96
    %v2135 = vpop.permute.xlu0 %2134
    %v2137 = vsel %vm264, %v2018, %v2035
    %v2138 = vsel %vm1134, %v2137, %v2052
    %v2139 = vsel %vm1185, %v2138, %v2069
    %v2140 = vsel %vm264, %v2084, %v2101
    %v2141 = vsel %vm1134, %v2140, %v2118
    %v2142 = vsel %vm1185, %v2141, %v2135
    %2143 = vst [vmem:[#allocation2] sm:$0xff] %v2139
    %2144 = vst [vmem:[#allocation2 + $0x8] sm:$0xff] %v2142
    %s2145 = scalar_lea.vmem %s0, 64
    %v2146 = vld [vmem:[%s2145] sm:$0xff]
    %v2147 = vld [vmem:[%s2145 + $0x8] sm:$0xff]
    %v2148 = vld [vmem:[%s2145 + $0x10] sm:$0xff]
    %v2149 = vld [vmem:[%s2145 + $0x18] sm:$0xff]
    %v2150 = vld [vmem:[%s2145 + $0x20] sm:$0xff]
    %v2151 = vld [vmem:[%s2145 + $0x28] sm:$0xff]
    %v2152 = vld [vmem:[%s2145 + $0x30] sm:$0xff]
    %v2153 = vld [vmem:[%s2145 + $0x38] sm:$0xff]
    %v2154 = vpack.c.bf16 %v2146, %v2146
    %v2155 = vpack.c.bf16 %v2147, %v2147
    %v2156 = vpack.c.bf16 %v2148, %v2148
    %v2157 = vpack.c.bf16 %v2149, %v2149
    %v2158 = vpack.c.bf16 %v2150, %v2150
    %v2159 = vpack.c.bf16 %v2151, %v2151
    %v2160 = vpack.c.bf16 %v2152, %v2152
    %v2161 = vpack.c.bf16 %v2153, %v2153
    %v2163 = vshrl.u32 %v2154, 16
    %v2165 = vrot.slane %v2163, 7
    %v2166 = vshll.u32 %v2154, 16
    %v2168 = vor.u32 %v2165, %v2166
    %v2170 = vshrl.u32 %v2155, 16
    %v2172 = vrot.slane %v2170, 7
    %v2173 = vshll.u32 %v2155, 16
    %v2175 = vor.u32 %v2172, %v2173
    %v2177 = vshrl.u32 %v2156, 16
    %v2179 = vrot.slane %v2177, 7
    %v2180 = vshll.u32 %v2156, 16
    %v2182 = vor.u32 %v2179, %v2180
    %v2184 = vshrl.u32 %v2157, 16
    %v2186 = vrot.slane %v2184, 7
    %v2187 = vshll.u32 %v2157, 16
    %v2189 = vor.u32 %v2186, %v2187
    %v2191 = vshrl.u32 %v2158, 16
    %v2193 = vrot.slane %v2191, 7
    %v2194 = vshll.u32 %v2158, 16
    %v2196 = vor.u32 %v2193, %v2194
    %v2198 = vshrl.u32 %v2159, 16
    %v2200 = vrot.slane %v2198, 7
    %v2201 = vshll.u32 %v2159, 16
    %v2203 = vor.u32 %v2200, %v2201
    %v2205 = vshrl.u32 %v2160, 16
    %v2207 = vrot.slane %v2205, 7
    %v2208 = vshll.u32 %v2160, 16
    %v2210 = vor.u32 %v2207, %v2208
    %v2212 = vshrl.u32 %v2161, 16
    %v2214 = vrot.slane %v2212, 7
    %v2215 = vshll.u32 %v2161, 16
    %v2217 = vor.u32 %v2214, %v2215
    %v2226 = vsel %vm188, 0, %v2168
    %v2227 = vsel %vm188, 0, %v2175
    %v2228 = vsel %vm188, 0, %v2182
    %v2229 = vsel %vm188, 0, %v2189
    %v2230 = vsel %vm188, 0, %v2196
    %v2231 = vsel %vm188, 0, %v2203
    %v2232 = vsel %vm188, 0, %v2210
    %v2233 = vsel %vm188, 0, %v2217
    %v2234 = vsel %vm199, %v2226, 0
    %v2235 = vsel %vm199, %v2227, 0
    %v2236 = vsel %vm199, %v2228, 0
    %v2237 = vsel %vm199, %v2229, 0
    %v2238 = vsel %vm199, %v2230, 0
    %v2239 = vsel %vm199, %v2231, 0
    %v2240 = vsel %vm199, %v2232, 0
    %v2241 = vsel %vm199, %v2233, 0
    %v2249 = vunpack.c.l.b16 %v2234
    %v2250 = vunpack.c.l.b16 %v2235
    %v2251 = vunpack.c.l.b16 %v2236
    %v2252 = vunpack.c.l.b16 %v2237
    %v2253 = vunpack.c.l.b16 %v2238
    %v2254 = vunpack.c.l.b16 %v2239
    %v2255 = vunpack.c.l.b16 %v2240
    %v2256 = vpack.c.b16 %v2249, %v216
    %v2257 = vpack.c.b16 %v2251, %v2250
    %v2258 = vpack.c.b16 %v2253, %v2252
    %v2259 = vpack.c.b16 %v2255, %v2254
    %v2261 = vunpack.c.l.b16 %v2241
    %v2262 = vpack.c.b16 %v2250, %v2249
    %v2263 = vpack.c.b16 %v2252, %v2251
    %v2264 = vpack.c.b16 %v2254, %v2253
    %v2265 = vpack.c.b16 %v2261, %v2255
    %2266 = vrot.lane.b32.xlu0 %v2262, 16
    %v2267 = vpop.permute.xlu0 %2266
    %2268 = vrot.lane.b32.xlu0 %v2263, 16
    %v2269 = vpop.permute.xlu0 %2268
    %2270 = vrot.lane.b32.xlu0 %v2264, 16
    %v2271 = vpop.permute.xlu0 %2270
    %2272 = vrot.lane.b32.xlu0 %v2265, 16
    %v2273 = vpop.permute.xlu0 %2272
    %v2274 = vpack.c.b16 %v216, %v2261
    %2275 = vrot.lane.b32.xlu0 %v2257, 32
    %v2276 = vpop.permute.xlu0 %2275
    %2277 = vrot.lane.b32.xlu0 %v2258, 32
    %v2278 = vpop.permute.xlu0 %2277
    %2279 = vrot.lane.b32.xlu0 %v2259, 32
    %v2280 = vpop.permute.xlu0 %2279
    %2281 = vrot.lane.b32.xlu0 %v2274, 32
    %v2282 = vpop.permute.xlu0 %2281
    %v2285 = vsel %vm251, %v2256, %v2267
    %v2288 = vsel %vm251, %v2257, %v2269
    %v2291 = vsel %vm251, %v2258, %v2271
    %v2294 = vsel %vm251, %v2259, %v2273
    %v2296 = vsel %vm264, %v2285, %v2276
    %v2298 = vsel %vm264, %v2288, %v2278
    %v2300 = vsel %vm264, %v2291, %v2280
    %v2302 = vsel %vm264, %v2294, %v2282
    %v2303 = vsel %vm297, %v2296, 0
    %v2305 = vsel %vm297, %v2298, 0
    %v2307 = vsel %vm297, %v2300, 0
    %v2309 = vsel %vm297, %v2302, 0
    %2311 = vmatprep.subr.bf16.mxu0 0
    %2312 = vmatpush1.bf16.msra.mxu0 %v291
    %2313 = vmatprep.subr.bf16.mxu0 0
    %2314 = vmatpush1.bf16.msra.mxu0 %v292
    %2315 = vmatprep.subr.bf16.mxu0 0
    %2316 = vmatpush1.bf16.msra.mxu0 %v293
    %2317 = vmatprep.subr.bf16.mxu0 0
    %2318 = vmatpush1.bf16.msra.mxu0 0
    %2319 = vmatprep.subr.bf16.mxu0 0
    %2320 = vmatpush1.bf16.msra.mxu0 0
    %2321 = vmatprep.subr.bf16.mxu0 0
    %2322 = vmatpush1.bf16.msra.mxu0 0
    %2323 = vmatprep.subr.bf16.mxu0 0
    %2324 = vmatpush1.bf16.msra.mxu0 0
    %2325 = vmatprep.subr.bf16.mxu0 0
    %2326 = vmatpush1.bf16.msra.mxu0 0
    %2327 = vmatprep.subr.bf16.mxu0 0
    %2328 = vmatpush1.bf16.msra.mxu0 0
    %2329 = vmatprep.subr.bf16.mxu0 0
    %2330 = vmatpush1.bf16.msra.mxu0 0
    %2331 = vmatprep.subr.bf16.mxu0 0
    %2332 = vmatpush1.bf16.msra.mxu0 0
    %2333 = vmatprep.subr.bf16.mxu0 0
    %2334 = vmatpush1.bf16.msra.mxu0 0
    %2335 = vmatprep.subr.bf16.mxu0 0
    %2336 = vmatpush1.bf16.msra.mxu0 0
    %2337 = vmatprep.subr.bf16.mxu0 0
    %2338 = vmatpush1.bf16.msra.mxu0 0
    %2339 = vmatprep.subr.bf16.mxu0 0
    %2340 = vmatpush1.bf16.msra.mxu0 0
    %2341 = vmatprep.subr.bf16.mxu0 0
    %2342 = vmatpush1.bf16.msra.mxu0 0
    %2343 = vmatprep.mubr.bf16.mxu0 0
    %2344 = vmatmul.mubr.bf16.gmra.mrb[0].mxu0 %v2303
    %v2345 = vpop.f32.mrb[0].mxu0
    %v2346 = vadd.f32 %v277, %v2345
    %v2347 = vpop.f32.mrb[0].mxu0
    %v2348 = vpop.f32.mrb[0].mxu0
    %v2349 = vadd.f32 %v277, %v2348
    %v2350 = vpop.f32.mrb[0].mxu0
    %2351 = vmatprep.mubr.bf16.mxu0 0
    %2352 = vmatmul.mubr.bf16.gmra.mrb[0].mxu0 %v2305
    %v2353 = vpop.f32.mrb[0].mxu0
    %v2354 = vadd.f32 %v277, %v2353
    %v2355 = vpop.f32.mrb[0].mxu0
    %v2356 = vpop.f32.mrb[0].mxu0
    %v2357 = vadd.f32 %v277, %v2356
    %v2358 = vpop.f32.mrb[0].mxu0
    %2359 = vmatprep.mubr.bf16.mxu0 0
    %2360 = vmatmul.mubr.bf16.gmra.mrb[0].mxu0 %v2307
    %v2361 = vpop.f32.mrb[0].mxu0
    %v2362 = vadd.f32 %v277, %v2361
    %v2363 = vpop.f32.mrb[0].mxu0
    %v2364 = vpop.f32.mrb[0].mxu0
    %v2365 = vadd.f32 %v277, %v2364
    %v2366 = vpop.f32.mrb[0].mxu0
    %2367 = vmatprep.mubr.bf16.mxu0 0
    %2368 = vmatmul.mubr.bf16.gmra.mrb[0].mxu0 %v2309
    %v2369 = vpop.f32.mrb[0].mxu0
    %v2370 = vadd.f32 %v277, %v2369
    %v2371 = vpop.f32.mrb[0].mxu0
    %v2372 = vpop.f32.mrb[0].mxu0
    %v2373 = vadd.f32 %v277, %v2372
    %v2374 = vpop.f32.mrb[0].mxu0
    %2375 = vdwg.mxu0
    %v2376 = vunpack.c.h.b16 %v2234
    %v2377 = vunpack.c.h.b16 %v2235
    %v2378 = vunpack.c.h.b16 %v2236
    %v2379 = vunpack.c.h.b16 %v2237
    %v2380 = vunpack.c.h.b16 %v2238
    %v2381 = vunpack.c.h.b16 %v2239
    %v2382 = vunpack.c.h.b16 %v2240
    %v2383 = vunpack.c.h.b16 %v2241
    %v2384 = vpack.c.b16 %v2249, %v2249
    %v2385 = vpack.c.b16 %v2376, %v2376
    %v2386 = vpack.c.b16 %v2250, %v2250
    %v2387 = vpack.c.b16 %v2377, %v2377
    %v2388 = vpack.c.b16 %v2251, %v2251
    %v2389 = vpack.c.b16 %v2378, %v2378
    %v2390 = vpack.c.b16 %v2252, %v2252
    %v2391 = vpack.c.b16 %v2379, %v2379
    %v2392 = vpack.c.b16 %v2253, %v2253
    %v2393 = vpack.c.b16 %v2380, %v2380
    %v2394 = vpack.c.b16 %v2254, %v2254
    %v2395 = vpack.c.b16 %v2381, %v2381
    %v2396 = vpack.c.b16 %v2255, %v2255
    %v2397 = vpack.c.b16 %v2382, %v2382
    %v2398 = vpack.c.b16 %v2261, %v2261
    %v2399 = vpack.c.b16 %v2383, %v2383
    %v2401 = vshrl.u32 %v2384, 16
    %v2403 = vrot.slane %v2401, 4
    %v2404 = vshll.u32 %v2384, 16
    %v2406 = vrot.slane %v2404, 5
    %v2407 = vor.u32 %v2403, %v2406
    %v2408 = vrot.slane %v2407, 4
    %v2410 = vshll.u32 %v2385, 16
    %v2412 = vrot.slane %v2410, 5
    %v2413 = vsel %vm400, %v2408, %v2412
    %v2415 = vshrl.u32 %v2386, 16
    %v2417 = vrot.slane %v2415, 4
    %v2418 = vshll.u32 %v2386, 16
    %v2420 = vrot.slane %v2418, 5
    %v2421 = vor.u32 %v2417, %v2420
    %v2422 = vrot.slane %v2421, 4
    %v2424 = vshll.u32 %v2387, 16
    %v2426 = vrot.slane %v2424, 5
    %v2427 = vsel %vm400, %v2422, %v2426
    %v2429 = vshrl.u32 %v2388, 16
    %v2431 = vrot.slane %v2429, 4
    %v2432 = vshll.u32 %v2388, 16
    %v2434 = vrot.slane %v2432, 5
    %v2435 = vor.u32 %v2431, %v2434
    %v2436 = vrot.slane %v2435, 4
    %v2438 = vshll.u32 %v2389, 16
    %v2440 = vrot.slane %v2438, 5
    %v2441 = vsel %vm400, %v2436, %v2440
    %v2443 = vshrl.u32 %v2390, 16
    %v2445 = vrot.slane %v2443, 4
    %v2446 = vshll.u32 %v2390, 16
    %v2448 = vrot.slane %v2446, 5
    %v2449 = vor.u32 %v2445, %v2448
    %v2450 = vrot.slane %v2449, 4
    %v2452 = vshll.u32 %v2391, 16
    %v2454 = vrot.slane %v2452, 5
    %v2455 = vsel %vm400, %v2450, %v2454
    %v2457 = vshrl.u32 %v2392, 16
    %v2459 = vrot.slane %v2457, 4
    %v2460 = vshll.u32 %v2392, 16
    %v2462 = vrot.slane %v2460, 5
    %v2463 = vor.u32 %v2459, %v2462
    %v2464 = vrot.slane %v2463, 4
    %v2466 = vshll.u32 %v2393, 16
    %v2468 = vrot.slane %v2466, 5
    %v2469 = vsel %vm400, %v2464, %v2468
    %v2471 = vshrl.u32 %v2394, 16
    %v2473 = vrot.slane %v2471, 4
    %v2474 = vshll.u32 %v2394, 16
    %v2476 = vrot.slane %v2474, 5
    %v2477 = vor.u32 %v2473, %v2476
    %v2478 = vrot.slane %v2477, 4
    %v2480 = vshll.u32 %v2395, 16
    %v2482 = vrot.slane %v2480, 5
    %v2483 = vsel %vm400, %v2478, %v2482
    %v2485 = vshrl.u32 %v2396, 16
    %v2487 = vrot.slane %v2485, 4
    %v2488 = vshll.u32 %v2396, 16
    %v2490 = vrot.slane %v2488, 5
    %v2491 = vor.u32 %v2487, %v2490
    %v2492 = vrot.slane %v2491, 4
    %v2494 = vshll.u32 %v2397, 16
    %v2496 = vrot.slane %v2494, 5
    %v2497 = vsel %vm400, %v2492, %v2496
    %v2499 = vshrl.u32 %v2398, 16
    %v2501 = vrot.slane %v2499, 4
    %v2502 = vshll.u32 %v2398, 16
    %v2504 = vrot.slane %v2502, 5
    %v2505 = vor.u32 %v2501, %v2504
    %v2506 = vrot.slane %v2505, 4
    %v2508 = vshll.u32 %v2399, 16
    %v2510 = vrot.slane %v2508, 5
    %v2511 = vsel %vm400, %v2506, %v2510
    %v2512 = vunpack.c.l.b16 %v2413
    %v2513 = vunpack.c.l.b16 %v2427
    %v2514 = vunpack.c.l.b16 %v2441
    %v2515 = vunpack.c.l.b16 %v2455
    %v2516 = vunpack.c.l.b16 %v2469
    %v2517 = vunpack.c.l.b16 %v2483
    %v2518 = vunpack.c.l.b16 %v2497
    %v2519 = vpack.c.b16 %v2512, %v527
    %v2520 = vpack.c.b16 %v2514, %v2513
    %v2521 = vpack.c.b16 %v2516, %v2515
    %v2522 = vpack.c.b16 %v2518, %v2517
    %v2523 = vunpack.c.l.b16 %v2511
    %v2524 = vpack.c.b16 %v2513, %v2512
    %v2525 = vpack.c.b16 %v2515, %v2514
    %v2526 = vpack.c.b16 %v2517, %v2516
    %v2527 = vpack.c.b16 %v2523, %v2518
    %2528 = vrot.lane.b32.xlu0 %v2524, 16
    %v2529 = vpop.permute.xlu0 %2528
    %2530 = vrot.lane.b32.xlu0 %v2525, 16
    %v2531 = vpop.permute.xlu0 %2530
    %2532 = vrot.lane.b32.xlu0 %v2526, 16
    %v2533 = vpop.permute.xlu0 %2532
    %2534 = vrot.lane.b32.xlu0 %v2527, 16
    %v2535 = vpop.permute.xlu0 %2534
    %v2536 = vpack.c.b16 %v527, %v2523
    %2537 = vrot.lane.b32.xlu0 %v2520, 32
    %v2538 = vpop.permute.xlu0 %2537
    %2539 = vrot.lane.b32.xlu0 %v2521, 32
    %v2540 = vpop.permute.xlu0 %2539
    %2541 = vrot.lane.b32.xlu0 %v2522, 32
    %v2542 = vpop.permute.xlu0 %2541
    %2543 = vrot.lane.b32.xlu0 %v2536, 32
    %v2544 = vpop.permute.xlu0 %2543
    %v2547 = vsel %vm251, %v2519, %v2529
    %v2550 = vsel %vm251, %v2520, %v2531
    %v2553 = vsel %vm251, %v2521, %v2533
    %v2556 = vsel %vm251, %v2522, %v2535
    %v2558 = vsel %vm264, %v2547, %v2538
    %v2560 = vsel %vm264, %v2550, %v2540
    %v2562 = vsel %vm264, %v2553, %v2542
    %v2564 = vsel %vm264, %v2556, %v2544
    %v2565 = vsel %vm297, %v2558, 0
    %v2567 = vsel %vm297, %v2560, 0
    %v2569 = vsel %vm297, %v2562, 0
    %v2571 = vsel %vm297, %v2564, 0
    %2573 = vmatprep.subr.bf16.mxu0 0
    %2574 = vmatpush1.bf16.msra.mxu0 %v593
    %2575 = vmatprep.subr.bf16.mxu0 0
    %2576 = vmatpush1.bf16.msra.mxu0 %v594
    %2577 = vmatprep.subr.bf16.mxu0 0
    %2578 = vmatpush1.bf16.msra.mxu0 %v595
    %2579 = vmatprep.subr.bf16.mxu0 0
    %2580 = vmatpush1.bf16.msra.mxu0 0
    %2581 = vmatprep.subr.bf16.mxu0 0
    %2582 = vmatpush1.bf16.msra.mxu0 0
    %2583 = vmatprep.subr.bf16.mxu0 0
    %2584 = vmatpush1.bf16.msra.mxu0 0
    %2585 = vmatprep.subr.bf16.mxu0 0
    %2586 = vmatpush1.bf16.msra.mxu0 0
    %2587 = vmatprep.subr.bf16.mxu0 0
    %2588 = vmatpush1.bf16.msra.mxu0 0
    %2589 = vmatprep.subr.bf16.mxu0 0
    %2590 = vmatpush1.bf16.msra.mxu0 0
    %2591 = vmatprep.subr.bf16.mxu0 0
    %2592 = vmatpush1.bf16.msra.mxu0 0
    %2593 = vmatprep.subr.bf16.mxu0 0
    %2594 = vmatpush1.bf16.msra.mxu0 0
    %2595 = vmatprep.subr.bf16.mxu0 0
    %2596 = vmatpush1.bf16.msra.mxu0 0
    %2597 = vmatprep.subr.bf16.mxu0 0
    %2598 = vmatpush1.bf16.msra.mxu0 0
    %2599 = vmatprep.subr.bf16.mxu0 0
    %2600 = vmatpush1.bf16.msra.mxu0 0
    %2601 = vmatprep.subr.bf16.mxu0 0
    %2602 = vmatpush1.bf16.msra.mxu0 0
    %2603 = vmatprep.subr.bf16.mxu0 0
    %2604 = vmatpush1.bf16.msra.mxu0 0
    %2605 = vmatprep.mubr.bf16.mxu0 0
    %2606 = vmatmul.mubr.bf16.gmra.mrb[0].mxu0 %v2565
    %v2607 = vpop.f32.mrb[0].mxu0
    %v2608 = vadd.f32 0.0, %v2607
    %v2609 = vpop.f32.mrb[0].mxu0
    %v2610 = vpop.f32.mrb[0].mxu0
    %v2611 = vadd.f32 0.0, %v2610
    %v2612 = vpop.f32.mrb[0].mxu0
    %2613 = vmatprep.mubr.bf16.mxu0 0
    %2614 = vmatmul.mubr.bf16.gmra.mrb[0].mxu0 %v2567
    %v2615 = vpop.f32.mrb[0].mxu0
    %v2616 = vadd.f32 0.0, %v2615
    %v2617 = vpop.f32.mrb[0].mxu0
    %v2618 = vpop.f32.mrb[0].mxu0
    %v2619 = vadd.f32 0.0, %v2618
    %v2620 = vpop.f32.mrb[0].mxu0
    %2621 = vmatprep.mubr.bf16.mxu0 0
    %2622 = vmatmul.mubr.bf16.gmra.mrb[0].mxu0 %v2569
    %v2623 = vpop.f32.mrb[0].mxu0
    %v2624 = vadd.f32 0.0, %v2623
    %v2625 = vpop.f32.mrb[0].mxu0
    %v2626 = vpop.f32.mrb[0].mxu0
    %v2627 = vadd.f32 0.0, %v2626
    %v2628 = vpop.f32.mrb[0].mxu0
    %2629 = vmatprep.mubr.bf16.mxu0 0
    %2630 = vmatmul.mubr.bf16.gmra.mrb[0].mxu0 %v2571
    %v2631 = vpop.f32.mrb[0].mxu0
    %v2632 = vadd.f32 0.0, %v2631
    %v2633 = vpop.f32.mrb[0].mxu0
    %v2634 = vpop.f32.mrb[0].mxu0
    %v2635 = vadd.f32 0.0, %v2634
    %v2636 = vpop.f32.mrb[0].mxu0
    %2637 = vdwg.mxu0
    %v2638 = vadd.f32 %v2346, %v2608
    %v2639 = vadd.f32 %v2349, %v2611
    %v2640 = vadd.f32 %v2354, %v2616
    %v2641 = vadd.f32 %v2357, %v2619
    %v2642 = vadd.f32 %v2362, %v2624
    %v2643 = vadd.f32 %v2365, %v2627
    %v2644 = vadd.f32 %v2370, %v2632
    %v2645 = vadd.f32 %v2373, %v2635
    %v2646 = vrot.slane %v2384, 5
    %v2647 = vrot.slane %v2646, 4
    %v2648 = vrot.slane %v2385, 5
    %v2649 = vsel %vm682, %v2647, %v2648
    %v2650 = vrot.slane %v2386, 5
    %v2651 = vrot.slane %v2650, 4
    %v2652 = vrot.slane %v2387, 5
    %v2653 = vsel %vm682, %v2651, %v2652
    %v2654 = vrot.slane %v2388, 5
    %v2655 = vrot.slane %v2654, 4
    %v2656 = vrot.slane %v2389, 5
    %v2657 = vsel %vm682, %v2655, %v2656
    %v2658 = vrot.slane %v2390, 5
    %v2659 = vrot.slane %v2658, 4
    %v2660 = vrot.slane %v2391, 5
    %v2661 = vsel %vm682, %v2659, %v2660
    %v2662 = vrot.slane %v2392, 5
    %v2663 = vrot.slane %v2662, 4
    %v2664 = vrot.slane %v2393, 5
    %v2665 = vsel %vm682, %v2663, %v2664
    %v2666 = vrot.slane %v2394, 5
    %v2667 = vrot.slane %v2666, 4
    %v2668 = vrot.slane %v2395, 5
    %v2669 = vsel %vm682, %v2667, %v2668
    %v2670 = vrot.slane %v2396, 5
    %v2671 = vrot.slane %v2670, 4
    %v2672 = vrot.slane %v2397, 5
    %v2673 = vsel %vm682, %v2671, %v2672
    %v2674 = vrot.slane %v2398, 5
    %v2675 = vrot.slane %v2674, 4
    %v2676 = vrot.slane %v2399, 5
    %v2677 = vsel %vm682, %v2675, %v2676
    %v2678 = vunpack.c.l.b16 %v2649
    %v2679 = vunpack.c.l.b16 %v2653
    %v2680 = vunpack.c.l.b16 %v2657
    %v2681 = vunpack.c.l.b16 %v2661
    %v2682 = vunpack.c.l.b16 %v2665
    %v2683 = vunpack.c.l.b16 %v2669
    %v2684 = vunpack.c.l.b16 %v2673
    %v2685 = vpack.c.b16 %v2678, %v719
    %v2686 = vpack.c.b16 %v2680, %v2679
    %v2687 = vpack.c.b16 %v2682, %v2681
    %v2688 = vpack.c.b16 %v2684, %v2683
    %v2689 = vunpack.c.l.b16 %v2677
    %v2690 = vpack.c.b16 %v2679, %v2678
    %v2691 = vpack.c.b16 %v2681, %v2680
    %v2692 = vpack.c.b16 %v2683, %v2682
    %v2693 = vpack.c.b16 %v2689, %v2684
    %2694 = vrot.lane.b32.xlu0 %v2690, 16
    %v2695 = vpop.permute.xlu0 %2694
    %2696 = vrot.lane.b32.xlu0 %v2691, 16
    %v2697 = vpop.permute.xlu0 %2696
    %2698 = vrot.lane.b32.xlu0 %v2692, 16
    %v2699 = vpop.permute.xlu0 %2698
    %2700 = vrot.lane.b32.xlu0 %v2693, 16
    %v2701 = vpop.permute.xlu0 %2700
    %v2702 = vpack.c.b16 %v719, %v2689
    %2703 = vrot.lane.b32.xlu0 %v2686, 32
    %v2704 = vpop.permute.xlu0 %2703
    %2705 = vrot.lane.b32.xlu0 %v2687, 32
    %v2706 = vpop.permute.xlu0 %2705
    %2707 = vrot.lane.b32.xlu0 %v2688, 32
    %v2708 = vpop.permute.xlu0 %2707
    %2709 = vrot.lane.b32.xlu0 %v2702, 32
    %v2710 = vpop.permute.xlu0 %2709
    %v2713 = vsel %vm251, %v2685, %v2695
    %v2716 = vsel %vm251, %v2686, %v2697
    %v2719 = vsel %vm251, %v2687, %v2699
    %v2722 = vsel %vm251, %v2688, %v2701
    %v2724 = vsel %vm264, %v2713, %v2704
    %v2726 = vsel %vm264, %v2716, %v2706
    %v2728 = vsel %vm264, %v2719, %v2708
    %v2730 = vsel %vm264, %v2722, %v2710
    %v2731 = vsel %vm297, %v2724, 0
    %v2733 = vsel %vm297, %v2726, 0
    %v2735 = vsel %vm297, %v2728, 0
    %v2737 = vsel %vm297, %v2730, 0
    %2739 = vmatprep.subr.bf16.mxu0 0
    %2740 = vmatpush1.bf16.msra.mxu0 %v785
    %2741 = vmatprep.subr.bf16.mxu0 0
    %2742 = vmatpush1.bf16.msra.mxu0 %v786
    %2743 = vmatprep.subr.bf16.mxu0 0
    %2744 = vmatpush1.bf16.msra.mxu0 %v787
    %2745 = vmatprep.subr.bf16.mxu0 0
    %2746 = vmatpush1.bf16.msra.mxu0 0
    %2747 = vmatprep.subr.bf16.mxu0 0
    %2748 = vmatpush1.bf16.msra.mxu0 0
    %2749 = vmatprep.subr.bf16.mxu0 0
    %2750 = vmatpush1.bf16.msra.mxu0 0
    %2751 = vmatprep.subr.bf16.mxu0 0
    %2752 = vmatpush1.bf16.msra.mxu0 0
    %2753 = vmatprep.subr.bf16.mxu0 0
    %2754 = vmatpush1.bf16.msra.mxu0 0
    %2755 = vmatprep.subr.bf16.mxu0 0
    %2756 = vmatpush1.bf16.msra.mxu0 0
    %2757 = vmatprep.subr.bf16.mxu0 0
    %2758 = vmatpush1.bf16.msra.mxu0 0
    %2759 = vmatprep.subr.bf16.mxu0 0
    %2760 = vmatpush1.bf16.msra.mxu0 0
    %2761 = vmatprep.subr.bf16.mxu0 0
    %2762 = vmatpush1.bf16.msra.mxu0 0
    %2763 = vmatprep.subr.bf16.mxu0 0
    %2764 = vmatpush1.bf16.msra.mxu0 0
    %2765 = vmatprep.subr.bf16.mxu0 0
    %2766 = vmatpush1.bf16.msra.mxu0 0
    %2767 = vmatprep.subr.bf16.mxu0 0
    %2768 = vmatpush1.bf16.msra.mxu0 0
    %2769 = vmatprep.subr.bf16.mxu0 0
    %2770 = vmatpush1.bf16.msra.mxu0 0
    %2771 = vmatprep.mubr.bf16.mxu0 0
    %2772 = vmatmul.mubr.bf16.gmra.mrb[0].mxu0 %v2731
    %v2773 = vpop.f32.mrb[0].mxu0
    %v2774 = vadd.f32 0.0, %v2773
    %v2775 = vpop.f32.mrb[0].mxu0
    %v2776 = vpop.f32.mrb[0].mxu0
    %v2777 = vadd.f32 0.0, %v2776
    %v2778 = vpop.f32.mrb[0].mxu0
    %2779 = vmatprep.mubr.bf16.mxu0 0
    %2780 = vmatmul.mubr.bf16.gmra.mrb[0].mxu0 %v2733
    %v2781 = vpop.f32.mrb[0].mxu0
    %v2782 = vadd.f32 0.0, %v2781
    %v2783 = vpop.f32.mrb[0].mxu0
    %v2784 = vpop.f32.mrb[0].mxu0
    %v2785 = vadd.f32 0.0, %v2784
    %v2786 = vpop.f32.mrb[0].mxu0
    %2787 = vmatprep.mubr.bf16.mxu0 0
    %2788 = vmatmul.mubr.bf16.gmra.mrb[0].mxu0 %v2735
    %v2789 = vpop.f32.mrb[0].mxu0
    %v2790 = vadd.f32 0.0, %v2789
    %v2791 = vpop.f32.mrb[0].mxu0
    %v2792 = vpop.f32.mrb[0].mxu0
    %v2793 = vadd.f32 0.0, %v2792
    %v2794 = vpop.f32.mrb[0].mxu0
    %2795 = vmatprep.mubr.bf16.mxu0 0
    %2796 = vmatmul.mubr.bf16.gmra.mrb[0].mxu0 %v2737
    %v2797 = vpop.f32.mrb[0].mxu0
    %v2798 = vadd.f32 0.0, %v2797
    %v2799 = vpop.f32.mrb[0].mxu0
    %v2800 = vpop.f32.mrb[0].mxu0
    %v2801 = vadd.f32 0.0, %v2800
    %v2802 = vpop.f32.mrb[0].mxu0
    %2803 = vdwg.mxu0
    %v2804 = vadd.f32 %v2638, %v2774
    %v2805 = vadd.f32 %v2639, %v2777
    %v2806 = vadd.f32 %v2640, %v2782
    %v2807 = vadd.f32 %v2641, %v2785
    %v2808 = vadd.f32 %v2642, %v2790
    %v2809 = vadd.f32 %v2643, %v2793
    %v2810 = vadd.f32 %v2644, %v2798
    %v2811 = vadd.f32 %v2645, %v2801
    %v2812 = vsel %vm264, %v2804, 0.0
    %v2813 = vsel %vm264, %v2805, 0.0
    %v2814 = vadd.f32 %v2812, %v2813
    %v2815 = vsel %vm264, %v2806, 0.0
    %v2816 = vadd.f32 %v2814, %v2815
    %v2817 = vsel %vm264, %v2807, 0.0
    %v2818 = vadd.f32 %v2816, %v2817
    %v2819 = vsel %vm264, %v2808, 0.0
    %v2820 = vadd.f32 %v2818, %v2819
    %v2821 = vsel %vm264, %v2809, 0.0
    %v2822 = vadd.f32 %v2820, %v2821
    %v2823 = vsel %vm264, %v2810, 0.0
    %v2824 = vadd.f32 %v2822, %v2823
    %v2825 = vsel %vm264, %v2811, 0.0
    %v2826 = vadd.f32 %v2824, %v2825
    %v2827 = vrot.slane %v2826, 4
    %v2828 = vadd.f32 %v2826, %v2827
    %v2829 = vrot.slane %v2828, 2
    %v2830 = vadd.f32 %v2828, %v2829
    %v2831 = vrot.slane %v2830, 1
    %v2832 = vadd.f32 %v2830, %v2831
    %v2833 = vmul.f32 %v2832, 0.015625
    %v2834 = vsub.f32 %v2804, %v2833
    %v2835 = vsub.f32 %v2805, %v2833
    %v2836 = vsub.f32 %v2806, %v2833
    %v2837 = vsub.f32 %v2807, %v2833
    %v2838 = vsub.f32 %v2808, %v2833
    %v2839 = vsub.f32 %v2809, %v2833
    %v2840 = vsub.f32 %v2810, %v2833
    %v2841 = vsub.f32 %v2811, %v2833
    %v2842 = vmul.f32 %v2834, %v2834
    %v2843 = vmul.f32 %v2835, %v2835
    %v2844 = vmul.f32 %v2836, %v2836
    %v2845 = vmul.f32 %v2837, %v2837
    %v2846 = vmul.f32 %v2838, %v2838
    %v2847 = vmul.f32 %v2839, %v2839
    %v2848 = vmul.f32 %v2840, %v2840
    %v2849 = vmul.f32 %v2841, %v2841
    %v2850 = vsel %vm264, %v2842, 0.0
    %v2851 = vsel %vm264, %v2843, 0.0
    %v2852 = vadd.f32 %v2850, %v2851
    %v2853 = vsel %vm264, %v2844, 0.0
    %v2854 = vadd.f32 %v2852, %v2853
    %v2855 = vsel %vm264, %v2845, 0.0
    %v2856 = vadd.f32 %v2854, %v2855
    %v2857 = vsel %vm264, %v2846, 0.0
    %v2858 = vadd.f32 %v2856, %v2857
    %v2859 = vsel %vm264, %v2847, 0.0
    %v2860 = vadd.f32 %v2858, %v2859
    %v2861 = vsel %vm264, %v2848, 0.0
    %v2862 = vadd.f32 %v2860, %v2861
    %v2863 = vsel %vm264, %v2849, 0.0
    %v2864 = vadd.f32 %v2862, %v2863
    %v2865 = vrot.slane %v2864, 4
    %v2866 = vadd.f32 %v2864, %v2865
    %v2867 = vrot.slane %v2866, 2
    %v2868 = vadd.f32 %v2866, %v2867
    %v2869 = vrot.slane %v2868, 1
    %v2870 = vadd.f32 %v2868, %v2869
    %v2871 = vmul.f32 %v2870, 0.015625
    %v2872 = vadd.f32 %v2871, 1e-05
    %v2873 = vrsqrt.pop %v2872
    %v2874 = vmul.f32 %v2834, %v2873
    %v2875 = vmul.f32 %v2835, %v2873
    %v2876 = vmul.f32 %v2836, %v2873
    %v2877 = vmul.f32 %v2837, %v2873
    %v2878 = vmul.f32 %v2838, %v2873
    %v2879 = vmul.f32 %v2839, %v2873
    %v2880 = vmul.f32 %v2840, %v2873
    %v2881 = vmul.f32 %v2841, %v2873
    %v2882 = vmul.f32 %v2874, %v946
    %v2883 = vmul.f32 %v2875, %v946
    %v2884 = vmul.f32 %v2876, %v946
    %v2885 = vmul.f32 %v2877, %v946
    %v2886 = vmul.f32 %v2878, %v946
    %v2887 = vmul.f32 %v2879, %v946
    %v2888 = vmul.f32 %v2880, %v946
    %v2889 = vmul.f32 %v2881, %v946
    %v2890 = vadd.f32 %v2882, %v960
    %v2891 = vadd.f32 %v2883, %v960
    %v2892 = vadd.f32 %v2884, %v960
    %v2893 = vadd.f32 %v2885, %v960
    %v2894 = vadd.f32 %v2886, %v960
    %v2895 = vadd.f32 %v2887, %v960
    %v2896 = vadd.f32 %v2888, %v960
    %v2897 = vadd.f32 %v2889, %v960
    %v2898 = vmax.f32 %v2890, 0.0
    %v2899 = vmax.f32 %v2891, 0.0
    %v2900 = vmax.f32 %v2892, 0.0
    %v2901 = vmax.f32 %v2893, 0.0
    %v2902 = vmax.f32 %v2894, 0.0
    %v2903 = vmax.f32 %v2895, 0.0
    %v2904 = vmax.f32 %v2896, 0.0
    %v2905 = vmax.f32 %v2897, 0.0
    %s2906 = scalar_lea.vmem %s1, 1
    %v2907 = vld [vmem:[%s2906] sm:$0x1]
    %v2909 = vlaneseq
    %v2910 = vshrl.u32 %v2909, 7
    %v2911 = vsub.s32 0, %v2910
    %v2912 = vrot.slane %v2907, %v2911
    %v2914 = vadd.f32 %v2898, %v2912
    %v2915 = vadd.f32 %v2899, %v2912
    %v2916 = vadd.f32 %v2900, %v2912
    %v2917 = vadd.f32 %v2901, %v2912
    %v2918 = vadd.f32 %v2902, %v2912
    %v2919 = vadd.f32 %v2903, %v2912
    %v2920 = vadd.f32 %v2904, %v2912
    %v2921 = vadd.f32 %v2905, %v2912
    %v2922 = vpack.c.bf16 %v2914, %v2914
    %v2923 = vpack.c.bf16 %v2915, %v2915
    %v2924 = vpack.c.bf16 %v2916, %v2916
    %v2925 = vpack.c.bf16 %v2917, %v2917
    %v2926 = vpack.c.bf16 %v2918, %v2918
    %v2927 = vpack.c.bf16 %v2919, %v2919
    %v2928 = vpack.c.bf16 %v2920, %v2920
    %v2929 = vpack.c.bf16 %v2921, %v2921
    %v2931 = vshrl.u32 %v2922, 16
    %v2933 = vrot.slane %v2931, 7
    %v2934 = vshll.u32 %v2922, 16
    %v2936 = vor.u32 %v2933, %v2934
    %v2938 = vshrl.u32 %v2923, 16
    %v2940 = vrot.slane %v2938, 7
    %v2941 = vshll.u32 %v2923, 16
    %v2943 = vor.u32 %v2940, %v2941
    %v2945 = vshrl.u32 %v2924, 16
    %v2947 = vrot.slane %v2945, 7
    %v2948 = vshll.u32 %v2924, 16
    %v2950 = vor.u32 %v2947, %v2948
    %v2952 = vshrl.u32 %v2925, 16
    %v2954 = vrot.slane %v2952, 7
    %v2955 = vshll.u32 %v2925, 16
    %v2957 = vor.u32 %v2954, %v2955
    %v2959 = vshrl.u32 %v2926, 16
    %v2961 = vrot.slane %v2959, 7
    %v2962 = vshll.u32 %v2926, 16
    %v2964 = vor.u32 %v2961, %v2962
    %v2966 = vshrl.u32 %v2927, 16
    %v2968 = vrot.slane %v2966, 7
    %v2969 = vshll.u32 %v2927, 16
    %v2971 = vor.u32 %v2968, %v2969
    %v2973 = vshrl.u32 %v2928, 16
    %v2975 = vrot.slane %v2973, 7
    %v2976 = vshll.u32 %v2928, 16
    %v2978 = vor.u32 %v2975, %v2976
    %v2980 = vshrl.u32 %v2929, 16
    %v2982 = vrot.slane %v2980, 7
    %v2983 = vshll.u32 %v2929, 16
    %v2985 = vor.u32 %v2982, %v2983
    %v2994 = vsel %vm188, 0, %v2936
    %v2995 = vsel %vm188, 0, %v2943
    %v2996 = vsel %vm188, 0, %v2950
    %v2997 = vsel %vm188, 0, %v2957
    %v2998 = vsel %vm188, 0, %v2964
    %v2999 = vsel %vm188, 0, %v2971
    %v3000 = vsel %vm188, 0, %v2978
    %v3001 = vsel %vm188, 0, %v2985
    %v3002 = vsel %vm199, %v2994, 0
    %v3003 = vsel %vm199, %v2995, 0
    %v3004 = vsel %vm199, %v2996, 0
    %v3005 = vsel %vm199, %v2997, 0
    %v3006 = vsel %vm199, %v2998, 0
    %v3007 = vsel %vm199, %v2999, 0
    %v3008 = vsel %vm199, %v3000, 0
    %v3009 = vsel %vm199, %v3001, 0
    %v3017 = vunpack.c.l.b16 %v3002
    %v3018 = vunpack.c.l.b16 %v3003
    %v3019 = vunpack.c.l.b16 %v3004
    %v3020 = vunpack.c.l.b16 %v3005
    %v3021 = vunpack.c.l.b16 %v3006
    %v3022 = vunpack.c.l.b16 %v3007
    %v3023 = vunpack.c.l.b16 %v3008
    %v3024 = vpack.c.b16 %v3017, %v216
    %v3025 = vpack.c.b16 %v3019, %v3018
    %v3026 = vpack.c.b16 %v3021, %v3020
    %v3027 = vpack.c.b16 %v3023, %v3022
    %v3029 = vunpack.c.l.b16 %v3009
    %v3030 = vpack.c.b16 %v3018, %v3017
    %v3031 = vpack.c.b16 %v3020, %v3019
    %v3032 = vpack.c.b16 %v3022, %v3021
    %v3033 = vpack.c.b16 %v3029, %v3023
    %3034 = vrot.lane.b32.xlu0 %v3030, 32
    %v3035 = vpop.permute.xlu0 %3034
    %3036 = vrot.lane.b32.xlu0 %v3031, 32
    %v3037 = vpop.permute.xlu0 %3036
    %3038 = vrot.lane.b32.xlu0 %v3032, 32
    %v3039 = vpop.permute.xlu0 %3038
    %3040 = vrot.lane.b32.xlu0 %v3033, 32
    %v3041 = vpop.permute.xlu0 %3040
    %v3042 = vpack.c.b16 %v216, %v3029
    %3043 = vrot.lane.b32.xlu0 %v3025, 64
    %v3044 = vpop.permute.xlu0 %3043
    %3045 = vrot.lane.b32.xlu0 %v3026, 64
    %v3046 = vpop.permute.xlu0 %3045
    %3047 = vrot.lane.b32.xlu0 %v3027, 64
    %v3048 = vpop.permute.xlu0 %3047
    %3049 = vrot.lane.b32.xlu0 %v3042, 64
    %v3050 = vpop.permute.xlu0 %3049
    %v3053 = vsel %vm264, %v3024, %v3035
    %v3056 = vsel %vm264, %v3025, %v3037
    %v3059 = vsel %vm264, %v3026, %v3039
    %v3062 = vsel %vm264, %v3027, %v3041
    %v3064 = vsel %vm1134, %v3053, %v3044
    %v3066 = vsel %vm1134, %v3056, %v3046
    %v3068 = vsel %vm1134, %v3059, %v3048
    %v3070 = vsel %vm1134, %v3062, %v3050
    %v3071 = vsel %vm1185, %v3064, 0
    %v3073 = vsel %vm1185, %v3066, 0
    %v3075 = vsel %vm1185, %v3068, 0
    %v3077 = vsel %vm1185, %v3070, 0
    %3079 = vmatprep.subr.bf16.mxu0 0
    %3080 = vmatpush1.bf16.msra.mxu0 %v1173
    %3081 = vmatprep.subr.bf16.mxu0 0
    %3082 = vmatpush1.bf16.msra.mxu0 %v1174
    %3083 = vmatprep.subr.bf16.mxu0 0
    %3084 = vmatpush1.bf16.msra.mxu0 %v1175
    %3085 = vmatprep.subr.bf16.mxu0 0
    %3086 = vmatpush1.bf16.msra.mxu0 %v1176
    %3087 = vmatprep.subr.bf16.mxu0 0
    %3088 = vmatpush1.bf16.msra.mxu0 %v1177
    %3089 = vmatprep.subr.bf16.mxu0 0
    %3090 = vmatpush1.bf16.msra.mxu0 %v1178
    %3091 = vmatprep.subr.bf16.mxu0 0
    %3092 = vmatpush1.bf16.msra.mxu0 0
    %3093 = vmatprep.subr.bf16.mxu0 0
    %3094 = vmatpush1.bf16.msra.mxu0 0
    %3095 = vmatprep.subr.bf16.mxu0 0
    %3096 = vmatpush1.bf16.msra.mxu0 0
    %3097 = vmatprep.subr.bf16.mxu0 0
    %3098 = vmatpush1.bf16.msra.mxu0 0
    %3099 = vmatprep.subr.bf16.mxu0 0
    %3100 = vmatpush1.bf16.msra.mxu0 0
    %3101 = vmatprep.subr.bf16.mxu0 0
    %3102 = vmatpush1.bf16.msra.mxu0 0
    %3103 = vmatprep.subr.bf16.mxu0 0
    %3104 = vmatpush1.bf16.msra.mxu0 0
    %3105 = vmatprep.subr.bf16.mxu0 0
    %3106 = vmatpush1.bf16.msra.mxu0 0
    %3107 = vmatprep.subr.bf16.mxu0 0
    %3108 = vmatpush1.bf16.msra.mxu0 0
    %3109 = vmatprep.subr.bf16.mxu0 0
    %3110 = vmatpush1.bf16.msra.mxu0 0
    %3111 = vmatprep.mubr.bf16.mxu0 0
    %3112 = vmatmul.mubr.bf16.gmra.mrb[0].mxu0 %v3071
    %v3113 = vpop.f32.mrb[0].mxu0
    %v3114 = vadd.f32 %v1147, %v3113
    %v3115 = vpop.f32.mrb[0].mxu0
    %v3116 = vpop.f32.mrb[0].mxu0
    %v3117 = vadd.f32 %v1147, %v3116
    %v3118 = vpop.f32.mrb[0].mxu0
    %3119 = vmatprep.mubr.bf16.mxu0 0
    %3120 = vmatmul.mubr.bf16.gmra.mrb[0].mxu0 %v3073
    %v3121 = vpop.f32.mrb[0].mxu0
    %v3122 = vadd.f32 %v1147, %v3121
    %v3123 = vpop.f32.mrb[0].mxu0
    %v3124 = vpop.f32.mrb[0].mxu0
    %v3125 = vadd.f32 %v1147, %v3124
    %v3126 = vpop.f32.mrb[0].mxu0
    %3127 = vmatprep.mubr.bf16.mxu0 0
    %3128 = vmatmul.mubr.bf16.gmra.mrb[0].mxu0 %v3075
    %v3129 = vpop.f32.mrb[0].mxu0
    %v3130 = vadd.f32 %v1147, %v3129
    %v3131 = vpop.f32.mrb[0].mxu0
    %v3132 = vpop.f32.mrb[0].mxu0
    %v3133 = vadd.f32 %v1147, %v3132
    %v3134 = vpop.f32.mrb[0].mxu0
    %3135 = vmatprep.mubr.bf16.mxu0 0
    %3136 = vmatmul.mubr.bf16.gmra.mrb[0].mxu0 %v3077
    %v3137 = vpop.f32.mrb[0].mxu0
    %v3138 = vadd.f32 %v1147, %v3137
    %v3139 = vpop.f32.mrb[0].mxu0
    %v3140 = vpop.f32.mrb[0].mxu0
    %v3141 = vadd.f32 %v1147, %v3140
    %v3142 = vpop.f32.mrb[0].mxu0
    %3143 = vdwg.mxu0
    %v3144 = vunpack.c.h.b16 %v3002
    %v3145 = vunpack.c.h.b16 %v3003
    %v3146 = vunpack.c.h.b16 %v3004
    %v3147 = vunpack.c.h.b16 %v3005
    %v3148 = vunpack.c.h.b16 %v3006
    %v3149 = vunpack.c.h.b16 %v3007
    %v3150 = vunpack.c.h.b16 %v3008
    %v3151 = vunpack.c.h.b16 %v3009
    %v3152 = vpack.c.b16 %v3017, %v3017
    %v3153 = vpack.c.b16 %v3144, %v3144
    %v3154 = vpack.c.b16 %v3018, %v3018
    %v3155 = vpack.c.b16 %v3145, %v3145
    %v3156 = vpack.c.b16 %v3019, %v3019
    %v3157 = vpack.c.b16 %v3146, %v3146
    %v3158 = vpack.c.b16 %v3020, %v3020
    %v3159 = vpack.c.b16 %v3147, %v3147
    %v3160 = vpack.c.b16 %v3021, %v3021
    %v3161 = vpack.c.b16 %v3148, %v3148
    %v3162 = vpack.c.b16 %v3022, %v3022
    %v3163 = vpack.c.b16 %v3149, %v3149
    %v3164 = vpack.c.b16 %v3023, %v3023
    %v3165 = vpack.c.b16 %v3150, %v3150
    %v3166 = vpack.c.b16 %v3029, %v3029
    %v3167 = vpack.c.b16 %v3151, %v3151
    %v3169 = vshrl.u32 %v3152, 16
    %v3171 = vrot.slane %v3169, 4
    %v3172 = vshll.u32 %v3152, 16
    %v3174 = vrot.slane %v3172, 5
    %v3175 = vor.u32 %v3171, %v3174
    %v3176 = vrot.slane %v3175, 4
    %v3178 = vshll.u32 %v3153, 16
    %v3180 = vrot.slane %v3178, 5
    %v3181 = vsel %vm400, %v3176, %v3180
    %v3183 = vshrl.u32 %v3154, 16
    %v3185 = vrot.slane %v3183, 4
    %v3186 = vshll.u32 %v3154, 16
    %v3188 = vrot.slane %v3186, 5
    %v3189 = vor.u32 %v3185, %v3188
    %v3190 = vrot.slane %v3189, 4
    %v3192 = vshll.u32 %v3155, 16
    %v3194 = vrot.slane %v3192, 5
    %v3195 = vsel %vm400, %v3190, %v3194
    %v3197 = vshrl.u32 %v3156, 16
    %v3199 = vrot.slane %v3197, 4
    %v3200 = vshll.u32 %v3156, 16
    %v3202 = vrot.slane %v3200, 5
    %v3203 = vor.u32 %v3199, %v3202
    %v3204 = vrot.slane %v3203, 4
    %v3206 = vshll.u32 %v3157, 16
    %v3208 = vrot.slane %v3206, 5
    %v3209 = vsel %vm400, %v3204, %v3208
    %v3211 = vshrl.u32 %v3158, 16
    %v3213 = vrot.slane %v3211, 4
    %v3214 = vshll.u32 %v3158, 16
    %v3216 = vrot.slane %v3214, 5
    %v3217 = vor.u32 %v3213, %v3216
    %v3218 = vrot.slane %v3217, 4
    %v3220 = vshll.u32 %v3159, 16
    %v3222 = vrot.slane %v3220, 5
    %v3223 = vsel %vm400, %v3218, %v3222
    %v3225 = vshrl.u32 %v3160, 16
    %v3227 = vrot.slane %v3225, 4
    %v3228 = vshll.u32 %v3160, 16
    %v3230 = vrot.slane %v3228, 5
    %v3231 = vor.u32 %v3227, %v3230
    %v3232 = vrot.slane %v3231, 4
    %v3234 = vshll.u32 %v3161, 16
    %v3236 = vrot.slane %v3234, 5
    %v3237 = vsel %vm400, %v3232, %v3236
    %v3239 = vshrl.u32 %v3162, 16
    %v3241 = vrot.slane %v3239, 4
    %v3242 = vshll.u32 %v3162, 16
    %v3244 = vrot.slane %v3242, 5
    %v3245 = vor.u32 %v3241, %v3244
    %v3246 = vrot.slane %v3245, 4
    %v3248 = vshll.u32 %v3163, 16
    %v3250 = vrot.slane %v3248, 5
    %v3251 = vsel %vm400, %v3246, %v3250
    %v3253 = vshrl.u32 %v3164, 16
    %v3255 = vrot.slane %v3253, 4
    %v3256 = vshll.u32 %v3164, 16
    %v3258 = vrot.slane %v3256, 5
    %v3259 = vor.u32 %v3255, %v3258
    %v3260 = vrot.slane %v3259, 4
    %v3262 = vshll.u32 %v3165, 16
    %v3264 = vrot.slane %v3262, 5
    %v3265 = vsel %vm400, %v3260, %v3264
    %v3267 = vshrl.u32 %v3166, 16
    %v3269 = vrot.slane %v3267, 4
    %v3270 = vshll.u32 %v3166, 16
    %v3272 = vrot.slane %v3270, 5
    %v3273 = vor.u32 %v3269, %v3272
    %v3274 = vrot.slane %v3273, 4
    %v3276 = vshll.u32 %v3167, 16
    %v3278 = vrot.slane %v3276, 5
    %v3279 = vsel %vm400, %v3274, %v3278
    %v3280 = vunpack.c.l.b16 %v3181
    %v3281 = vunpack.c.l.b16 %v3195
    %v3282 = vunpack.c.l.b16 %v3209
    %v3283 = vunpack.c.l.b16 %v3223
    %v3284 = vunpack.c.l.b16 %v3237
    %v3285 = vunpack.c.l.b16 %v3251
    %v3286 = vunpack.c.l.b16 %v3265
    %v3287 = vpack.c.b16 %v3280, %v527
    %v3288 = vpack.c.b16 %v3282, %v3281
    %v3289 = vpack.c.b16 %v3284, %v3283
    %v3290 = vpack.c.b16 %v3286, %v3285
    %v3291 = vunpack.c.l.b16 %v3279
    %v3292 = vpack.c.b16 %v3281, %v3280
    %v3293 = vpack.c.b16 %v3283, %v3282
    %v3294 = vpack.c.b16 %v3285, %v3284
    %v3295 = vpack.c.b16 %v3291, %v3286
    %3296 = vrot.lane.b32.xlu0 %v3292, 32
    %v3297 = vpop.permute.xlu0 %3296
    %3298 = vrot.lane.b32.xlu0 %v3293, 32
    %v3299 = vpop.permute.xlu0 %3298
    %3300 = vrot.lane.b32.xlu0 %v3294, 32
    %v3301 = vpop.permute.xlu0 %3300
    %3302 = vrot.lane.b32.xlu0 %v3295, 32
    %v3303 = vpop.permute.xlu0 %3302
    %v3304 = vpack.c.b16 %v527, %v3291
    %3305 = vrot.lane.b32.xlu0 %v3288, 64
    %v3306 = vpop.permute.xlu0 %3305
    %3307 = vrot.lane.b32.xlu0 %v3289, 64
    %v3308 = vpop.permute.xlu0 %3307
    %3309 = vrot.lane.b32.xlu0 %v3290, 64
    %v3310 = vpop.permute.xlu0 %3309
    %3311 = vrot.lane.b32.xlu0 %v3304, 64
    %v3312 = vpop.permute.xlu0 %3311
    %v3315 = vsel %vm264, %v3287, %v3297
    %v3318 = vsel %vm264, %v3288, %v3299
    %v3321 = vsel %vm264, %v3289, %v3301
    %v3324 = vsel %vm264, %v3290, %v3303
    %v3326 = vsel %vm1134, %v3315, %v3306
    %v3328 = vsel %vm1134, %v3318, %v3308
    %v3330 = vsel %vm1134, %v3321, %v3310
    %v3332 = vsel %vm1134, %v3324, %v3312
    %v3333 = vsel %vm1185, %v3326, 0
    %v3335 = vsel %vm1185, %v3328, 0
    %v3337 = vsel %vm1185, %v3330, 0
    %v3339 = vsel %vm1185, %v3332, 0
    %3341 = vmatprep.subr.bf16.mxu0 0
    %3342 = vmatpush1.bf16.msra.mxu0 %v1472
    %3343 = vmatprep.subr.bf16.mxu0 0
    %3344 = vmatpush1.bf16.msra.mxu0 %v1473
    %3345 = vmatprep.subr.bf16.mxu0 0
    %3346 = vmatpush1.bf16.msra.mxu0 %v1474
    %3347 = vmatprep.subr.bf16.mxu0 0
    %3348 = vmatpush1.bf16.msra.mxu0 %v1475
    %3349 = vmatprep.subr.bf16.mxu0 0
    %3350 = vmatpush1.bf16.msra.mxu0 %v1476
    %3351 = vmatprep.subr.bf16.mxu0 0
    %3352 = vmatpush1.bf16.msra.mxu0 %v1477
    %3353 = vmatprep.subr.bf16.mxu0 0
    %3354 = vmatpush1.bf16.msra.mxu0 0
    %3355 = vmatprep.subr.bf16.mxu0 0
    %3356 = vmatpush1.bf16.msra.mxu0 0
    %3357 = vmatprep.subr.bf16.mxu0 0
    %3358 = vmatpush1.bf16.msra.mxu0 0
    %3359 = vmatprep.subr.bf16.mxu0 0
    %3360 = vmatpush1.bf16.msra.mxu0 0
    %3361 = vmatprep.subr.bf16.mxu0 0
    %3362 = vmatpush1.bf16.msra.mxu0 0
    %3363 = vmatprep.subr.bf16.mxu0 0
    %3364 = vmatpush1.bf16.msra.mxu0 0
    %3365 = vmatprep.subr.bf16.mxu0 0
    %3366 = vmatpush1.bf16.msra.mxu0 0
    %3367 = vmatprep.subr.bf16.mxu0 0
    %3368 = vmatpush1.bf16.msra.mxu0 0
    %3369 = vmatprep.subr.bf16.mxu0 0
    %3370 = vmatpush1.bf16.msra.mxu0 0
    %3371 = vmatprep.subr.bf16.mxu0 0
    %3372 = vmatpush1.bf16.msra.mxu0 0
    %3373 = vmatprep.mubr.bf16.mxu0 0
    %3374 = vmatmul.mubr.bf16.gmra.mrb[0].mxu0 %v3333
    %v3375 = vpop.f32.mrb[0].mxu0
    %v3376 = vadd.f32 0.0, %v3375
    %v3377 = vpop.f32.mrb[0].mxu0
    %v3378 = vpop.f32.mrb[0].mxu0
    %v3379 = vadd.f32 0.0, %v3378
    %v3380 = vpop.f32.mrb[0].mxu0
    %3381 = vmatprep.mubr.bf16.mxu0 0
    %3382 = vmatmul.mubr.bf16.gmra.mrb[0].mxu0 %v3335
    %v3383 = vpop.f32.mrb[0].mxu0
    %v3384 = vadd.f32 0.0, %v3383
    %v3385 = vpop.f32.mrb[0].mxu0
    %v3386 = vpop.f32.mrb[0].mxu0
    %v3387 = vadd.f32 0.0, %v3386
    %v3388 = vpop.f32.mrb[0].mxu0
    %3389 = vmatprep.mubr.bf16.mxu0 0
    %3390 = vmatmul.mubr.bf16.gmra.mrb[0].mxu0 %v3337
    %v3391 = vpop.f32.mrb[0].mxu0
    %v3392 = vadd.f32 0.0, %v3391
    %v3393 = vpop.f32.mrb[0].mxu0
    %v3394 = vpop.f32.mrb[0].mxu0
    %v3395 = vadd.f32 0.0, %v3394
    %v3396 = vpop.f32.mrb[0].mxu0
    %3397 = vmatprep.mubr.bf16.mxu0 0
    %3398 = vmatmul.mubr.bf16.gmra.mrb[0].mxu0 %v3339
    %v3399 = vpop.f32.mrb[0].mxu0
    %v3400 = vadd.f32 0.0, %v3399
    %v3401 = vpop.f32.mrb[0].mxu0
    %v3402 = vpop.f32.mrb[0].mxu0
    %v3403 = vadd.f32 0.0, %v3402
    %v3404 = vpop.f32.mrb[0].mxu0
    %3405 = vdwg.mxu0
    %v3406 = vadd.f32 %v3114, %v3376
    %v3407 = vadd.f32 %v3117, %v3379
    %v3408 = vadd.f32 %v3122, %v3384
    %v3409 = vadd.f32 %v3125, %v3387
    %v3410 = vadd.f32 %v3130, %v3392
    %v3411 = vadd.f32 %v3133, %v3395
    %v3412 = vadd.f32 %v3138, %v3400
    %v3413 = vadd.f32 %v3141, %v3403
    %v3414 = vrot.slane %v3152, 5
    %v3415 = vrot.slane %v3414, 4
    %v3416 = vrot.slane %v3153, 5
    %v3417 = vsel %vm682, %v3415, %v3416
    %v3418 = vrot.slane %v3154, 5
    %v3419 = vrot.slane %v3418, 4
    %v3420 = vrot.slane %v3155, 5
    %v3421 = vsel %vm682, %v3419, %v3420
    %v3422 = vrot.slane %v3156, 5
    %v3423 = vrot.slane %v3422, 4
    %v3424 = vrot.slane %v3157, 5
    %v3425 = vsel %vm682, %v3423, %v3424
    %v3426 = vrot.slane %v3158, 5
    %v3427 = vrot.slane %v3426, 4
    %v3428 = vrot.slane %v3159, 5
    %v3429 = vsel %vm682, %v3427, %v3428
    %v3430 = vrot.slane %v3160, 5
    %v3431 = vrot.slane %v3430, 4
    %v3432 = vrot.slane %v3161, 5
    %v3433 = vsel %vm682, %v3431, %v3432
    %v3434 = vrot.slane %v3162, 5
    %v3435 = vrot.slane %v3434, 4
    %v3436 = vrot.slane %v3163, 5
    %v3437 = vsel %vm682, %v3435, %v3436
    %v3438 = vrot.slane %v3164, 5
    %v3439 = vrot.slane %v3438, 4
    %v3440 = vrot.slane %v3165, 5
    %v3441 = vsel %vm682, %v3439, %v3440
    %v3442 = vrot.slane %v3166, 5
    %v3443 = vrot.slane %v3442, 4
    %v3444 = vrot.slane %v3167, 5
    %v3445 = vsel %vm682, %v3443, %v3444
    %v3446 = vunpack.c.l.b16 %v3417
    %v3447 = vunpack.c.l.b16 %v3421
    %v3448 = vunpack.c.l.b16 %v3425
    %v3449 = vunpack.c.l.b16 %v3429
    %v3450 = vunpack.c.l.b16 %v3433
    %v3451 = vunpack.c.l.b16 %v3437
    %v3452 = vunpack.c.l.b16 %v3441
    %v3453 = vpack.c.b16 %v3446, %v719
    %v3454 = vpack.c.b16 %v3448, %v3447
    %v3455 = vpack.c.b16 %v3450, %v3449
    %v3456 = vpack.c.b16 %v3452, %v3451
    %v3457 = vunpack.c.l.b16 %v3445
    %v3458 = vpack.c.b16 %v3447, %v3446
    %v3459 = vpack.c.b16 %v3449, %v3448
    %v3460 = vpack.c.b16 %v3451, %v3450
    %v3461 = vpack.c.b16 %v3457, %v3452
    %3462 = vrot.lane.b32.xlu0 %v3458, 32
    %v3463 = vpop.permute.xlu0 %3462
    %3464 = vrot.lane.b32.xlu0 %v3459, 32
    %v3465 = vpop.permute.xlu0 %3464
    %3466 = vrot.lane.b32.xlu0 %v3460, 32
    %v3467 = vpop.permute.xlu0 %3466
    %3468 = vrot.lane.b32.xlu0 %v3461, 32
    %v3469 = vpop.permute.xlu0 %3468
    %v3470 = vpack.c.b16 %v719, %v3457
    %3471 = vrot.lane.b32.xlu0 %v3454, 64
    %v3472 = vpop.permute.xlu0 %3471
    %3473 = vrot.lane.b32.xlu0 %v3455, 64
    %v3474 = vpop.permute.xlu0 %3473
    %3475 = vrot.lane.b32.xlu0 %v3456, 64
    %v3476 = vpop.permute.xlu0 %3475
    %3477 = vrot.lane.b32.xlu0 %v3470, 64
    %v3478 = vpop.permute.xlu0 %3477
    %v3481 = vsel %vm264, %v3453, %v3463
    %v3484 = vsel %vm264, %v3454, %v3465
    %v3487 = vsel %vm264, %v3455, %v3467
    %v3490 = vsel %vm264, %v3456, %v3469
    %v3492 = vsel %vm1134, %v3481, %v3472
    %v3494 = vsel %vm1134, %v3484, %v3474
    %v3496 = vsel %vm1134, %v3487, %v3476
    %v3498 = vsel %vm1134, %v3490, %v3478
    %v3499 = vsel %vm1185, %v3492, 0
    %v3501 = vsel %vm1185, %v3494, 0
    %v3503 = vsel %vm1185, %v3496, 0
    %v3505 = vsel %vm1185, %v3498, 0
    %3507 = vmatprep.subr.bf16.mxu0 0
    %3508 = vmatpush1.bf16.msra.mxu0 %v1674
    %3509 = vmatprep.subr.bf16.mxu0 0
    %3510 = vmatpush1.bf16.msra.mxu0 %v1675
    %3511 = vmatprep.subr.bf16.mxu0 0
    %3512 = vmatpush1.bf16.msra.mxu0 %v1676
    %3513 = vmatprep.subr.bf16.mxu0 0
    %3514 = vmatpush1.bf16.msra.mxu0 %v1677
    %3515 = vmatprep.subr.bf16.mxu0 0
    %3516 = vmatpush1.bf16.msra.mxu0 %v1678
    %3517 = vmatprep.subr.bf16.mxu0 0
    %3518 = vmatpush1.bf16.msra.mxu0 %v1679
    %3519 = vmatprep.subr.bf16.mxu0 0
    %3520 = vmatpush1.bf16.msra.mxu0 0
    %3521 = vmatprep.subr.bf16.mxu0 0
    %3522 = vmatpush1.bf16.msra.mxu0 0
    %3523 = vmatprep.subr.bf16.mxu0 0
    %3524 = vmatpush1.bf16.msra.mxu0 0
    %3525 = vmatprep.subr.bf16.mxu0 0
    %3526 = vmatpush1.bf16.msra.mxu0 0
    %3527 = vmatprep.subr.bf16.mxu0 0
    %3528 = vmatpush1.bf16.msra.mxu0 0
    %3529 = vmatprep.subr.bf16.mxu0 0
    %3530 = vmatpush1.bf16.msra.mxu0 0
    %3531 = vmatprep.subr.bf16.mxu0 0
    %3532 = vmatpush1.bf16.msra.mxu0 0
    %3533 = vmatprep.subr.bf16.mxu0 0
    %3534 = vmatpush1.bf16.msra.mxu0 0
    %3535 = vmatprep.subr.bf16.mxu0 0
    %3536 = vmatpush1.bf16.msra.mxu0 0
    %3537 = vmatprep.subr.bf16.mxu0 0
    %3538 = vmatpush1.bf16.msra.mxu0 0
    %3539 = vmatprep.mubr.bf16.mxu0 0
    %3540 = vmatmul.mubr.bf16.gmra.mrb[0].mxu0 %v3499
    %v3541 = vpop.f32.mrb[0].mxu0
    %v3542 = vadd.f32 0.0, %v3541
    %v3543 = vpop.f32.mrb[0].mxu0
    %v3544 = vpop.f32.mrb[0].mxu0
    %v3545 = vadd.f32 0.0, %v3544
    %v3546 = vpop.f32.mrb[0].mxu0
    %3547 = vmatprep.mubr.bf16.mxu0 0
    %3548 = vmatmul.mubr.bf16.gmra.mrb[0].mxu0 %v3501
    %v3549 = vpop.f32.mrb[0].mxu0
    %v3550 = vadd.f32 0.0, %v3549
    %v3551 = vpop.f32.mrb[0].mxu0
    %v3552 = vpop.f32.mrb[0].mxu0
    %v3553 = vadd.f32 0.0, %v3552
    %v3554 = vpop.f32.mrb[0].mxu0
    %3555 = vmatprep.mubr.bf16.mxu0 0
    %3556 = vmatmul.mubr.bf16.gmra.mrb[0].mxu0 %v3503
    %v3557 = vpop.f32.mrb[0].mxu0
    %v3558 = vadd.f32 0.0, %v3557
    %v3559 = vpop.f32.mrb[0].mxu0
    %v3560 = vpop.f32.mrb[0].mxu0
    %v3561 = vadd.f32 0.0, %v3560
    %v3562 = vpop.f32.mrb[0].mxu0
    %3563 = vmatprep.mubr.bf16.mxu0 0
    %3564 = vmatmul.mubr.bf16.gmra.mrb[0].mxu0 %v3505
    %v3565 = vpop.f32.mrb[0].mxu0
    %v3566 = vadd.f32 0.0, %v3565
    %v3567 = vpop.f32.mrb[0].mxu0
    %v3568 = vpop.f32.mrb[0].mxu0
    %v3569 = vadd.f32 0.0, %v3568
    %v3570 = vpop.f32.mrb[0].mxu0
    %3571 = vdwg.mxu0
    %v3572 = vadd.f32 %v3406, %v3542
    %v3573 = vadd.f32 %v3407, %v3545
    %v3574 = vadd.f32 %v3408, %v3550
    %v3575 = vadd.f32 %v3409, %v3553
    %v3576 = vadd.f32 %v3410, %v3558
    %v3577 = vadd.f32 %v3411, %v3561
    %v3578 = vadd.f32 %v3412, %v3566
    %v3579 = vadd.f32 %v3413, %v3569
    %v3580 = vsel %vm264, %v3572, 0.0
    %v3581 = vsel %vm264, %v3573, 0.0
    %v3582 = vadd.f32 %v3580, %v3581
    %v3583 = vsel %vm264, %v3574, 0.0
    %v3584 = vadd.f32 %v3582, %v3583
    %v3585 = vsel %vm264, %v3575, 0.0
    %v3586 = vadd.f32 %v3584, %v3585
    %v3587 = vsel %vm264, %v3576, 0.0
    %v3588 = vadd.f32 %v3586, %v3587
    %v3589 = vsel %vm264, %v3577, 0.0
    %v3590 = vadd.f32 %v3588, %v3589
    %v3591 = vsel %vm264, %v3578, 0.0
    %v3592 = vadd.f32 %v3590, %v3591
    %v3593 = vsel %vm264, %v3579, 0.0
    %v3594 = vadd.f32 %v3592, %v3593
    %v3595 = vrot.slane %v3594, 4
    %v3596 = vadd.f32 %v3594, %v3595
    %v3597 = vrot.slane %v3596, 2
    %v3598 = vadd.f32 %v3596, %v3597
    %v3599 = vrot.slane %v3598, 1
    %v3600 = vadd.f32 %v3598, %v3599
    %v3601 = vmul.f32 %v3600, 0.015625
    %v3602 = vsub.f32 %v3572, %v3601
    %v3603 = vsub.f32 %v3573, %v3601
    %v3604 = vsub.f32 %v3574, %v3601
    %v3605 = vsub.f32 %v3575, %v3601
    %v3606 = vsub.f32 %v3576, %v3601
    %v3607 = vsub.f32 %v3577, %v3601
    %v3608 = vsub.f32 %v3578, %v3601
    %v3609 = vsub.f32 %v3579, %v3601
    %v3610 = vmul.f32 %v3602, %v3602
    %v3611 = vmul.f32 %v3603, %v3603
    %v3612 = vmul.f32 %v3604, %v3604
    %v3613 = vmul.f32 %v3605, %v3605
    %v3614 = vmul.f32 %v3606, %v3606
    %v3615 = vmul.f32 %v3607, %v3607
    %v3616 = vmul.f32 %v3608, %v3608
    %v3617 = vmul.f32 %v3609, %v3609
    %v3618 = vsel %vm264, %v3610, 0.0
    %v3619 = vsel %vm264, %v3611, 0.0
    %v3620 = vadd.f32 %v3618, %v3619
    %v3621 = vsel %vm264, %v3612, 0.0
    %v3622 = vadd.f32 %v3620, %v3621
    %v3623 = vsel %vm264, %v3613, 0.0
    %v3624 = vadd.f32 %v3622, %v3623
    %v3625 = vsel %vm264, %v3614, 0.0
    %v3626 = vadd.f32 %v3624, %v3625
    %v3627 = vsel %vm264, %v3615, 0.0
    %v3628 = vadd.f32 %v3626, %v3627
    %v3629 = vsel %vm264, %v3616, 0.0
    %v3630 = vadd.f32 %v3628, %v3629
    %v3631 = vsel %vm264, %v3617, 0.0
    %v3632 = vadd.f32 %v3630, %v3631
    %v3633 = vrot.slane %v3632, 4
    %v3634 = vadd.f32 %v3632, %v3633
    %v3635 = vrot.slane %v3634, 2
    %v3636 = vadd.f32 %v3634, %v3635
    %v3637 = vrot.slane %v3636, 1
    %v3638 = vadd.f32 %v3636, %v3637
    %v3639 = vmul.f32 %v3638, 0.015625
    %v3640 = vadd.f32 %v3639, 1e-05
    %v3641 = vrsqrt.pop %v3640
    %v3642 = vmul.f32 %v3602, %v3641
    %v3643 = vmul.f32 %v3603, %v3641
    %v3644 = vmul.f32 %v3604, %v3641
    %v3645 = vmul.f32 %v3605, %v3641
    %v3646 = vmul.f32 %v3606, %v3641
    %v3647 = vmul.f32 %v3607, %v3641
    %v3648 = vmul.f32 %v3608, %v3641
    %v3649 = vmul.f32 %v3609, %v3641
    %v3650 = vmul.f32 %v3642, %v1841
    %v3651 = vmul.f32 %v3643, %v1841
    %v3652 = vmul.f32 %v3644, %v1841
    %v3653 = vmul.f32 %v3645, %v1841
    %v3654 = vmul.f32 %v3646, %v1841
    %v3655 = vmul.f32 %v3647, %v1841
    %v3656 = vmul.f32 %v3648, %v1841
    %v3657 = vmul.f32 %v3649, %v1841
    %v3658 = vadd.f32 %v3650, %v1855
    %v3659 = vadd.f32 %v3651, %v1855
    %v3660 = vadd.f32 %v3652, %v1855
    %v3661 = vadd.f32 %v3653, %v1855
    %v3662 = vadd.f32 %v3654, %v1855
    %v3663 = vadd.f32 %v3655, %v1855
    %v3664 = vadd.f32 %v3656, %v1855
    %v3665 = vadd.f32 %v3657, %v1855
    %v3666 = vmax.f32 %v3658, 0.0
    %v3667 = vmax.f32 %v3659, 0.0
    %v3668 = vmax.f32 %v3660, 0.0
    %v3669 = vmax.f32 %v3661, 0.0
    %v3670 = vmax.f32 %v3662, 0.0
    %v3671 = vmax.f32 %v3663, 0.0
    %v3672 = vmax.f32 %v3664, 0.0
    %v3673 = vmax.f32 %v3665, 0.0
    %v3682 = vunpack.c.l.b16 %v2154
    %v3683 = vunpack.c.l.b16 %v2155
    %v3684 = vunpack.c.l.b16 %v2156
    %v3685 = vunpack.c.l.b16 %v2157
    %v3686 = vunpack.c.l.b16 %v2158
    %v3687 = vunpack.c.l.b16 %v2159
    %v3688 = vunpack.c.l.b16 %v2160
    %v3689 = vunpack.c.l.b16 %v2161
    %v3690 = vpack.c.b16 %v3683, %v3682
    %v3691 = vpack.c.b16 %v3685, %v3684
    %v3692 = vpack.c.b16 %v3687, %v3686
    %v3693 = vpack.c.b16 %v3689, %v3688
    %v3695 = vsel %vm251, %v3690, 0
    %v3698 = vsel %vm251, %v3691, 0
    %v3701 = vsel %vm251, %v3692, 0
    %v3704 = vsel %vm251, %v3693, 0
    %3706 = vmatprep.subr.bf16.mxu0 0
    %3707 = vmatpush1.bf16.msra.mxu0 %v1903
    %3708 = vmatprep.subr.bf16.mxu0 0
    %3709 = vmatpush1.bf16.msra.mxu0 0
    %3710 = vmatprep.subr.bf16.mxu0 0
    %3711 = vmatpush1.bf16.msra.mxu0 0
    %3712 = vmatprep.subr.bf16.mxu0 0
    %3713 = vmatpush1.bf16.msra.mxu0 0
    %3714 = vmatprep.subr.bf16.mxu0 0
    %3715 = vmatpush1.bf16.msra.mxu0 0
    %3716 = vmatprep.subr.bf16.mxu0 0
    %3717 = vmatpush1.bf16.msra.mxu0 0
    %3718 = vmatprep.subr.bf16.mxu0 0
    %3719 = vmatpush1.bf16.msra.mxu0 0
    %3720 = vmatprep.subr.bf16.mxu0 0
    %3721 = vmatpush1.bf16.msra.mxu0 0
    %3722 = vmatprep.subr.bf16.mxu0 0
    %3723 = vmatpush1.bf16.msra.mxu0 0
    %3724 = vmatprep.subr.bf16.mxu0 0
    %3725 = vmatpush1.bf16.msra.mxu0 0
    %3726 = vmatprep.subr.bf16.mxu0 0
    %3727 = vmatpush1.bf16.msra.mxu0 0
    %3728 = vmatprep.subr.bf16.mxu0 0
    %3729 = vmatpush1.bf16.msra.mxu0 0
    %3730 = vmatprep.subr.bf16.mxu0 0
    %3731 = vmatpush1.bf16.msra.mxu0 0
    %3732 = vmatprep.subr.bf16.mxu0 0
    %3733 = vmatpush1.bf16.msra.mxu0 0
    %3734 = vmatprep.subr.bf16.mxu0 0
    %3735 = vmatpush1.bf16.msra.mxu0 0
    %3736 = vmatprep.subr.bf16.mxu0 0
    %3737 = vmatpush1.bf16.msra.mxu0 0
    %3738 = vmatprep.mubr.bf16.mxu0 0
    %3739 = vmatmul.mubr.bf16.gmra.mrb[0].mxu0 %v3695
    %v3740 = vpop.f32.mrb[0].mxu0
    %v3741 = vadd.f32 %v1877, %v3740
    %v3742 = vpop.f32.mrb[0].mxu0
    %v3743 = vpop.f32.mrb[0].mxu0
    %v3744 = vadd.f32 %v1877, %v3743
    %v3745 = vpop.f32.mrb[0].mxu0
    %3746 = vmatprep.mubr.bf16.mxu0 0
    %3747 = vmatmul.mubr.bf16.gmra.mrb[0].mxu0 %v3698
    %v3748 = vpop.f32.mrb[0].mxu0
    %v3749 = vadd.f32 %v1877, %v3748
    %v3750 = vpop.f32.mrb[0].mxu0
    %v3751 = vpop.f32.mrb[0].mxu0
    %v3752 = vadd.f32 %v1877, %v3751
    %v3753 = vpop.f32.mrb[0].mxu0
    %3754 = vmatprep.mubr.bf16.mxu0 0
    %3755 = vmatmul.mubr.bf16.gmra.mrb[0].mxu0 %v3701
    %v3756 = vpop.f32.mrb[0].mxu0
    %v3757 = vadd.f32 %v1877, %v3756
    %v3758 = vpop.f32.mrb[0].mxu0
    %v3759 = vpop.f32.mrb[0].mxu0
    %v3760 = vadd.f32 %v1877, %v3759
    %v3761 = vpop.f32.mrb[0].mxu0
    %3762 = vmatprep.mubr.bf16.mxu0 0
    %3763 = vmatmul.mubr.bf16.gmra.mrb[0].mxu0 %v3704
    %v3764 = vpop.f32.mrb[0].mxu0
    %v3765 = vadd.f32 %v1877, %v3764
    %v3766 = vpop.f32.mrb[0].mxu0
    %v3767 = vpop.f32.mrb[0].mxu0
    %v3768 = vadd.f32 %v1877, %v3767
    %v3769 = vpop.f32.mrb[0].mxu0
    %3770 = vdwg.mxu0
    %v3771 = vadd.f32 %v3666, %v3741
    %v3772 = vadd.f32 %v3667, %v3744
    %v3773 = vadd.f32 %v3668, %v3749
    %v3774 = vadd.f32 %v3669, %v3752
    %v3775 = vadd.f32 %v3670, %v3757
    %v3776 = vadd.f32 %v3671, %v3760
    %v3777 = vadd.f32 %v3672, %v3765
    %v3778 = vadd.f32 %v3673, %v3768
    %v3787 = vrot.slane %v3772, 7
    %v3788 = vsel %vm1999, %v3787, %v3771
    %v3789 = vrot.slane %v3773, 6
    %v3790 = vsel %vm2002, %v3789, %v3788
    %v3791 = vrot.slane %v3774, 5
    %v3792 = vsel %vm2005, %v3791, %v3790
    %v3793 = vrot.slane %v3775, 4
    %v3794 = vsel %vm2008, %v3793, %v3792
    %v3795 = vrot.slane %v3776, 3
    %v3796 = vsel %vm2011, %v3795, %v3794
    %v3797 = vrot.slane %v3777, 2
    %v3798 = vsel %vm2014, %v3797, %v3796
    %v3799 = vrot.slane %v3778, 1
    %v3800 = vsel %vm2017, %v3799, %v3798
    %v3802 = vrot.slane %v3771, 1
    %v3803 = vsel %vm1999, %v3772, %v3802
    %v3804 = vrot.slane %v3773, 7
    %v3805 = vsel %vm2002, %v3804, %v3803
    %v3806 = vrot.slane %v3774, 6
    %v3807 = vsel %vm2005, %v3806, %v3805
    %v3808 = vrot.slane %v3775, 5
    %v3809 = vsel %vm2008, %v3808, %v3807
    %v3810 = vrot.slane %v3776, 4
    %v3811 = vsel %vm2011, %v3810, %v3809
    %v3812 = vrot.slane %v3777, 3
    %v3813 = vsel %vm2014, %v3812, %v3811
    %v3814 = vrot.slane %v3778, 2
    %v3815 = vsel %vm2017, %v3814, %v3813
    %3816 = vrot.lane.b32.xlu0 %v3815, 32
    %v3817 = vpop.permute.xlu0 %3816
    %v3819 = vrot.slane %v3771, 2
    %v3820 = vrot.slane %v3772, 1
    %v3821 = vsel %vm1999, %v3820, %v3819
    %v3822 = vsel %vm2002, %v3773, %v3821
    %v3823 = vrot.slane %v3774, 7
    %v3824 = vsel %vm2005, %v3823, %v3822
    %v3825 = vrot.slane %v3775, 6
    %v3826 = vsel %vm2008, %v3825, %v3824
    %v3827 = vrot.slane %v3776, 5
    %v3828 = vsel %vm2011, %v3827, %v3826
    %v3829 = vrot.slane %v3777, 4
    %v3830 = vsel %vm2014, %v3829, %v3828
    %v3831 = vrot.slane %v3778, 3
    %v3832 = vsel %vm2017, %v3831, %v3830
    %3833 = vrot.lane.b32.xlu0 %v3832, 64
    %v3834 = vpop.permute.xlu0 %3833
    %v3836 = vrot.slane %v3771, 3
    %v3837 = vrot.slane %v3772, 2
    %v3838 = vsel %vm1999, %v3837, %v3836
    %v3839 = vrot.slane %v3773, 1
    %v3840 = vsel %vm2002, %v3839, %v3838
    %v3841 = vsel %vm2005, %v3774, %v3840
    %v3842 = vrot.slane %v3775, 7
    %v3843 = vsel %vm2008, %v3842, %v3841
    %v3844 = vrot.slane %v3776, 6
    %v3845 = vsel %vm2011, %v3844, %v3843
    %v3846 = vrot.slane %v3777, 5
    %v3847 = vsel %vm2014, %v3846, %v3845
    %v3848 = vrot.slane %v3778, 4
    %v3849 = vsel %vm2017, %v3848, %v3847
    %3850 = vrot.lane.b32.xlu0 %v3849, 96
    %v3851 = vpop.permute.xlu0 %3850
    %v3853 = vrot.slane %v3771, 4
    %v3854 = vrot.slane %v3772, 3
    %v3855 = vsel %vm1999, %v3854, %v3853
    %v3856 = vrot.slane %v3773, 2
    %v3857 = vsel %vm2002, %v3856, %v3855
    %v3858 = vrot.slane %v3774, 1
    %v3859 = vsel %vm2005, %v3858, %v3857
    %v3860 = vsel %vm2008, %v3775, %v3859
    %v3861 = vrot.slane %v3776, 7
    %v3862 = vsel %vm2011, %v3861, %v3860
    %v3863 = vrot.slane %v3777, 6
    %v3864 = vsel %vm2014, %v3863, %v3862
    %v3865 = vrot.slane %v3778, 5
    %v3866 = vsel %vm2017, %v3865, %v3864
    %v3868 = vrot.slane %v3771, 5
    %v3869 = vrot.slane %v3772, 4
    %v3870 = vsel %vm1999, %v3869, %v3868
    %v3871 = vrot.slane %v3773, 3
    %v3872 = vsel %vm2002, %v3871, %v3870
    %v3873 = vrot.slane %v3774, 2
    %v3874 = vsel %vm2005, %v3873, %v3872
    %v3875 = vrot.slane %v3775, 1
    %v3876 = vsel %vm2008, %v3875, %v3874
    %v3877 = vsel %vm2011, %v3776, %v3876
    %v3878 = vrot.slane %v3777, 7
    %v3879 = vsel %vm2014, %v3878, %v3877
    %v3880 = vrot.slane %v3778, 6
    %v3881 = vsel %vm2017, %v3880, %v3879
    %3882 = vrot.lane.b32.xlu0 %v3881, 32
    %v3883 = vpop.permute.xlu0 %3882
    %v3885 = vrot.slane %v3771, 6
    %v3886 = vrot.slane %v3772, 5
    %v3887 = vsel %vm1999, %v3886, %v3885
    %v3888 = vrot.slane %v3773, 4
    %v3889 = vsel %vm2002, %v3888, %v3887
    %v3890 = vrot.slane %v3774, 3
    %v3891 = vsel %vm2005, %v3890, %v3889
    %v3892 = vrot.slane %v3775, 2
    %v3893 = vsel %vm2008, %v3892, %v3891
    %v3894 = vrot.slane %v3776, 1
    %v3895 = vsel %vm2011, %v3894, %v3893
    %v3896 = vsel %vm2014, %v3777, %v3895
    %v3897 = vrot.slane %v3778, 7
    %v3898 = vsel %vm2017, %v3897, %v3896
    %3899 = vrot.lane.b32.xlu0 %v3898, 64
    %v3900 = vpop.permute.xlu0 %3899
    %v3902 = vrot.slane %v3771, 7
    %v3903 = vrot.slane %v3772, 6
    %v3904 = vsel %vm1999, %v3903, %v3902
    %v3905 = vrot.slane %v3773, 5
    %v3906 = vsel %vm2002, %v3905, %v3904
    %v3907 = vrot.slane %v3774, 4
    %v3908 = vsel %vm2005, %v3907, %v3906
    %v3909 = vrot.slane %v3775, 3
    %v3910 = vsel %vm2008, %v3909, %v3908
    %v3911 = vrot.slane %v3776, 2
    %v3912 = vsel %vm2011, %v3911, %v3910
    %v3913 = vrot.slane %v3777, 1
    %v3914 = vsel %vm2014, %v3913, %v3912
    %v3915 = vsel %vm2017, %v3778, %v3914
    %3916 = vrot.lane.b32.xlu0 %v3915, 96
    %v3917 = vpop.permute.xlu0 %3916
    %v3919 = vsel %vm264, %v3800, %v3817
    %v3920 = vsel %vm1134, %v3919, %v3834
    %v3921 = vsel %vm1185, %v3920, %v3851
    %v3922 = vsel %vm264, %v3866, %v3883
    %v3923 = vsel %vm1134, %v3922, %v3900
    %v3924 = vsel %vm1185, %v3923, %v3917
    %s3925 = scalar_lea.vmem [#allocation2], 16
    %3926 = vst [vmem:[%s3925] sm:$0xff] %v3921
    %3927 = vst [vmem:[%s3925 + $0x8] sm:$0xff] %v3924
    // Predicated region
    $region50: #{tpu_custom_call.1} parent=1 // pred_check
      _
    $region51: #{tpu_custom_call.1} parent=1 // pred_check_branch
      %3929 = sbr.rel (0) target = $region53
    $region52: #{tpu_custom_call.1} parent=1 // pred_region
      %s3931 = ssub.s32 512, 512
      %3932 = vsyncadd [#allocation3], %s3931
      %s3933 = sshll.u32 [#allocation2], 4
      %s3934 = int_to_ptr.vmem [resolvable:$true] %s3933
      %3939 = dma.vmem_to_hbm [thread:$0]  %s3934, 512, %s12, [#allocation3], 256, 256, 16
    $region53: #{tpu_custom_call.1} parent=1 // pred_fallthru
      _
    // Predicated region
    $region54: #{tpu_custom_call.1} parent=1 // pred_check
      _
    $region55: #{tpu_custom_call.1} parent=1 // pred_check_branch
      %3941 = sbr.rel (0) target = $region57
    $region56: #{tpu_custom_call.1} parent=1 // pred_region
      %3942 = dma.done [#allocation3], 512
    $region57: #{tpu_custom_call.1} parent=1 // pred_fallthru
      _
    %3943 = vsyncpa [#allocation3], 1

// kernel: tpu_custom_call.1
$region0: #{tpu_custom_call.1}
  #allocation0 [shape = 'u32[]', space=smem, size = 0x4, offset = 0x4, fixed_abs, tag = 'smem constant byte address 0x4 - core index']
  #allocation1 [shape = 'u32[144,128]{1,0:T(1,128)}', space=vmem, size = 0x12000, scoped, tag = 'internal scratch']
  #allocation2 [shape = 'f32[10,10,16]{2,1,0:T(8,128)}', space=vmem, size = 0x14000, scoped, tag = 'scratch operand']
  #allocation3 [shape = 'f32[10,10,32]{2,1,0:T(8,128)}', space=vmem, size = 0x14000, scoped, tag = 'scratch operand']
  %s0 = inlined_call_operand.vmem [shape: f32[2,8,8,16], index: 0, kind: input, shape index: {}]
  %s1 = inlined_call_operand.vmem [shape: f32[2,1,32], index: 1, kind: input, shape index: {}]
  %s2 = inlined_call_operand.vmem [shape: bf16[3,48,32], index: 2, kind: input, shape index: {}]
  %s3 = inlined_call_operand.vmem [shape: f32[1,32], index: 3, kind: input, shape index: {}]
  %s4 = inlined_call_operand.vmem [shape: f32[1,32], index: 4, kind: input, shape index: {}]
  %s5 = inlined_call_operand.vmem [shape: f32[1,32], index: 5, kind: input, shape index: {}]
  %s6 = inlined_call_operand.vmem [shape: bf16[3,96,32], index: 6, kind: input, shape index: {}]
  %s7 = inlined_call_operand.vmem [shape: f32[1,32], index: 7, kind: input, shape index: {}]
  %s8 = inlined_call_operand.vmem [shape: f32[1,32], index: 8, kind: input, shape index: {}]
  %s9 = inlined_call_operand.vmem [shape: f32[1,32], index: 9, kind: input, shape index: {}]
  %s10 = inlined_call_operand.vmem [shape: bf16[16,32], index: 10, kind: input, shape index: {}]
  %s11 = inlined_call_operand.vmem [shape: f32[1,32], index: 11, kind: input, shape index: {}]
  %s12 = inlined_call_operand.hbm [shape: f32[2,8,8,32], index: 12, kind: output, shape index: {}]
  %s13 = sld [smem:[#allocation0]]
  $region58: #{tpu_custom_call.1} parent=0
    _
  %s15 = ssub.s32 1, %s13
  %s16 = scalar_select 0, %s15, %s13
  $region1: #{tpu_custom_call.1} parent=0
    #allocation4 [shape = 'u8[65536]{0}', space=vmem, size = 0x10000, scoped, tag = 'output window, operand 0, single buffered']
    #allocation5 [shape = 's32[1]{0}', space=sflag, size = 0x4, scoped, tag = 'scoped memory for tpu_custom_call.1']
    %17 = vsyncpa [#allocation5], 0
    // Predicated region
    $region2: #{tpu_custom_call.1} parent=1 // pred_check
      _
    $region3: #{tpu_custom_call.1} parent=1 // pred_check_branch
      %19 = sbr.rel (0) target = $region5
    $region4: #{tpu_custom_call.1} parent=1 // pred_region
      _
    $region5: #{tpu_custom_call.1} parent=1 // pred_fallthru
      _
    // Predicated region
    $region6: #{tpu_custom_call.1} parent=1 // pred_check
      _
    $region7: #{tpu_custom_call.1} parent=1 // pred_check_branch
      %21 = sbr.rel (0) target = $region9
    $region8: #{tpu_custom_call.1} parent=1 // pred_region
      _
    $region9: #{tpu_custom_call.1} parent=1 // pred_fallthru
      _
    // Predicated region
    $region10: #{tpu_custom_call.1} parent=1 // pred_check
      _
    $region11: #{tpu_custom_call.1} parent=1 // pred_check_branch
      %23 = sbr.rel (0) target = $region13
    $region12: #{tpu_custom_call.1} parent=1 // pred_region
      _
    $region13: #{tpu_custom_call.1} parent=1 // pred_fallthru
      _
    // Predicated region
    $region14: #{tpu_custom_call.1} parent=1 // pred_check
      _
    $region15: #{tpu_custom_call.1} parent=1 // pred_check_branch
      %25 = sbr.rel (0) target = $region17
    $region16: #{tpu_custom_call.1} parent=1 // pred_region
      _
    $region17: #{tpu_custom_call.1} parent=1 // pred_fallthru
      _
    // Predicated region
    $region18: #{tpu_custom_call.1} parent=1 // pred_check
      _
    $region19: #{tpu_custom_call.1} parent=1 // pred_check_branch
      %27 = sbr.rel (0) target = $region21
    $region20: #{tpu_custom_call.1} parent=1 // pred_region
      _
    $region21: #{tpu_custom_call.1} parent=1 // pred_fallthru
      _
    // Predicated region
    $region22: #{tpu_custom_call.1} parent=1 // pred_check
      _
    $region23: #{tpu_custom_call.1} parent=1 // pred_check_branch
      %29 = sbr.rel (0) target = $region25
    $region24: #{tpu_custom_call.1} parent=1 // pred_region
      _
    $region25: #{tpu_custom_call.1} parent=1 // pred_fallthru
      _
    // Predicated region
    $region26: #{tpu_custom_call.1} parent=1 // pred_check
      _
    $region27: #{tpu_custom_call.1} parent=1 // pred_check_branch
      %31 = sbr.rel (0) target = $region29
    $region28: #{tpu_custom_call.1} parent=1 // pred_region
      _
    $region29: #{tpu_custom_call.1} parent=1 // pred_fallthru
      _
    // Predicated region
    $region30: #{tpu_custom_call.1} parent=1 // pred_check
      _
    $region31: #{tpu_custom_call.1} parent=1 // pred_check_branch
      %33 = sbr.rel (0) target = $region33
    $region32: #{tpu_custom_call.1} parent=1 // pred_region
      _
    $region33: #{tpu_custom_call.1} parent=1 // pred_fallthru
      _
    // Predicated region
    $region34: #{tpu_custom_call.1} parent=1 // pred_check
      _
    $region35: #{tpu_custom_call.1} parent=1 // pred_check_branch
      %35 = sbr.rel (0) target = $region37
    $region36: #{tpu_custom_call.1} parent=1 // pred_region
      _
    $region37: #{tpu_custom_call.1} parent=1 // pred_fallthru
      _
    // Predicated region
    $region38: #{tpu_custom_call.1} parent=1 // pred_check
      _
    $region39: #{tpu_custom_call.1} parent=1 // pred_check_branch
      %37 = sbr.rel (0) target = $region41
    $region40: #{tpu_custom_call.1} parent=1 // pred_region
      _
    $region41: #{tpu_custom_call.1} parent=1 // pred_fallthru
      _
    // Predicated region
    $region42: #{tpu_custom_call.1} parent=1 // pred_check
      _
    $region43: #{tpu_custom_call.1} parent=1 // pred_check_branch
      %39 = sbr.rel (0) target = $region45
    $region44: #{tpu_custom_call.1} parent=1 // pred_region
      _
    $region45: #{tpu_custom_call.1} parent=1 // pred_fallthru
      _
    // Predicated region
    $region46: #{tpu_custom_call.1} parent=1 // pred_check
      _
    $region47: #{tpu_custom_call.1} parent=1 // pred_check_branch
      %41 = sbr.rel (0) target = $region49
    $region48: #{tpu_custom_call.1} parent=1 // pred_region
      _
    $region49: #{tpu_custom_call.1} parent=1 // pred_fallthru
      _
    %v43 = vld [vmem:[%s10] sm:$0xf]
    %v44 = vld [vmem:[%s10 + $0x4] sm:$0xf]
    %v45 = vld [vmem:[%s11] sm:$0x1]
    %v46 = vld [vmem:[%s2] sm:$0xf]
    %v47 = vld [vmem:[%s2 + $0x4] sm:$0xf]
    %v48 = vld [vmem:[%s2 + $0x8] sm:$0xf]
    %v49 = vld [vmem:[%s2 + $0xc] sm:$0xf]
    %v50 = vld [vmem:[%s2 + $0x10] sm:$0xf]
    %v51 = vld [vmem:[%s2 + $0x14] sm:$0xf]
    %v52 = vld [vmem:[%s2 + $0x18] sm:$0xf]
    %v53 = vld [vmem:[%s2 + $0x1c] sm:$0xf]
    %v54 = vld [vmem:[%s2 + $0x20] sm:$0xf]
    %v55 = vld [vmem:[%s2 + $0x24] sm:$0xf]
    %v56 = vld [vmem:[%s2 + $0x28] sm:$0xf]
    %v57 = vld [vmem:[%s2 + $0x2c] sm:$0xf]
    %v58 = vld [vmem:[%s2 + $0x30] sm:$0xf]
    %v59 = vld [vmem:[%s2 + $0x34] sm:$0xf]
    %v60 = vld [vmem:[%s2 + $0x38] sm:$0xf]
    %v61 = vld [vmem:[%s2 + $0x3c] sm:$0xf]
    %v62 = vld [vmem:[%s2 + $0x40] sm:$0xf]
    %v63 = vld [vmem:[%s2 + $0x44] sm:$0xf]
    %v64 = vld [vmem:[%s3] sm:$0x1]
    %v65 = vld [vmem:[%s4] sm:$0x1]
    %v66 = vld [vmem:[%s5] sm:$0x1]
    %v67 = vld [vmem:[%s6] sm:$0xf]
    %v68 = vld [vmem:[%s6 + $0x4] sm:$0xf]
    %v69 = vld [vmem:[%s6 + $0x8] sm:$0xf]
    %v70 = vld [vmem:[%s6 + $0xc] sm:$0xf]
    %v71 = vld [vmem:[%s6 + $0x10] sm:$0xf]
    %v72 = vld [vmem:[%s6 + $0x14] sm:$0xf]
    %v73 = vld [vmem:[%s6 + $0x18] sm:$0xf]
    %v74 = vld [vmem:[%s6 + $0x1c] sm:$0xf]
    %v75 = vld [vmem:[%s6 + $0x20] sm:$0xf]
    %v76 = vld [vmem:[%s6 + $0x24] sm:$0xf]
    %v77 = vld [vmem:[%s6 + $0x28] sm:$0xf]
    %v78 = vld [vmem:[%s6 + $0x2c] sm:$0xf]
    %v79 = vld [vmem:[%s6 + $0x30] sm:$0xf]
    %v80 = vld [vmem:[%s6 + $0x34] sm:$0xf]
    %v81 = vld [vmem:[%s6 + $0x38] sm:$0xf]
    %v82 = vld [vmem:[%s6 + $0x3c] sm:$0xf]
    %v83 = vld [vmem:[%s6 + $0x40] sm:$0xf]
    %v84 = vld [vmem:[%s6 + $0x44] sm:$0xf]
    %v85 = vld [vmem:[%s6 + $0x48] sm:$0xf]
    %v86 = vld [vmem:[%s6 + $0x4c] sm:$0xf]
    %v87 = vld [vmem:[%s6 + $0x50] sm:$0xf]
    %v88 = vld [vmem:[%s6 + $0x54] sm:$0xf]
    %v89 = vld [vmem:[%s6 + $0x58] sm:$0xf]
    %v90 = vld [vmem:[%s6 + $0x5c] sm:$0xf]
    %v91 = vld [vmem:[%s6 + $0x60] sm:$0xf]
    %v92 = vld [vmem:[%s6 + $0x64] sm:$0xf]
    %v93 = vld [vmem:[%s6 + $0x68] sm:$0xf]
    %v94 = vld [vmem:[%s6 + $0x6c] sm:$0xf]
    %v95 = vld [vmem:[%s6 + $0x70] sm:$0xf]
    %v96 = vld [vmem:[%s6 + $0x74] sm:$0xf]
    %v97 = vld [vmem:[%s6 + $0x78] sm:$0xf]
    %v98 = vld [vmem:[%s6 + $0x7c] sm:$0xf]
    %v99 = vld [vmem:[%s6 + $0x80] sm:$0xf]
    %v100 = vld [vmem:[%s6 + $0x84] sm:$0xf]
    %v101 = vld [vmem:[%s6 + $0x88] sm:$0xf]
    %v102 = vld [vmem:[%s6 + $0x8c] sm:$0xf]
    %v103 = vld [vmem:[%s7] sm:$0x1]
    %v104 = vld [vmem:[%s8] sm:$0x1]
    %v105 = vld [vmem:[%s9] sm:$0x1]
    %vm106 = vcmask 130048
    %107 = vst.msk [vmem:[#allocation2] sm:$0xff] %vm106, 0.0
    %vm108 = vcmask 123904
    %109 = vst.msk [vmem:[#allocation2 + $0x8] sm:$0x3] %vm108, 0.0
    %s110 = scalar_lea.vmem [#allocation2], 144
    %111 = vst.msk [vmem:[%s110] sm:$0xff] %vm106, 0.0
    %112 = vst.msk [vmem:[%s110 + $0x8] sm:$0x3] %vm108, 0.0
    %vm113 = vcmask 122880
    %114 = vst.msk [vmem:[#allocation2] sm:$0x1] %vm113, 0.0
    %115 = vst.msk [vmem:[#allocation2 + $0x10] sm:$0x1] %vm113, 0.0
    %116 = vst.msk [vmem:[#allocation2 + $0x20] sm:$0x1] %vm113, 0.0
    %117 = vst.msk [vmem:[#allocation2 + $0x30] sm:$0x1] %vm113, 0.0
    %118 = vst.msk [vmem:[#allocation2 + $0x40] sm:$0x1] %vm113, 0.0
    %119 = vst.msk [vmem:[#allocation2 + $0x50] sm:$0x1] %vm113, 0.0
    %120 = vst.msk [vmem:[#allocation2 + $0x60] sm:$0x1] %vm113, 0.0
    %121 = vst.msk [vmem:[#allocation2 + $0x70] sm:$0x1] %vm113, 0.0
    %122 = vst.msk [vmem:[#allocation2 + $0x80] sm:$0x1] %vm113, 0.0
    %123 = vst.msk [vmem:[#allocation2 + $0x90] sm:$0x1] %vm113, 0.0
    %124 = vst.msk [vmem:[#allocation2 + $0x9] sm:$0x1] %vm113, 0.0
    %125 = vst.msk [vmem:[#allocation2 + $0x19] sm:$0x1] %vm113, 0.0
    %126 = vst.msk [vmem:[#allocation2 + $0x29] sm:$0x1] %vm113, 0.0
    %127 = vst.msk [vmem:[#allocation2 + $0x39] sm:$0x1] %vm113, 0.0
    %128 = vst.msk [vmem:[#allocation2 + $0x49] sm:$0x1] %vm113, 0.0
    %129 = vst.msk [vmem:[#allocation2 + $0x59] sm:$0x1] %vm113, 0.0
    %130 = vst.msk [vmem:[#allocation2 + $0x69] sm:$0x1] %vm113, 0.0
    %131 = vst.msk [vmem:[#allocation2 + $0x79] sm:$0x1] %vm113, 0.0
    %132 = vst.msk [vmem:[#allocation2 + $0x89] sm:$0x1] %vm113, 0.0
    %133 = vst.msk [vmem:[#allocation2 + $0x99] sm:$0x1] %vm113, 0.0
    %vm134 = vcmask 261120
    %135 = vst.msk [vmem:[#allocation3] sm:$0xff] %vm134, 0.0
    %vm136 = vcmask 254976
    %137 = vst.msk [vmem:[#allocation3 + $0x8] sm:$0x3] %vm136, 0.0
    %s138 = scalar_lea.vmem [#allocation3], 144
    %139 = vst.msk [vmem:[%s138] sm:$0xff] %vm134, 0.0
    %140 = vst.msk [vmem:[%s138 + $0x8] sm:$0x3] %vm136, 0.0
    %vm141 = vcmask 253952
    %142 = vst.msk [vmem:[#allocation3] sm:$0x1] %vm141, 0.0
    %143 = vst.msk [vmem:[#allocation3 + $0x10] sm:$0x1] %vm141, 0.0
    %144 = vst.msk [vmem:[#allocation3 + $0x20] sm:$0x1] %vm141, 0.0
    %145 = vst.msk [vmem:[#allocation3 + $0x30] sm:$0x1] %vm141, 0.0
    %146 = vst.msk [vmem:[#allocation3 + $0x40] sm:$0x1] %vm141, 0.0
    %147 = vst.msk [vmem:[#allocation3 + $0x50] sm:$0x1] %vm141, 0.0
    %148 = vst.msk [vmem:[#allocation3 + $0x60] sm:$0x1] %vm141, 0.0
    %149 = vst.msk [vmem:[#allocation3 + $0x70] sm:$0x1] %vm141, 0.0
    %150 = vst.msk [vmem:[#allocation3 + $0x80] sm:$0x1] %vm141, 0.0
    %151 = vst.msk [vmem:[#allocation3 + $0x90] sm:$0x1] %vm141, 0.0
    %152 = vst.msk [vmem:[#allocation3 + $0x9] sm:$0x1] %vm141, 0.0
    %153 = vst.msk [vmem:[#allocation3 + $0x19] sm:$0x1] %vm141, 0.0
    %154 = vst.msk [vmem:[#allocation3 + $0x29] sm:$0x1] %vm141, 0.0
    %155 = vst.msk [vmem:[#allocation3 + $0x39] sm:$0x1] %vm141, 0.0
    %156 = vst.msk [vmem:[#allocation3 + $0x49] sm:$0x1] %vm141, 0.0
    %157 = vst.msk [vmem:[#allocation3 + $0x59] sm:$0x1] %vm141, 0.0
    %158 = vst.msk [vmem:[#allocation3 + $0x69] sm:$0x1] %vm141, 0.0
    %159 = vst.msk [vmem:[#allocation3 + $0x79] sm:$0x1] %vm141, 0.0
    %160 = vst.msk [vmem:[#allocation3 + $0x89] sm:$0x1] %vm141, 0.0
    %161 = vst.msk [vmem:[#allocation3 + $0x99] sm:$0x1] %vm141, 0.0
    %v162 = vld [vmem:[%s0] sm:$0xff]
    %v163 = vld [vmem:[%s0 + $0x8] sm:$0xff]
    %v164 = vld [vmem:[%s0 + $0x10] sm:$0xff]
    %v165 = vld [vmem:[%s0 + $0x18] sm:$0xff]
    %v166 = vld [vmem:[%s0 + $0x20] sm:$0xff]
    %v167 = vld [vmem:[%s0 + $0x28] sm:$0xff]
    %v168 = vld [vmem:[%s0 + $0x30] sm:$0xff]
    %v169 = vld [vmem:[%s0 + $0x38] sm:$0xff]
    %v170 = vpack.c.bf16 %v162, %v162
    %v171 = vpack.c.bf16 %v163, %v163
    %v172 = vpack.c.bf16 %v164, %v164
    %v173 = vpack.c.bf16 %v165, %v165
    %v174 = vpack.c.bf16 %v166, %v166
    %v175 = vpack.c.bf16 %v167, %v167
    %v176 = vpack.c.bf16 %v168, %v168
    %v177 = vpack.c.bf16 %v169, %v169
    %s178 = scalar_lea.vmem [#allocation2], 16
    %179 = vst.msk [vmem:[%s178 + $0x1] sm:$0xff] %vm106, %v162
    %180 = vst.msk [vmem:[%s178 + $0x11] sm:$0xff] %vm106, %v163
    %181 = vst.msk [vmem:[%s178 + $0x21] sm:$0xff] %vm106, %v164
    %182 = vst.msk [vmem:[%s178 + $0x31] sm:$0xff] %vm106, %v165
    %183 = vst.msk [vmem:[%s178 + $0x41] sm:$0xff] %vm106, %v166
    %184 = vst.msk [vmem:[%s178 + $0x51] sm:$0xff] %vm106, %v167
    %185 = vst.msk [vmem:[%s178 + $0x61] sm:$0xff] %vm106, %v168
    %186 = vst.msk [vmem:[%s178 + $0x71] sm:$0xff] %vm106, %v169
    %v187 = vld [vmem:[#allocation2] sm:$0xff]
    %v188 = vld [vmem:[#allocation2 + $0x10] sm:$0xff]
    %v189 = vld [vmem:[#allocation2 + $0x20] sm:$0xff]
    %v190 = vld [vmem:[#allocation2 + $0x30] sm:$0xff]
    %v191 = vld [vmem:[#allocation2 + $0x40] sm:$0xff]
    %v192 = vld [vmem:[#allocation2 + $0x50] sm:$0xff]
    %v193 = vld [vmem:[#allocation2 + $0x60] sm:$0xff]
    %v194 = vld [vmem:[#allocation2 + $0x70] sm:$0xff]
    %v195 = vld [vmem:[#allocation2 + $0x80] sm:$0xff]
    %v196 = vld [vmem:[#allocation2 + $0x90] sm:$0xff]
    %v197 = vpack.c.bf16 %v187, %v187
    %v198 = vpack.c.bf16 %v188, %v188
    %v199 = vpack.c.bf16 %v189, %v189
    %v200 = vpack.c.bf16 %v190, %v190
    %v201 = vpack.c.bf16 %v191, %v191
    %v202 = vpack.c.bf16 %v192, %v192
    %v203 = vpack.c.bf16 %v193, %v193
    %v204 = vpack.c.bf16 %v194, %v194
    %v205 = vpack.c.bf16 %v195, %v195
    %v206 = vpack.c.bf16 %v196, %v196
    %v208 = vlaneseq
    %v209 = vshrl.u32 %v208, 7
    %v210 = vsub.s32 0, %v209
    %v211 = vrot.slane %v64, %v210
    %v221 = vunpack.c.l.b16 %v197
    %v222 = vunpack.c.l.b16 %v198
    %v223 = vunpack.c.l.b16 %v199
    %v224 = vunpack.c.l.b16 %v200
    %v225 = vunpack.c.l.b16 %v201
    %v226 = vunpack.c.l.b16 %v202
    %v227 = vunpack.c.l.b16 %v203
    %v228 = vunpack.c.l.b16 %v204
    %v229 = vpack.c.b16 %v222, %v221
    %v230 = vpack.c.b16 %v224, %v223
    %v231 = vpack.c.b16 %v226, %v225
    %v232 = vpack.c.b16 %v228, %v227
    %v235 = vunpack.c.l.b16 %v46
    %v236 = vunpack.c.l.b16 %v47
    %v237 = vpack.c.b16 %v236, %v235
    %v240 = vsel %vm106, %v229, 0
    %v243 = vsel %vm106, %v230, 0
    %v246 = vsel %vm106, %v231, 0
    %v249 = vsel %vm106, %v232, 0
    %251 = vmatprep.subr.bf16.mxu0 0
    %252 = vmatpush1.bf16.msra.mxu0 %v237
    %253 = vmatprep.subr.bf16.mxu0 0
    %254 = vmatpush1.bf16.msra.mxu0 0
    %255 = vmatprep.subr.bf16.mxu0 0
    %256 = vmatpush1.bf16.msra.mxu0 0
    %257 = vmatprep.subr.bf16.mxu0 0
    %258 = vmatpush1.bf16.msra.mxu0 0
    %259 = vmatprep.subr.bf16.mxu0 0
    %260 = vmatpush1.bf16.msra.mxu0 0
    %261 = vmatprep.subr.bf16.mxu0 0
    %262 = vmatpush1.bf16.msra.mxu0 0
    %263 = vmatprep.subr.bf16.mxu0 0
    %264 = vmatpush1.bf16.msra.mxu0 0
    %265 = vmatprep.subr.bf16.mxu0 0
    %266 = vmatpush1.bf16.msra.mxu0 0
    %267 = vmatprep.subr.bf16.mxu0 0
    %268 = vmatpush1.bf16.msra.mxu0 0
    %269 = vmatprep.subr.bf16.mxu0 0
    %270 = vmatpush1.bf16.msra.mxu0 0
    %271 = vmatprep.subr.bf16.mxu0 0
    %272 = vmatpush1.bf16.msra.mxu0 0
    %273 = vmatprep.subr.bf16.mxu0 0
    %274 = vmatpush1.bf16.msra.mxu0 0
    %275 = vmatprep.subr.bf16.mxu0 0
    %276 = vmatpush1.bf16.msra.mxu0 0
    %277 = vmatprep.subr.bf16.mxu0 0
    %278 = vmatpush1.bf16.msra.mxu0 0
    %279 = vmatprep.subr.bf16.mxu0 0
    %280 = vmatpush1.bf16.msra.mxu0 0
    %281 = vmatprep.subr.bf16.mxu0 0
    %282 = vmatpush1.bf16.msra.mxu0 0
    %283 = vmatprep.mubr.bf16.mxu0 0
    %284 = vmatmul.mubr.bf16.gmra.mrb[0].mxu0 %v240
    %v285 = vpop.f32.mrb[0].mxu0
    %v286 = vadd.f32 %v211, %v285
    %v287 = vpop.f32.mrb[0].mxu0
    %v288 = vpop.f32.mrb[0].mxu0
    %v289 = vadd.f32 %v211, %v288
    %v290 = vpop.f32.mrb[0].mxu0
    %291 = vmatprep.mubr.bf16.mxu0 0
    %292 = vmatmul.mubr.bf16.gmra.mrb[0].mxu0 %v243
    %v293 = vpop.f32.mrb[0].mxu0
    %v294 = vadd.f32 %v211, %v293
    %v295 = vpop.f32.mrb[0].mxu0
    %v296 = vpop.f32.mrb[0].mxu0
    %v297 = vadd.f32 %v211, %v296
    %v298 = vpop.f32.mrb[0].mxu0
    %299 = vmatprep.mubr.bf16.mxu0 0
    %300 = vmatmul.mubr.bf16.gmra.mrb[0].mxu0 %v246
    %v301 = vpop.f32.mrb[0].mxu0
    %v302 = vadd.f32 %v211, %v301
    %v303 = vpop.f32.mrb[0].mxu0
    %v304 = vpop.f32.mrb[0].mxu0
    %v305 = vadd.f32 %v211, %v304
    %v306 = vpop.f32.mrb[0].mxu0
    %307 = vmatprep.mubr.bf16.mxu0 0
    %308 = vmatmul.mubr.bf16.gmra.mrb[0].mxu0 %v249
    %v309 = vpop.f32.mrb[0].mxu0
    %v310 = vadd.f32 %v211, %v309
    %v311 = vpop.f32.mrb[0].mxu0
    %v312 = vpop.f32.mrb[0].mxu0
    %v313 = vadd.f32 %v211, %v312
    %v314 = vpop.f32.mrb[0].mxu0
    %315 = vdwg.mxu0
    %v317 = vunpack.c.l.b16 %v205
    %v318 = vpack.c.b16 %v223, %v222
    %v319 = vpack.c.b16 %v225, %v224
    %v320 = vpack.c.b16 %v227, %v226
    %v321 = vpack.c.b16 %v317, %v228
    %v324 = vunpack.c.l.b16 %v48
    %v325 = vunpack.c.l.b16 %v49
    %v326 = vpack.c.b16 %v325, %v324
    %v329 = vsel %vm106, %v318, 0
    %v332 = vsel %vm106, %v319, 0
    %v335 = vsel %vm106, %v320, 0
    %v338 = vsel %vm106, %v321, 0
    %340 = vmatprep.subr.bf16.mxu0 0
    %341 = vmatpush1.bf16.msra.mxu0 %v326
    %342 = vmatprep.subr.bf16.mxu0 0
    %343 = vmatpush1.bf16.msra.mxu0 0
    %344 = vmatprep.subr.bf16.mxu0 0
    %345 = vmatpush1.bf16.msra.mxu0 0
    %346 = vmatprep.subr.bf16.mxu0 0
    %347 = vmatpush1.bf16.msra.mxu0 0
    %348 = vmatprep.subr.bf16.mxu0 0
    %349 = vmatpush1.bf16.msra.mxu0 0
    %350 = vmatprep.subr.bf16.mxu0 0
    %351 = vmatpush1.bf16.msra.mxu0 0
    %352 = vmatprep.subr.bf16.mxu0 0
    %353 = vmatpush1.bf16.msra.mxu0 0
    %354 = vmatprep.subr.bf16.mxu0 0
    %355 = vmatpush1.bf16.msra.mxu0 0
    %356 = vmatprep.subr.bf16.mxu0 0
    %357 = vmatpush1.bf16.msra.mxu0 0
    %358 = vmatprep.subr.bf16.mxu0 0
    %359 = vmatpush1.bf16.msra.mxu0 0
    %360 = vmatprep.subr.bf16.mxu0 0
    %361 = vmatpush1.bf16.msra.mxu0 0
    %362 = vmatprep.subr.bf16.mxu0 0
    %363 = vmatpush1.bf16.msra.mxu0 0
    %364 = vmatprep.subr.bf16.mxu0 0
    %365 = vmatpush1.bf16.msra.mxu0 0
    %366 = vmatprep.subr.bf16.mxu0 0
    %367 = vmatpush1.bf16.msra.mxu0 0
    %368 = vmatprep.subr.bf16.mxu0 0
    %369 = vmatpush1.bf16.msra.mxu0 0
    %370 = vmatprep.subr.bf16.mxu0 0
    %371 = vmatpush1.bf16.msra.mxu0 0
    %372 = vmatprep.mubr.bf16.mxu0 0
    %373 = vmatmul.mubr.bf16.gmra.mrb[0].mxu0 %v329
    %v374 = vpop.f32.mrb[0].mxu0
    %v375 = vadd.f32 0.0, %v374
    %v376 = vpop.f32.mrb[0].mxu0
    %v377 = vpop.f32.mrb[0].mxu0
    %v378 = vadd.f32 0.0, %v377
    %v379 = vpop.f32.mrb[0].mxu0
    %380 = vmatprep.mubr.bf16.mxu0 0
    %381 = vmatmul.mubr.bf16.gmra.mrb[0].mxu0 %v332
    %v382 = vpop.f32.mrb[0].mxu0
    %v383 = vadd.f32 0.0, %v382
    %v384 = vpop.f32.mrb[0].mxu0
    %v385 = vpop.f32.mrb[0].mxu0
    %v386 = vadd.f32 0.0, %v385
    %v387 = vpop.f32.mrb[0].mxu0
    %388 = vmatprep.mubr.bf16.mxu0 0
    %389 = vmatmul.mubr.bf16.gmra.mrb[0].mxu0 %v335
    %v390 = vpop.f32.mrb[0].mxu0
    %v391 = vadd.f32 0.0, %v390
    %v392 = vpop.f32.mrb[0].mxu0
    %v393 = vpop.f32.mrb[0].mxu0
    %v394 = vadd.f32 0.0, %v393
    %v395 = vpop.f32.mrb[0].mxu0
    %396 = vmatprep.mubr.bf16.mxu0 0
    %397 = vmatmul.mubr.bf16.gmra.mrb[0].mxu0 %v338
    %v398 = vpop.f32.mrb[0].mxu0
    %v399 = vadd.f32 0.0, %v398
    %v400 = vpop.f32.mrb[0].mxu0
    %v401 = vpop.f32.mrb[0].mxu0
    %v402 = vadd.f32 0.0, %v401
    %v403 = vpop.f32.mrb[0].mxu0
    %404 = vdwg.mxu0
    %v405 = vadd.f32 %v286, %v375
    %v406 = vadd.f32 %v289, %v378
    %v407 = vadd.f32 %v294, %v383
    %v408 = vadd.f32 %v297, %v386
    %v409 = vadd.f32 %v302, %v391
    %v410 = vadd.f32 %v305, %v394
    %v411 = vadd.f32 %v310, %v399
    %v412 = vadd.f32 %v313, %v402
    %v414 = vunpack.c.l.b16 %v206
    %v415 = vpack.c.b16 %v414, %v317
    %v418 = vunpack.c.l.b16 %v50
    %v419 = vunpack.c.l.b16 %v51
    %v420 = vpack.c.b16 %v419, %v418
    %v423 = vsel %vm106, %v415, 0
    %425 = vmatprep.subr.bf16.mxu0 0
    %426 = vmatpush1.bf16.msra.mxu0 %v420
    %427 = vmatprep.subr.bf16.mxu0 0
    %428 = vmatpush1.bf16.msra.mxu0 0
    %429 = vmatprep.subr.bf16.mxu0 0
    %430 = vmatpush1.bf16.msra.mxu0 0
    %431 = vmatprep.subr.bf16.mxu0 0
    %432 = vmatpush1.bf16.msra.mxu0 0
    %433 = vmatprep.subr.bf16.mxu0 0
    %434 = vmatpush1.bf16.msra.mxu0 0
    %435 = vmatprep.subr.bf16.mxu0 0
    %436 = vmatpush1.bf16.msra.mxu0 0
    %437 = vmatprep.subr.bf16.mxu0 0
    %438 = vmatpush1.bf16.msra.mxu0 0
    %439 = vmatprep.subr.bf16.mxu0 0
    %440 = vmatpush1.bf16.msra.mxu0 0
    %441 = vmatprep.subr.bf16.mxu0 0
    %442 = vmatpush1.bf16.msra.mxu0 0
    %443 = vmatprep.subr.bf16.mxu0 0
    %444 = vmatpush1.bf16.msra.mxu0 0
    %445 = vmatprep.subr.bf16.mxu0 0
    %446 = vmatpush1.bf16.msra.mxu0 0
    %447 = vmatprep.subr.bf16.mxu0 0
    %448 = vmatpush1.bf16.msra.mxu0 0
    %449 = vmatprep.subr.bf16.mxu0 0
    %450 = vmatpush1.bf16.msra.mxu0 0
    %451 = vmatprep.subr.bf16.mxu0 0
    %452 = vmatpush1.bf16.msra.mxu0 0
    %453 = vmatprep.subr.bf16.mxu0 0
    %454 = vmatpush1.bf16.msra.mxu0 0
    %455 = vmatprep.subr.bf16.mxu0 0
    %456 = vmatpush1.bf16.msra.mxu0 0
    %457 = vmatprep.mubr.bf16.mxu0 0
    %458 = vmatmul.mubr.bf16.gmra.mrb[0].mxu0 %v243
    %v459 = vpop.f32.mrb[0].mxu0
    %v460 = vadd.f32 0.0, %v459
    %v461 = vpop.f32.mrb[0].mxu0
    %v462 = vpop.f32.mrb[0].mxu0
    %v463 = vadd.f32 0.0, %v462
    %v464 = vpop.f32.mrb[0].mxu0
    %465 = vmatprep.mubr.bf16.mxu0 0
    %466 = vmatmul.mubr.bf16.gmra.mrb[0].mxu0 %v246
    %v467 = vpop.f32.mrb[0].mxu0
    %v468 = vadd.f32 0.0, %v467
    %v469 = vpop.f32.mrb[0].mxu0
    %v470 = vpop.f32.mrb[0].mxu0
    %v471 = vadd.f32 0.0, %v470
    %v472 = vpop.f32.mrb[0].mxu0
    %473 = vmatprep.mubr.bf16.mxu0 0
    %474 = vmatmul.mubr.bf16.gmra.mrb[0].mxu0 %v249
    %v475 = vpop.f32.mrb[0].mxu0
    %v476 = vadd.f32 0.0, %v475
    %v477 = vpop.f32.mrb[0].mxu0
    %v478 = vpop.f32.mrb[0].mxu0
    %v479 = vadd.f32 0.0, %v478
    %v480 = vpop.f32.mrb[0].mxu0
    %481 = vmatprep.mubr.bf16.mxu0 0
    %482 = vmatmul.mubr.bf16.gmra.mrb[0].mxu0 %v423
    %v483 = vpop.f32.mrb[0].mxu0
    %v484 = vadd.f32 0.0, %v483
    %v485 = vpop.f32.mrb[0].mxu0
    %v486 = vpop.f32.mrb[0].mxu0
    %v487 = vadd.f32 0.0, %v486
    %v488 = vpop.f32.mrb[0].mxu0
    %489 = vdwg.mxu0
    %v490 = vadd.f32 %v405, %v460
    %v491 = vadd.f32 %v406, %v463
    %v492 = vadd.f32 %v407, %v468
    %v493 = vadd.f32 %v408, %v471
    %v494 = vadd.f32 %v409, %v476
    %v495 = vadd.f32 %v410, %v479
    %v496 = vadd.f32 %v411, %v484
    %v497 = vadd.f32 %v412, %v487
    %v498 = vld [vmem:[#allocation2 + $0x1] sm:$0xff]
    %v499 = vld [vmem:[#allocation2 + $0x11] sm:$0xff]
    %v500 = vld [vmem:[#allocation2 + $0x21] sm:$0xff]
    %v501 = vld [vmem:[#allocation2 + $0x31] sm:$0xff]
    %v502 = vld [vmem:[#allocation2 + $0x41] sm:$0xff]
    %v503 = vld [vmem:[#allocation2 + $0x51] sm:$0xff]
    %v504 = vld [vmem:[#allocation2 + $0x61] sm:$0xff]
    %v505 = vld [vmem:[#allocation2 + $0x71] sm:$0xff]
    %v506 = vld [vmem:[#allocation2 + $0x81] sm:$0xff]
    %v507 = vld [vmem:[#allocation2 + $0x91] sm:$0xff]
    %v508 = vpack.c.bf16 %v498, %v498
    %v509 = vpack.c.bf16 %v499, %v499
    %v510 = vpack.c.bf16 %v500, %v500
    %v511 = vpack.c.bf16 %v501, %v501
    %v512 = vpack.c.bf16 %v502, %v502
    %v513 = vpack.c.bf16 %v503, %v503
    %v514 = vpack.c.bf16 %v504, %v504
    %v515 = vpack.c.bf16 %v505, %v505
    %v516 = vpack.c.bf16 %v506, %v506
    %v517 = vpack.c.bf16 %v507, %v507
    %v526 = vunpack.c.l.b16 %v508
    %v527 = vunpack.c.l.b16 %v509
    %v528 = vunpack.c.l.b16 %v510
    %v529 = vunpack.c.l.b16 %v511
    %v530 = vunpack.c.l.b16 %v512
    %v531 = vunpack.c.l.b16 %v513
    %v532 = vunpack.c.l.b16 %v514
    %v533 = vunpack.c.l.b16 %v515
    %v534 = vpack.c.b16 %v527, %v526
    %v535 = vpack.c.b16 %v529, %v528
    %v536 = vpack.c.b16 %v531, %v530
    %v537 = vpack.c.b16 %v533, %v532
    %v540 = vunpack.c.l.b16 %v52
    %v541 = vunpack.c.l.b16 %v53
    %v542 = vpack.c.b16 %v541, %v540
    %v545 = vsel %vm106, %v534, 0
    %v548 = vsel %vm106, %v535, 0
    %v551 = vsel %vm106, %v536, 0
    %v554 = vsel %vm106, %v537, 0
    %556 = vmatprep.subr.bf16.mxu0 0
    %557 = vmatpush1.bf16.msra.mxu0 %v542
    %558 = vmatprep.subr.bf16.mxu0 0
    %559 = vmatpush1.bf16.msra.mxu0 0
    %560 = vmatprep.subr.bf16.mxu0 0
    %561 = vmatpush1.bf16.msra.mxu0 0
    %562 = vmatprep.subr.bf16.mxu0 0
    %563 = vmatpush1.bf16.msra.mxu0 0
    %564 = vmatprep.subr.bf16.mxu0 0
    %565 = vmatpush1.bf16.msra.mxu0 0
    %566 = vmatprep.subr.bf16.mxu0 0
    %567 = vmatpush1.bf16.msra.mxu0 0
    %568 = vmatprep.subr.bf16.mxu0 0
    %569 = vmatpush1.bf16.msra.mxu0 0
    %570 = vmatprep.subr.bf16.mxu0 0
    %571 = vmatpush1.bf16.msra.mxu0 0
    %572 = vmatprep.subr.bf16.mxu0 0
    %573 = vmatpush1.bf16.msra.mxu0 0
    %574 = vmatprep.subr.bf16.mxu0 0
    %575 = vmatpush1.bf16.msra.mxu0 0
    %576 = vmatprep.subr.bf16.mxu0 0
    %577 = vmatpush1.bf16.msra.mxu0 0
    %578 = vmatprep.subr.bf16.mxu0 0
    %579 = vmatpush1.bf16.msra.mxu0 0
    %580 = vmatprep.subr.bf16.mxu0 0
    %581 = vmatpush1.bf16.msra.mxu0 0
    %582 = vmatprep.subr.bf16.mxu0 0
    %583 = vmatpush1.bf16.msra.mxu0 0
    %584 = vmatprep.subr.bf16.mxu0 0
    %585 = vmatpush1.bf16.msra.mxu0 0
    %586 = vmatprep.subr.bf16.mxu0 0
    %587 = vmatpush1.bf16.msra.mxu0 0
    %588 = vmatprep.mubr.bf16.mxu0 0
    %589 = vmatmul.mubr.bf16.gmra.mrb[0].mxu0 %v545
    %v590 = vpop.f32.mrb[0].mxu0
    %v591 = vadd.f32 0.0, %v590
    %v592 = vpop.f32.mrb[0].mxu0
    %v593 = vpop.f32.mrb[0].mxu0
    %v594 = vadd.f32 0.0, %v593
    %v595 = vpop.f32.mrb[0].mxu0
    %596 = vmatprep.mubr.bf16.mxu0 0
    %597 = vmatmul.mubr.bf16.gmra.mrb[0].mxu0 %v548
    %v598 = vpop.f32.mrb[0].mxu0
    %v599 = vadd.f32 0.0, %v598
    %v600 = vpop.f32.mrb[0].mxu0
    %v601 = vpop.f32.mrb[0].mxu0
    %v602 = vadd.f32 0.0, %v601
    %v603 = vpop.f32.mrb[0].mxu0
    %604 = vmatprep.mubr.bf16.mxu0 0
    %605 = vmatmul.mubr.bf16.gmra.mrb[0].mxu0 %v551
    %v606 = vpop.f32.mrb[0].mxu0
    %v607 = vadd.f32 0.0, %v606
    %v608 = vpop.f32.mrb[0].mxu0
    %v609 = vpop.f32.mrb[0].mxu0
    %v610 = vadd.f32 0.0, %v609
    %v611 = vpop.f32.mrb[0].mxu0
    %612 = vmatprep.mubr.bf16.mxu0 0
    %613 = vmatmul.mubr.bf16.gmra.mrb[0].mxu0 %v554
    %v614 = vpop.f32.mrb[0].mxu0
    %v615 = vadd.f32 0.0, %v614
    %v616 = vpop.f32.mrb[0].mxu0
    %v617 = vpop.f32.mrb[0].mxu0
    %v618 = vadd.f32 0.0, %v617
    %v619 = vpop.f32.mrb[0].mxu0
    %620 = vdwg.mxu0
    %v621 = vadd.f32 %v490, %v591
    %v622 = vadd.f32 %v491, %v594
    %v623 = vadd.f32 %v492, %v599
    %v624 = vadd.f32 %v493, %v602
    %v625 = vadd.f32 %v494, %v607
    %v626 = vadd.f32 %v495, %v610
    %v627 = vadd.f32 %v496, %v615
    %v628 = vadd.f32 %v497, %v618
    %v630 = vunpack.c.l.b16 %v516
    %v631 = vpack.c.b16 %v528, %v527
    %v632 = vpack.c.b16 %v530, %v529
    %v633 = vpack.c.b16 %v532, %v531
    %v634 = vpack.c.b16 %v630, %v533
    %v637 = vunpack.c.l.b16 %v54
    %v638 = vunpack.c.l.b16 %v55
    %v639 = vpack.c.b16 %v638, %v637
    %v642 = vsel %vm106, %v631, 0
    %v645 = vsel %vm106, %v632, 0
    %v648 = vsel %vm106, %v633, 0
    %v651 = vsel %vm106, %v634, 0
    %653 = vmatprep.subr.bf16.mxu0 0
    %654 = vmatpush1.bf16.msra.mxu0 %v639
    %655 = vmatprep.subr.bf16.mxu0 0
    %656 = vmatpush1.bf16.msra.mxu0 0
    %657 = vmatprep.subr.bf16.mxu0 0
    %658 = vmatpush1.bf16.msra.mxu0 0
    %659 = vmatprep.subr.bf16.mxu0 0
    %660 = vmatpush1.bf16.msra.mxu0 0
    %661 = vmatprep.subr.bf16.mxu0 0
    %662 = vmatpush1.bf16.msra.mxu0 0
    %663 = vmatprep.subr.bf16.mxu0 0
    %664 = vmatpush1.bf16.msra.mxu0 0
    %665 = vmatprep.subr.bf16.mxu0 0
    %666 = vmatpush1.bf16.msra.mxu0 0
    %667 = vmatprep.subr.bf16.mxu0 0
    %668 = vmatpush1.bf16.msra.mxu0 0
    %669 = vmatprep.subr.bf16.mxu0 0
    %670 = vmatpush1.bf16.msra.mxu0 0
    %671 = vmatprep.subr.bf16.mxu0 0
    %672 = vmatpush1.bf16.msra.mxu0 0
    %673 = vmatprep.subr.bf16.mxu0 0
    %674 = vmatpush1.bf16.msra.mxu0 0
    %675 = vmatprep.subr.bf16.mxu0 0
    %676 = vmatpush1.bf16.msra.mxu0 0
    %677 = vmatprep.subr.bf16.mxu0 0
    %678 = vmatpush1.bf16.msra.mxu0 0
    %679 = vmatprep.subr.bf16.mxu0 0
    %680 = vmatpush1.bf16.msra.mxu0 0
    %681 = vmatprep.subr.bf16.mxu0 0
    %682 = vmatpush1.bf16.msra.mxu0 0
    %683 = vmatprep.subr.bf16.mxu0 0
    %684 = vmatpush1.bf16.msra.mxu0 0
    %685 = vmatprep.mubr.bf16.mxu0 0
    %686 = vmatmul.mubr.bf16.gmra.mrb[0].mxu0 %v642
    %v687 = vpop.f32.mrb[0].mxu0
    %v688 = vadd.f32 0.0, %v687
    %v689 = vpop.f32.mrb[0].mxu0
    %v690 = vpop.f32.mrb[0].mxu0
    %v691 = vadd.f32 0.0, %v690
    %v692 = vpop.f32.mrb[0].mxu0
    %693 = vmatprep.mubr.bf16.mxu0 0
    %694 = vmatmul.mubr.bf16.gmra.mrb[0].mxu0 %v645
    %v695 = vpop.f32.mrb[0].mxu0
    %v696 = vadd.f32 0.0, %v695
    %v697 = vpop.f32.mrb[0].mxu0
    %v698 = vpop.f32.mrb[0].mxu0
    %v699 = vadd.f32 0.0, %v698
    %v700 = vpop.f32.mrb[0].mxu0
    %701 = vmatprep.mubr.bf16.mxu0 0
    %702 = vmatmul.mubr.bf16.gmra.mrb[0].mxu0 %v648
    %v703 = vpop.f32.mrb[0].mxu0
    %v704 = vadd.f32 0.0, %v703
    %v705 = vpop.f32.mrb[0].mxu0
    %v706 = vpop.f32.mrb[0].mxu0
    %v707 = vadd.f32 0.0, %v706
    %v708 = vpop.f32.mrb[0].mxu0
    %709 = vmatprep.mubr.bf16.mxu0 0
    %710 = vmatmul.mubr.bf16.gmra.mrb[0].mxu0 %v651
    %v711 = vpop.f32.mrb[0].mxu0
    %v712 = vadd.f32 0.0, %v711
    %v713 = vpop.f32.mrb[0].mxu0
    %v714 = vpop.f32.mrb[0].mxu0
    %v715 = vadd.f32 0.0, %v714
    %v716 = vpop.f32.mrb[0].mxu0
    %717 = vdwg.mxu0
    %v718 = vadd.f32 %v621, %v688
    %v719 = vadd.f32 %v622, %v691
    %v720 = vadd.f32 %v623, %v696
    %v721 = vadd.f32 %v624, %v699
    %v722 = vadd.f32 %v625, %v704
    %v723 = vadd.f32 %v626, %v707
    %v724 = vadd.f32 %v627, %v712
    %v725 = vadd.f32 %v628, %v715
    %v727 = vunpack.c.l.b16 %v517
    %v728 = vpack.c.b16 %v727, %v630
    %v731 = vunpack.c.l.b16 %v56
    %v732 = vunpack.c.l.b16 %v57
    %v733 = vpack.c.b16 %v732, %v731
    %v736 = vsel %vm106, %v728, 0
    %738 = vmatprep.subr.bf16.mxu0 0
    %739 = vmatpush1.bf16.msra.mxu0 %v733
    %740 = vmatprep.subr.bf16.mxu0 0
    %741 = vmatpush1.bf16.msra.mxu0 0
    %742 = vmatprep.subr.bf16.mxu0 0
    %743 = vmatpush1.bf16.msra.mxu0 0
    %744 = vmatprep.subr.bf16.mxu0 0
    %745 = vmatpush1.bf16.msra.mxu0 0
    %746 = vmatprep.subr.bf16.mxu0 0
    %747 = vmatpush1.bf16.msra.mxu0 0
    %748 = vmatprep.subr.bf16.mxu0 0
    %749 = vmatpush1.bf16.msra.mxu0 0
    %750 = vmatprep.subr.bf16.mxu0 0
    %751 = vmatpush1.bf16.msra.mxu0 0
    %752 = vmatprep.subr.bf16.mxu0 0
    %753 = vmatpush1.bf16.msra.mxu0 0
    %754 = vmatprep.subr.bf16.mxu0 0
    %755 = vmatpush1.bf16.msra.mxu0 0
    %756 = vmatprep.subr.bf16.mxu0 0
    %757 = vmatpush1.bf16.msra.mxu0 0
    %758 = vmatprep.subr.bf16.mxu0 0
    %759 = vmatpush1.bf16.msra.mxu0 0
    %760 = vmatprep.subr.bf16.mxu0 0
    %761 = vmatpush1.bf16.msra.mxu0 0
    %762 = vmatprep.subr.bf16.mxu0 0
    %763 = vmatpush1.bf16.msra.mxu0 0
    %764 = vmatprep.subr.bf16.mxu0 0
    %765 = vmatpush1.bf16.msra.mxu0 0
    %766 = vmatprep.subr.bf16.mxu0 0
    %767 = vmatpush1.bf16.msra.mxu0 0
    %768 = vmatprep.subr.bf16.mxu0 0
    %769 = vmatpush1.bf16.msra.mxu0 0
    %770 = vmatprep.mubr.bf16.mxu0 0
    %771 = vmatmul.mubr.bf16.gmra.mrb[0].mxu0 %v548
    %v772 = vpop.f32.mrb[0].mxu0
    %v773 = vadd.f32 0.0, %v772
    %v774 = vpop.f32.mrb[0].mxu0
    %v775 = vpop.f32.mrb[0].mxu0
    %v776 = vadd.f32 0.0, %v775
    %v777 = vpop.f32.mrb[0].mxu0
    %778 = vmatprep.mubr.bf16.mxu0 0
    %779 = vmatmul.mubr.bf16.gmra.mrb[0].mxu0 %v551
    %v780 = vpop.f32.mrb[0].mxu0
    %v781 = vadd.f32 0.0, %v780
    %v782 = vpop.f32.mrb[0].mxu0
    %v783 = vpop.f32.mrb[0].mxu0
    %v784 = vadd.f32 0.0, %v783
    %v785 = vpop.f32.mrb[0].mxu0
    %786 = vmatprep.mubr.bf16.mxu0 0
    %787 = vmatmul.mubr.bf16.gmra.mrb[0].mxu0 %v554
    %v788 = vpop.f32.mrb[0].mxu0
    %v789 = vadd.f32 0.0, %v788
    %v790 = vpop.f32.mrb[0].mxu0
    %v791 = vpop.f32.mrb[0].mxu0
    %v792 = vadd.f32 0.0, %v791
    %v793 = vpop.f32.mrb[0].mxu0
    %794 = vmatprep.mubr.bf16.mxu0 0
    %795 = vmatmul.mubr.bf16.gmra.mrb[0].mxu0 %v736
    %v796 = vpop.f32.mrb[0].mxu0
    %v797 = vadd.f32 0.0, %v796
    %v798 = vpop.f32.mrb[0].mxu0
    %v799 = vpop.f32.mrb[0].mxu0
    %v800 = vadd.f32 0.0, %v799
    %v801 = vpop.f32.mrb[0].mxu0
    %802 = vdwg.mxu0
    %v803 = vadd.f32 %v718, %v773
    %v804 = vadd.f32 %v719, %v776
    %v805 = vadd.f32 %v720, %v781
    %v806 = vadd.f32 %v721, %v784
    %v807 = vadd.f32 %v722, %v789
    %v808 = vadd.f32 %v723, %v792
    %v809 = vadd.f32 %v724, %v797
    %v810 = vadd.f32 %v725, %v800
    %v811 = vld [vmem:[#allocation2 + $0x2] sm:$0xff]
    %v812 = vld [vmem:[#allocation2 + $0x12] sm:$0xff]
    %v813 = vld [vmem:[#allocation2 + $0x22] sm:$0xff]
    %v814 = vld [vmem:[#allocation2 + $0x32] sm:$0xff]
    %v815 = vld [vmem:[#allocation2 + $0x42] sm:$0xff]
    %v816 = vld [vmem:[#allocation2 + $0x52] sm:$0xff]
    %v817 = vld [vmem:[#allocation2 + $0x62] sm:$0xff]
    %v818 = vld [vmem:[#allocation2 + $0x72] sm:$0xff]
    %v819 = vld [vmem:[#allocation2 + $0x82] sm:$0xff]
    %v820 = vld [vmem:[#allocation2 + $0x92] sm:$0xff]
    %v821 = vpack.c.bf16 %v811, %v811
    %v822 = vpack.c.bf16 %v812, %v812
    %v823 = vpack.c.bf16 %v813, %v813
    %v824 = vpack.c.bf16 %v814, %v814
    %v825 = vpack.c.bf16 %v815, %v815
    %v826 = vpack.c.bf16 %v816, %v816
    %v827 = vpack.c.bf16 %v817, %v817
    %v828 = vpack.c.bf16 %v818, %v818
    %v829 = vpack.c.bf16 %v819, %v819
    %v830 = vpack.c.bf16 %v820, %v820
    %v839 = vunpack.c.l.b16 %v821
    %v840 = vunpack.c.l.b16 %v822
    %v841 = vunpack.c.l.b16 %v823
    %v842 = vunpack.c.l.b16 %v824
    %v843 = vunpack.c.l.b16 %v825
    %v844 = vunpack.c.l.b16 %v826
    %v845 = vunpack.c.l.b16 %v827
    %v846 = vunpack.c.l.b16 %v828
    %v847 = vpack.c.b16 %v840, %v839
    %v848 = vpack.c.b16 %v842, %v841
    %v849 = vpack.c.b16 %v844, %v843
    %v850 = vpack.c.b16 %v846, %v845
    %v853 = vunpack.c.l.b16 %v58
    %v854 = vunpack.c.l.b16 %v59
    %v855 = vpack.c.b16 %v854, %v853
    %v858 = vsel %vm106, %v847, 0
    %v861 = vsel %vm106, %v848, 0
    %v864 = vsel %vm106, %v849, 0
    %v867 = vsel %vm106, %v850, 0
    %869 = vmatprep.subr.bf16.mxu0 0
    %870 = vmatpush1.bf16.msra.mxu0 %v855
    %871 = vmatprep.subr.bf16.mxu0 0
    %872 = vmatpush1.bf16.msra.mxu0 0
    %873 = vmatprep.subr.bf16.mxu0 0
    %874 = vmatpush1.bf16.msra.mxu0 0
    %875 = vmatprep.subr.bf16.mxu0 0
    %876 = vmatpush1.bf16.msra.mxu0 0
    %877 = vmatprep.subr.bf16.mxu0 0
    %878 = vmatpush1.bf16.msra.mxu0 0
    %879 = vmatprep.subr.bf16.mxu0 0
    %880 = vmatpush1.bf16.msra.mxu0 0
    %881 = vmatprep.subr.bf16.mxu0 0
    %882 = vmatpush1.bf16.msra.mxu0 0
    %883 = vmatprep.subr.bf16.mxu0 0
    %884 = vmatpush1.bf16.msra.mxu0 0
    %885 = vmatprep.subr.bf16.mxu0 0
    %886 = vmatpush1.bf16.msra.mxu0 0
    %887 = vmatprep.subr.bf16.mxu0 0
    %888 = vmatpush1.bf16.msra.mxu0 0
    %889 = vmatprep.subr.bf16.mxu0 0
    %890 = vmatpush1.bf16.msra.mxu0 0
    %891 = vmatprep.subr.bf16.mxu0 0
    %892 = vmatpush1.bf16.msra.mxu0 0
    %893 = vmatprep.subr.bf16.mxu0 0
    %894 = vmatpush1.bf16.msra.mxu0 0
    %895 = vmatprep.subr.bf16.mxu0 0
    %896 = vmatpush1.bf16.msra.mxu0 0
    %897 = vmatprep.subr.bf16.mxu0 0
    %898 = vmatpush1.bf16.msra.mxu0 0
    %899 = vmatprep.subr.bf16.mxu0 0
    %900 = vmatpush1.bf16.msra.mxu0 0
    %901 = vmatprep.mubr.bf16.mxu0 0
    %902 = vmatmul.mubr.bf16.gmra.mrb[0].mxu0 %v858
    %v903 = vpop.f32.mrb[0].mxu0
    %v904 = vadd.f32 0.0, %v903
    %v905 = vpop.f32.mrb[0].mxu0
    %v906 = vpop.f32.mrb[0].mxu0
    %v907 = vadd.f32 0.0, %v906
    %v908 = vpop.f32.mrb[0].mxu0
    %909 = vmatprep.mubr.bf16.mxu0 0
    %910 = vmatmul.mubr.bf16.gmra.mrb[0].mxu0 %v861
    %v911 = vpop.f32.mrb[0].mxu0
    %v912 = vadd.f32 0.0, %v911
    %v913 = vpop.f32.mrb[0].mxu0
    %v914 = vpop.f32.mrb[0].mxu0
    %v915 = vadd.f32 0.0, %v914
    %v916 = vpop.f32.mrb[0].mxu0
    %917 = vmatprep.mubr.bf16.mxu0 0
    %918 = vmatmul.mubr.bf16.gmra.mrb[0].mxu0 %v864
    %v919 = vpop.f32.mrb[0].mxu0
    %v920 = vadd.f32 0.0, %v919
    %v921 = vpop.f32.mrb[0].mxu0
    %v922 = vpop.f32.mrb[0].mxu0
    %v923 = vadd.f32 0.0, %v922
    %v924 = vpop.f32.mrb[0].mxu0
    %925 = vmatprep.mubr.bf16.mxu0 0
    %926 = vmatmul.mubr.bf16.gmra.mrb[0].mxu0 %v867
    %v927 = vpop.f32.mrb[0].mxu0
    %v928 = vadd.f32 0.0, %v927
    %v929 = vpop.f32.mrb[0].mxu0
    %v930 = vpop.f32.mrb[0].mxu0
    %v931 = vadd.f32 0.0, %v930
    %v932 = vpop.f32.mrb[0].mxu0
    %933 = vdwg.mxu0
    %v934 = vadd.f32 %v803, %v904
    %v935 = vadd.f32 %v804, %v907
    %v936 = vadd.f32 %v805, %v912
    %v937 = vadd.f32 %v806, %v915
    %v938 = vadd.f32 %v807, %v920
    %v939 = vadd.f32 %v808, %v923
    %v940 = vadd.f32 %v809, %v928
    %v941 = vadd.f32 %v810, %v931
    %v943 = vunpack.c.l.b16 %v829
    %v944 = vpack.c.b16 %v841, %v840
    %v945 = vpack.c.b16 %v843, %v842
    %v946 = vpack.c.b16 %v845, %v844
    %v947 = vpack.c.b16 %v943, %v846
    %v950 = vunpack.c.l.b16 %v60
    %v951 = vunpack.c.l.b16 %v61
    %v952 = vpack.c.b16 %v951, %v950
    %v955 = vsel %vm106, %v944, 0
    %v958 = vsel %vm106, %v945, 0
    %v961 = vsel %vm106, %v946, 0
    %v964 = vsel %vm106, %v947, 0
    %966 = vmatprep.subr.bf16.mxu0 0
    %967 = vmatpush1.bf16.msra.mxu0 %v952
    %968 = vmatprep.subr.bf16.mxu0 0
    %969 = vmatpush1.bf16.msra.mxu0 0
    %970 = vmatprep.subr.bf16.mxu0 0
    %971 = vmatpush1.bf16.msra.mxu0 0
    %972 = vmatprep.subr.bf16.mxu0 0
    %973 = vmatpush1.bf16.msra.mxu0 0
    %974 = vmatprep.subr.bf16.mxu0 0
    %975 = vmatpush1.bf16.msra.mxu0 0
    %976 = vmatprep.subr.bf16.mxu0 0
    %977 = vmatpush1.bf16.msra.mxu0 0
    %978 = vmatprep.subr.bf16.mxu0 0
    %979 = vmatpush1.bf16.msra.mxu0 0
    %980 = vmatprep.subr.bf16.mxu0 0
    %981 = vmatpush1.bf16.msra.mxu0 0
    %982 = vmatprep.subr.bf16.mxu0 0
    %983 = vmatpush1.bf16.msra.mxu0 0
    %984 = vmatprep.subr.bf16.mxu0 0
    %985 = vmatpush1.bf16.msra.mxu0 0
    %986 = vmatprep.subr.bf16.mxu0 0
    %987 = vmatpush1.bf16.msra.mxu0 0
    %988 = vmatprep.subr.bf16.mxu0 0
    %989 = vmatpush1.bf16.msra.mxu0 0
    %990 = vmatprep.subr.bf16.mxu0 0
    %991 = vmatpush1.bf16.msra.mxu0 0
    %992 = vmatprep.subr.bf16.mxu0 0
    %993 = vmatpush1.bf16.msra.mxu0 0
    %994 = vmatprep.subr.bf16.mxu0 0
    %995 = vmatpush1.bf16.msra.mxu0 0
    %996 = vmatprep.subr.bf16.mxu0 0
    %997 = vmatpush1.bf16.msra.mxu0 0
    %998 = vmatprep.mubr.bf16.mxu0 0
    %999 = vmatmul.mubr.bf16.gmra.mrb[0].mxu0 %v955
    %v1000 = vpop.f32.mrb[0].mxu0
    %v1001 = vadd.f32 0.0, %v1000
    %v1002 = vpop.f32.mrb[0].mxu0
    %v1003 = vpop.f32.mrb[0].mxu0
    %v1004 = vadd.f32 0.0, %v1003
    %v1005 = vpop.f32.mrb[0].mxu0
    %1006 = vmatprep.mubr.bf16.mxu0 0
    %1007 = vmatmul.mubr.bf16.gmra.mrb[0].mxu0 %v958
    %v1008 = vpop.f32.mrb[0].mxu0
    %v1009 = vadd.f32 0.0, %v1008
    %v1010 = vpop.f32.mrb[0].mxu0
    %v1011 = vpop.f32.mrb[0].mxu0
    %v1012 = vadd.f32 0.0, %v1011
    %v1013 = vpop.f32.mrb[0].mxu0
    %1014 = vmatprep.mubr.bf16.mxu0 0
    %1015 = vmatmul.mubr.bf16.gmra.mrb[0].mxu0 %v961
    %v1016 = vpop.f32.mrb[0].mxu0
    %v1017 = vadd.f32 0.0, %v1016
    %v1018 = vpop.f32.mrb[0].mxu0
    %v1019 = vpop.f32.mrb[0].mxu0
    %v1020 = vadd.f32 0.0, %v1019
    %v1021 = vpop.f32.mrb[0].mxu0
    %1022 = vmatprep.mubr.bf16.mxu0 0
    %1023 = vmatmul.mubr.bf16.gmra.mrb[0].mxu0 %v964
    %v1024 = vpop.f32.mrb[0].mxu0
    %v1025 = vadd.f32 0.0, %v1024
    %v1026 = vpop.f32.mrb[0].mxu0
    %v1027 = vpop.f32.mrb[0].mxu0
    %v1028 = vadd.f32 0.0, %v1027
    %v1029 = vpop.f32.mrb[0].mxu0
    %1030 = vdwg.mxu0
    %v1031 = vadd.f32 %v934, %v1001
    %v1032 = vadd.f32 %v935, %v1004
    %v1033 = vadd.f32 %v936, %v1009
    %v1034 = vadd.f32 %v937, %v1012
    %v1035 = vadd.f32 %v938, %v1017
    %v1036 = vadd.f32 %v939, %v1020
    %v1037 = vadd.f32 %v940, %v1025
    %v1038 = vadd.f32 %v941, %v1028
    %v1040 = vunpack.c.l.b16 %v830
    %v1041 = vpack.c.b16 %v1040, %v943
    %v1044 = vunpack.c.l.b16 %v62
    %v1045 = vunpack.c.l.b16 %v63
    %v1046 = vpack.c.b16 %v1045, %v1044
    %v1049 = vsel %vm106, %v1041, 0
    %1051 = vmatprep.subr.bf16.mxu0 0
    %1052 = vmatpush1.bf16.msra.mxu0 %v1046
    %1053 = vmatprep.subr.bf16.mxu0 0
    %1054 = vmatpush1.bf16.msra.mxu0 0
    %1055 = vmatprep.subr.bf16.mxu0 0
    %1056 = vmatpush1.bf16.msra.mxu0 0
    %1057 = vmatprep.subr.bf16.mxu0 0
    %1058 = vmatpush1.bf16.msra.mxu0 0
    %1059 = vmatprep.subr.bf16.mxu0 0
    %1060 = vmatpush1.bf16.msra.mxu0 0
    %1061 = vmatprep.subr.bf16.mxu0 0
    %1062 = vmatpush1.bf16.msra.mxu0 0
    %1063 = vmatprep.subr.bf16.mxu0 0
    %1064 = vmatpush1.bf16.msra.mxu0 0
    %1065 = vmatprep.subr.bf16.mxu0 0
    %1066 = vmatpush1.bf16.msra.mxu0 0
    %1067 = vmatprep.subr.bf16.mxu0 0
    %1068 = vmatpush1.bf16.msra.mxu0 0
    %1069 = vmatprep.subr.bf16.mxu0 0
    %1070 = vmatpush1.bf16.msra.mxu0 0
    %1071 = vmatprep.subr.bf16.mxu0 0
    %1072 = vmatpush1.bf16.msra.mxu0 0
    %1073 = vmatprep.subr.bf16.mxu0 0
    %1074 = vmatpush1.bf16.msra.mxu0 0
    %1075 = vmatprep.subr.bf16.mxu0 0
    %1076 = vmatpush1.bf16.msra.mxu0 0
    %1077 = vmatprep.subr.bf16.mxu0 0
    %1078 = vmatpush1.bf16.msra.mxu0 0
    %1079 = vmatprep.subr.bf16.mxu0 0
    %1080 = vmatpush1.bf16.msra.mxu0 0
    %1081 = vmatprep.subr.bf16.mxu0 0
    %1082 = vmatpush1.bf16.msra.mxu0 0
    %1083 = vmatprep.mubr.bf16.mxu0 0
    %1084 = vmatmul.mubr.bf16.gmra.mrb[0].mxu0 %v861
    %v1085 = vpop.f32.mrb[0].mxu0
    %v1086 = vadd.f32 0.0, %v1085
    %v1087 = vpop.f32.mrb[0].mxu0
    %v1088 = vpop.f32.mrb[0].mxu0
    %v1089 = vadd.f32 0.0, %v1088
    %v1090 = vpop.f32.mrb[0].mxu0
    %1091 = vmatprep.mubr.bf16.mxu0 0
    %1092 = vmatmul.mubr.bf16.gmra.mrb[0].mxu0 %v864
    %v1093 = vpop.f32.mrb[0].mxu0
    %v1094 = vadd.f32 0.0, %v1093
    %v1095 = vpop.f32.mrb[0].mxu0
    %v1096 = vpop.f32.mrb[0].mxu0
    %v1097 = vadd.f32 0.0, %v1096
    %v1098 = vpop.f32.mrb[0].mxu0
    %1099 = vmatprep.mubr.bf16.mxu0 0
    %1100 = vmatmul.mubr.bf16.gmra.mrb[0].mxu0 %v867
    %v1101 = vpop.f32.mrb[0].mxu0
    %v1102 = vadd.f32 0.0, %v1101
    %v1103 = vpop.f32.mrb[0].mxu0
    %v1104 = vpop.f32.mrb[0].mxu0
    %v1105 = vadd.f32 0.0, %v1104
    %v1106 = vpop.f32.mrb[0].mxu0
    %1107 = vmatprep.mubr.bf16.mxu0 0
    %1108 = vmatmul.mubr.bf16.gmra.mrb[0].mxu0 %v1049
    %v1109 = vpop.f32.mrb[0].mxu0
    %v1110 = vadd.f32 0.0, %v1109
    %v1111 = vpop.f32.mrb[0].mxu0
    %v1112 = vpop.f32.mrb[0].mxu0
    %v1113 = vadd.f32 0.0, %v1112
    %v1114 = vpop.f32.mrb[0].mxu0
    %1115 = vdwg.mxu0
    %v1116 = vadd.f32 %v1031, %v1086
    %v1117 = vadd.f32 %v1032, %v1089
    %v1118 = vadd.f32 %v1033, %v1094
    %v1119 = vadd.f32 %v1034, %v1097
    %v1120 = vadd.f32 %v1035, %v1102
    %v1121 = vadd.f32 %v1036, %v1105
    %v1122 = vadd.f32 %v1037, %v1110
    %v1123 = vadd.f32 %v1038, %v1113
    %v1124 = vsel %vm134, %v1116, 0.0
    %v1125 = vsel %vm134, %v1117, 0.0
    %v1126 = vadd.f32 %v1124, %v1125
    %v1127 = vsel %vm134, %v1118, 0.0
    %v1128 = vadd.f32 %v1126, %v1127
    %v1129 = vsel %vm134, %v1119, 0.0
    %v1130 = vadd.f32 %v1128, %v1129
    %v1131 = vsel %vm134, %v1120, 0.0
    %v1132 = vadd.f32 %v1130, %v1131
    %v1133 = vsel %vm134, %v1121, 0.0
    %v1134 = vadd.f32 %v1132, %v1133
    %v1135 = vsel %vm134, %v1122, 0.0
    %v1136 = vadd.f32 %v1134, %v1135
    %v1137 = vsel %vm134, %v1123, 0.0
    %v1138 = vadd.f32 %v1136, %v1137
    %v1139 = vrot.slane %v1138, 4
    %v1140 = vadd.f32 %v1138, %v1139
    %v1141 = vrot.slane %v1140, 2
    %v1142 = vadd.f32 %v1140, %v1141
    %v1143 = vrot.slane %v1142, 1
    %v1144 = vadd.f32 %v1142, %v1143
    %v1145 = vmul.f32 %v1144, 0.015625
    %v1146 = vsub.f32 %v1116, %v1145
    %v1147 = vsub.f32 %v1117, %v1145
    %v1148 = vsub.f32 %v1118, %v1145
    %v1149 = vsub.f32 %v1119, %v1145
    %v1150 = vsub.f32 %v1120, %v1145
    %v1151 = vsub.f32 %v1121, %v1145
    %v1152 = vsub.f32 %v1122, %v1145
    %v1153 = vsub.f32 %v1123, %v1145
    %v1154 = vmul.f32 %v1146, %v1146
    %v1155 = vmul.f32 %v1147, %v1147
    %v1156 = vmul.f32 %v1148, %v1148
    %v1157 = vmul.f32 %v1149, %v1149
    %v1158 = vmul.f32 %v1150, %v1150
    %v1159 = vmul.f32 %v1151, %v1151
    %v1160 = vmul.f32 %v1152, %v1152
    %v1161 = vmul.f32 %v1153, %v1153
    %v1162 = vsel %vm134, %v1154, 0.0
    %v1163 = vsel %vm134, %v1155, 0.0
    %v1164 = vadd.f32 %v1162, %v1163
    %v1165 = vsel %vm134, %v1156, 0.0
    %v1166 = vadd.f32 %v1164, %v1165
    %v1167 = vsel %vm134, %v1157, 0.0
    %v1168 = vadd.f32 %v1166, %v1167
    %v1169 = vsel %vm134, %v1158, 0.0
    %v1170 = vadd.f32 %v1168, %v1169
    %v1171 = vsel %vm134, %v1159, 0.0
    %v1172 = vadd.f32 %v1170, %v1171
    %v1173 = vsel %vm134, %v1160, 0.0
    %v1174 = vadd.f32 %v1172, %v1173
    %v1175 = vsel %vm134, %v1161, 0.0
    %v1176 = vadd.f32 %v1174, %v1175
    %v1177 = vrot.slane %v1176, 4
    %v1178 = vadd.f32 %v1176, %v1177
    %v1179 = vrot.slane %v1178, 2
    %v1180 = vadd.f32 %v1178, %v1179
    %v1181 = vrot.slane %v1180, 1
    %v1182 = vadd.f32 %v1180, %v1181
    %v1183 = vmul.f32 %v1182, 0.015625
    %v1184 = vadd.f32 %v1183, 1e-05
    %v1185 = vrsqrt.pop %v1184
    %v1186 = vmul.f32 %v1146, %v1185
    %v1187 = vmul.f32 %v1147, %v1185
    %v1188 = vmul.f32 %v1148, %v1185
    %v1189 = vmul.f32 %v1149, %v1185
    %v1190 = vmul.f32 %v1150, %v1185
    %v1191 = vmul.f32 %v1151, %v1185
    %v1192 = vmul.f32 %v1152, %v1185
    %v1193 = vmul.f32 %v1153, %v1185
    %v1195 = vlaneseq
    %v1196 = vshrl.u32 %v1195, 7
    %v1197 = vsub.s32 0, %v1196
    %v1198 = vrot.slane %v65, %v1197
    %v1200 = vmul.f32 %v1186, %v1198
    %v1201 = vmul.f32 %v1187, %v1198
    %v1202 = vmul.f32 %v1188, %v1198
    %v1203 = vmul.f32 %v1189, %v1198
    %v1204 = vmul.f32 %v1190, %v1198
    %v1205 = vmul.f32 %v1191, %v1198
    %v1206 = vmul.f32 %v1192, %v1198
    %v1207 = vmul.f32 %v1193, %v1198
    %v1209 = vlaneseq
    %v1210 = vshrl.u32 %v1209, 7
    %v1211 = vsub.s32 0, %v1210
    %v1212 = vrot.slane %v66, %v1211
    %v1214 = vadd.f32 %v1200, %v1212
    %v1215 = vadd.f32 %v1201, %v1212
    %v1216 = vadd.f32 %v1202, %v1212
    %v1217 = vadd.f32 %v1203, %v1212
    %v1218 = vadd.f32 %v1204, %v1212
    %v1219 = vadd.f32 %v1205, %v1212
    %v1220 = vadd.f32 %v1206, %v1212
    %v1221 = vadd.f32 %v1207, %v1212
    %v1222 = vmax.f32 %v1214, 0.0
    %v1223 = vmax.f32 %v1215, 0.0
    %v1224 = vmax.f32 %v1216, 0.0
    %v1225 = vmax.f32 %v1217, 0.0
    %v1226 = vmax.f32 %v1218, 0.0
    %v1227 = vmax.f32 %v1219, 0.0
    %v1228 = vmax.f32 %v1220, 0.0
    %v1229 = vmax.f32 %v1221, 0.0
    %v1230 = vld [vmem:[%s1] sm:$0x1]
    %v1232 = vlaneseq
    %v1233 = vshrl.u32 %v1232, 7
    %v1234 = vsub.s32 0, %v1233
    %v1235 = vrot.slane %v1230, %v1234
    %v1237 = vadd.f32 %v1222, %v1235
    %v1238 = vadd.f32 %v1223, %v1235
    %v1239 = vadd.f32 %v1224, %v1235
    %v1240 = vadd.f32 %v1225, %v1235
    %v1241 = vadd.f32 %v1226, %v1235
    %v1242 = vadd.f32 %v1227, %v1235
    %v1243 = vadd.f32 %v1228, %v1235
    %v1244 = vadd.f32 %v1229, %v1235
    %s1245 = scalar_lea.vmem [#allocation3], 16
    %1246 = vst.msk [vmem:[%s1245 + $0x1] sm:$0xff] %vm134, %v1237
    %1247 = vst.msk [vmem:[%s1245 + $0x11] sm:$0xff] %vm134, %v1238
    %1248 = vst.msk [vmem:[%s1245 + $0x21] sm:$0xff] %vm134, %v1239
    %1249 = vst.msk [vmem:[%s1245 + $0x31] sm:$0xff] %vm134, %v1240
    %1250 = vst.msk [vmem:[%s1245 + $0x41] sm:$0xff] %vm134, %v1241
    %1251 = vst.msk [vmem:[%s1245 + $0x51] sm:$0xff] %vm134, %v1242
    %1252 = vst.msk [vmem:[%s1245 + $0x61] sm:$0xff] %vm134, %v1243
    %1253 = vst.msk [vmem:[%s1245 + $0x71] sm:$0xff] %vm134, %v1244
    %v1254 = vld [vmem:[#allocation3] sm:$0xff]
    %v1255 = vld [vmem:[#allocation3 + $0x10] sm:$0xff]
    %v1256 = vld [vmem:[#allocation3 + $0x20] sm:$0xff]
    %v1257 = vld [vmem:[#allocation3 + $0x30] sm:$0xff]
    %v1258 = vld [vmem:[#allocation3 + $0x40] sm:$0xff]
    %v1259 = vld [vmem:[#allocation3 + $0x50] sm:$0xff]
    %v1260 = vld [vmem:[#allocation3 + $0x60] sm:$0xff]
    %v1261 = vld [vmem:[#allocation3 + $0x70] sm:$0xff]
    %v1262 = vld [vmem:[#allocation3 + $0x80] sm:$0xff]
    %v1263 = vld [vmem:[#allocation3 + $0x90] sm:$0xff]
    %v1264 = vpack.c.bf16 %v1254, %v1254
    %v1265 = vpack.c.bf16 %v1255, %v1255
    %v1266 = vpack.c.bf16 %v1256, %v1256
    %v1267 = vpack.c.bf16 %v1257, %v1257
    %v1268 = vpack.c.bf16 %v1258, %v1258
    %v1269 = vpack.c.bf16 %v1259, %v1259
    %v1270 = vpack.c.bf16 %v1260, %v1260
    %v1271 = vpack.c.bf16 %v1261, %v1261
    %v1272 = vpack.c.bf16 %v1262, %v1262
    %v1273 = vpack.c.bf16 %v1263, %v1263
    %v1275 = vlaneseq
    %v1276 = vshrl.u32 %v1275, 7
    %v1277 = vsub.s32 0, %v1276
    %v1278 = vrot.slane %v103, %v1277
    %v1288 = vunpack.c.l.b16 %v1264
    %v1289 = vunpack.c.l.b16 %v1265
    %v1290 = vunpack.c.l.b16 %v1266
    %v1291 = vunpack.c.l.b16 %v1267
    %v1292 = vunpack.c.l.b16 %v1268
    %v1293 = vunpack.c.l.b16 %v1269
    %v1294 = vunpack.c.l.b16 %v1270
    %v1295 = vunpack.c.l.b16 %v1271
    %v1296 = vpack.c.b16 %v1289, %v1288
    %v1297 = vpack.c.b16 %v1291, %v1290
    %v1298 = vpack.c.b16 %v1293, %v1292
    %v1299 = vpack.c.b16 %v1295, %v1294
    %v1304 = vunpack.c.l.b16 %v67
    %v1305 = vunpack.c.l.b16 %v68
    %v1306 = vunpack.c.l.b16 %v69
    %v1307 = vunpack.c.l.b16 %v70
    %v1308 = vpack.c.b16 %v1305, %v1304
    %v1309 = vpack.c.b16 %v1307, %v1306
    %v1313 = vsel %vm134, %v1296, 0
    %v1316 = vsel %vm134, %v1297, 0
    %v1319 = vsel %vm134, %v1298, 0
    %v1322 = vsel %vm134, %v1299, 0
    %1324 = vmatprep.subr.bf16.mxu0 0
    %1325 = vmatpush1.bf16.msra.mxu0 %v1308
    %1326 = vmatprep.subr.bf16.mxu0 0
    %1327 = vmatpush1.bf16.msra.mxu0 %v1309
    %1328 = vmatprep.subr.bf16.mxu0 0
    %1329 = vmatpush1.bf16.msra.mxu0 0
    %1330 = vmatprep.subr.bf16.mxu0 0
    %1331 = vmatpush1.bf16.msra.mxu0 0
    %1332 = vmatprep.subr.bf16.mxu0 0
    %1333 = vmatpush1.bf16.msra.mxu0 0
    %1334 = vmatprep.subr.bf16.mxu0 0
    %1335 = vmatpush1.bf16.msra.mxu0 0
    %1336 = vmatprep.subr.bf16.mxu0 0
    %1337 = vmatpush1.bf16.msra.mxu0 0
    %1338 = vmatprep.subr.bf16.mxu0 0
    %1339 = vmatpush1.bf16.msra.mxu0 0
    %1340 = vmatprep.subr.bf16.mxu0 0
    %1341 = vmatpush1.bf16.msra.mxu0 0
    %1342 = vmatprep.subr.bf16.mxu0 0
    %1343 = vmatpush1.bf16.msra.mxu0 0
    %1344 = vmatprep.subr.bf16.mxu0 0
    %1345 = vmatpush1.bf16.msra.mxu0 0
    %1346 = vmatprep.subr.bf16.mxu0 0
    %1347 = vmatpush1.bf16.msra.mxu0 0
    %1348 = vmatprep.subr.bf16.mxu0 0
    %1349 = vmatpush1.bf16.msra.mxu0 0
    %1350 = vmatprep.subr.bf16.mxu0 0
    %1351 = vmatpush1.bf16.msra.mxu0 0
    %1352 = vmatprep.subr.bf16.mxu0 0
    %1353 = vmatpush1.bf16.msra.mxu0 0
    %1354 = vmatprep.subr.bf16.mxu0 0
    %1355 = vmatpush1.bf16.msra.mxu0 0
    %1356 = vmatprep.mubr.bf16.mxu0 0
    %1357 = vmatmul.mubr.bf16.gmra.mrb[0].mxu0 %v1313
    %v1358 = vpop.f32.mrb[0].mxu0
    %v1359 = vadd.f32 %v1278, %v1358
    %v1360 = vpop.f32.mrb[0].mxu0
    %v1361 = vpop.f32.mrb[0].mxu0
    %v1362 = vadd.f32 %v1278, %v1361
    %v1363 = vpop.f32.mrb[0].mxu0
    %1364 = vmatprep.mubr.bf16.mxu0 0
    %1365 = vmatmul.mubr.bf16.gmra.mrb[0].mxu0 %v1316
    %v1366 = vpop.f32.mrb[0].mxu0
    %v1367 = vadd.f32 %v1278, %v1366
    %v1368 = vpop.f32.mrb[0].mxu0
    %v1369 = vpop.f32.mrb[0].mxu0
    %v1370 = vadd.f32 %v1278, %v1369
    %v1371 = vpop.f32.mrb[0].mxu0
    %1372 = vmatprep.mubr.bf16.mxu0 0
    %1373 = vmatmul.mubr.bf16.gmra.mrb[0].mxu0 %v1319
    %v1374 = vpop.f32.mrb[0].mxu0
    %v1375 = vadd.f32 %v1278, %v1374
    %v1376 = vpop.f32.mrb[0].mxu0
    %v1377 = vpop.f32.mrb[0].mxu0
    %v1378 = vadd.f32 %v1278, %v1377
    %v1379 = vpop.f32.mrb[0].mxu0
    %1380 = vmatprep.mubr.bf16.mxu0 0
    %1381 = vmatmul.mubr.bf16.gmra.mrb[0].mxu0 %v1322
    %v1382 = vpop.f32.mrb[0].mxu0
    %v1383 = vadd.f32 %v1278, %v1382
    %v1384 = vpop.f32.mrb[0].mxu0
    %v1385 = vpop.f32.mrb[0].mxu0
    %v1386 = vadd.f32 %v1278, %v1385
    %v1387 = vpop.f32.mrb[0].mxu0
    %1388 = vdwg.mxu0
    %v1390 = vunpack.c.l.b16 %v1272
    %v1391 = vpack.c.b16 %v1290, %v1289
    %v1392 = vpack.c.b16 %v1292, %v1291
    %v1393 = vpack.c.b16 %v1294, %v1293
    %v1394 = vpack.c.b16 %v1390, %v1295
    %v1399 = vunpack.c.l.b16 %v71
    %v1400 = vunpack.c.l.b16 %v72
    %v1401 = vunpack.c.l.b16 %v73
    %v1402 = vunpack.c.l.b16 %v74
    %v1403 = vpack.c.b16 %v1400, %v1399
    %v1404 = vpack.c.b16 %v1402, %v1401
    %v1408 = vsel %vm134, %v1391, 0
    %v1411 = vsel %vm134, %v1392, 0
    %v1414 = vsel %vm134, %v1393, 0
    %v1417 = vsel %vm134, %v1394, 0
    %1419 = vmatprep.subr.bf16.mxu0 0
    %1420 = vmatpush1.bf16.msra.mxu0 %v1403
    %1421 = vmatprep.subr.bf16.mxu0 0
    %1422 = vmatpush1.bf16.msra.mxu0 %v1404
    %1423 = vmatprep.subr.bf16.mxu0 0
    %1424 = vmatpush1.bf16.msra.mxu0 0
    %1425 = vmatprep.subr.bf16.mxu0 0
    %1426 = vmatpush1.bf16.msra.mxu0 0
    %1427 = vmatprep.subr.bf16.mxu0 0
    %1428 = vmatpush1.bf16.msra.mxu0 0
    %1429 = vmatprep.subr.bf16.mxu0 0
    %1430 = vmatpush1.bf16.msra.mxu0 0
    %1431 = vmatprep.subr.bf16.mxu0 0
    %1432 = vmatpush1.bf16.msra.mxu0 0
    %1433 = vmatprep.subr.bf16.mxu0 0
    %1434 = vmatpush1.bf16.msra.mxu0 0
    %1435 = vmatprep.subr.bf16.mxu0 0
    %1436 = vmatpush1.bf16.msra.mxu0 0
    %1437 = vmatprep.subr.bf16.mxu0 0
    %1438 = vmatpush1.bf16.msra.mxu0 0
    %1439 = vmatprep.subr.bf16.mxu0 0
    %1440 = vmatpush1.bf16.msra.mxu0 0
    %1441 = vmatprep.subr.bf16.mxu0 0
    %1442 = vmatpush1.bf16.msra.mxu0 0
    %1443 = vmatprep.subr.bf16.mxu0 0
    %1444 = vmatpush1.bf16.msra.mxu0 0
    %1445 = vmatprep.subr.bf16.mxu0 0
    %1446 = vmatpush1.bf16.msra.mxu0 0
    %1447 = vmatprep.subr.bf16.mxu0 0
    %1448 = vmatpush1.bf16.msra.mxu0 0
    %1449 = vmatprep.subr.bf16.mxu0 0
    %1450 = vmatpush1.bf16.msra.mxu0 0
    %1451 = vmatprep.mubr.bf16.mxu0 0
    %1452 = vmatmul.mubr.bf16.gmra.mrb[0].mxu0 %v1408
    %v1453 = vpop.f32.mrb[0].mxu0
    %v1454 = vadd.f32 0.0, %v1453
    %v1455 = vpop.f32.mrb[0].mxu0
    %v1456 = vpop.f32.mrb[0].mxu0
    %v1457 = vadd.f32 0.0, %v1456
    %v1458 = vpop.f32.mrb[0].mxu0
    %1459 = vmatprep.mubr.bf16.mxu0 0
    %1460 = vmatmul.mubr.bf16.gmra.mrb[0].mxu0 %v1411
    %v1461 = vpop.f32.mrb[0].mxu0
    %v1462 = vadd.f32 0.0, %v1461
    %v1463 = vpop.f32.mrb[0].mxu0
    %v1464 = vpop.f32.mrb[0].mxu0
    %v1465 = vadd.f32 0.0, %v1464
    %v1466 = vpop.f32.mrb[0].mxu0
    %1467 = vmatprep.mubr.bf16.mxu0 0
    %1468 = vmatmul.mubr.bf16.gmra.mrb[0].mxu0 %v1414
    %v1469 = vpop.f32.mrb[0].mxu0
    %v1470 = vadd.f32 0.0, %v1469
    %v1471 = vpop.f32.mrb[0].mxu0
    %v1472 = vpop.f32.mrb[0].mxu0
    %v1473 = vadd.f32 0.0, %v1472
    %v1474 = vpop.f32.mrb[0].mxu0
    %1475 = vmatprep.mubr.bf16.mxu0 0
    %1476 = vmatmul.mubr.bf16.gmra.mrb[0].mxu0 %v1417
    %v1477 = vpop.f32.mrb[0].mxu0
    %v1478 = vadd.f32 0.0, %v1477
    %v1479 = vpop.f32.mrb[0].mxu0
    %v1480 = vpop.f32.mrb[0].mxu0
    %v1481 = vadd.f32 0.0, %v1480
    %v1482 = vpop.f32.mrb[0].mxu0
    %1483 = vdwg.mxu0
    %v1484 = vadd.f32 %v1359, %v1454
    %v1485 = vadd.f32 %v1362, %v1457
    %v1486 = vadd.f32 %v1367, %v1462
    %v1487 = vadd.f32 %v1370, %v1465
    %v1488 = vadd.f32 %v1375, %v1470
    %v1489 = vadd.f32 %v1378, %v1473
    %v1490 = vadd.f32 %v1383, %v1478
    %v1491 = vadd.f32 %v1386, %v1481
    %v1493 = vunpack.c.l.b16 %v1273
    %v1494 = vpack.c.b16 %v1493, %v1390
    %v1499 = vunpack.c.l.b16 %v75
    %v1500 = vunpack.c.l.b16 %v76
    %v1501 = vunpack.c.l.b16 %v77
    %v1502 = vunpack.c.l.b16 %v78
    %v1503 = vpack.c.b16 %v1500, %v1499
    %v1504 = vpack.c.b16 %v1502, %v1501
    %v1508 = vsel %vm134, %v1494, 0
    %1510 = vmatprep.subr.bf16.mxu0 0
    %1511 = vmatpush1.bf16.msra.mxu0 %v1503
    %1512 = vmatprep.subr.bf16.mxu0 0
    %1513 = vmatpush1.bf16.msra.mxu0 %v1504
    %1514 = vmatprep.subr.bf16.mxu0 0
    %1515 = vmatpush1.bf16.msra.mxu0 0
    %1516 = vmatprep.subr.bf16.mxu0 0
    %1517 = vmatpush1.bf16.msra.mxu0 0
    %1518 = vmatprep.subr.bf16.mxu0 0
    %1519 = vmatpush1.bf16.msra.mxu0 0
    %1520 = vmatprep.subr.bf16.mxu0 0
    %1521 = vmatpush1.bf16.msra.mxu0 0
    %1522 = vmatprep.subr.bf16.mxu0 0
    %1523 = vmatpush1.bf16.msra.mxu0 0
    %1524 = vmatprep.subr.bf16.mxu0 0
    %1525 = vmatpush1.bf16.msra.mxu0 0
    %1526 = vmatprep.subr.bf16.mxu0 0
    %1527 = vmatpush1.bf16.msra.mxu0 0
    %1528 = vmatprep.subr.bf16.mxu0 0
    %1529 = vmatpush1.bf16.msra.mxu0 0
    %1530 = vmatprep.subr.bf16.mxu0 0
    %1531 = vmatpush1.bf16.msra.mxu0 0
    %1532 = vmatprep.subr.bf16.mxu0 0
    %1533 = vmatpush1.bf16.msra.mxu0 0
    %1534 = vmatprep.subr.bf16.mxu0 0
    %1535 = vmatpush1.bf16.msra.mxu0 0
    %1536 = vmatprep.subr.bf16.mxu0 0
    %1537 = vmatpush1.bf16.msra.mxu0 0
    %1538 = vmatprep.subr.bf16.mxu0 0
    %1539 = vmatpush1.bf16.msra.mxu0 0
    %1540 = vmatprep.subr.bf16.mxu0 0
    %1541 = vmatpush1.bf16.msra.mxu0 0
    %1542 = vmatprep.mubr.bf16.mxu0 0
    %1543 = vmatmul.mubr.bf16.gmra.mrb[0].mxu0 %v1316
    %v1544 = vpop.f32.mrb[0].mxu0
    %v1545 = vadd.f32 0.0, %v1544
    %v1546 = vpop.f32.mrb[0].mxu0
    %v1547 = vpop.f32.mrb[0].mxu0
    %v1548 = vadd.f32 0.0, %v1547
    %v1549 = vpop.f32.mrb[0].mxu0
    %1550 = vmatprep.mubr.bf16.mxu0 0
    %1551 = vmatmul.mubr.bf16.gmra.mrb[0].mxu0 %v1319
    %v1552 = vpop.f32.mrb[0].mxu0
    %v1553 = vadd.f32 0.0, %v1552
    %v1554 = vpop.f32.mrb[0].mxu0
    %v1555 = vpop.f32.mrb[0].mxu0
    %v1556 = vadd.f32 0.0, %v1555
    %v1557 = vpop.f32.mrb[0].mxu0
    %1558 = vmatprep.mubr.bf16.mxu0 0
    %1559 = vmatmul.mubr.bf16.gmra.mrb[0].mxu0 %v1322
    %v1560 = vpop.f32.mrb[0].mxu0
    %v1561 = vadd.f32 0.0, %v1560
    %v1562 = vpop.f32.mrb[0].mxu0
    %v1563 = vpop.f32.mrb[0].mxu0
    %v1564 = vadd.f32 0.0, %v1563
    %v1565 = vpop.f32.mrb[0].mxu0
    %1566 = vmatprep.mubr.bf16.mxu0 0
    %1567 = vmatmul.mubr.bf16.gmra.mrb[0].mxu0 %v1508
    %v1568 = vpop.f32.mrb[0].mxu0
    %v1569 = vadd.f32 0.0, %v1568
    %v1570 = vpop.f32.mrb[0].mxu0
    %v1571 = vpop.f32.mrb[0].mxu0
    %v1572 = vadd.f32 0.0, %v1571
    %v1573 = vpop.f32.mrb[0].mxu0
    %1574 = vdwg.mxu0
    %v1575 = vadd.f32 %v1484, %v1545
    %v1576 = vadd.f32 %v1485, %v1548
    %v1577 = vadd.f32 %v1486, %v1553
    %v1578 = vadd.f32 %v1487, %v1556
    %v1579 = vadd.f32 %v1488, %v1561
    %v1580 = vadd.f32 %v1489, %v1564
    %v1581 = vadd.f32 %v1490, %v1569
    %v1582 = vadd.f32 %v1491, %v1572
    %v1583 = vld [vmem:[#allocation3 + $0x1] sm:$0xff]
    %v1584 = vld [vmem:[#allocation3 + $0x11] sm:$0xff]
    %v1585 = vld [vmem:[#allocation3 + $0x21] sm:$0xff]
    %v1586 = vld [vmem:[#allocation3 + $0x31] sm:$0xff]
    %v1587 = vld [vmem:[#allocation3 + $0x41] sm:$0xff]
    %v1588 = vld [vmem:[#allocation3 + $0x51] sm:$0xff]
    %v1589 = vld [vmem:[#allocation3 + $0x61] sm:$0xff]
    %v1590 = vld [vmem:[#allocation3 + $0x71] sm:$0xff]
    %v1591 = vld [vmem:[#allocation3 + $0x81] sm:$0xff]
    %v1592 = vld [vmem:[#allocation3 + $0x91] sm:$0xff]
    %v1593 = vpack.c.bf16 %v1583, %v1583
    %v1594 = vpack.c.bf16 %v1584, %v1584
    %v1595 = vpack.c.bf16 %v1585, %v1585
    %v1596 = vpack.c.bf16 %v1586, %v1586
    %v1597 = vpack.c.bf16 %v1587, %v1587
    %v1598 = vpack.c.bf16 %v1588, %v1588
    %v1599 = vpack.c.bf16 %v1589, %v1589
    %v1600 = vpack.c.bf16 %v1590, %v1590
    %v1601 = vpack.c.bf16 %v1591, %v1591
    %v1602 = vpack.c.bf16 %v1592, %v1592
    %v1611 = vunpack.c.l.b16 %v1593
    %v1612 = vunpack.c.l.b16 %v1594
    %v1613 = vunpack.c.l.b16 %v1595
    %v1614 = vunpack.c.l.b16 %v1596
    %v1615 = vunpack.c.l.b16 %v1597
    %v1616 = vunpack.c.l.b16 %v1598
    %v1617 = vunpack.c.l.b16 %v1599
    %v1618 = vunpack.c.l.b16 %v1600
    %v1619 = vpack.c.b16 %v1612, %v1611
    %v1620 = vpack.c.b16 %v1614, %v1613
    %v1621 = vpack.c.b16 %v1616, %v1615
    %v1622 = vpack.c.b16 %v1618, %v1617
    %v1627 = vunpack.c.l.b16 %v79
    %v1628 = vunpack.c.l.b16 %v80
    %v1629 = vunpack.c.l.b16 %v81
    %v1630 = vunpack.c.l.b16 %v82
    %v1631 = vpack.c.b16 %v1628, %v1627
    %v1632 = vpack.c.b16 %v1630, %v1629
    %v1636 = vsel %vm134, %v1619, 0
    %v1639 = vsel %vm134, %v1620, 0
    %v1642 = vsel %vm134, %v1621, 0
    %v1645 = vsel %vm134, %v1622, 0
    %1647 = vmatprep.subr.bf16.mxu0 0
    %1648 = vmatpush1.bf16.msra.mxu0 %v1631
    %1649 = vmatprep.subr.bf16.mxu0 0
    %1650 = vmatpush1.bf16.msra.mxu0 %v1632
    %1651 = vmatprep.subr.bf16.mxu0 0
    %1652 = vmatpush1.bf16.msra.mxu0 0
    %1653 = vmatprep.subr.bf16.mxu0 0
    %1654 = vmatpush1.bf16.msra.mxu0 0
    %1655 = vmatprep.subr.bf16.mxu0 0
    %1656 = vmatpush1.bf16.msra.mxu0 0
    %1657 = vmatprep.subr.bf16.mxu0 0
    %1658 = vmatpush1.bf16.msra.mxu0 0
    %1659 = vmatprep.subr.bf16.mxu0 0
    %1660 = vmatpush1.bf16.msra.mxu0 0
    %1661 = vmatprep.subr.bf16.mxu0 0
    %1662 = vmatpush1.bf16.msra.mxu0 0
    %1663 = vmatprep.subr.bf16.mxu0 0
    %1664 = vmatpush1.bf16.msra.mxu0 0
    %1665 = vmatprep.subr.bf16.mxu0 0
    %1666 = vmatpush1.bf16.msra.mxu0 0
    %1667 = vmatprep.subr.bf16.mxu0 0
    %1668 = vmatpush1.bf16.msra.mxu0 0
    %1669 = vmatprep.subr.bf16.mxu0 0
    %1670 = vmatpush1.bf16.msra.mxu0 0
    %1671 = vmatprep.subr.bf16.mxu0 0
    %1672 = vmatpush1.bf16.msra.mxu0 0
    %1673 = vmatprep.subr.bf16.mxu0 0
    %1674 = vmatpush1.bf16.msra.mxu0 0
    %1675 = vmatprep.subr.bf16.mxu0 0
    %1676 = vmatpush1.bf16.msra.mxu0 0
    %1677 = vmatprep.subr.bf16.mxu0 0
    %1678 = vmatpush1.bf16.msra.mxu0 0
    %1679 = vmatprep.mubr.bf16.mxu0 0
    %1680 = vmatmul.mubr.bf16.gmra.mrb[0].mxu0 %v1636
    %v1681 = vpop.f32.mrb[0].mxu0
    %v1682 = vadd.f32 0.0, %v1681
    %v1683 = vpop.f32.mrb[0].mxu0
    %v1684 = vpop.f32.mrb[0].mxu0
    %v1685 = vadd.f32 0.0, %v1684
    %v1686 = vpop.f32.mrb[0].mxu0
    %1687 = vmatprep.mubr.bf16.mxu0 0
    %1688 = vmatmul.mubr.bf16.gmra.mrb[0].mxu0 %v1639
    %v1689 = vpop.f32.mrb[0].mxu0
    %v1690 = vadd.f32 0.0, %v1689
    %v1691 = vpop.f32.mrb[0].mxu0
    %v1692 = vpop.f32.mrb[0].mxu0
    %v1693 = vadd.f32 0.0, %v1692
    %v1694 = vpop.f32.mrb[0].mxu0
    %1695 = vmatprep.mubr.bf16.mxu0 0
    %1696 = vmatmul.mubr.bf16.gmra.mrb[0].mxu0 %v1642
    %v1697 = vpop.f32.mrb[0].mxu0
    %v1698 = vadd.f32 0.0, %v1697
    %v1699 = vpop.f32.mrb[0].mxu0
    %v1700 = vpop.f32.mrb[0].mxu0
    %v1701 = vadd.f32 0.0, %v1700
    %v1702 = vpop.f32.mrb[0].mxu0
    %1703 = vmatprep.mubr.bf16.mxu0 0
    %1704 = vmatmul.mubr.bf16.gmra.mrb[0].mxu0 %v1645
    %v1705 = vpop.f32.mrb[0].mxu0
    %v1706 = vadd.f32 0.0, %v1705
    %v1707 = vpop.f32.mrb[0].mxu0
    %v1708 = vpop.f32.mrb[0].mxu0
    %v1709 = vadd.f32 0.0, %v1708
    %v1710 = vpop.f32.mrb[0].mxu0
    %1711 = vdwg.mxu0
    %v1712 = vadd.f32 %v1575, %v1682
    %v1713 = vadd.f32 %v1576, %v1685
    %v1714 = vadd.f32 %v1577, %v1690
    %v1715 = vadd.f32 %v1578, %v1693
    %v1716 = vadd.f32 %v1579, %v1698
    %v1717 = vadd.f32 %v1580, %v1701
    %v1718 = vadd.f32 %v1581, %v1706
    %v1719 = vadd.f32 %v1582, %v1709
    %v1721 = vunpack.c.l.b16 %v1601
    %v1722 = vpack.c.b16 %v1613, %v1612
    %v1723 = vpack.c.b16 %v1615, %v1614
    %v1724 = vpack.c.b16 %v1617, %v1616
    %v1725 = vpack.c.b16 %v1721, %v1618
    %v1730 = vunpack.c.l.b16 %v83
    %v1731 = vunpack.c.l.b16 %v84
    %v1732 = vunpack.c.l.b16 %v85
    %v1733 = vunpack.c.l.b16 %v86
    %v1734 = vpack.c.b16 %v1731, %v1730
    %v1735 = vpack.c.b16 %v1733, %v1732
    %v1739 = vsel %vm134, %v1722, 0
    %v1742 = vsel %vm134, %v1723, 0
    %v1745 = vsel %vm134, %v1724, 0
    %v1748 = vsel %vm134, %v1725, 0
    %1750 = vmatprep.subr.bf16.mxu0 0
    %1751 = vmatpush1.bf16.msra.mxu0 %v1734
    %1752 = vmatprep.subr.bf16.mxu0 0
    %1753 = vmatpush1.bf16.msra.mxu0 %v1735
    %1754 = vmatprep.subr.bf16.mxu0 0
    %1755 = vmatpush1.bf16.msra.mxu0 0
    %1756 = vmatprep.subr.bf16.mxu0 0
    %1757 = vmatpush1.bf16.msra.mxu0 0
    %1758 = vmatprep.subr.bf16.mxu0 0
    %1759 = vmatpush1.bf16.msra.mxu0 0
    %1760 = vmatprep.subr.bf16.mxu0 0
    %1761 = vmatpush1.bf16.msra.mxu0 0
    %1762 = vmatprep.subr.bf16.mxu0 0
    %1763 = vmatpush1.bf16.msra.mxu0 0
    %1764 = vmatprep.subr.bf16.mxu0 0
    %1765 = vmatpush1.bf16.msra.mxu0 0
    %1766 = vmatprep.subr.bf16.mxu0 0
    %1767 = vmatpush1.bf16.msra.mxu0 0
    %1768 = vmatprep.subr.bf16.mxu0 0
    %1769 = vmatpush1.bf16.msra.mxu0 0
    %1770 = vmatprep.subr.bf16.mxu0 0
    %1771 = vmatpush1.bf16.msra.mxu0 0
    %1772 = vmatprep.subr.bf16.mxu0 0
    %1773 = vmatpush1.bf16.msra.mxu0 0
    %1774 = vmatprep.subr.bf16.mxu0 0
    %1775 = vmatpush1.bf16.msra.mxu0 0
    %1776 = vmatprep.subr.bf16.mxu0 0
    %1777 = vmatpush1.bf16.msra.mxu0 0
    %1778 = vmatprep.subr.bf16.mxu0 0
    %1779 = vmatpush1.bf16.msra.mxu0 0
    %1780 = vmatprep.subr.bf16.mxu0 0
    %1781 = vmatpush1.bf16.msra.mxu0 0
    %1782 = vmatprep.mubr.bf16.mxu0 0
    %1783 = vmatmul.mubr.bf16.gmra.mrb[0].mxu0 %v1739
    %v1784 = vpop.f32.mrb[0].mxu0
    %v1785 = vadd.f32 0.0, %v1784
    %v1786 = vpop.f32.mrb[0].mxu0
    %v1787 = vpop.f32.mrb[0].mxu0
    %v1788 = vadd.f32 0.0, %v1787
    %v1789 = vpop.f32.mrb[0].mxu0
    %1790 = vmatprep.mubr.bf16.mxu0 0
    %1791 = vmatmul.mubr.bf16.gmra.mrb[0].mxu0 %v1742
    %v1792 = vpop.f32.mrb[0].mxu0
    %v1793 = vadd.f32 0.0, %v1792
    %v1794 = vpop.f32.mrb[0].mxu0
    %v1795 = vpop.f32.mrb[0].mxu0
    %v1796 = vadd.f32 0.0, %v1795
    %v1797 = vpop.f32.mrb[0].mxu0
    %1798 = vmatprep.mubr.bf16.mxu0 0
    %1799 = vmatmul.mubr.bf16.gmra.mrb[0].mxu0 %v1745
    %v1800 = vpop.f32.mrb[0].mxu0
    %v1801 = vadd.f32 0.0, %v1800
    %v1802 = vpop.f32.mrb[0].mxu0
    %v1803 = vpop.f32.mrb[0].mxu0
    %v1804 = vadd.f32 0.0, %v1803
    %v1805 = vpop.f32.mrb[0].mxu0
    %1806 = vmatprep.mubr.bf16.mxu0 0
    %1807 = vmatmul.mubr.bf16.gmra.mrb[0].mxu0 %v1748
    %v1808 = vpop.f32.mrb[0].mxu0
    %v1809 = vadd.f32 0.0, %v1808
    %v1810 = vpop.f32.mrb[0].mxu0
    %v1811 = vpop.f32.mrb[0].mxu0
    %v1812 = vadd.f32 0.0, %v1811
    %v1813 = vpop.f32.mrb[0].mxu0
    %1814 = vdwg.mxu0
    %v1815 = vadd.f32 %v1712, %v1785
    %v1816 = vadd.f32 %v1713, %v1788
    %v1817 = vadd.f32 %v1714, %v1793
    %v1818 = vadd.f32 %v1715, %v1796
    %v1819 = vadd.f32 %v1716, %v1801
    %v1820 = vadd.f32 %v1717, %v1804
    %v1821 = vadd.f32 %v1718, %v1809
    %v1822 = vadd.f32 %v1719, %v1812
    %v1824 = vunpack.c.l.b16 %v1602
    %v1825 = vpack.c.b16 %v1824, %v1721
    %v1830 = vunpack.c.l.b16 %v87
    %v1831 = vunpack.c.l.b16 %v88
    %v1832 = vunpack.c.l.b16 %v89
    %v1833 = vunpack.c.l.b16 %v90
    %v1834 = vpack.c.b16 %v1831, %v1830
    %v1835 = vpack.c.b16 %v1833, %v1832
    %v1839 = vsel %vm134, %v1825, 0
    %1841 = vmatprep.subr.bf16.mxu0 0
    %1842 = vmatpush1.bf16.msra.mxu0 %v1834
    %1843 = vmatprep.subr.bf16.mxu0 0
    %1844 = vmatpush1.bf16.msra.mxu0 %v1835
    %1845 = vmatprep.subr.bf16.mxu0 0
    %1846 = vmatpush1.bf16.msra.mxu0 0
    %1847 = vmatprep.subr.bf16.mxu0 0
    %1848 = vmatpush1.bf16.msra.mxu0 0
    %1849 = vmatprep.subr.bf16.mxu0 0
    %1850 = vmatpush1.bf16.msra.mxu0 0
    %1851 = vmatprep.subr.bf16.mxu0 0
    %1852 = vmatpush1.bf16.msra.mxu0 0
    %1853 = vmatprep.subr.bf16.mxu0 0
    %1854 = vmatpush1.bf16.msra.mxu0 0
    %1855 = vmatprep.subr.bf16.mxu0 0
    %1856 = vmatpush1.bf16.msra.mxu0 0
    %1857 = vmatprep.subr.bf16.mxu0 0
    %1858 = vmatpush1.bf16.msra.mxu0 0
    %1859 = vmatprep.subr.bf16.mxu0 0
    %1860 = vmatpush1.bf16.msra.mxu0 0
    %1861 = vmatprep.subr.bf16.mxu0 0
    %1862 = vmatpush1.bf16.msra.mxu0 0
    %1863 = vmatprep.subr.bf16.mxu0 0
    %1864 = vmatpush1.bf16.msra.mxu0 0
    %1865 = vmatprep.subr.bf16.mxu0 0
    %1866 = vmatpush1.bf16.msra.mxu0 0
    %1867 = vmatprep.subr.bf16.mxu0 0
    %1868 = vmatpush1.bf16.msra.mxu0 0
    %1869 = vmatprep.subr.bf16.mxu0 0
    %1870 = vmatpush1.bf16.msra.mxu0 0
    %1871 = vmatprep.subr.bf16.mxu0 0
    %1872 = vmatpush1.bf16.msra.mxu0 0
    %1873 = vmatprep.mubr.bf16.mxu0 0
    %1874 = vmatmul.mubr.bf16.gmra.mrb[0].mxu0 %v1639
    %v1875 = vpop.f32.mrb[0].mxu0
    %v1876 = vadd.f32 0.0, %v1875
    %v1877 = vpop.f32.mrb[0].mxu0
    %v1878 = vpop.f32.mrb[0].mxu0
    %v1879 = vadd.f32 0.0, %v1878
    %v1880 = vpop.f32.mrb[0].mxu0
    %1881 = vmatprep.mubr.bf16.mxu0 0
    %1882 = vmatmul.mubr.bf16.gmra.mrb[0].mxu0 %v1642
    %v1883 = vpop.f32.mrb[0].mxu0
    %v1884 = vadd.f32 0.0, %v1883
    %v1885 = vpop.f32.mrb[0].mxu0
    %v1886 = vpop.f32.mrb[0].mxu0
    %v1887 = vadd.f32 0.0, %v1886
    %v1888 = vpop.f32.mrb[0].mxu0
    %1889 = vmatprep.mubr.bf16.mxu0 0
    %1890 = vmatmul.mubr.bf16.gmra.mrb[0].mxu0 %v1645
    %v1891 = vpop.f32.mrb[0].mxu0
    %v1892 = vadd.f32 0.0, %v1891
    %v1893 = vpop.f32.mrb[0].mxu0
    %v1894 = vpop.f32.mrb[0].mxu0
    %v1895 = vadd.f32 0.0, %v1894
    %v1896 = vpop.f32.mrb[0].mxu0
    %1897 = vmatprep.mubr.bf16.mxu0 0
    %1898 = vmatmul.mubr.bf16.gmra.mrb[0].mxu0 %v1839
    %v1899 = vpop.f32.mrb[0].mxu0
    %v1900 = vadd.f32 0.0, %v1899
    %v1901 = vpop.f32.mrb[0].mxu0
    %v1902 = vpop.f32.mrb[0].mxu0
    %v1903 = vadd.f32 0.0, %v1902
    %v1904 = vpop.f32.mrb[0].mxu0
    %1905 = vdwg.mxu0
    %v1906 = vadd.f32 %v1815, %v1876
    %v1907 = vadd.f32 %v1816, %v1879
    %v1908 = vadd.f32 %v1817, %v1884
    %v1909 = vadd.f32 %v1818, %v1887
    %v1910 = vadd.f32 %v1819, %v1892
    %v1911 = vadd.f32 %v1820, %v1895
    %v1912 = vadd.f32 %v1821, %v1900
    %v1913 = vadd.f32 %v1822, %v1903
    %v1914 = vld [vmem:[#allocation3 + $0x2] sm:$0xff]
    %v1915 = vld [vmem:[#allocation3 + $0x12] sm:$0xff]
    %v1916 = vld [vmem:[#allocation3 + $0x22] sm:$0xff]
    %v1917 = vld [vmem:[#allocation3 + $0x32] sm:$0xff]
    %v1918 = vld [vmem:[#allocation3 + $0x42] sm:$0xff]
    %v1919 = vld [vmem:[#allocation3 + $0x52] sm:$0xff]
    %v1920 = vld [vmem:[#allocation3 + $0x62] sm:$0xff]
    %v1921 = vld [vmem:[#allocation3 + $0x72] sm:$0xff]
    %v1922 = vld [vmem:[#allocation3 + $0x82] sm:$0xff]
    %v1923 = vld [vmem:[#allocation3 + $0x92] sm:$0xff]
    %v1924 = vpack.c.bf16 %v1914, %v1914
    %v1925 = vpack.c.bf16 %v1915, %v1915
    %v1926 = vpack.c.bf16 %v1916, %v1916
    %v1927 = vpack.c.bf16 %v1917, %v1917
    %v1928 = vpack.c.bf16 %v1918, %v1918
    %v1929 = vpack.c.bf16 %v1919, %v1919
    %v1930 = vpack.c.bf16 %v1920, %v1920
    %v1931 = vpack.c.bf16 %v1921, %v1921
    %v1932 = vpack.c.bf16 %v1922, %v1922
    %v1933 = vpack.c.bf16 %v1923, %v1923
    %v1942 = vunpack.c.l.b16 %v1924
    %v1943 = vunpack.c.l.b16 %v1925
    %v1944 = vunpack.c.l.b16 %v1926
    %v1945 = vunpack.c.l.b16 %v1927
    %v1946 = vunpack.c.l.b16 %v1928
    %v1947 = vunpack.c.l.b16 %v1929
    %v1948 = vunpack.c.l.b16 %v1930
    %v1949 = vunpack.c.l.b16 %v1931
    %v1950 = vpack.c.b16 %v1943, %v1942
    %v1951 = vpack.c.b16 %v1945, %v1944
    %v1952 = vpack.c.b16 %v1947, %v1946
    %v1953 = vpack.c.b16 %v1949, %v1948
    %v1958 = vunpack.c.l.b16 %v91
    %v1959 = vunpack.c.l.b16 %v92
    %v1960 = vunpack.c.l.b16 %v93
    %v1961 = vunpack.c.l.b16 %v94
    %v1962 = vpack.c.b16 %v1959, %v1958
    %v1963 = vpack.c.b16 %v1961, %v1960
    %v1967 = vsel %vm134, %v1950, 0
    %v1970 = vsel %vm134, %v1951, 0
    %v1973 = vsel %vm134, %v1952, 0
    %v1976 = vsel %vm134, %v1953, 0
    %1978 = vmatprep.subr.bf16.mxu0 0
    %1979 = vmatpush1.bf16.msra.mxu0 %v1962
    %1980 = vmatprep.subr.bf16.mxu0 0
    %1981 = vmatpush1.bf16.msra.mxu0 %v1963
    %1982 = vmatprep.subr.bf16.mxu0 0
    %1983 = vmatpush1.bf16.msra.mxu0 0
    %1984 = vmatprep.subr.bf16.mxu0 0
    %1985 = vmatpush1.bf16.msra.mxu0 0
    %1986 = vmatprep.subr.bf16.mxu0 0
    %1987 = vmatpush1.bf16.msra.mxu0 0
    %1988 = vmatprep.subr.bf16.mxu0 0
    %1989 = vmatpush1.bf16.msra.mxu0 0
    %1990 = vmatprep.subr.bf16.mxu0 0
    %1991 = vmatpush1.bf16.msra.mxu0 0
    %1992 = vmatprep.subr.bf16.mxu0 0
    %1993 = vmatpush1.bf16.msra.mxu0 0
    %1994 = vmatprep.subr.bf16.mxu0 0
    %1995 = vmatpush1.bf16.msra.mxu0 0
    %1996 = vmatprep.subr.bf16.mxu0 0
    %1997 = vmatpush1.bf16.msra.mxu0 0
    %1998 = vmatprep.subr.bf16.mxu0 0
    %1999 = vmatpush1.bf16.msra.mxu0 0
    %2000 = vmatprep.subr.bf16.mxu0 0
    %2001 = vmatpush1.bf16.msra.mxu0 0
    %2002 = vmatprep.subr.bf16.mxu0 0
    %2003 = vmatpush1.bf16.msra.mxu0 0
    %2004 = vmatprep.subr.bf16.mxu0 0
    %2005 = vmatpush1.bf16.msra.mxu0 0
    %2006 = vmatprep.subr.bf16.mxu0 0
    %2007 = vmatpush1.bf16.msra.mxu0 0
    %2008 = vmatprep.subr.bf16.mxu0 0
    %2009 = vmatpush1.bf16.msra.mxu0 0
    %2010 = vmatprep.mubr.bf16.mxu0 0
    %2011 = vmatmul.mubr.bf16.gmra.mrb[0].mxu0 %v1967
    %v2012 = vpop.f32.mrb[0].mxu0
    %v2013 = vadd.f32 0.0, %v2012
    %v2014 = vpop.f32.mrb[0].mxu0
    %v2015 = vpop.f32.mrb[0].mxu0
    %v2016 = vadd.f32 0.0, %v2015
    %v2017 = vpop.f32.mrb[0].mxu0
    %2018 = vmatprep.mubr.bf16.mxu0 0
    %2019 = vmatmul.mubr.bf16.gmra.mrb[0].mxu0 %v1970
    %v2020 = vpop.f32.mrb[0].mxu0
    %v2021 = vadd.f32 0.0, %v2020
    %v2022 = vpop.f32.mrb[0].mxu0
    %v2023 = vpop.f32.mrb[0].mxu0
    %v2024 = vadd.f32 0.0, %v2023
    %v2025 = vpop.f32.mrb[0].mxu0
    %2026 = vmatprep.mubr.bf16.mxu0 0
    %2027 = vmatmul.mubr.bf16.gmra.mrb[0].mxu0 %v1973
    %v2028 = vpop.f32.mrb[0].mxu0
    %v2029 = vadd.f32 0.0, %v2028
    %v2030 = vpop.f32.mrb[0].mxu0
    %v2031 = vpop.f32.mrb[0].mxu0
    %v2032 = vadd.f32 0.0, %v2031
    %v2033 = vpop.f32.mrb[0].mxu0
    %2034 = vmatprep.mubr.bf16.mxu0 0
    %2035 = vmatmul.mubr.bf16.gmra.mrb[0].mxu0 %v1976
    %v2036 = vpop.f32.mrb[0].mxu0
    %v2037 = vadd.f32 0.0, %v2036
    %v2038 = vpop.f32.mrb[0].mxu0
    %v2039 = vpop.f32.mrb[0].mxu0
    %v2040 = vadd.f32 0.0, %v2039
    %v2041 = vpop.f32.mrb[0].mxu0
    %2042 = vdwg.mxu0
    %v2043 = vadd.f32 %v1906, %v2013
    %v2044 = vadd.f32 %v1907, %v2016
    %v2045 = vadd.f32 %v1908, %v2021
    %v2046 = vadd.f32 %v1909, %v2024
    %v2047 = vadd.f32 %v1910, %v2029
    %v2048 = vadd.f32 %v1911, %v2032
    %v2049 = vadd.f32 %v1912, %v2037
    %v2050 = vadd.f32 %v1913, %v2040
    %v2052 = vunpack.c.l.b16 %v1932
    %v2053 = vpack.c.b16 %v1944, %v1943
    %v2054 = vpack.c.b16 %v1946, %v1945
    %v2055 = vpack.c.b16 %v1948, %v1947
    %v2056 = vpack.c.b16 %v2052, %v1949
    %v2061 = vunpack.c.l.b16 %v95
    %v2062 = vunpack.c.l.b16 %v96
    %v2063 = vunpack.c.l.b16 %v97
    %v2064 = vunpack.c.l.b16 %v98
    %v2065 = vpack.c.b16 %v2062, %v2061
    %v2066 = vpack.c.b16 %v2064, %v2063
    %v2070 = vsel %vm134, %v2053, 0
    %v2073 = vsel %vm134, %v2054, 0
    %v2076 = vsel %vm134, %v2055, 0
    %v2079 = vsel %vm134, %v2056, 0
    %2081 = vmatprep.subr.bf16.mxu0 0
    %2082 = vmatpush1.bf16.msra.mxu0 %v2065
    %2083 = vmatprep.subr.bf16.mxu0 0
    %2084 = vmatpush1.bf16.msra.mxu0 %v2066
    %2085 = vmatprep.subr.bf16.mxu0 0
    %2086 = vmatpush1.bf16.msra.mxu0 0
    %2087 = vmatprep.subr.bf16.mxu0 0
    %2088 = vmatpush1.bf16.msra.mxu0 0
    %2089 = vmatprep.subr.bf16.mxu0 0
    %2090 = vmatpush1.bf16.msra.mxu0 0
    %2091 = vmatprep.subr.bf16.mxu0 0
    %2092 = vmatpush1.bf16.msra.mxu0 0
    %2093 = vmatprep.subr.bf16.mxu0 0
    %2094 = vmatpush1.bf16.msra.mxu0 0
    %2095 = vmatprep.subr.bf16.mxu0 0
    %2096 = vmatpush1.bf16.msra.mxu0 0
    %2097 = vmatprep.subr.bf16.mxu0 0
    %2098 = vmatpush1.bf16.msra.mxu0 0
    %2099 = vmatprep.subr.bf16.mxu0 0
    %2100 = vmatpush1.bf16.msra.mxu0 0
    %2101 = vmatprep.subr.bf16.mxu0 0
    %2102 = vmatpush1.bf16.msra.mxu0 0
    %2103 = vmatprep.subr.bf16.mxu0 0
    %2104 = vmatpush1.bf16.msra.mxu0 0
    %2105 = vmatprep.subr.bf16.mxu0 0
    %2106 = vmatpush1.bf16.msra.mxu0 0
    %2107 = vmatprep.subr.bf16.mxu0 0
    %2108 = vmatpush1.bf16.msra.mxu0 0
    %2109 = vmatprep.subr.bf16.mxu0 0
    %2110 = vmatpush1.bf16.msra.mxu0 0
    %2111 = vmatprep.subr.bf16.mxu0 0
    %2112 = vmatpush1.bf16.msra.mxu0 0
    %2113 = vmatprep.mubr.bf16.mxu0 0
    %2114 = vmatmul.mubr.bf16.gmra.mrb[0].mxu0 %v2070
    %v2115 = vpop.f32.mrb[0].mxu0
    %v2116 = vadd.f32 0.0, %v2115
    %v2117 = vpop.f32.mrb[0].mxu0
    %v2118 = vpop.f32.mrb[0].mxu0
    %v2119 = vadd.f32 0.0, %v2118
    %v2120 = vpop.f32.mrb[0].mxu0
    %2121 = vmatprep.mubr.bf16.mxu0 0
    %2122 = vmatmul.mubr.bf16.gmra.mrb[0].mxu0 %v2073
    %v2123 = vpop.f32.mrb[0].mxu0
    %v2124 = vadd.f32 0.0, %v2123
    %v2125 = vpop.f32.mrb[0].mxu0
    %v2126 = vpop.f32.mrb[0].mxu0
    %v2127 = vadd.f32 0.0, %v2126
    %v2128 = vpop.f32.mrb[0].mxu0
    %2129 = vmatprep.mubr.bf16.mxu0 0
    %2130 = vmatmul.mubr.bf16.gmra.mrb[0].mxu0 %v2076
    %v2131 = vpop.f32.mrb[0].mxu0
    %v2132 = vadd.f32 0.0, %v2131
    %v2133 = vpop.f32.mrb[0].mxu0
    %v2134 = vpop.f32.mrb[0].mxu0
    %v2135 = vadd.f32 0.0, %v2134
    %v2136 = vpop.f32.mrb[0].mxu0
    %2137 = vmatprep.mubr.bf16.mxu0 0
    %2138 = vmatmul.mubr.bf16.gmra.mrb[0].mxu0 %v2079
    %v2139 = vpop.f32.mrb[0].mxu0
    %v2140 = vadd.f32 0.0, %v2139
    %v2141 = vpop.f32.mrb[0].mxu0
    %v2142 = vpop.f32.mrb[0].mxu0
    %v2143 = vadd.f32 0.0, %v2142
    %v2144 = vpop.f32.mrb[0].mxu0
    %2145 = vdwg.mxu0
    %v2146 = vadd.f32 %v2043, %v2116
    %v2147 = vadd.f32 %v2044, %v2119
    %v2148 = vadd.f32 %v2045, %v2124
    %v2149 = vadd.f32 %v2046, %v2127
    %v2150 = vadd.f32 %v2047, %v2132
    %v2151 = vadd.f32 %v2048, %v2135
    %v2152 = vadd.f32 %v2049, %v2140
    %v2153 = vadd.f32 %v2050, %v2143
    %v2155 = vunpack.c.l.b16 %v1933
    %v2156 = vpack.c.b16 %v2155, %v2052
    %v2161 = vunpack.c.l.b16 %v99
    %v2162 = vunpack.c.l.b16 %v100
    %v2163 = vunpack.c.l.b16 %v101
    %v2164 = vunpack.c.l.b16 %v102
    %v2165 = vpack.c.b16 %v2162, %v2161
    %v2166 = vpack.c.b16 %v2164, %v2163
    %v2170 = vsel %vm134, %v2156, 0
    %2172 = vmatprep.subr.bf16.mxu0 0
    %2173 = vmatpush1.bf16.msra.mxu0 %v2165
    %2174 = vmatprep.subr.bf16.mxu0 0
    %2175 = vmatpush1.bf16.msra.mxu0 %v2166
    %2176 = vmatprep.subr.bf16.mxu0 0
    %2177 = vmatpush1.bf16.msra.mxu0 0
    %2178 = vmatprep.subr.bf16.mxu0 0
    %2179 = vmatpush1.bf16.msra.mxu0 0
    %2180 = vmatprep.subr.bf16.mxu0 0
    %2181 = vmatpush1.bf16.msra.mxu0 0
    %2182 = vmatprep.subr.bf16.mxu0 0
    %2183 = vmatpush1.bf16.msra.mxu0 0
    %2184 = vmatprep.subr.bf16.mxu0 0
    %2185 = vmatpush1.bf16.msra.mxu0 0
    %2186 = vmatprep.subr.bf16.mxu0 0
    %2187 = vmatpush1.bf16.msra.mxu0 0
    %2188 = vmatprep.subr.bf16.mxu0 0
    %2189 = vmatpush1.bf16.msra.mxu0 0
    %2190 = vmatprep.subr.bf16.mxu0 0
    %2191 = vmatpush1.bf16.msra.mxu0 0
    %2192 = vmatprep.subr.bf16.mxu0 0
    %2193 = vmatpush1.bf16.msra.mxu0 0
    %2194 = vmatprep.subr.bf16.mxu0 0
    %2195 = vmatpush1.bf16.msra.mxu0 0
    %2196 = vmatprep.subr.bf16.mxu0 0
    %2197 = vmatpush1.bf16.msra.mxu0 0
    %2198 = vmatprep.subr.bf16.mxu0 0
    %2199 = vmatpush1.bf16.msra.mxu0 0
    %2200 = vmatprep.subr.bf16.mxu0 0
    %2201 = vmatpush1.bf16.msra.mxu0 0
    %2202 = vmatprep.subr.bf16.mxu0 0
    %2203 = vmatpush1.bf16.msra.mxu0 0
    %2204 = vmatprep.mubr.bf16.mxu0 0
    %2205 = vmatmul.mubr.bf16.gmra.mrb[0].mxu0 %v1970
    %v2206 = vpop.f32.mrb[0].mxu0
    %v2207 = vadd.f32 0.0, %v2206
    %v2208 = vpop.f32.mrb[0].mxu0
    %v2209 = vpop.f32.mrb[0].mxu0
    %v2210 = vadd.f32 0.0, %v2209
    %v2211 = vpop.f32.mrb[0].mxu0
    %2212 = vmatprep.mubr.bf16.mxu0 0
    %2213 = vmatmul.mubr.bf16.gmra.mrb[0].mxu0 %v1973
    %v2214 = vpop.f32.mrb[0].mxu0
    %v2215 = vadd.f32 0.0, %v2214
    %v2216 = vpop.f32.mrb[0].mxu0
    %v2217 = vpop.f32.mrb[0].mxu0
    %v2218 = vadd.f32 0.0, %v2217
    %v2219 = vpop.f32.mrb[0].mxu0
    %2220 = vmatprep.mubr.bf16.mxu0 0
    %2221 = vmatmul.mubr.bf16.gmra.mrb[0].mxu0 %v1976
    %v2222 = vpop.f32.mrb[0].mxu0
    %v2223 = vadd.f32 0.0, %v2222
    %v2224 = vpop.f32.mrb[0].mxu0
    %v2225 = vpop.f32.mrb[0].mxu0
    %v2226 = vadd.f32 0.0, %v2225
    %v2227 = vpop.f32.mrb[0].mxu0
    %2228 = vmatprep.mubr.bf16.mxu0 0
    %2229 = vmatmul.mubr.bf16.gmra.mrb[0].mxu0 %v2170
    %v2230 = vpop.f32.mrb[0].mxu0
    %v2231 = vadd.f32 0.0, %v2230
    %v2232 = vpop.f32.mrb[0].mxu0
    %v2233 = vpop.f32.mrb[0].mxu0
    %v2234 = vadd.f32 0.0, %v2233
    %v2235 = vpop.f32.mrb[0].mxu0
    %2236 = vdwg.mxu0
    %v2237 = vadd.f32 %v2146, %v2207
    %v2238 = vadd.f32 %v2147, %v2210
    %v2239 = vadd.f32 %v2148, %v2215
    %v2240 = vadd.f32 %v2149, %v2218
    %v2241 = vadd.f32 %v2150, %v2223
    %v2242 = vadd.f32 %v2151, %v2226
    %v2243 = vadd.f32 %v2152, %v2231
    %v2244 = vadd.f32 %v2153, %v2234
    %v2245 = vsel %vm134, %v2237, 0.0
    %v2246 = vsel %vm134, %v2238, 0.0
    %v2247 = vadd.f32 %v2245, %v2246
    %v2248 = vsel %vm134, %v2239, 0.0
    %v2249 = vadd.f32 %v2247, %v2248
    %v2250 = vsel %vm134, %v2240, 0.0
    %v2251 = vadd.f32 %v2249, %v2250
    %v2252 = vsel %vm134, %v2241, 0.0
    %v2253 = vadd.f32 %v2251, %v2252
    %v2254 = vsel %vm134, %v2242, 0.0
    %v2255 = vadd.f32 %v2253, %v2254
    %v2256 = vsel %vm134, %v2243, 0.0
    %v2257 = vadd.f32 %v2255, %v2256
    %v2258 = vsel %vm134, %v2244, 0.0
    %v2259 = vadd.f32 %v2257, %v2258
    %v2260 = vrot.slane %v2259, 4
    %v2261 = vadd.f32 %v2259, %v2260
    %v2262 = vrot.slane %v2261, 2
    %v2263 = vadd.f32 %v2261, %v2262
    %v2264 = vrot.slane %v2263, 1
    %v2265 = vadd.f32 %v2263, %v2264
    %v2266 = vmul.f32 %v2265, 0.015625
    %v2267 = vsub.f32 %v2237, %v2266
    %v2268 = vsub.f32 %v2238, %v2266
    %v2269 = vsub.f32 %v2239, %v2266
    %v2270 = vsub.f32 %v2240, %v2266
    %v2271 = vsub.f32 %v2241, %v2266
    %v2272 = vsub.f32 %v2242, %v2266
    %v2273 = vsub.f32 %v2243, %v2266
    %v2274 = vsub.f32 %v2244, %v2266
    %v2275 = vmul.f32 %v2267, %v2267
    %v2276 = vmul.f32 %v2268, %v2268
    %v2277 = vmul.f32 %v2269, %v2269
    %v2278 = vmul.f32 %v2270, %v2270
    %v2279 = vmul.f32 %v2271, %v2271
    %v2280 = vmul.f32 %v2272, %v2272
    %v2281 = vmul.f32 %v2273, %v2273
    %v2282 = vmul.f32 %v2274, %v2274
    %v2283 = vsel %vm134, %v2275, 0.0
    %v2284 = vsel %vm134, %v2276, 0.0
    %v2285 = vadd.f32 %v2283, %v2284
    %v2286 = vsel %vm134, %v2277, 0.0
    %v2287 = vadd.f32 %v2285, %v2286
    %v2288 = vsel %vm134, %v2278, 0.0
    %v2289 = vadd.f32 %v2287, %v2288
    %v2290 = vsel %vm134, %v2279, 0.0
    %v2291 = vadd.f32 %v2289, %v2290
    %v2292 = vsel %vm134, %v2280, 0.0
    %v2293 = vadd.f32 %v2291, %v2292
    %v2294 = vsel %vm134, %v2281, 0.0
    %v2295 = vadd.f32 %v2293, %v2294
    %v2296 = vsel %vm134, %v2282, 0.0
    %v2297 = vadd.f32 %v2295, %v2296
    %v2298 = vrot.slane %v2297, 4
    %v2299 = vadd.f32 %v2297, %v2298
    %v2300 = vrot.slane %v2299, 2
    %v2301 = vadd.f32 %v2299, %v2300
    %v2302 = vrot.slane %v2301, 1
    %v2303 = vadd.f32 %v2301, %v2302
    %v2304 = vmul.f32 %v2303, 0.015625
    %v2305 = vadd.f32 %v2304, 1e-05
    %v2306 = vrsqrt.pop %v2305
    %v2307 = vmul.f32 %v2267, %v2306
    %v2308 = vmul.f32 %v2268, %v2306
    %v2309 = vmul.f32 %v2269, %v2306
    %v2310 = vmul.f32 %v2270, %v2306
    %v2311 = vmul.f32 %v2271, %v2306
    %v2312 = vmul.f32 %v2272, %v2306
    %v2313 = vmul.f32 %v2273, %v2306
    %v2314 = vmul.f32 %v2274, %v2306
    %v2316 = vlaneseq
    %v2317 = vshrl.u32 %v2316, 7
    %v2318 = vsub.s32 0, %v2317
    %v2319 = vrot.slane %v104, %v2318
    %v2321 = vmul.f32 %v2307, %v2319
    %v2322 = vmul.f32 %v2308, %v2319
    %v2323 = vmul.f32 %v2309, %v2319
    %v2324 = vmul.f32 %v2310, %v2319
    %v2325 = vmul.f32 %v2311, %v2319
    %v2326 = vmul.f32 %v2312, %v2319
    %v2327 = vmul.f32 %v2313, %v2319
    %v2328 = vmul.f32 %v2314, %v2319
    %v2330 = vlaneseq
    %v2331 = vshrl.u32 %v2330, 7
    %v2332 = vsub.s32 0, %v2331
    %v2333 = vrot.slane %v105, %v2332
    %v2335 = vadd.f32 %v2321, %v2333
    %v2336 = vadd.f32 %v2322, %v2333
    %v2337 = vadd.f32 %v2323, %v2333
    %v2338 = vadd.f32 %v2324, %v2333
    %v2339 = vadd.f32 %v2325, %v2333
    %v2340 = vadd.f32 %v2326, %v2333
    %v2341 = vadd.f32 %v2327, %v2333
    %v2342 = vadd.f32 %v2328, %v2333
    %v2343 = vmax.f32 %v2335, 0.0
    %v2344 = vmax.f32 %v2336, 0.0
    %v2345 = vmax.f32 %v2337, 0.0
    %v2346 = vmax.f32 %v2338, 0.0
    %v2347 = vmax.f32 %v2339, 0.0
    %v2348 = vmax.f32 %v2340, 0.0
    %v2349 = vmax.f32 %v2341, 0.0
    %v2350 = vmax.f32 %v2342, 0.0
    %v2352 = vlaneseq
    %v2353 = vshrl.u32 %v2352, 7
    %v2354 = vsub.s32 0, %v2353
    %v2355 = vrot.slane %v45, %v2354
    %v2365 = vunpack.c.l.b16 %v170
    %v2366 = vunpack.c.l.b16 %v171
    %v2367 = vunpack.c.l.b16 %v172
    %v2368 = vunpack.c.l.b16 %v173
    %v2369 = vunpack.c.l.b16 %v174
    %v2370 = vunpack.c.l.b16 %v175
    %v2371 = vunpack.c.l.b16 %v176
    %v2372 = vunpack.c.l.b16 %v177
    %v2373 = vpack.c.b16 %v2366, %v2365
    %v2374 = vpack.c.b16 %v2368, %v2367
    %v2375 = vpack.c.b16 %v2370, %v2369
    %v2376 = vpack.c.b16 %v2372, %v2371
    %v2379 = vunpack.c.l.b16 %v43
    %v2380 = vunpack.c.l.b16 %v44
    %v2381 = vpack.c.b16 %v2380, %v2379
    %v2384 = vsel %vm106, %v2373, 0
    %v2387 = vsel %vm106, %v2374, 0
    %v2390 = vsel %vm106, %v2375, 0
    %v2393 = vsel %vm106, %v2376, 0
    %2395 = vmatprep.subr.bf16.mxu0 0
    %2396 = vmatpush1.bf16.msra.mxu0 %v2381
    %2397 = vmatprep.subr.bf16.mxu0 0
    %2398 = vmatpush1.bf16.msra.mxu0 0
    %2399 = vmatprep.subr.bf16.mxu0 0
    %2400 = vmatpush1.bf16.msra.mxu0 0
    %2401 = vmatprep.subr.bf16.mxu0 0
    %2402 = vmatpush1.bf16.msra.mxu0 0
    %2403 = vmatprep.subr.bf16.mxu0 0
    %2404 = vmatpush1.bf16.msra.mxu0 0
    %2405 = vmatprep.subr.bf16.mxu0 0
    %2406 = vmatpush1.bf16.msra.mxu0 0
    %2407 = vmatprep.subr.bf16.mxu0 0
    %2408 = vmatpush1.bf16.msra.mxu0 0
    %2409 = vmatprep.subr.bf16.mxu0 0
    %2410 = vmatpush1.bf16.msra.mxu0 0
    %2411 = vmatprep.subr.bf16.mxu0 0
    %2412 = vmatpush1.bf16.msra.mxu0 0
    %2413 = vmatprep.subr.bf16.mxu0 0
    %2414 = vmatpush1.bf16.msra.mxu0 0
    %2415 = vmatprep.subr.bf16.mxu0 0
    %2416 = vmatpush1.bf16.msra.mxu0 0
    %2417 = vmatprep.subr.bf16.mxu0 0
    %2418 = vmatpush1.bf16.msra.mxu0 0
    %2419 = vmatprep.subr.bf16.mxu0 0
    %2420 = vmatpush1.bf16.msra.mxu0 0
    %2421 = vmatprep.subr.bf16.mxu0 0
    %2422 = vmatpush1.bf16.msra.mxu0 0
    %2423 = vmatprep.subr.bf16.mxu0 0
    %2424 = vmatpush1.bf16.msra.mxu0 0
    %2425 = vmatprep.subr.bf16.mxu0 0
    %2426 = vmatpush1.bf16.msra.mxu0 0
    %2427 = vmatprep.mubr.bf16.mxu0 0
    %2428 = vmatmul.mubr.bf16.gmra.mrb[0].mxu0 %v2384
    %v2429 = vpop.f32.mrb[0].mxu0
    %v2430 = vadd.f32 %v2355, %v2429
    %v2431 = vpop.f32.mrb[0].mxu0
    %v2432 = vpop.f32.mrb[0].mxu0
    %v2433 = vadd.f32 %v2355, %v2432
    %v2434 = vpop.f32.mrb[0].mxu0
    %2435 = vmatprep.mubr.bf16.mxu0 0
    %2436 = vmatmul.mubr.bf16.gmra.mrb[0].mxu0 %v2387
    %v2437 = vpop.f32.mrb[0].mxu0
    %v2438 = vadd.f32 %v2355, %v2437
    %v2439 = vpop.f32.mrb[0].mxu0
    %v2440 = vpop.f32.mrb[0].mxu0
    %v2441 = vadd.f32 %v2355, %v2440
    %v2442 = vpop.f32.mrb[0].mxu0
    %2443 = vmatprep.mubr.bf16.mxu0 0
    %2444 = vmatmul.mubr.bf16.gmra.mrb[0].mxu0 %v2390
    %v2445 = vpop.f32.mrb[0].mxu0
    %v2446 = vadd.f32 %v2355, %v2445
    %v2447 = vpop.f32.mrb[0].mxu0
    %v2448 = vpop.f32.mrb[0].mxu0
    %v2449 = vadd.f32 %v2355, %v2448
    %v2450 = vpop.f32.mrb[0].mxu0
    %2451 = vmatprep.mubr.bf16.mxu0 0
    %2452 = vmatmul.mubr.bf16.gmra.mrb[0].mxu0 %v2393
    %v2453 = vpop.f32.mrb[0].mxu0
    %v2454 = vadd.f32 %v2355, %v2453
    %v2455 = vpop.f32.mrb[0].mxu0
    %v2456 = vpop.f32.mrb[0].mxu0
    %v2457 = vadd.f32 %v2355, %v2456
    %v2458 = vpop.f32.mrb[0].mxu0
    %2459 = vdwg.mxu0
    %v2460 = vadd.f32 %v2343, %v2430
    %v2461 = vadd.f32 %v2344, %v2433
    %v2462 = vadd.f32 %v2345, %v2438
    %v2463 = vadd.f32 %v2346, %v2441
    %v2464 = vadd.f32 %v2347, %v2446
    %v2465 = vadd.f32 %v2348, %v2449
    %v2466 = vadd.f32 %v2349, %v2454
    %v2467 = vadd.f32 %v2350, %v2457
    %2468 = vst.msk [vmem:[#allocation4] sm:$0xff] %vm134, %v2460
    %2469 = vst.msk [vmem:[#allocation4 + $0x8] sm:$0xff] %vm134, %v2461
    %2470 = vst.msk [vmem:[#allocation4 + $0x10] sm:$0xff] %vm134, %v2462
    %2471 = vst.msk [vmem:[#allocation4 + $0x18] sm:$0xff] %vm134, %v2463
    %2472 = vst.msk [vmem:[#allocation4 + $0x20] sm:$0xff] %vm134, %v2464
    %2473 = vst.msk [vmem:[#allocation4 + $0x28] sm:$0xff] %vm134, %v2465
    %2474 = vst.msk [vmem:[#allocation4 + $0x30] sm:$0xff] %vm134, %v2466
    %2475 = vst.msk [vmem:[#allocation4 + $0x38] sm:$0xff] %vm134, %v2467
    %s2476 = scalar_lea.vmem %s0, 64
    %v2477 = vld [vmem:[%s2476] sm:$0xff]
    %v2478 = vld [vmem:[%s2476 + $0x8] sm:$0xff]
    %v2479 = vld [vmem:[%s2476 + $0x10] sm:$0xff]
    %v2480 = vld [vmem:[%s2476 + $0x18] sm:$0xff]
    %v2481 = vld [vmem:[%s2476 + $0x20] sm:$0xff]
    %v2482 = vld [vmem:[%s2476 + $0x28] sm:$0xff]
    %v2483 = vld [vmem:[%s2476 + $0x30] sm:$0xff]
    %v2484 = vld [vmem:[%s2476 + $0x38] sm:$0xff]
    %v2485 = vpack.c.bf16 %v2477, %v2477
    %v2486 = vpack.c.bf16 %v2478, %v2478
    %v2487 = vpack.c.bf16 %v2479, %v2479
    %v2488 = vpack.c.bf16 %v2480, %v2480
    %v2489 = vpack.c.bf16 %v2481, %v2481
    %v2490 = vpack.c.bf16 %v2482, %v2482
    %v2491 = vpack.c.bf16 %v2483, %v2483
    %v2492 = vpack.c.bf16 %v2484, %v2484
    %2493 = vst.msk [vmem:[%s178 + $0x1] sm:$0xff] %vm106, %v2477
    %2494 = vst.msk [vmem:[%s178 + $0x11] sm:$0xff] %vm106, %v2478
    %2495 = vst.msk [vmem:[%s178 + $0x21] sm:$0xff] %vm106, %v2479
    %2496 = vst.msk [vmem:[%s178 + $0x31] sm:$0xff] %vm106, %v2480
    %2497 = vst.msk [vmem:[%s178 + $0x41] sm:$0xff] %vm106, %v2481
    %2498 = vst.msk [vmem:[%s178 + $0x51] sm:$0xff] %vm106, %v2482
    %2499 = vst.msk [vmem:[%s178 + $0x61] sm:$0xff] %vm106, %v2483
    %2500 = vst.msk [vmem:[%s178 + $0x71] sm:$0xff] %vm106, %v2484
    %v2501 = vld [vmem:[#allocation2] sm:$0xff]
    %v2502 = vld [vmem:[#allocation2 + $0x10] sm:$0xff]
    %v2503 = vld [vmem:[#allocation2 + $0x20] sm:$0xff]
    %v2504 = vld [vmem:[#allocation2 + $0x30] sm:$0xff]
    %v2505 = vld [vmem:[#allocation2 + $0x40] sm:$0xff]
    %v2506 = vld [vmem:[#allocation2 + $0x50] sm:$0xff]
    %v2507 = vld [vmem:[#allocation2 + $0x60] sm:$0xff]
    %v2508 = vld [vmem:[#allocation2 + $0x70] sm:$0xff]
    %v2509 = vld [vmem:[#allocation2 + $0x80] sm:$0xff]
    %v2510 = vld [vmem:[#allocation2 + $0x90] sm:$0xff]
    %v2511 = vpack.c.bf16 %v2501, %v2501
    %v2512 = vpack.c.bf16 %v2502, %v2502
    %v2513 = vpack.c.bf16 %v2503, %v2503
    %v2514 = vpack.c.bf16 %v2504, %v2504
    %v2515 = vpack.c.bf16 %v2505, %v2505
    %v2516 = vpack.c.bf16 %v2506, %v2506
    %v2517 = vpack.c.bf16 %v2507, %v2507
    %v2518 = vpack.c.bf16 %v2508, %v2508
    %v2519 = vpack.c.bf16 %v2509, %v2509
    %v2520 = vpack.c.bf16 %v2510, %v2510
    %v2529 = vunpack.c.l.b16 %v2511
    %v2530 = vunpack.c.l.b16 %v2512
    %v2531 = vunpack.c.l.b16 %v2513
    %v2532 = vunpack.c.l.b16 %v2514
    %v2533 = vunpack.c.l.b16 %v2515
    %v2534 = vunpack.c.l.b16 %v2516
    %v2535 = vunpack.c.l.b16 %v2517
    %v2536 = vunpack.c.l.b16 %v2518
    %v2537 = vpack.c.b16 %v2530, %v2529
    %v2538 = vpack.c.b16 %v2532, %v2531
    %v2539 = vpack.c.b16 %v2534, %v2533
    %v2540 = vpack.c.b16 %v2536, %v2535
    %v2542 = vsel %vm106, %v2537, 0
    %v2545 = vsel %vm106, %v2538, 0
    %v2548 = vsel %vm106, %v2539, 0
    %v2551 = vsel %vm106, %v2540, 0
    %2553 = vmatprep.subr.bf16.mxu0 0
    %2554 = vmatpush1.bf16.msra.mxu0 %v237
    %2555 = vmatprep.subr.bf16.mxu0 0
    %2556 = vmatpush1.bf16.msra.mxu0 0
    %2557 = vmatprep.subr.bf16.mxu0 0
    %2558 = vmatpush1.bf16.msra.mxu0 0
    %2559 = vmatprep.subr.bf16.mxu0 0
    %2560 = vmatpush1.bf16.msra.mxu0 0
    %2561 = vmatprep.subr.bf16.mxu0 0
    %2562 = vmatpush1.bf16.msra.mxu0 0
    %2563 = vmatprep.subr.bf16.mxu0 0
    %2564 = vmatpush1.bf16.msra.mxu0 0
    %2565 = vmatprep.subr.bf16.mxu0 0
    %2566 = vmatpush1.bf16.msra.mxu0 0
    %2567 = vmatprep.subr.bf16.mxu0 0
    %2568 = vmatpush1.bf16.msra.mxu0 0
    %2569 = vmatprep.subr.bf16.mxu0 0
    %2570 = vmatpush1.bf16.msra.mxu0 0
    %2571 = vmatprep.subr.bf16.mxu0 0
    %2572 = vmatpush1.bf16.msra.mxu0 0
    %2573 = vmatprep.subr.bf16.mxu0 0
    %2574 = vmatpush1.bf16.msra.mxu0 0
    %2575 = vmatprep.subr.bf16.mxu0 0
    %2576 = vmatpush1.bf16.msra.mxu0 0
    %2577 = vmatprep.subr.bf16.mxu0 0
    %2578 = vmatpush1.bf16.msra.mxu0 0
    %2579 = vmatprep.subr.bf16.mxu0 0
    %2580 = vmatpush1.bf16.msra.mxu0 0
    %2581 = vmatprep.subr.bf16.mxu0 0
    %2582 = vmatpush1.bf16.msra.mxu0 0
    %2583 = vmatprep.subr.bf16.mxu0 0
    %2584 = vmatpush1.bf16.msra.mxu0 0
    %2585 = vmatprep.mubr.bf16.mxu0 0
    %2586 = vmatmul.mubr.bf16.gmra.mrb[0].mxu0 %v2542
    %v2587 = vpop.f32.mrb[0].mxu0
    %v2588 = vadd.f32 %v211, %v2587
    %v2589 = vpop.f32.mrb[0].mxu0
    %v2590 = vpop.f32.mrb[0].mxu0
    %v2591 = vadd.f32 %v211, %v2590
    %v2592 = vpop.f32.mrb[0].mxu0
    %2593 = vmatprep.mubr.bf16.mxu0 0
    %2594 = vmatmul.mubr.bf16.gmra.mrb[0].mxu0 %v2545
    %v2595 = vpop.f32.mrb[0].mxu0
    %v2596 = vadd.f32 %v211, %v2595
    %v2597 = vpop.f32.mrb[0].mxu0
    %v2598 = vpop.f32.mrb[0].mxu0
    %v2599 = vadd.f32 %v211, %v2598
    %v2600 = vpop.f32.mrb[0].mxu0
    %2601 = vmatprep.mubr.bf16.mxu0 0
    %2602 = vmatmul.mubr.bf16.gmra.mrb[0].mxu0 %v2548
    %v2603 = vpop.f32.mrb[0].mxu0
    %v2604 = vadd.f32 %v211, %v2603
    %v2605 = vpop.f32.mrb[0].mxu0
    %v2606 = vpop.f32.mrb[0].mxu0
    %v2607 = vadd.f32 %v211, %v2606
    %v2608 = vpop.f32.mrb[0].mxu0
    %2609 = vmatprep.mubr.bf16.mxu0 0
    %2610 = vmatmul.mubr.bf16.gmra.mrb[0].mxu0 %v2551
    %v2611 = vpop.f32.mrb[0].mxu0
    %v2612 = vadd.f32 %v211, %v2611
    %v2613 = vpop.f32.mrb[0].mxu0
    %v2614 = vpop.f32.mrb[0].mxu0
    %v2615 = vadd.f32 %v211, %v2614
    %v2616 = vpop.f32.mrb[0].mxu0
    %2617 = vdwg.mxu0
    %v2619 = vunpack.c.l.b16 %v2519
    %v2620 = vpack.c.b16 %v2531, %v2530
    %v2621 = vpack.c.b16 %v2533, %v2532
    %v2622 = vpack.c.b16 %v2535, %v2534
    %v2623 = vpack.c.b16 %v2619, %v2536
    %v2625 = vsel %vm106, %v2620, 0
    %v2628 = vsel %vm106, %v2621, 0
    %v2631 = vsel %vm106, %v2622, 0
    %v2634 = vsel %vm106, %v2623, 0
    %2636 = vmatprep.subr.bf16.mxu0 0
    %2637 = vmatpush1.bf16.msra.mxu0 %v326
    %2638 = vmatprep.subr.bf16.mxu0 0
    %2639 = vmatpush1.bf16.msra.mxu0 0
    %2640 = vmatprep.subr.bf16.mxu0 0
    %2641 = vmatpush1.bf16.msra.mxu0 0
    %2642 = vmatprep.subr.bf16.mxu0 0
    %2643 = vmatpush1.bf16.msra.mxu0 0
    %2644 = vmatprep.subr.bf16.mxu0 0
    %2645 = vmatpush1.bf16.msra.mxu0 0
    %2646 = vmatprep.subr.bf16.mxu0 0
    %2647 = vmatpush1.bf16.msra.mxu0 0
    %2648 = vmatprep.subr.bf16.mxu0 0
    %2649 = vmatpush1.bf16.msra.mxu0 0
    %2650 = vmatprep.subr.bf16.mxu0 0
    %2651 = vmatpush1.bf16.msra.mxu0 0
    %2652 = vmatprep.subr.bf16.mxu0 0
    %2653 = vmatpush1.bf16.msra.mxu0 0
    %2654 = vmatprep.subr.bf16.mxu0 0
    %2655 = vmatpush1.bf16.msra.mxu0 0
    %2656 = vmatprep.subr.bf16.mxu0 0
    %2657 = vmatpush1.bf16.msra.mxu0 0
    %2658 = vmatprep.subr.bf16.mxu0 0
    %2659 = vmatpush1.bf16.msra.mxu0 0
    %2660 = vmatprep.subr.bf16.mxu0 0
    %2661 = vmatpush1.bf16.msra.mxu0 0
    %2662 = vmatprep.subr.bf16.mxu0 0
    %2663 = vmatpush1.bf16.msra.mxu0 0
    %2664 = vmatprep.subr.bf16.mxu0 0
    %2665 = vmatpush1.bf16.msra.mxu0 0
    %2666 = vmatprep.subr.bf16.mxu0 0
    %2667 = vmatpush1.bf16.msra.mxu0 0
    %2668 = vmatprep.mubr.bf16.mxu0 0
    %2669 = vmatmul.mubr.bf16.gmra.mrb[0].mxu0 %v2625
    %v2670 = vpop.f32.mrb[0].mxu0
    %v2671 = vadd.f32 0.0, %v2670
    %v2672 = vpop.f32.mrb[0].mxu0
    %v2673 = vpop.f32.mrb[0].mxu0
    %v2674 = vadd.f32 0.0, %v2673
    %v2675 = vpop.f32.mrb[0].mxu0
    %2676 = vmatprep.mubr.bf16.mxu0 0
    %2677 = vmatmul.mubr.bf16.gmra.mrb[0].mxu0 %v2628
    %v2678 = vpop.f32.mrb[0].mxu0
    %v2679 = vadd.f32 0.0, %v2678
    %v2680 = vpop.f32.mrb[0].mxu0
    %v2681 = vpop.f32.mrb[0].mxu0
    %v2682 = vadd.f32 0.0, %v2681
    %v2683 = vpop.f32.mrb[0].mxu0
    %2684 = vmatprep.mubr.bf16.mxu0 0
    %2685 = vmatmul.mubr.bf16.gmra.mrb[0].mxu0 %v2631
    %v2686 = vpop.f32.mrb[0].mxu0
    %v2687 = vadd.f32 0.0, %v2686
    %v2688 = vpop.f32.mrb[0].mxu0
    %v2689 = vpop.f32.mrb[0].mxu0
    %v2690 = vadd.f32 0.0, %v2689
    %v2691 = vpop.f32.mrb[0].mxu0
    %2692 = vmatprep.mubr.bf16.mxu0 0
    %2693 = vmatmul.mubr.bf16.gmra.mrb[0].mxu0 %v2634
    %v2694 = vpop.f32.mrb[0].mxu0
    %v2695 = vadd.f32 0.0, %v2694
    %v2696 = vpop.f32.mrb[0].mxu0
    %v2697 = vpop.f32.mrb[0].mxu0
    %v2698 = vadd.f32 0.0, %v2697
    %v2699 = vpop.f32.mrb[0].mxu0
    %2700 = vdwg.mxu0
    %v2701 = vadd.f32 %v2588, %v2671
    %v2702 = vadd.f32 %v2591, %v2674
    %v2703 = vadd.f32 %v2596, %v2679
    %v2704 = vadd.f32 %v2599, %v2682
    %v2705 = vadd.f32 %v2604, %v2687
    %v2706 = vadd.f32 %v2607, %v2690
    %v2707 = vadd.f32 %v2612, %v2695
    %v2708 = vadd.f32 %v2615, %v2698
    %v2710 = vunpack.c.l.b16 %v2520
    %v2711 = vpack.c.b16 %v2710, %v2619
    %v2713 = vsel %vm106, %v2711, 0
    %2715 = vmatprep.subr.bf16.mxu0 0
    %2716 = vmatpush1.bf16.msra.mxu0 %v420
    %2717 = vmatprep.subr.bf16.mxu0 0
    %2718 = vmatpush1.bf16.msra.mxu0 0
    %2719 = vmatprep.subr.bf16.mxu0 0
    %2720 = vmatpush1.bf16.msra.mxu0 0
    %2721 = vmatprep.subr.bf16.mxu0 0
    %2722 = vmatpush1.bf16.msra.mxu0 0
    %2723 = vmatprep.subr.bf16.mxu0 0
    %2724 = vmatpush1.bf16.msra.mxu0 0
    %2725 = vmatprep.subr.bf16.mxu0 0
    %2726 = vmatpush1.bf16.msra.mxu0 0
    %2727 = vmatprep.subr.bf16.mxu0 0
    %2728 = vmatpush1.bf16.msra.mxu0 0
    %2729 = vmatprep.subr.bf16.mxu0 0
    %2730 = vmatpush1.bf16.msra.mxu0 0
    %2731 = vmatprep.subr.bf16.mxu0 0
    %2732 = vmatpush1.bf16.msra.mxu0 0
    %2733 = vmatprep.subr.bf16.mxu0 0
    %2734 = vmatpush1.bf16.msra.mxu0 0
    %2735 = vmatprep.subr.bf16.mxu0 0
    %2736 = vmatpush1.bf16.msra.mxu0 0
    %2737 = vmatprep.subr.bf16.mxu0 0
    %2738 = vmatpush1.bf16.msra.mxu0 0
    %2739 = vmatprep.subr.bf16.mxu0 0
    %2740 = vmatpush1.bf16.msra.mxu0 0
    %2741 = vmatprep.subr.bf16.mxu0 0
    %2742 = vmatpush1.bf16.msra.mxu0 0
    %2743 = vmatprep.subr.bf16.mxu0 0
    %2744 = vmatpush1.bf16.msra.mxu0 0
    %2745 = vmatprep.subr.bf16.mxu0 0
    %2746 = vmatpush1.bf16.msra.mxu0 0
    %2747 = vmatprep.mubr.bf16.mxu0 0
    %2748 = vmatmul.mubr.bf16.gmra.mrb[0].mxu0 %v2545
    %v2749 = vpop.f32.mrb[0].mxu0
    %v2750 = vadd.f32 0.0, %v2749
    %v2751 = vpop.f32.mrb[0].mxu0
    %v2752 = vpop.f32.mrb[0].mxu0
    %v2753 = vadd.f32 0.0, %v2752
    %v2754 = vpop.f32.mrb[0].mxu0
    %2755 = vmatprep.mubr.bf16.mxu0 0
    %2756 = vmatmul.mubr.bf16.gmra.mrb[0].mxu0 %v2548
    %v2757 = vpop.f32.mrb[0].mxu0
    %v2758 = vadd.f32 0.0, %v2757
    %v2759 = vpop.f32.mrb[0].mxu0
    %v2760 = vpop.f32.mrb[0].mxu0
    %v2761 = vadd.f32 0.0, %v2760
    %v2762 = vpop.f32.mrb[0].mxu0
    %2763 = vmatprep.mubr.bf16.mxu0 0
    %2764 = vmatmul.mubr.bf16.gmra.mrb[0].mxu0 %v2551
    %v2765 = vpop.f32.mrb[0].mxu0
    %v2766 = vadd.f32 0.0, %v2765
    %v2767 = vpop.f32.mrb[0].mxu0
    %v2768 = vpop.f32.mrb[0].mxu0
    %v2769 = vadd.f32 0.0, %v2768
    %v2770 = vpop.f32.mrb[0].mxu0
    %2771 = vmatprep.mubr.bf16.mxu0 0
    %2772 = vmatmul.mubr.bf16.gmra.mrb[0].mxu0 %v2713
    %v2773 = vpop.f32.mrb[0].mxu0
    %v2774 = vadd.f32 0.0, %v2773
    %v2775 = vpop.f32.mrb[0].mxu0
    %v2776 = vpop.f32.mrb[0].mxu0
    %v2777 = vadd.f32 0.0, %v2776
    %v2778 = vpop.f32.mrb[0].mxu0
    %2779 = vdwg.mxu0
    %v2780 = vadd.f32 %v2701, %v2750
    %v2781 = vadd.f32 %v2702, %v2753
    %v2782 = vadd.f32 %v2703, %v2758
    %v2783 = vadd.f32 %v2704, %v2761
    %v2784 = vadd.f32 %v2705, %v2766
    %v2785 = vadd.f32 %v2706, %v2769
    %v2786 = vadd.f32 %v2707, %v2774
    %v2787 = vadd.f32 %v2708, %v2777
    %v2788 = vld [vmem:[#allocation2 + $0x1] sm:$0xff]
    %v2789 = vld [vmem:[#allocation2 + $0x11] sm:$0xff]
    %v2790 = vld [vmem:[#allocation2 + $0x21] sm:$0xff]
    %v2791 = vld [vmem:[#allocation2 + $0x31] sm:$0xff]
    %v2792 = vld [vmem:[#allocation2 + $0x41] sm:$0xff]
    %v2793 = vld [vmem:[#allocation2 + $0x51] sm:$0xff]
    %v2794 = vld [vmem:[#allocation2 + $0x61] sm:$0xff]
    %v2795 = vld [vmem:[#allocation2 + $0x71] sm:$0xff]
    %v2796 = vld [vmem:[#allocation2 + $0x81] sm:$0xff]
    %v2797 = vld [vmem:[#allocation2 + $0x91] sm:$0xff]
    %v2798 = vpack.c.bf16 %v2788, %v2788
    %v2799 = vpack.c.bf16 %v2789, %v2789
    %v2800 = vpack.c.bf16 %v2790, %v2790
    %v2801 = vpack.c.bf16 %v2791, %v2791
    %v2802 = vpack.c.bf16 %v2792, %v2792
    %v2803 = vpack.c.bf16 %v2793, %v2793
    %v2804 = vpack.c.bf16 %v2794, %v2794
    %v2805 = vpack.c.bf16 %v2795, %v2795
    %v2806 = vpack.c.bf16 %v2796, %v2796
    %v2807 = vpack.c.bf16 %v2797, %v2797
    %v2816 = vunpack.c.l.b16 %v2798
    %v2817 = vunpack.c.l.b16 %v2799
    %v2818 = vunpack.c.l.b16 %v2800
    %v2819 = vunpack.c.l.b16 %v2801
    %v2820 = vunpack.c.l.b16 %v2802
    %v2821 = vunpack.c.l.b16 %v2803
    %v2822 = vunpack.c.l.b16 %v2804
    %v2823 = vunpack.c.l.b16 %v2805
    %v2824 = vpack.c.b16 %v2817, %v2816
    %v2825 = vpack.c.b16 %v2819, %v2818
    %v2826 = vpack.c.b16 %v2821, %v2820
    %v2827 = vpack.c.b16 %v2823, %v2822
    %v2829 = vsel %vm106, %v2824, 0
    %v2832 = vsel %vm106, %v2825, 0
    %v2835 = vsel %vm106, %v2826, 0
    %v2838 = vsel %vm106, %v2827, 0
    %2840 = vmatprep.subr.bf16.mxu0 0
    %2841 = vmatpush1.bf16.msra.mxu0 %v542
    %2842 = vmatprep.subr.bf16.mxu0 0
    %2843 = vmatpush1.bf16.msra.mxu0 0
    %2844 = vmatprep.subr.bf16.mxu0 0
    %2845 = vmatpush1.bf16.msra.mxu0 0
    %2846 = vmatprep.subr.bf16.mxu0 0
    %2847 = vmatpush1.bf16.msra.mxu0 0
    %2848 = vmatprep.subr.bf16.mxu0 0
    %2849 = vmatpush1.bf16.msra.mxu0 0
    %2850 = vmatprep.subr.bf16.mxu0 0
    %2851 = vmatpush1.bf16.msra.mxu0 0
    %2852 = vmatprep.subr.bf16.mxu0 0
    %2853 = vmatpush1.bf16.msra.mxu0 0
    %2854 = vmatprep.subr.bf16.mxu0 0
    %2855 = vmatpush1.bf16.msra.mxu0 0
    %2856 = vmatprep.subr.bf16.mxu0 0
    %2857 = vmatpush1.bf16.msra.mxu0 0
    %2858 = vmatprep.subr.bf16.mxu0 0
    %2859 = vmatpush1.bf16.msra.mxu0 0
    %2860 = vmatprep.subr.bf16.mxu0 0
    %2861 = vmatpush1.bf16.msra.mxu0 0
    %2862 = vmatprep.subr.bf16.mxu0 0
    %2863 = vmatpush1.bf16.msra.mxu0 0
    %2864 = vmatprep.subr.bf16.mxu0 0
    %2865 = vmatpush1.bf16.msra.mxu0 0
    %2866 = vmatprep.subr.bf16.mxu0 0
    %2867 = vmatpush1.bf16.msra.mxu0 0
    %2868 = vmatprep.subr.bf16.mxu0 0
    %2869 = vmatpush1.bf16.msra.mxu0 0
    %2870 = vmatprep.subr.bf16.mxu0 0
    %2871 = vmatpush1.bf16.msra.mxu0 0
    %2872 = vmatprep.mubr.bf16.mxu0 0
    %2873 = vmatmul.mubr.bf16.gmra.mrb[0].mxu0 %v2829
    %v2874 = vpop.f32.mrb[0].mxu0
    %v2875 = vadd.f32 0.0, %v2874
    %v2876 = vpop.f32.mrb[0].mxu0
    %v2877 = vpop.f32.mrb[0].mxu0
    %v2878 = vadd.f32 0.0, %v2877
    %v2879 = vpop.f32.mrb[0].mxu0
    %2880 = vmatprep.mubr.bf16.mxu0 0
    %2881 = vmatmul.mubr.bf16.gmra.mrb[0].mxu0 %v2832
    %v2882 = vpop.f32.mrb[0].mxu0
    %v2883 = vadd.f32 0.0, %v2882
    %v2884 = vpop.f32.mrb[0].mxu0
    %v2885 = vpop.f32.mrb[0].mxu0
    %v2886 = vadd.f32 0.0, %v2885
    %v2887 = vpop.f32.mrb[0].mxu0
    %2888 = vmatprep.mubr.bf16.mxu0 0
    %2889 = vmatmul.mubr.bf16.gmra.mrb[0].mxu0 %v2835
    %v2890 = vpop.f32.mrb[0].mxu0
    %v2891 = vadd.f32 0.0, %v2890
    %v2892 = vpop.f32.mrb[0].mxu0
    %v2893 = vpop.f32.mrb[0].mxu0
    %v2894 = vadd.f32 0.0, %v2893
    %v2895 = vpop.f32.mrb[0].mxu0
    %2896 = vmatprep.mubr.bf16.mxu0 0
    %2897 = vmatmul.mubr.bf16.gmra.mrb[0].mxu0 %v2838
    %v2898 = vpop.f32.mrb[0].mxu0
    %v2899 = vadd.f32 0.0, %v2898
    %v2900 = vpop.f32.mrb[0].mxu0
    %v2901 = vpop.f32.mrb[0].mxu0
    %v2902 = vadd.f32 0.0, %v2901
    %v2903 = vpop.f32.mrb[0].mxu0
    %2904 = vdwg.mxu0
    %v2905 = vadd.f32 %v2780, %v2875
    %v2906 = vadd.f32 %v2781, %v2878
    %v2907 = vadd.f32 %v2782, %v2883
    %v2908 = vadd.f32 %v2783, %v2886
    %v2909 = vadd.f32 %v2784, %v2891
    %v2910 = vadd.f32 %v2785, %v2894
    %v2911 = vadd.f32 %v2786, %v2899
    %v2912 = vadd.f32 %v2787, %v2902
    %v2914 = vunpack.c.l.b16 %v2806
    %v2915 = vpack.c.b16 %v2818, %v2817
    %v2916 = vpack.c.b16 %v2820, %v2819
    %v2917 = vpack.c.b16 %v2822, %v2821
    %v2918 = vpack.c.b16 %v2914, %v2823
    %v2920 = vsel %vm106, %v2915, 0
    %v2923 = vsel %vm106, %v2916, 0
    %v2926 = vsel %vm106, %v2917, 0
    %v2929 = vsel %vm106, %v2918, 0
    %2931 = vmatprep.subr.bf16.mxu0 0
    %2932 = vmatpush1.bf16.msra.mxu0 %v639
    %2933 = vmatprep.subr.bf16.mxu0 0
    %2934 = vmatpush1.bf16.msra.mxu0 0
    %2935 = vmatprep.subr.bf16.mxu0 0
    %2936 = vmatpush1.bf16.msra.mxu0 0
    %2937 = vmatprep.subr.bf16.mxu0 0
    %2938 = vmatpush1.bf16.msra.mxu0 0
    %2939 = vmatprep.subr.bf16.mxu0 0
    %2940 = vmatpush1.bf16.msra.mxu0 0
    %2941 = vmatprep.subr.bf16.mxu0 0
    %2942 = vmatpush1.bf16.msra.mxu0 0
    %2943 = vmatprep.subr.bf16.mxu0 0
    %2944 = vmatpush1.bf16.msra.mxu0 0
    %2945 = vmatprep.subr.bf16.mxu0 0
    %2946 = vmatpush1.bf16.msra.mxu0 0
    %2947 = vmatprep.subr.bf16.mxu0 0
    %2948 = vmatpush1.bf16.msra.mxu0 0
    %2949 = vmatprep.subr.bf16.mxu0 0
    %2950 = vmatpush1.bf16.msra.mxu0 0
    %2951 = vmatprep.subr.bf16.mxu0 0
    %2952 = vmatpush1.bf16.msra.mxu0 0
    %2953 = vmatprep.subr.bf16.mxu0 0
    %2954 = vmatpush1.bf16.msra.mxu0 0
    %2955 = vmatprep.subr.bf16.mxu0 0
    %2956 = vmatpush1.bf16.msra.mxu0 0
    %2957 = vmatprep.subr.bf16.mxu0 0
    %2958 = vmatpush1.bf16.msra.mxu0 0
    %2959 = vmatprep.subr.bf16.mxu0 0
    %2960 = vmatpush1.bf16.msra.mxu0 0
    %2961 = vmatprep.subr.bf16.mxu0 0
    %2962 = vmatpush1.bf16.msra.mxu0 0
    %2963 = vmatprep.mubr.bf16.mxu0 0
    %2964 = vmatmul.mubr.bf16.gmra.mrb[0].mxu0 %v2920
    %v2965 = vpop.f32.mrb[0].mxu0
    %v2966 = vadd.f32 0.0, %v2965
    %v2967 = vpop.f32.mrb[0].mxu0
    %v2968 = vpop.f32.mrb[0].mxu0
    %v2969 = vadd.f32 0.0, %v2968
    %v2970 = vpop.f32.mrb[0].mxu0
    %2971 = vmatprep.mubr.bf16.mxu0 0
    %2972 = vmatmul.mubr.bf16.gmra.mrb[0].mxu0 %v2923
    %v2973 = vpop.f32.mrb[0].mxu0
    %v2974 = vadd.f32 0.0, %v2973
    %v2975 = vpop.f32.mrb[0].mxu0
    %v2976 = vpop.f32.mrb[0].mxu0
    %v2977 = vadd.f32 0.0, %v2976
    %v2978 = vpop.f32.mrb[0].mxu0
    %2979 = vmatprep.mubr.bf16.mxu0 0
    %2980 = vmatmul.mubr.bf16.gmra.mrb[0].mxu0 %v2926
    %v2981 = vpop.f32.mrb[0].mxu0
    %v2982 = vadd.f32 0.0, %v2981
    %v2983 = vpop.f32.mrb[0].mxu0
    %v2984 = vpop.f32.mrb[0].mxu0
    %v2985 = vadd.f32 0.0, %v2984
    %v2986 = vpop.f32.mrb[0].mxu0
    %2987 = vmatprep.mubr.bf16.mxu0 0
    %2988 = vmatmul.mubr.bf16.gmra.mrb[0].mxu0 %v2929
    %v2989 = vpop.f32.mrb[0].mxu0
    %v2990 = vadd.f32 0.0, %v2989
    %v2991 = vpop.f32.mrb[0].mxu0
    %v2992 = vpop.f32.mrb[0].mxu0
    %v2993 = vadd.f32 0.0, %v2992
    %v2994 = vpop.f32.mrb[0].mxu0
    %2995 = vdwg.mxu0
    %v2996 = vadd.f32 %v2905, %v2966
    %v2997 = vadd.f32 %v2906, %v2969
    %v2998 = vadd.f32 %v2907, %v2974
    %v2999 = vadd.f32 %v2908, %v2977
    %v3000 = vadd.f32 %v2909, %v2982
    %v3001 = vadd.f32 %v2910, %v2985
    %v3002 = vadd.f32 %v2911, %v2990
    %v3003 = vadd.f32 %v2912, %v2993
    %v3005 = vunpack.c.l.b16 %v2807
    %v3006 = vpack.c.b16 %v3005, %v2914
    %v3008 = vsel %vm106, %v3006, 0
    %3010 = vmatprep.subr.bf16.mxu0 0
    %3011 = vmatpush1.bf16.msra.mxu0 %v733
    %3012 = vmatprep.subr.bf16.mxu0 0
    %3013 = vmatpush1.bf16.msra.mxu0 0
    %3014 = vmatprep.subr.bf16.mxu0 0
    %3015 = vmatpush1.bf16.msra.mxu0 0
    %3016 = vmatprep.subr.bf16.mxu0 0
    %3017 = vmatpush1.bf16.msra.mxu0 0
    %3018 = vmatprep.subr.bf16.mxu0 0
    %3019 = vmatpush1.bf16.msra.mxu0 0
    %3020 = vmatprep.subr.bf16.mxu0 0
    %3021 = vmatpush1.bf16.msra.mxu0 0
    %3022 = vmatprep.subr.bf16.mxu0 0
    %3023 = vmatpush1.bf16.msra.mxu0 0
    %3024 = vmatprep.subr.bf16.mxu0 0
    %3025 = vmatpush1.bf16.msra.mxu0 0
    %3026 = vmatprep.subr.bf16.mxu0 0
    %3027 = vmatpush1.bf16.msra.mxu0 0
    %3028 = vmatprep.subr.bf16.mxu0 0
    %3029 = vmatpush1.bf16.msra.mxu0 0
    %3030 = vmatprep.subr.bf16.mxu0 0
    %3031 = vmatpush1.bf16.msra.mxu0 0
    %3032 = vmatprep.subr.bf16.mxu0 0
    %3033 = vmatpush1.bf16.msra.mxu0 0
    %3034 = vmatprep.subr.bf16.mxu0 0
    %3035 = vmatpush1.bf16.msra.mxu0 0
    %3036 = vmatprep.subr.bf16.mxu0 0
    %3037 = vmatpush1.bf16.msra.mxu0 0
    %3038 = vmatprep.subr.bf16.mxu0 0
    %3039 = vmatpush1.bf16.msra.mxu0 0
    %3040 = vmatprep.subr.bf16.mxu0 0
    %3041 = vmatpush1.bf16.msra.mxu0 0
    %3042 = vmatprep.mubr.bf16.mxu0 0
    %3043 = vmatmul.mubr.bf16.gmra.mrb[0].mxu0 %v2832
    %v3044 = vpop.f32.mrb[0].mxu0
    %v3045 = vadd.f32 0.0, %v3044
    %v3046 = vpop.f32.mrb[0].mxu0
    %v3047 = vpop.f32.mrb[0].mxu0
    %v3048 = vadd.f32 0.0, %v3047
    %v3049 = vpop.f32.mrb[0].mxu0
    %3050 = vmatprep.mubr.bf16.mxu0 0
    %3051 = vmatmul.mubr.bf16.gmra.mrb[0].mxu0 %v2835
    %v3052 = vpop.f32.mrb[0].mxu0
    %v3053 = vadd.f32 0.0, %v3052
    %v3054 = vpop.f32.mrb[0].mxu0
    %v3055 = vpop.f32.mrb[0].mxu0
    %v3056 = vadd.f32 0.0, %v3055
    %v3057 = vpop.f32.mrb[0].mxu0
    %3058 = vmatprep.mubr.bf16.mxu0 0
    %3059 = vmatmul.mubr.bf16.gmra.mrb[0].mxu0 %v2838
    %v3060 = vpop.f32.mrb[0].mxu0
    %v3061 = vadd.f32 0.0, %v3060
    %v3062 = vpop.f32.mrb[0].mxu0
    %v3063 = vpop.f32.mrb[0].mxu0
    %v3064 = vadd.f32 0.0, %v3063
    %v3065 = vpop.f32.mrb[0].mxu0
    %3066 = vmatprep.mubr.bf16.mxu0 0
    %3067 = vmatmul.mubr.bf16.gmra.mrb[0].mxu0 %v3008
    %v3068 = vpop.f32.mrb[0].mxu0
    %v3069 = vadd.f32 0.0, %v3068
    %v3070 = vpop.f32.mrb[0].mxu0
    %v3071 = vpop.f32.mrb[0].mxu0
    %v3072 = vadd.f32 0.0, %v3071
    %v3073 = vpop.f32.mrb[0].mxu0
    %3074 = vdwg.mxu0
    %v3075 = vadd.f32 %v2996, %v3045
    %v3076 = vadd.f32 %v2997, %v3048
    %v3077 = vadd.f32 %v2998, %v3053
    %v3078 = vadd.f32 %v2999, %v3056
    %v3079 = vadd.f32 %v3000, %v3061
    %v3080 = vadd.f32 %v3001, %v3064
    %v3081 = vadd.f32 %v3002, %v3069
    %v3082 = vadd.f32 %v3003, %v3072
    %v3083 = vld [vmem:[#allocation2 + $0x2] sm:$0xff]
    %v3084 = vld [vmem:[#allocation2 + $0x12] sm:$0xff]
    %v3085 = vld [vmem:[#allocation2 + $0x22] sm:$0xff]
    %v3086 = vld [vmem:[#allocation2 + $0x32] sm:$0xff]
    %v3087 = vld [vmem:[#allocation2 + $0x42] sm:$0xff]
    %v3088 = vld [vmem:[#allocation2 + $0x52] sm:$0xff]
    %v3089 = vld [vmem:[#allocation2 + $0x62] sm:$0xff]
    %v3090 = vld [vmem:[#allocation2 + $0x72] sm:$0xff]
    %v3091 = vld [vmem:[#allocation2 + $0x82] sm:$0xff]
    %v3092 = vld [vmem:[#allocation2 + $0x92] sm:$0xff]
    %v3093 = vpack.c.bf16 %v3083, %v3083
    %v3094 = vpack.c.bf16 %v3084, %v3084
    %v3095 = vpack.c.bf16 %v3085, %v3085
    %v3096 = vpack.c.bf16 %v3086, %v3086
    %v3097 = vpack.c.bf16 %v3087, %v3087
    %v3098 = vpack.c.bf16 %v3088, %v3088
    %v3099 = vpack.c.bf16 %v3089, %v3089
    %v3100 = vpack.c.bf16 %v3090, %v3090
    %v3101 = vpack.c.bf16 %v3091, %v3091
    %v3102 = vpack.c.bf16 %v3092, %v3092
    %v3111 = vunpack.c.l.b16 %v3093
    %v3112 = vunpack.c.l.b16 %v3094
    %v3113 = vunpack.c.l.b16 %v3095
    %v3114 = vunpack.c.l.b16 %v3096
    %v3115 = vunpack.c.l.b16 %v3097
    %v3116 = vunpack.c.l.b16 %v3098
    %v3117 = vunpack.c.l.b16 %v3099
    %v3118 = vunpack.c.l.b16 %v3100
    %v3119 = vpack.c.b16 %v3112, %v3111
    %v3120 = vpack.c.b16 %v3114, %v3113
    %v3121 = vpack.c.b16 %v3116, %v3115
    %v3122 = vpack.c.b16 %v3118, %v3117
    %v3124 = vsel %vm106, %v3119, 0
    %v3127 = vsel %vm106, %v3120, 0
    %v3130 = vsel %vm106, %v3121, 0
    %v3133 = vsel %vm106, %v3122, 0
    %3135 = vmatprep.subr.bf16.mxu0 0
    %3136 = vmatpush1.bf16.msra.mxu0 %v855
    %3137 = vmatprep.subr.bf16.mxu0 0
    %3138 = vmatpush1.bf16.msra.mxu0 0
    %3139 = vmatprep.subr.bf16.mxu0 0
    %3140 = vmatpush1.bf16.msra.mxu0 0
    %3141 = vmatprep.subr.bf16.mxu0 0
    %3142 = vmatpush1.bf16.msra.mxu0 0
    %3143 = vmatprep.subr.bf16.mxu0 0
    %3144 = vmatpush1.bf16.msra.mxu0 0
    %3145 = vmatprep.subr.bf16.mxu0 0
    %3146 = vmatpush1.bf16.msra.mxu0 0
    %3147 = vmatprep.subr.bf16.mxu0 0
    %3148 = vmatpush1.bf16.msra.mxu0 0
    %3149 = vmatprep.subr.bf16.mxu0 0
    %3150 = vmatpush1.bf16.msra.mxu0 0
    %3151 = vmatprep.subr.bf16.mxu0 0
    %3152 = vmatpush1.bf16.msra.mxu0 0
    %3153 = vmatprep.subr.bf16.mxu0 0
    %3154 = vmatpush1.bf16.msra.mxu0 0
    %3155 = vmatprep.subr.bf16.mxu0 0
    %3156 = vmatpush1.bf16.msra.mxu0 0
    %3157 = vmatprep.subr.bf16.mxu0 0
    %3158 = vmatpush1.bf16.msra.mxu0 0
    %3159 = vmatprep.subr.bf16.mxu0 0
    %3160 = vmatpush1.bf16.msra.mxu0 0
    %3161 = vmatprep.subr.bf16.mxu0 0
    %3162 = vmatpush1.bf16.msra.mxu0 0
    %3163 = vmatprep.subr.bf16.mxu0 0
    %3164 = vmatpush1.bf16.msra.mxu0 0
    %3165 = vmatprep.subr.bf16.mxu0 0
    %3166 = vmatpush1.bf16.msra.mxu0 0
    %3167 = vmatprep.mubr.bf16.mxu0 0
    %3168 = vmatmul.mubr.bf16.gmra.mrb[0].mxu0 %v3124
    %v3169 = vpop.f32.mrb[0].mxu0
    %v3170 = vadd.f32 0.0, %v3169
    %v3171 = vpop.f32.mrb[0].mxu0
    %v3172 = vpop.f32.mrb[0].mxu0
    %v3173 = vadd.f32 0.0, %v3172
    %v3174 = vpop.f32.mrb[0].mxu0
    %3175 = vmatprep.mubr.bf16.mxu0 0
    %3176 = vmatmul.mubr.bf16.gmra.mrb[0].mxu0 %v3127
    %v3177 = vpop.f32.mrb[0].mxu0
    %v3178 = vadd.f32 0.0, %v3177
    %v3179 = vpop.f32.mrb[0].mxu0
    %v3180 = vpop.f32.mrb[0].mxu0
    %v3181 = vadd.f32 0.0, %v3180
    %v3182 = vpop.f32.mrb[0].mxu0
    %3183 = vmatprep.mubr.bf16.mxu0 0
    %3184 = vmatmul.mubr.bf16.gmra.mrb[0].mxu0 %v3130
    %v3185 = vpop.f32.mrb[0].mxu0
    %v3186 = vadd.f32 0.0, %v3185
    %v3187 = vpop.f32.mrb[0].mxu0
    %v3188 = vpop.f32.mrb[0].mxu0
    %v3189 = vadd.f32 0.0, %v3188
    %v3190 = vpop.f32.mrb[0].mxu0
    %3191 = vmatprep.mubr.bf16.mxu0 0
    %3192 = vmatmul.mubr.bf16.gmra.mrb[0].mxu0 %v3133
    %v3193 = vpop.f32.mrb[0].mxu0
    %v3194 = vadd.f32 0.0, %v3193
    %v3195 = vpop.f32.mrb[0].mxu0
    %v3196 = vpop.f32.mrb[0].mxu0
    %v3197 = vadd.f32 0.0, %v3196
    %v3198 = vpop.f32.mrb[0].mxu0
    %3199 = vdwg.mxu0
    %v3200 = vadd.f32 %v3075, %v3170
    %v3201 = vadd.f32 %v3076, %v3173
    %v3202 = vadd.f32 %v3077, %v3178
    %v3203 = vadd.f32 %v3078, %v3181
    %v3204 = vadd.f32 %v3079, %v3186
    %v3205 = vadd.f32 %v3080, %v3189
    %v3206 = vadd.f32 %v3081, %v3194
    %v3207 = vadd.f32 %v3082, %v3197
    %v3209 = vunpack.c.l.b16 %v3101
    %v3210 = vpack.c.b16 %v3113, %v3112
    %v3211 = vpack.c.b16 %v3115, %v3114
    %v3212 = vpack.c.b16 %v3117, %v3116
    %v3213 = vpack.c.b16 %v3209, %v3118
    %v3215 = vsel %vm106, %v3210, 0
    %v3218 = vsel %vm106, %v3211, 0
    %v3221 = vsel %vm106, %v3212, 0
    %v3224 = vsel %vm106, %v3213, 0
    %3226 = vmatprep.subr.bf16.mxu0 0
    %3227 = vmatpush1.bf16.msra.mxu0 %v952
    %3228 = vmatprep.subr.bf16.mxu0 0
    %3229 = vmatpush1.bf16.msra.mxu0 0
    %3230 = vmatprep.subr.bf16.mxu0 0
    %3231 = vmatpush1.bf16.msra.mxu0 0
    %3232 = vmatprep.subr.bf16.mxu0 0
    %3233 = vmatpush1.bf16.msra.mxu0 0
    %3234 = vmatprep.subr.bf16.mxu0 0
    %3235 = vmatpush1.bf16.msra.mxu0 0
    %3236 = vmatprep.subr.bf16.mxu0 0
    %3237 = vmatpush1.bf16.msra.mxu0 0
    %3238 = vmatprep.subr.bf16.mxu0 0
    %3239 = vmatpush1.bf16.msra.mxu0 0
    %3240 = vmatprep.subr.bf16.mxu0 0
    %3241 = vmatpush1.bf16.msra.mxu0 0
    %3242 = vmatprep.subr.bf16.mxu0 0
    %3243 = vmatpush1.bf16.msra.mxu0 0
    %3244 = vmatprep.subr.bf16.mxu0 0
    %3245 = vmatpush1.bf16.msra.mxu0 0
    %3246 = vmatprep.subr.bf16.mxu0 0
    %3247 = vmatpush1.bf16.msra.mxu0 0
    %3248 = vmatprep.subr.bf16.mxu0 0
    %3249 = vmatpush1.bf16.msra.mxu0 0
    %3250 = vmatprep.subr.bf16.mxu0 0
    %3251 = vmatpush1.bf16.msra.mxu0 0
    %3252 = vmatprep.subr.bf16.mxu0 0
    %3253 = vmatpush1.bf16.msra.mxu0 0
    %3254 = vmatprep.subr.bf16.mxu0 0
    %3255 = vmatpush1.bf16.msra.mxu0 0
    %3256 = vmatprep.subr.bf16.mxu0 0
    %3257 = vmatpush1.bf16.msra.mxu0 0
    %3258 = vmatprep.mubr.bf16.mxu0 0
    %3259 = vmatmul.mubr.bf16.gmra.mrb[0].mxu0 %v3215
    %v3260 = vpop.f32.mrb[0].mxu0
    %v3261 = vadd.f32 0.0, %v3260
    %v3262 = vpop.f32.mrb[0].mxu0
    %v3263 = vpop.f32.mrb[0].mxu0
    %v3264 = vadd.f32 0.0, %v3263
    %v3265 = vpop.f32.mrb[0].mxu0
    %3266 = vmatprep.mubr.bf16.mxu0 0
    %3267 = vmatmul.mubr.bf16.gmra.mrb[0].mxu0 %v3218
    %v3268 = vpop.f32.mrb[0].mxu0
    %v3269 = vadd.f32 0.0, %v3268
    %v3270 = vpop.f32.mrb[0].mxu0
    %v3271 = vpop.f32.mrb[0].mxu0
    %v3272 = vadd.f32 0.0, %v3271
    %v3273 = vpop.f32.mrb[0].mxu0
    %3274 = vmatprep.mubr.bf16.mxu0 0
    %3275 = vmatmul.mubr.bf16.gmra.mrb[0].mxu0 %v3221
    %v3276 = vpop.f32.mrb[0].mxu0
    %v3277 = vadd.f32 0.0, %v3276
    %v3278 = vpop.f32.mrb[0].mxu0
    %v3279 = vpop.f32.mrb[0].mxu0
    %v3280 = vadd.f32 0.0, %v3279
    %v3281 = vpop.f32.mrb[0].mxu0
    %3282 = vmatprep.mubr.bf16.mxu0 0
    %3283 = vmatmul.mubr.bf16.gmra.mrb[0].mxu0 %v3224
    %v3284 = vpop.f32.mrb[0].mxu0
    %v3285 = vadd.f32 0.0, %v3284
    %v3286 = vpop.f32.mrb[0].mxu0
    %v3287 = vpop.f32.mrb[0].mxu0
    %v3288 = vadd.f32 0.0, %v3287
    %v3289 = vpop.f32.mrb[0].mxu0
    %3290 = vdwg.mxu0
    %v3291 = vadd.f32 %v3200, %v3261
    %v3292 = vadd.f32 %v3201, %v3264
    %v3293 = vadd.f32 %v3202, %v3269
    %v3294 = vadd.f32 %v3203, %v3272
    %v3295 = vadd.f32 %v3204, %v3277
    %v3296 = vadd.f32 %v3205, %v3280
    %v3297 = vadd.f32 %v3206, %v3285
    %v3298 = vadd.f32 %v3207, %v3288
    %v3300 = vunpack.c.l.b16 %v3102
    %v3301 = vpack.c.b16 %v3300, %v3209
    %v3303 = vsel %vm106, %v3301, 0
    %3305 = vmatprep.subr.bf16.mxu0 0
    %3306 = vmatpush1.bf16.msra.mxu0 %v1046
    %3307 = vmatprep.subr.bf16.mxu0 0
    %3308 = vmatpush1.bf16.msra.mxu0 0
    %3309 = vmatprep.subr.bf16.mxu0 0
    %3310 = vmatpush1.bf16.msra.mxu0 0
    %3311 = vmatprep.subr.bf16.mxu0 0
    %3312 = vmatpush1.bf16.msra.mxu0 0
    %3313 = vmatprep.subr.bf16.mxu0 0
    %3314 = vmatpush1.bf16.msra.mxu0 0
    %3315 = vmatprep.subr.bf16.mxu0 0
    %3316 = vmatpush1.bf16.msra.mxu0 0
    %3317 = vmatprep.subr.bf16.mxu0 0
    %3318 = vmatpush1.bf16.msra.mxu0 0
    %3319 = vmatprep.subr.bf16.mxu0 0
    %3320 = vmatpush1.bf16.msra.mxu0 0
    %3321 = vmatprep.subr.bf16.mxu0 0
    %3322 = vmatpush1.bf16.msra.mxu0 0
    %3323 = vmatprep.subr.bf16.mxu0 0
    %3324 = vmatpush1.bf16.msra.mxu0 0
    %3325 = vmatprep.subr.bf16.mxu0 0
    %3326 = vmatpush1.bf16.msra.mxu0 0
    %3327 = vmatprep.subr.bf16.mxu0 0
    %3328 = vmatpush1.bf16.msra.mxu0 0
    %3329 = vmatprep.subr.bf16.mxu0 0
    %3330 = vmatpush1.bf16.msra.mxu0 0
    %3331 = vmatprep.subr.bf16.mxu0 0
    %3332 = vmatpush1.bf16.msra.mxu0 0
    %3333 = vmatprep.subr.bf16.mxu0 0
    %3334 = vmatpush1.bf16.msra.mxu0 0
    %3335 = vmatprep.subr.bf16.mxu0 0
    %3336 = vmatpush1.bf16.msra.mxu0 0
    %3337 = vmatprep.mubr.bf16.mxu0 0
    %3338 = vmatmul.mubr.bf16.gmra.mrb[0].mxu0 %v3127
    %v3339 = vpop.f32.mrb[0].mxu0
    %v3340 = vadd.f32 0.0, %v3339
    %v3341 = vpop.f32.mrb[0].mxu0
    %v3342 = vpop.f32.mrb[0].mxu0
    %v3343 = vadd.f32 0.0, %v3342
    %v3344 = vpop.f32.mrb[0].mxu0
    %3345 = vmatprep.mubr.bf16.mxu0 0
    %3346 = vmatmul.mubr.bf16.gmra.mrb[0].mxu0 %v3130
    %v3347 = vpop.f32.mrb[0].mxu0
    %v3348 = vadd.f32 0.0, %v3347
    %v3349 = vpop.f32.mrb[0].mxu0
    %v3350 = vpop.f32.mrb[0].mxu0
    %v3351 = vadd.f32 0.0, %v3350
    %v3352 = vpop.f32.mrb[0].mxu0
    %3353 = vmatprep.mubr.bf16.mxu0 0
    %3354 = vmatmul.mubr.bf16.gmra.mrb[0].mxu0 %v3133
    %v3355 = vpop.f32.mrb[0].mxu0
    %v3356 = vadd.f32 0.0, %v3355
    %v3357 = vpop.f32.mrb[0].mxu0
    %v3358 = vpop.f32.mrb[0].mxu0
    %v3359 = vadd.f32 0.0, %v3358
    %v3360 = vpop.f32.mrb[0].mxu0
    %3361 = vmatprep.mubr.bf16.mxu0 0
    %3362 = vmatmul.mubr.bf16.gmra.mrb[0].mxu0 %v3303
    %v3363 = vpop.f32.mrb[0].mxu0
    %v3364 = vadd.f32 0.0, %v3363
    %v3365 = vpop.f32.mrb[0].mxu0
    %v3366 = vpop.f32.mrb[0].mxu0
    %v3367 = vadd.f32 0.0, %v3366
    %v3368 = vpop.f32.mrb[0].mxu0
    %3369 = vdwg.mxu0
    %v3370 = vadd.f32 %v3291, %v3340
    %v3371 = vadd.f32 %v3292, %v3343
    %v3372 = vadd.f32 %v3293, %v3348
    %v3373 = vadd.f32 %v3294, %v3351
    %v3374 = vadd.f32 %v3295, %v3356
    %v3375 = vadd.f32 %v3296, %v3359
    %v3376 = vadd.f32 %v3297, %v3364
    %v3377 = vadd.f32 %v3298, %v3367
    %v3378 = vsel %vm134, %v3370, 0.0
    %v3379 = vsel %vm134, %v3371, 0.0
    %v3380 = vadd.f32 %v3378, %v3379
    %v3381 = vsel %vm134, %v3372, 0.0
    %v3382 = vadd.f32 %v3380, %v3381
    %v3383 = vsel %vm134, %v3373, 0.0
    %v3384 = vadd.f32 %v3382, %v3383
    %v3385 = vsel %vm134, %v3374, 0.0
    %v3386 = vadd.f32 %v3384, %v3385
    %v3387 = vsel %vm134, %v3375, 0.0
    %v3388 = vadd.f32 %v3386, %v3387
    %v3389 = vsel %vm134, %v3376, 0.0
    %v3390 = vadd.f32 %v3388, %v3389
    %v3391 = vsel %vm134, %v3377, 0.0
    %v3392 = vadd.f32 %v3390, %v3391
    %v3393 = vrot.slane %v3392, 4
    %v3394 = vadd.f32 %v3392, %v3393
    %v3395 = vrot.slane %v3394, 2
    %v3396 = vadd.f32 %v3394, %v3395
    %v3397 = vrot.slane %v3396, 1
    %v3398 = vadd.f32 %v3396, %v3397
    %v3399 = vmul.f32 %v3398, 0.015625
    %v3400 = vsub.f32 %v3370, %v3399
    %v3401 = vsub.f32 %v3371, %v3399
    %v3402 = vsub.f32 %v3372, %v3399
    %v3403 = vsub.f32 %v3373, %v3399
    %v3404 = vsub.f32 %v3374, %v3399
    %v3405 = vsub.f32 %v3375, %v3399
    %v3406 = vsub.f32 %v3376, %v3399
    %v3407 = vsub.f32 %v3377, %v3399
    %v3408 = vmul.f32 %v3400, %v3400
    %v3409 = vmul.f32 %v3401, %v3401
    %v3410 = vmul.f32 %v3402, %v3402
    %v3411 = vmul.f32 %v3403, %v3403
    %v3412 = vmul.f32 %v3404, %v3404
    %v3413 = vmul.f32 %v3405, %v3405
    %v3414 = vmul.f32 %v3406, %v3406
    %v3415 = vmul.f32 %v3407, %v3407
    %v3416 = vsel %vm134, %v3408, 0.0
    %v3417 = vsel %vm134, %v3409, 0.0
    %v3418 = vadd.f32 %v3416, %v3417
    %v3419 = vsel %vm134, %v3410, 0.0
    %v3420 = vadd.f32 %v3418, %v3419
    %v3421 = vsel %vm134, %v3411, 0.0
    %v3422 = vadd.f32 %v3420, %v3421
    %v3423 = vsel %vm134, %v3412, 0.0
    %v3424 = vadd.f32 %v3422, %v3423
    %v3425 = vsel %vm134, %v3413, 0.0
    %v3426 = vadd.f32 %v3424, %v3425
    %v3427 = vsel %vm134, %v3414, 0.0
    %v3428 = vadd.f32 %v3426, %v3427
    %v3429 = vsel %vm134, %v3415, 0.0
    %v3430 = vadd.f32 %v3428, %v3429
    %v3431 = vrot.slane %v3430, 4
    %v3432 = vadd.f32 %v3430, %v3431
    %v3433 = vrot.slane %v3432, 2
    %v3434 = vadd.f32 %v3432, %v3433
    %v3435 = vrot.slane %v3434, 1
    %v3436 = vadd.f32 %v3434, %v3435
    %v3437 = vmul.f32 %v3436, 0.015625
    %v3438 = vadd.f32 %v3437, 1e-05
    %v3439 = vrsqrt.pop %v3438
    %v3440 = vmul.f32 %v3400, %v3439
    %v3441 = vmul.f32 %v3401, %v3439
    %v3442 = vmul.f32 %v3402, %v3439
    %v3443 = vmul.f32 %v3403, %v3439
    %v3444 = vmul.f32 %v3404, %v3439
    %v3445 = vmul.f32 %v3405, %v3439
    %v3446 = vmul.f32 %v3406, %v3439
    %v3447 = vmul.f32 %v3407, %v3439
    %v3448 = vmul.f32 %v3440, %v1198
    %v3449 = vmul.f32 %v3441, %v1198
    %v3450 = vmul.f32 %v3442, %v1198
    %v3451 = vmul.f32 %v3443, %v1198
    %v3452 = vmul.f32 %v3444, %v1198
    %v3453 = vmul.f32 %v3445, %v1198
    %v3454 = vmul.f32 %v3446, %v1198
    %v3455 = vmul.f32 %v3447, %v1198
    %v3456 = vadd.f32 %v3448, %v1212
    %v3457 = vadd.f32 %v3449, %v1212
    %v3458 = vadd.f32 %v3450, %v1212
    %v3459 = vadd.f32 %v3451, %v1212
    %v3460 = vadd.f32 %v3452, %v1212
    %v3461 = vadd.f32 %v3453, %v1212
    %v3462 = vadd.f32 %v3454, %v1212
    %v3463 = vadd.f32 %v3455, %v1212
    %v3464 = vmax.f32 %v3456, 0.0
    %v3465 = vmax.f32 %v3457, 0.0
    %v3466 = vmax.f32 %v3458, 0.0
    %v3467 = vmax.f32 %v3459, 0.0
    %v3468 = vmax.f32 %v3460, 0.0
    %v3469 = vmax.f32 %v3461, 0.0
    %v3470 = vmax.f32 %v3462, 0.0
    %v3471 = vmax.f32 %v3463, 0.0
    %s3472 = scalar_lea.vmem %s1, 1
    %v3473 = vld [vmem:[%s3472] sm:$0x1]
    %v3475 = vlaneseq
    %v3476 = vshrl.u32 %v3475, 7
    %v3477 = vsub.s32 0, %v3476
    %v3478 = vrot.slane %v3473, %v3477
    %v3480 = vadd.f32 %v3464, %v3478
    %v3481 = vadd.f32 %v3465, %v3478
    %v3482 = vadd.f32 %v3466, %v3478
    %v3483 = vadd.f32 %v3467, %v3478
    %v3484 = vadd.f32 %v3468, %v3478
    %v3485 = vadd.f32 %v3469, %v3478
    %v3486 = vadd.f32 %v3470, %v3478
    %v3487 = vadd.f32 %v3471, %v3478
    %3488 = vst.msk [vmem:[%s1245 + $0x1] sm:$0xff] %vm134, %v3480
    %3489 = vst.msk [vmem:[%s1245 + $0x11] sm:$0xff] %vm134, %v3481
    %3490 = vst.msk [vmem:[%s1245 + $0x21] sm:$0xff] %vm134, %v3482
    %3491 = vst.msk [vmem:[%s1245 + $0x31] sm:$0xff] %vm134, %v3483
    %3492 = vst.msk [vmem:[%s1245 + $0x41] sm:$0xff] %vm134, %v3484
    %3493 = vst.msk [vmem:[%s1245 + $0x51] sm:$0xff] %vm134, %v3485
    %3494 = vst.msk [vmem:[%s1245 + $0x61] sm:$0xff] %vm134, %v3486
    %3495 = vst.msk [vmem:[%s1245 + $0x71] sm:$0xff] %vm134, %v3487
    %v3496 = vld [vmem:[#allocation3] sm:$0xff]
    %v3497 = vld [vmem:[#allocation3 + $0x10] sm:$0xff]
    %v3498 = vld [vmem:[#allocation3 + $0x20] sm:$0xff]
    %v3499 = vld [vmem:[#allocation3 + $0x30] sm:$0xff]
    %v3500 = vld [vmem:[#allocation3 + $0x40] sm:$0xff]
    %v3501 = vld [vmem:[#allocation3 + $0x50] sm:$0xff]
    %v3502 = vld [vmem:[#allocation3 + $0x60] sm:$0xff]
    %v3503 = vld [vmem:[#allocation3 + $0x70] sm:$0xff]
    %v3504 = vld [vmem:[#allocation3 + $0x80] sm:$0xff]
    %v3505 = vld [vmem:[#allocation3 + $0x90] sm:$0xff]
    %v3506 = vpack.c.bf16 %v3496, %v3496
    %v3507 = vpack.c.bf16 %v3497, %v3497
    %v3508 = vpack.c.bf16 %v3498, %v3498
    %v3509 = vpack.c.bf16 %v3499, %v3499
    %v3510 = vpack.c.bf16 %v3500, %v3500
    %v3511 = vpack.c.bf16 %v3501, %v3501
    %v3512 = vpack.c.bf16 %v3502, %v3502
    %v3513 = vpack.c.bf16 %v3503, %v3503
    %v3514 = vpack.c.bf16 %v3504, %v3504
    %v3515 = vpack.c.bf16 %v3505, %v3505
    %v3524 = vunpack.c.l.b16 %v3506
    %v3525 = vunpack.c.l.b16 %v3507
    %v3526 = vunpack.c.l.b16 %v3508
    %v3527 = vunpack.c.l.b16 %v3509
    %v3528 = vunpack.c.l.b16 %v3510
    %v3529 = vunpack.c.l.b16 %v3511
    %v3530 = vunpack.c.l.b16 %v3512
    %v3531 = vunpack.c.l.b16 %v3513
    %v3532 = vpack.c.b16 %v3525, %v3524
    %v3533 = vpack.c.b16 %v3527, %v3526
    %v3534 = vpack.c.b16 %v3529, %v3528
    %v3535 = vpack.c.b16 %v3531, %v3530
    %v3537 = vsel %vm134, %v3532, 0
    %v3540 = vsel %vm134, %v3533, 0
    %v3543 = vsel %vm134, %v3534, 0
    %v3546 = vsel %vm134, %v3535, 0
    %3548 = vmatprep.subr.bf16.mxu0 0
    %3549 = vmatpush1.bf16.msra.mxu0 %v1308
    %3550 = vmatprep.subr.bf16.mxu0 0
    %3551 = vmatpush1.bf16.msra.mxu0 %v1309
    %3552 = vmatprep.subr.bf16.mxu0 0
    %3553 = vmatpush1.bf16.msra.mxu0 0
    %3554 = vmatprep.subr.bf16.mxu0 0
    %3555 = vmatpush1.bf16.msra.mxu0 0
    %3556 = vmatprep.subr.bf16.mxu0 0
    %3557 = vmatpush1.bf16.msra.mxu0 0
    %3558 = vmatprep.subr.bf16.mxu0 0
    %3559 = vmatpush1.bf16.msra.mxu0 0
    %3560 = vmatprep.subr.bf16.mxu0 0
    %3561 = vmatpush1.bf16.msra.mxu0 0
    %3562 = vmatprep.subr.bf16.mxu0 0
    %3563 = vmatpush1.bf16.msra.mxu0 0
    %3564 = vmatprep.subr.bf16.mxu0 0
    %3565 = vmatpush1.bf16.msra.mxu0 0
    %3566 = vmatprep.subr.bf16.mxu0 0
    %3567 = vmatpush1.bf16.msra.mxu0 0
    %3568 = vmatprep.subr.bf16.mxu0 0
    %3569 = vmatpush1.bf16.msra.mxu0 0
    %3570 = vmatprep.subr.bf16.mxu0 0
    %3571 = vmatpush1.bf16.msra.mxu0 0
    %3572 = vmatprep.subr.bf16.mxu0 0
    %3573 = vmatpush1.bf16.msra.mxu0 0
    %3574 = vmatprep.subr.bf16.mxu0 0
    %3575 = vmatpush1.bf16.msra.mxu0 0
    %3576 = vmatprep.subr.bf16.mxu0 0
    %3577 = vmatpush1.bf16.msra.mxu0 0
    %3578 = vmatprep.subr.bf16.mxu0 0
    %3579 = vmatpush1.bf16.msra.mxu0 0
    %3580 = vmatprep.mubr.bf16.mxu0 0
    %3581 = vmatmul.mubr.bf16.gmra.mrb[0].mxu0 %v3537
    %v3582 = vpop.f32.mrb[0].mxu0
    %v3583 = vadd.f32 %v1278, %v3582
    %v3584 = vpop.f32.mrb[0].mxu0
    %v3585 = vpop.f32.mrb[0].mxu0
    %v3586 = vadd.f32 %v1278, %v3585
    %v3587 = vpop.f32.mrb[0].mxu0
    %3588 = vmatprep.mubr.bf16.mxu0 0
    %3589 = vmatmul.mubr.bf16.gmra.mrb[0].mxu0 %v3540
    %v3590 = vpop.f32.mrb[0].mxu0
    %v3591 = vadd.f32 %v1278, %v3590
    %v3592 = vpop.f32.mrb[0].mxu0
    %v3593 = vpop.f32.mrb[0].mxu0
    %v3594 = vadd.f32 %v1278, %v3593
    %v3595 = vpop.f32.mrb[0].mxu0
    %3596 = vmatprep.mubr.bf16.mxu0 0
    %3597 = vmatmul.mubr.bf16.gmra.mrb[0].mxu0 %v3543
    %v3598 = vpop.f32.mrb[0].mxu0
    %v3599 = vadd.f32 %v1278, %v3598
    %v3600 = vpop.f32.mrb[0].mxu0
    %v3601 = vpop.f32.mrb[0].mxu0
    %v3602 = vadd.f32 %v1278, %v3601
    %v3603 = vpop.f32.mrb[0].mxu0
    %3604 = vmatprep.mubr.bf16.mxu0 0
    %3605 = vmatmul.mubr.bf16.gmra.mrb[0].mxu0 %v3546
    %v3606 = vpop.f32.mrb[0].mxu0
    %v3607 = vadd.f32 %v1278, %v3606
    %v3608 = vpop.f32.mrb[0].mxu0
    %v3609 = vpop.f32.mrb[0].mxu0
    %v3610 = vadd.f32 %v1278, %v3609
    %v3611 = vpop.f32.mrb[0].mxu0
    %3612 = vdwg.mxu0
    %v3614 = vunpack.c.l.b16 %v3514
    %v3615 = vpack.c.b16 %v3526, %v3525
    %v3616 = vpack.c.b16 %v3528, %v3527
    %v3617 = vpack.c.b16 %v3530, %v3529
    %v3618 = vpack.c.b16 %v3614, %v3531
    %v3620 = vsel %vm134, %v3615, 0
    %v3623 = vsel %vm134, %v3616, 0
    %v3626 = vsel %vm134, %v3617, 0
    %v3629 = vsel %vm134, %v3618, 0
    %3631 = vmatprep.subr.bf16.mxu0 0
    %3632 = vmatpush1.bf16.msra.mxu0 %v1403
    %3633 = vmatprep.subr.bf16.mxu0 0
    %3634 = vmatpush1.bf16.msra.mxu0 %v1404
    %3635 = vmatprep.subr.bf16.mxu0 0
    %3636 = vmatpush1.bf16.msra.mxu0 0
    %3637 = vmatprep.subr.bf16.mxu0 0
    %3638 = vmatpush1.bf16.msra.mxu0 0
    %3639 = vmatprep.subr.bf16.mxu0 0
    %3640 = vmatpush1.bf16.msra.mxu0 0
    %3641 = vmatprep.subr.bf16.mxu0 0
    %3642 = vmatpush1.bf16.msra.mxu0 0
    %3643 = vmatprep.subr.bf16.mxu0 0
    %3644 = vmatpush1.bf16.msra.mxu0 0
    %3645 = vmatprep.subr.bf16.mxu0 0
    %3646 = vmatpush1.bf16.msra.mxu0 0
    %3647 = vmatprep.subr.bf16.mxu0 0
    %3648 = vmatpush1.bf16.msra.mxu0 0
    %3649 = vmatprep.subr.bf16.mxu0 0
    %3650 = vmatpush1.bf16.msra.mxu0 0
    %3651 = vmatprep.subr.bf16.mxu0 0
    %3652 = vmatpush1.bf16.msra.mxu0 0
    %3653 = vmatprep.subr.bf16.mxu0 0
    %3654 = vmatpush1.bf16.msra.mxu0 0
    %3655 = vmatprep.subr.bf16.mxu0 0
    %3656 = vmatpush1.bf16.msra.mxu0 0
    %3657 = vmatprep.subr.bf16.mxu0 0
    %3658 = vmatpush1.bf16.msra.mxu0 0
    %3659 = vmatprep.subr.bf16.mxu0 0
    %3660 = vmatpush1.bf16.msra.mxu0 0
    %3661 = vmatprep.subr.bf16.mxu0 0
    %3662 = vmatpush1.bf16.msra.mxu0 0
    %3663 = vmatprep.mubr.bf16.mxu0 0
    %3664 = vmatmul.mubr.bf16.gmra.mrb[0].mxu0 %v3620
    %v3665 = vpop.f32.mrb[0].mxu0
    %v3666 = vadd.f32 0.0, %v3665
    %v3667 = vpop.f32.mrb[0].mxu0
    %v3668 = vpop.f32.mrb[0].mxu0
    %v3669 = vadd.f32 0.0, %v3668
    %v3670 = vpop.f32.mrb[0].mxu0
    %3671 = vmatprep.mubr.bf16.mxu0 0
    %3672 = vmatmul.mubr.bf16.gmra.mrb[0].mxu0 %v3623
    %v3673 = vpop.f32.mrb[0].mxu0
    %v3674 = vadd.f32 0.0, %v3673
    %v3675 = vpop.f32.mrb[0].mxu0
    %v3676 = vpop.f32.mrb[0].mxu0
    %v3677 = vadd.f32 0.0, %v3676
    %v3678 = vpop.f32.mrb[0].mxu0
    %3679 = vmatprep.mubr.bf16.mxu0 0
    %3680 = vmatmul.mubr.bf16.gmra.mrb[0].mxu0 %v3626
    %v3681 = vpop.f32.mrb[0].mxu0
    %v3682 = vadd.f32 0.0, %v3681
    %v3683 = vpop.f32.mrb[0].mxu0
    %v3684 = vpop.f32.mrb[0].mxu0
    %v3685 = vadd.f32 0.0, %v3684
    %v3686 = vpop.f32.mrb[0].mxu0
    %3687 = vmatprep.mubr.bf16.mxu0 0
    %3688 = vmatmul.mubr.bf16.gmra.mrb[0].mxu0 %v3629
    %v3689 = vpop.f32.mrb[0].mxu0
    %v3690 = vadd.f32 0.0, %v3689
    %v3691 = vpop.f32.mrb[0].mxu0
    %v3692 = vpop.f32.mrb[0].mxu0
    %v3693 = vadd.f32 0.0, %v3692
    %v3694 = vpop.f32.mrb[0].mxu0
    %3695 = vdwg.mxu0
    %v3696 = vadd.f32 %v3583, %v3666
    %v3697 = vadd.f32 %v3586, %v3669
    %v3698 = vadd.f32 %v3591, %v3674
    %v3699 = vadd.f32 %v3594, %v3677
    %v3700 = vadd.f32 %v3599, %v3682
    %v3701 = vadd.f32 %v3602, %v3685
    %v3702 = vadd.f32 %v3607, %v3690
    %v3703 = vadd.f32 %v3610, %v3693
    %v3705 = vunpack.c.l.b16 %v3515
    %v3706 = vpack.c.b16 %v3705, %v3614
    %v3708 = vsel %vm134, %v3706, 0
    %3710 = vmatprep.subr.bf16.mxu0 0
    %3711 = vmatpush1.bf16.msra.mxu0 %v1503
    %3712 = vmatprep.subr.bf16.mxu0 0
    %3713 = vmatpush1.bf16.msra.mxu0 %v1504
    %3714 = vmatprep.subr.bf16.mxu0 0
    %3715 = vmatpush1.bf16.msra.mxu0 0
    %3716 = vmatprep.subr.bf16.mxu0 0
    %3717 = vmatpush1.bf16.msra.mxu0 0
    %3718 = vmatprep.subr.bf16.mxu0 0
    %3719 = vmatpush1.bf16.msra.mxu0 0
    %3720 = vmatprep.subr.bf16.mxu0 0
    %3721 = vmatpush1.bf16.msra.mxu0 0
    %3722 = vmatprep.subr.bf16.mxu0 0
    %3723 = vmatpush1.bf16.msra.mxu0 0
    %3724 = vmatprep.subr.bf16.mxu0 0
    %3725 = vmatpush1.bf16.msra.mxu0 0
    %3726 = vmatprep.subr.bf16.mxu0 0
    %3727 = vmatpush1.bf16.msra.mxu0 0
    %3728 = vmatprep.subr.bf16.mxu0 0
    %3729 = vmatpush1.bf16.msra.mxu0 0
    %3730 = vmatprep.subr.bf16.mxu0 0
    %3731 = vmatpush1.bf16.msra.mxu0 0
    %3732 = vmatprep.subr.bf16.mxu0 0
    %3733 = vmatpush1.bf16.msra.mxu0 0
    %3734 = vmatprep.subr.bf16.mxu0 0
    %3735 = vmatpush1.bf16.msra.mxu0 0
    %3736 = vmatprep.subr.bf16.mxu0 0
    %3737 = vmatpush1.bf16.msra.mxu0 0
    %3738 = vmatprep.subr.bf16.mxu0 0
    %3739 = vmatpush1.bf16.msra.mxu0 0
    %3740 = vmatprep.subr.bf16.mxu0 0
    %3741 = vmatpush1.bf16.msra.mxu0 0
    %3742 = vmatprep.mubr.bf16.mxu0 0
    %3743 = vmatmul.mubr.bf16.gmra.mrb[0].mxu0 %v3540
    %v3744 = vpop.f32.mrb[0].mxu0
    %v3745 = vadd.f32 0.0, %v3744
    %v3746 = vpop.f32.mrb[0].mxu0
    %v3747 = vpop.f32.mrb[0].mxu0
    %v3748 = vadd.f32 0.0, %v3747
    %v3749 = vpop.f32.mrb[0].mxu0
    %3750 = vmatprep.mubr.bf16.mxu0 0
    %3751 = vmatmul.mubr.bf16.gmra.mrb[0].mxu0 %v3543
    %v3752 = vpop.f32.mrb[0].mxu0
    %v3753 = vadd.f32 0.0, %v3752
    %v3754 = vpop.f32.mrb[0].mxu0
    %v3755 = vpop.f32.mrb[0].mxu0
    %v3756 = vadd.f32 0.0, %v3755
    %v3757 = vpop.f32.mrb[0].mxu0
    %3758 = vmatprep.mubr.bf16.mxu0 0
    %3759 = vmatmul.mubr.bf16.gmra.mrb[0].mxu0 %v3546
    %v3760 = vpop.f32.mrb[0].mxu0
    %v3761 = vadd.f32 0.0, %v3760
    %v3762 = vpop.f32.mrb[0].mxu0
    %v3763 = vpop.f32.mrb[0].mxu0
    %v3764 = vadd.f32 0.0, %v3763
    %v3765 = vpop.f32.mrb[0].mxu0
    %3766 = vmatprep.mubr.bf16.mxu0 0
    %3767 = vmatmul.mubr.bf16.gmra.mrb[0].mxu0 %v3708
    %v3768 = vpop.f32.mrb[0].mxu0
    %v3769 = vadd.f32 0.0, %v3768
    %v3770 = vpop.f32.mrb[0].mxu0
    %v3771 = vpop.f32.mrb[0].mxu0
    %v3772 = vadd.f32 0.0, %v3771
    %v3773 = vpop.f32.mrb[0].mxu0
    %3774 = vdwg.mxu0
    %v3775 = vadd.f32 %v3696, %v3745
    %v3776 = vadd.f32 %v3697, %v3748
    %v3777 = vadd.f32 %v3698, %v3753
    %v3778 = vadd.f32 %v3699, %v3756
    %v3779 = vadd.f32 %v3700, %v3761
    %v3780 = vadd.f32 %v3701, %v3764
    %v3781 = vadd.f32 %v3702, %v3769
    %v3782 = vadd.f32 %v3703, %v3772
    %v3783 = vld [vmem:[#allocation3 + $0x1] sm:$0xff]
    %v3784 = vld [vmem:[#allocation3 + $0x11] sm:$0xff]
    %v3785 = vld [vmem:[#allocation3 + $0x21] sm:$0xff]
    %v3786 = vld [vmem:[#allocation3 + $0x31] sm:$0xff]
    %v3787 = vld [vmem:[#allocation3 + $0x41] sm:$0xff]
    %v3788 = vld [vmem:[#allocation3 + $0x51] sm:$0xff]
    %v3789 = vld [vmem:[#allocation3 + $0x61] sm:$0xff]
    %v3790 = vld [vmem:[#allocation3 + $0x71] sm:$0xff]
    %v3791 = vld [vmem:[#allocation3 + $0x81] sm:$0xff]
    %v3792 = vld [vmem:[#allocation3 + $0x91] sm:$0xff]
    %v3793 = vpack.c.bf16 %v3783, %v3783
    %v3794 = vpack.c.bf16 %v3784, %v3784
    %v3795 = vpack.c.bf16 %v3785, %v3785
    %v3796 = vpack.c.bf16 %v3786, %v3786
    %v3797 = vpack.c.bf16 %v3787, %v3787
    %v3798 = vpack.c.bf16 %v3788, %v3788
    %v3799 = vpack.c.bf16 %v3789, %v3789
    %v3800 = vpack.c.bf16 %v3790, %v3790
    %v3801 = vpack.c.bf16 %v3791, %v3791
    %v3802 = vpack.c.bf16 %v3792, %v3792
    %v3811 = vunpack.c.l.b16 %v3793
    %v3812 = vunpack.c.l.b16 %v3794
    %v3813 = vunpack.c.l.b16 %v3795
    %v3814 = vunpack.c.l.b16 %v3796
    %v3815 = vunpack.c.l.b16 %v3797
    %v3816 = vunpack.c.l.b16 %v3798
    %v3817 = vunpack.c.l.b16 %v3799
    %v3818 = vunpack.c.l.b16 %v3800
    %v3819 = vpack.c.b16 %v3812, %v3811
    %v3820 = vpack.c.b16 %v3814, %v3813
    %v3821 = vpack.c.b16 %v3816, %v3815
    %v3822 = vpack.c.b16 %v3818, %v3817
    %v3824 = vsel %vm134, %v3819, 0
    %v3827 = vsel %vm134, %v3820, 0
    %v3830 = vsel %vm134, %v3821, 0
    %v3833 = vsel %vm134, %v3822, 0
    %3835 = vmatprep.subr.bf16.mxu0 0
    %3836 = vmatpush1.bf16.msra.mxu0 %v1631
    %3837 = vmatprep.subr.bf16.mxu0 0
    %3838 = vmatpush1.bf16.msra.mxu0 %v1632
    %3839 = vmatprep.subr.bf16.mxu0 0
    %3840 = vmatpush1.bf16.msra.mxu0 0
    %3841 = vmatprep.subr.bf16.mxu0 0
    %3842 = vmatpush1.bf16.msra.mxu0 0
    %3843 = vmatprep.subr.bf16.mxu0 0
    %3844 = vmatpush1.bf16.msra.mxu0 0
    %3845 = vmatprep.subr.bf16.mxu0 0
    %3846 = vmatpush1.bf16.msra.mxu0 0
    %3847 = vmatprep.subr.bf16.mxu0 0
    %3848 = vmatpush1.bf16.msra.mxu0 0
    %3849 = vmatprep.subr.bf16.mxu0 0
    %3850 = vmatpush1.bf16.msra.mxu0 0
    %3851 = vmatprep.subr.bf16.mxu0 0
    %3852 = vmatpush1.bf16.msra.mxu0 0
    %3853 = vmatprep.subr.bf16.mxu0 0
    %3854 = vmatpush1.bf16.msra.mxu0 0
    %3855 = vmatprep.subr.bf16.mxu0 0
    %3856 = vmatpush1.bf16.msra.mxu0 0
    %3857 = vmatprep.subr.bf16.mxu0 0
    %3858 = vmatpush1.bf16.msra.mxu0 0
    %3859 = vmatprep.subr.bf16.mxu0 0
    %3860 = vmatpush1.bf16.msra.mxu0 0
    %3861 = vmatprep.subr.bf16.mxu0 0
    %3862 = vmatpush1.bf16.msra.mxu0 0
    %3863 = vmatprep.subr.bf16.mxu0 0
    %3864 = vmatpush1.bf16.msra.mxu0 0
    %3865 = vmatprep.subr.bf16.mxu0 0
    %3866 = vmatpush1.bf16.msra.mxu0 0
    %3867 = vmatprep.mubr.bf16.mxu0 0
    %3868 = vmatmul.mubr.bf16.gmra.mrb[0].mxu0 %v3824
    %v3869 = vpop.f32.mrb[0].mxu0
    %v3870 = vadd.f32 0.0, %v3869
    %v3871 = vpop.f32.mrb[0].mxu0
    %v3872 = vpop.f32.mrb[0].mxu0
    %v3873 = vadd.f32 0.0, %v3872
    %v3874 = vpop.f32.mrb[0].mxu0
    %3875 = vmatprep.mubr.bf16.mxu0 0
    %3876 = vmatmul.mubr.bf16.gmra.mrb[0].mxu0 %v3827
    %v3877 = vpop.f32.mrb[0].mxu0
    %v3878 = vadd.f32 0.0, %v3877
    %v3879 = vpop.f32.mrb[0].mxu0
    %v3880 = vpop.f32.mrb[0].mxu0
    %v3881 = vadd.f32 0.0, %v3880
    %v3882 = vpop.f32.mrb[0].mxu0
    %3883 = vmatprep.mubr.bf16.mxu0 0
    %3884 = vmatmul.mubr.bf16.gmra.mrb[0].mxu0 %v3830
    %v3885 = vpop.f32.mrb[0].mxu0
    %v3886 = vadd.f32 0.0, %v3885
    %v3887 = vpop.f32.mrb[0].mxu0
    %v3888 = vpop.f32.mrb[0].mxu0
    %v3889 = vadd.f32 0.0, %v3888
    %v3890 = vpop.f32.mrb[0].mxu0
    %3891 = vmatprep.mubr.bf16.mxu0 0
    %3892 = vmatmul.mubr.bf16.gmra.mrb[0].mxu0 %v3833
    %v3893 = vpop.f32.mrb[0].mxu0
    %v3894 = vadd.f32 0.0, %v3893
    %v3895 = vpop.f32.mrb[0].mxu0
    %v3896 = vpop.f32.mrb[0].mxu0
    %v3897 = vadd.f32 0.0, %v3896
    %v3898 = vpop.f32.mrb[0].mxu0
    %3899 = vdwg.mxu0
    %v3900 = vadd.f32 %v3775, %v3870
    %v3901 = vadd.f32 %v3776, %v3873
    %v3902 = vadd.f32 %v3777, %v3878
    %v3903 = vadd.f32 %v3778, %v3881
    %v3904 = vadd.f32 %v3779, %v3886
    %v3905 = vadd.f32 %v3780, %v3889
    %v3906 = vadd.f32 %v3781, %v3894
    %v3907 = vadd.f32 %v3782, %v3897
    %v3909 = vunpack.c.l.b16 %v3801
    %v3910 = vpack.c.b16 %v3813, %v3812
    %v3911 = vpack.c.b16 %v3815, %v3814
    %v3912 = vpack.c.b16 %v3817, %v3816
    %v3913 = vpack.c.b16 %v3909, %v3818
    %v3915 = vsel %vm134, %v3910, 0
    %v3918 = vsel %vm134, %v3911, 0
    %v3921 = vsel %vm134, %v3912, 0
    %v3924 = vsel %vm134, %v3913, 0
    %3926 = vmatprep.subr.bf16.mxu0 0
    %3927 = vmatpush1.bf16.msra.mxu0 %v1734
    %3928 = vmatprep.subr.bf16.mxu0 0
    %3929 = vmatpush1.bf16.msra.mxu0 %v1735
    %3930 = vmatprep.subr.bf16.mxu0 0
    %3931 = vmatpush1.bf16.msra.mxu0 0
    %3932 = vmatprep.subr.bf16.mxu0 0
    %3933 = vmatpush1.bf16.msra.mxu0 0
    %3934 = vmatprep.subr.bf16.mxu0 0
    %3935 = vmatpush1.bf16.msra.mxu0 0
    %3936 = vmatprep.subr.bf16.mxu0 0
    %3937 = vmatpush1.bf16.msra.mxu0 0
    %3938 = vmatprep.subr.bf16.mxu0 0
    %3939 = vmatpush1.bf16.msra.mxu0 0
    %3940 = vmatprep.subr.bf16.mxu0 0
    %3941 = vmatpush1.bf16.msra.mxu0 0
    %3942 = vmatprep.subr.bf16.mxu0 0
    %3943 = vmatpush1.bf16.msra.mxu0 0
    %3944 = vmatprep.subr.bf16.mxu0 0
    %3945 = vmatpush1.bf16.msra.mxu0 0
    %3946 = vmatprep.subr.bf16.mxu0 0
    %3947 = vmatpush1.bf16.msra.mxu0 0
    %3948 = vmatprep.subr.bf16.mxu0 0
    %3949 = vmatpush1.bf16.msra.mxu0 0
    %3950 = vmatprep.subr.bf16.mxu0 0
    %3951 = vmatpush1.bf16.msra.mxu0 0
    %3952 = vmatprep.subr.bf16.mxu0 0
    %3953 = vmatpush1.bf16.msra.mxu0 0
    %3954 = vmatprep.subr.bf16.mxu0 0
    %3955 = vmatpush1.bf16.msra.mxu0 0
    %3956 = vmatprep.subr.bf16.mxu0 0
    %3957 = vmatpush1.bf16.msra.mxu0 0
    %3958 = vmatprep.mubr.bf16.mxu0 0
    %3959 = vmatmul.mubr.bf16.gmra.mrb[0].mxu0 %v3915
    %v3960 = vpop.f32.mrb[0].mxu0
    %v3961 = vadd.f32 0.0, %v3960
    %v3962 = vpop.f32.mrb[0].mxu0
    %v3963 = vpop.f32.mrb[0].mxu0
    %v3964 = vadd.f32 0.0, %v3963
    %v3965 = vpop.f32.mrb[0].mxu0
    %3966 = vmatprep.mubr.bf16.mxu0 0
    %3967 = vmatmul.mubr.bf16.gmra.mrb[0].mxu0 %v3918
    %v3968 = vpop.f32.mrb[0].mxu0
    %v3969 = vadd.f32 0.0, %v3968
    %v3970 = vpop.f32.mrb[0].mxu0
    %v3971 = vpop.f32.mrb[0].mxu0
    %v3972 = vadd.f32 0.0, %v3971
    %v3973 = vpop.f32.mrb[0].mxu0
    %3974 = vmatprep.mubr.bf16.mxu0 0
    %3975 = vmatmul.mubr.bf16.gmra.mrb[0].mxu0 %v3921
    %v3976 = vpop.f32.mrb[0].mxu0
    %v3977 = vadd.f32 0.0, %v3976
    %v3978 = vpop.f32.mrb[0].mxu0
    %v3979 = vpop.f32.mrb[0].mxu0
    %v3980 = vadd.f32 0.0, %v3979
    %v3981 = vpop.f32.mrb[0].mxu0
    %3982 = vmatprep.mubr.bf16.mxu0 0
    %3983 = vmatmul.mubr.bf16.gmra.mrb[0].mxu0 %v3924
    %v3984 = vpop.f32.mrb[0].mxu0
    %v3985 = vadd.f32 0.0, %v3984
    %v3986 = vpop.f32.mrb[0].mxu0
    %v3987 = vpop.f32.mrb[0].mxu0
    %v3988 = vadd.f32 0.0, %v3987
    %v3989 = vpop.f32.mrb[0].mxu0
    %3990 = vdwg.mxu0
    %v3991 = vadd.f32 %v3900, %v3961
    %v3992 = vadd.f32 %v3901, %v3964
    %v3993 = vadd.f32 %v3902, %v3969
    %v3994 = vadd.f32 %v3903, %v3972
    %v3995 = vadd.f32 %v3904, %v3977
    %v3996 = vadd.f32 %v3905, %v3980
    %v3997 = vadd.f32 %v3906, %v3985
    %v3998 = vadd.f32 %v3907, %v3988
    %v4000 = vunpack.c.l.b16 %v3802
    %v4001 = vpack.c.b16 %v4000, %v3909
    %v4003 = vsel %vm134, %v4001, 0
    %4005 = vmatprep.subr.bf16.mxu0 0
    %4006 = vmatpush1.bf16.msra.mxu0 %v1834
    %4007 = vmatprep.subr.bf16.mxu0 0
    %4008 = vmatpush1.bf16.msra.mxu0 %v1835
    %4009 = vmatprep.subr.bf16.mxu0 0
    %4010 = vmatpush1.bf16.msra.mxu0 0
    %4011 = vmatprep.subr.bf16.mxu0 0
    %4012 = vmatpush1.bf16.msra.mxu0 0
    %4013 = vmatprep.subr.bf16.mxu0 0
    %4014 = vmatpush1.bf16.msra.mxu0 0
    %4015 = vmatprep.subr.bf16.mxu0 0
    %4016 = vmatpush1.bf16.msra.mxu0 0
    %4017 = vmatprep.subr.bf16.mxu0 0
    %4018 = vmatpush1.bf16.msra.mxu0 0
    %4019 = vmatprep.subr.bf16.mxu0 0
    %4020 = vmatpush1.bf16.msra.mxu0 0
    %4021 = vmatprep.subr.bf16.mxu0 0
    %4022 = vmatpush1.bf16.msra.mxu0 0
    %4023 = vmatprep.subr.bf16.mxu0 0
    %4024 = vmatpush1.bf16.msra.mxu0 0
    %4025 = vmatprep.subr.bf16.mxu0 0
    %4026 = vmatpush1.bf16.msra.mxu0 0
    %4027 = vmatprep.subr.bf16.mxu0 0
    %4028 = vmatpush1.bf16.msra.mxu0 0
    %4029 = vmatprep.subr.bf16.mxu0 0
    %4030 = vmatpush1.bf16.msra.mxu0 0
    %4031 = vmatprep.subr.bf16.mxu0 0
    %4032 = vmatpush1.bf16.msra.mxu0 0
    %4033 = vmatprep.subr.bf16.mxu0 0
    %4034 = vmatpush1.bf16.msra.mxu0 0
    %4035 = vmatprep.subr.bf16.mxu0 0
    %4036 = vmatpush1.bf16.msra.mxu0 0
    %4037 = vmatprep.mubr.bf16.mxu0 0
    %4038 = vmatmul.mubr.bf16.gmra.mrb[0].mxu0 %v3827
    %v4039 = vpop.f32.mrb[0].mxu0
    %v4040 = vadd.f32 0.0, %v4039
    %v4041 = vpop.f32.mrb[0].mxu0
    %v4042 = vpop.f32.mrb[0].mxu0
    %v4043 = vadd.f32 0.0, %v4042
    %v4044 = vpop.f32.mrb[0].mxu0
    %4045 = vmatprep.mubr.bf16.mxu0 0
    %4046 = vmatmul.mubr.bf16.gmra.mrb[0].mxu0 %v3830
    %v4047 = vpop.f32.mrb[0].mxu0
    %v4048 = vadd.f32 0.0, %v4047
    %v4049 = vpop.f32.mrb[0].mxu0
    %v4050 = vpop.f32.mrb[0].mxu0
    %v4051 = vadd.f32 0.0, %v4050
    %v4052 = vpop.f32.mrb[0].mxu0
    %4053 = vmatprep.mubr.bf16.mxu0 0
    %4054 = vmatmul.mubr.bf16.gmra.mrb[0].mxu0 %v3833
    %v4055 = vpop.f32.mrb[0].mxu0
    %v4056 = vadd.f32 0.0, %v4055
    %v4057 = vpop.f32.mrb[0].mxu0
    %v4058 = vpop.f32.mrb[0].mxu0
    %v4059 = vadd.f32 0.0, %v4058
    %v4060 = vpop.f32.mrb[0].mxu0
    %4061 = vmatprep.mubr.bf16.mxu0 0
    %4062 = vmatmul.mubr.bf16.gmra.mrb[0].mxu0 %v4003
    %v4063 = vpop.f32.mrb[0].mxu0
    %v4064 = vadd.f32 0.0, %v4063
    %v4065 = vpop.f32.mrb[0].mxu0
    %v4066 = vpop.f32.mrb[0].mxu0
    %v4067 = vadd.f32 0.0, %v4066
    %v4068 = vpop.f32.mrb[0].mxu0
    %4069 = vdwg.mxu0
    %v4070 = vadd.f32 %v3991, %v4040
    %v4071 = vadd.f32 %v3992, %v4043
    %v4072 = vadd.f32 %v3993, %v4048
    %v4073 = vadd.f32 %v3994, %v4051
    %v4074 = vadd.f32 %v3995, %v4056
    %v4075 = vadd.f32 %v3996, %v4059
    %v4076 = vadd.f32 %v3997, %v4064
    %v4077 = vadd.f32 %v3998, %v4067
    %v4078 = vld [vmem:[#allocation3 + $0x2] sm:$0xff]
    %v4079 = vld [vmem:[#allocation3 + $0x12] sm:$0xff]
    %v4080 = vld [vmem:[#allocation3 + $0x22] sm:$0xff]
    %v4081 = vld [vmem:[#allocation3 + $0x32] sm:$0xff]
    %v4082 = vld [vmem:[#allocation3 + $0x42] sm:$0xff]
    %v4083 = vld [vmem:[#allocation3 + $0x52] sm:$0xff]
    %v4084 = vld [vmem:[#allocation3 + $0x62] sm:$0xff]
    %v4085 = vld [vmem:[#allocation3 + $0x72] sm:$0xff]
    %v4086 = vld [vmem:[#allocation3 + $0x82] sm:$0xff]
    %v4087 = vld [vmem:[#allocation3 + $0x92] sm:$0xff]
    %v4088 = vpack.c.bf16 %v4078, %v4078
    %v4089 = vpack.c.bf16 %v4079, %v4079
    %v4090 = vpack.c.bf16 %v4080, %v4080
    %v4091 = vpack.c.bf16 %v4081, %v4081
    %v4092 = vpack.c.bf16 %v4082, %v4082
    %v4093 = vpack.c.bf16 %v4083, %v4083
    %v4094 = vpack.c.bf16 %v4084, %v4084
    %v4095 = vpack.c.bf16 %v4085, %v4085
    %v4096 = vpack.c.bf16 %v4086, %v4086
    %v4097 = vpack.c.bf16 %v4087, %v4087
    %v4106 = vunpack.c.l.b16 %v4088
    %v4107 = vunpack.c.l.b16 %v4089
    %v4108 = vunpack.c.l.b16 %v4090
    %v4109 = vunpack.c.l.b16 %v4091
    %v4110 = vunpack.c.l.b16 %v4092
    %v4111 = vunpack.c.l.b16 %v4093
    %v4112 = vunpack.c.l.b16 %v4094
    %v4113 = vunpack.c.l.b16 %v4095
    %v4114 = vpack.c.b16 %v4107, %v4106
    %v4115 = vpack.c.b16 %v4109, %v4108
    %v4116 = vpack.c.b16 %v4111, %v4110
    %v4117 = vpack.c.b16 %v4113, %v4112
    %v4119 = vsel %vm134, %v4114, 0
    %v4122 = vsel %vm134, %v4115, 0
    %v4125 = vsel %vm134, %v4116, 0
    %v4128 = vsel %vm134, %v4117, 0
    %4130 = vmatprep.subr.bf16.mxu0 0
    %4131 = vmatpush1.bf16.msra.mxu0 %v1962
    %4132 = vmatprep.subr.bf16.mxu0 0
    %4133 = vmatpush1.bf16.msra.mxu0 %v1963
    %4134 = vmatprep.subr.bf16.mxu0 0
    %4135 = vmatpush1.bf16.msra.mxu0 0
    %4136 = vmatprep.subr.bf16.mxu0 0
    %4137 = vmatpush1.bf16.msra.mxu0 0
    %4138 = vmatprep.subr.bf16.mxu0 0
    %4139 = vmatpush1.bf16.msra.mxu0 0
    %4140 = vmatprep.subr.bf16.mxu0 0
    %4141 = vmatpush1.bf16.msra.mxu0 0
    %4142 = vmatprep.subr.bf16.mxu0 0
    %4143 = vmatpush1.bf16.msra.mxu0 0
    %4144 = vmatprep.subr.bf16.mxu0 0
    %4145 = vmatpush1.bf16.msra.mxu0 0
    %4146 = vmatprep.subr.bf16.mxu0 0
    %4147 = vmatpush1.bf16.msra.mxu0 0
    %4148 = vmatprep.subr.bf16.mxu0 0
    %4149 = vmatpush1.bf16.msra.mxu0 0
    %4150 = vmatprep.subr.bf16.mxu0 0
    %4151 = vmatpush1.bf16.msra.mxu0 0
    %4152 = vmatprep.subr.bf16.mxu0 0
    %4153 = vmatpush1.bf16.msra.mxu0 0
    %4154 = vmatprep.subr.bf16.mxu0 0
    %4155 = vmatpush1.bf16.msra.mxu0 0
    %4156 = vmatprep.subr.bf16.mxu0 0
    %4157 = vmatpush1.bf16.msra.mxu0 0
    %4158 = vmatprep.subr.bf16.mxu0 0
    %4159 = vmatpush1.bf16.msra.mxu0 0
    %4160 = vmatprep.subr.bf16.mxu0 0
    %4161 = vmatpush1.bf16.msra.mxu0 0
    %4162 = vmatprep.mubr.bf16.mxu0 0
    %4163 = vmatmul.mubr.bf16.gmra.mrb[0].mxu0 %v4119
    %v4164 = vpop.f32.mrb[0].mxu0
    %v4165 = vadd.f32 0.0, %v4164
    %v4166 = vpop.f32.mrb[0].mxu0
    %v4167 = vpop.f32.mrb[0].mxu0
    %v4168 = vadd.f32 0.0, %v4167
    %v4169 = vpop.f32.mrb[0].mxu0
    %4170 = vmatprep.mubr.bf16.mxu0 0
    %4171 = vmatmul.mubr.bf16.gmra.mrb[0].mxu0 %v4122
    %v4172 = vpop.f32.mrb[0].mxu0
    %v4173 = vadd.f32 0.0, %v4172
    %v4174 = vpop.f32.mrb[0].mxu0
    %v4175 = vpop.f32.mrb[0].mxu0
    %v4176 = vadd.f32 0.0, %v4175
    %v4177 = vpop.f32.mrb[0].mxu0
    %4178 = vmatprep.mubr.bf16.mxu0 0
    %4179 = vmatmul.mubr.bf16.gmra.mrb[0].mxu0 %v4125
    %v4180 = vpop.f32.mrb[0].mxu0
    %v4181 = vadd.f32 0.0, %v4180
    %v4182 = vpop.f32.mrb[0].mxu0
    %v4183 = vpop.f32.mrb[0].mxu0
    %v4184 = vadd.f32 0.0, %v4183
    %v4185 = vpop.f32.mrb[0].mxu0
    %4186 = vmatprep.mubr.bf16.mxu0 0
    %4187 = vmatmul.mubr.bf16.gmra.mrb[0].mxu0 %v4128
    %v4188 = vpop.f32.mrb[0].mxu0
    %v4189 = vadd.f32 0.0, %v4188
    %v4190 = vpop.f32.mrb[0].mxu0
    %v4191 = vpop.f32.mrb[0].mxu0
    %v4192 = vadd.f32 0.0, %v4191
    %v4193 = vpop.f32.mrb[0].mxu0
    %4194 = vdwg.mxu0
    %v4195 = vadd.f32 %v4070, %v4165
    %v4196 = vadd.f32 %v4071, %v4168
    %v4197 = vadd.f32 %v4072, %v4173
    %v4198 = vadd.f32 %v4073, %v4176
    %v4199 = vadd.f32 %v4074, %v4181
    %v4200 = vadd.f32 %v4075, %v4184
    %v4201 = vadd.f32 %v4076, %v4189
    %v4202 = vadd.f32 %v4077, %v4192
    %v4204 = vunpack.c.l.b16 %v4096
    %v4205 = vpack.c.b16 %v4108, %v4107
    %v4206 = vpack.c.b16 %v4110, %v4109
    %v4207 = vpack.c.b16 %v4112, %v4111
    %v4208 = vpack.c.b16 %v4204, %v4113
    %v4210 = vsel %vm134, %v4205, 0
    %v4213 = vsel %vm134, %v4206, 0
    %v4216 = vsel %vm134, %v4207, 0
    %v4219 = vsel %vm134, %v4208, 0
    %4221 = vmatprep.subr.bf16.mxu0 0
    %4222 = vmatpush1.bf16.msra.mxu0 %v2065
    %4223 = vmatprep.subr.bf16.mxu0 0
    %4224 = vmatpush1.bf16.msra.mxu0 %v2066
    %4225 = vmatprep.subr.bf16.mxu0 0
    %4226 = vmatpush1.bf16.msra.mxu0 0
    %4227 = vmatprep.subr.bf16.mxu0 0
    %4228 = vmatpush1.bf16.msra.mxu0 0
    %4229 = vmatprep.subr.bf16.mxu0 0
    %4230 = vmatpush1.bf16.msra.mxu0 0
    %4231 = vmatprep.subr.bf16.mxu0 0
    %4232 = vmatpush1.bf16.msra.mxu0 0
    %4233 = vmatprep.subr.bf16.mxu0 0
    %4234 = vmatpush1.bf16.msra.mxu0 0
    %4235 = vmatprep.subr.bf16.mxu0 0
    %4236 = vmatpush1.bf16.msra.mxu0 0
    %4237 = vmatprep.subr.bf16.mxu0 0
    %4238 = vmatpush1.bf16.msra.mxu0 0
    %4239 = vmatprep.subr.bf16.mxu0 0
    %4240 = vmatpush1.bf16.msra.mxu0 0
    %4241 = vmatprep.subr.bf16.mxu0 0
    %4242 = vmatpush1.bf16.msra.mxu0 0
    %4243 = vmatprep.subr.bf16.mxu0 0
    %4244 = vmatpush1.bf16.msra.mxu0 0
    %4245 = vmatprep.subr.bf16.mxu0 0
    %4246 = vmatpush1.bf16.msra.mxu0 0
    %4247 = vmatprep.subr.bf16.mxu0 0
    %4248 = vmatpush1.bf16.msra.mxu0 0
    %4249 = vmatprep.subr.bf16.mxu0 0
    %4250 = vmatpush1.bf16.msra.mxu0 0
    %4251 = vmatprep.subr.bf16.mxu0 0
    %4252 = vmatpush1.bf16.msra.mxu0 0
    %4253 = vmatprep.mubr.bf16.mxu0 0
    %4254 = vmatmul.mubr.bf16.gmra.mrb[0].mxu0 %v4210
    %v4255 = vpop.f32.mrb[0].mxu0
    %v4256 = vadd.f32 0.0, %v4255
    %v4257 = vpop.f32.mrb[0].mxu0
    %v4258 = vpop.f32.mrb[0].mxu0
    %v4259 = vadd.f32 0.0, %v4258
    %v4260 = vpop.f32.mrb[0].mxu0
    %4261 = vmatprep.mubr.bf16.mxu0 0
    %4262 = vmatmul.mubr.bf16.gmra.mrb[0].mxu0 %v4213
    %v4263 = vpop.f32.mrb[0].mxu0
    %v4264 = vadd.f32 0.0, %v4263
    %v4265 = vpop.f32.mrb[0].mxu0
    %v4266 = vpop.f32.mrb[0].mxu0
    %v4267 = vadd.f32 0.0, %v4266
    %v4268 = vpop.f32.mrb[0].mxu0
    %4269 = vmatprep.mubr.bf16.mxu0 0
    %4270 = vmatmul.mubr.bf16.gmra.mrb[0].mxu0 %v4216
    %v4271 = vpop.f32.mrb[0].mxu0
    %v4272 = vadd.f32 0.0, %v4271
    %v4273 = vpop.f32.mrb[0].mxu0
    %v4274 = vpop.f32.mrb[0].mxu0
    %v4275 = vadd.f32 0.0, %v4274
    %v4276 = vpop.f32.mrb[0].mxu0
    %4277 = vmatprep.mubr.bf16.mxu0 0
    %4278 = vmatmul.mubr.bf16.gmra.mrb[0].mxu0 %v4219
    %v4279 = vpop.f32.mrb[0].mxu0
    %v4280 = vadd.f32 0.0, %v4279
    %v4281 = vpop.f32.mrb[0].mxu0
    %v4282 = vpop.f32.mrb[0].mxu0
    %v4283 = vadd.f32 0.0, %v4282
    %v4284 = vpop.f32.mrb[0].mxu0
    %4285 = vdwg.mxu0
    %v4286 = vadd.f32 %v4195, %v4256
    %v4287 = vadd.f32 %v4196, %v4259
    %v4288 = vadd.f32 %v4197, %v4264
    %v4289 = vadd.f32 %v4198, %v4267
    %v4290 = vadd.f32 %v4199, %v4272
    %v4291 = vadd.f32 %v4200, %v4275
    %v4292 = vadd.f32 %v4201, %v4280
    %v4293 = vadd.f32 %v4202, %v4283
    %v4295 = vunpack.c.l.b16 %v4097
    %v4296 = vpack.c.b16 %v4295, %v4204
    %v4298 = vsel %vm134, %v4296, 0
    %4300 = vmatprep.subr.bf16.mxu0 0
    %4301 = vmatpush1.bf16.msra.mxu0 %v2165
    %4302 = vmatprep.subr.bf16.mxu0 0
    %4303 = vmatpush1.bf16.msra.mxu0 %v2166
    %4304 = vmatprep.subr.bf16.mxu0 0
    %4305 = vmatpush1.bf16.msra.mxu0 0
    %4306 = vmatprep.subr.bf16.mxu0 0
    %4307 = vmatpush1.bf16.msra.mxu0 0
    %4308 = vmatprep.subr.bf16.mxu0 0
    %4309 = vmatpush1.bf16.msra.mxu0 0
    %4310 = vmatprep.subr.bf16.mxu0 0
    %4311 = vmatpush1.bf16.msra.mxu0 0
    %4312 = vmatprep.subr.bf16.mxu0 0
    %4313 = vmatpush1.bf16.msra.mxu0 0
    %4314 = vmatprep.subr.bf16.mxu0 0
    %4315 = vmatpush1.bf16.msra.mxu0 0
    %4316 = vmatprep.subr.bf16.mxu0 0
    %4317 = vmatpush1.bf16.msra.mxu0 0
    %4318 = vmatprep.subr.bf16.mxu0 0
    %4319 = vmatpush1.bf16.msra.mxu0 0
    %4320 = vmatprep.subr.bf16.mxu0 0
    %4321 = vmatpush1.bf16.msra.mxu0 0
    %4322 = vmatprep.subr.bf16.mxu0 0
    %4323 = vmatpush1.bf16.msra.mxu0 0
    %4324 = vmatprep.subr.bf16.mxu0 0
    %4325 = vmatpush1.bf16.msra.mxu0 0
    %4326 = vmatprep.subr.bf16.mxu0 0
    %4327 = vmatpush1.bf16.msra.mxu0 0
    %4328 = vmatprep.subr.bf16.mxu0 0
    %4329 = vmatpush1.bf16.msra.mxu0 0
    %4330 = vmatprep.subr.bf16.mxu0 0
    %4331 = vmatpush1.bf16.msra.mxu0 0
    %4332 = vmatprep.mubr.bf16.mxu0 0
    %4333 = vmatmul.mubr.bf16.gmra.mrb[0].mxu0 %v4122
    %v4334 = vpop.f32.mrb[0].mxu0
    %v4335 = vadd.f32 0.0, %v4334
    %v4336 = vpop.f32.mrb[0].mxu0
    %v4337 = vpop.f32.mrb[0].mxu0
    %v4338 = vadd.f32 0.0, %v4337
    %v4339 = vpop.f32.mrb[0].mxu0
    %4340 = vmatprep.mubr.bf16.mxu0 0
    %4341 = vmatmul.mubr.bf16.gmra.mrb[0].mxu0 %v4125
    %v4342 = vpop.f32.mrb[0].mxu0
    %v4343 = vadd.f32 0.0, %v4342
    %v4344 = vpop.f32.mrb[0].mxu0
    %v4345 = vpop.f32.mrb[0].mxu0
    %v4346 = vadd.f32 0.0, %v4345
    %v4347 = vpop.f32.mrb[0].mxu0
    %4348 = vmatprep.mubr.bf16.mxu0 0
    %4349 = vmatmul.mubr.bf16.gmra.mrb[0].mxu0 %v4128
    %v4350 = vpop.f32.mrb[0].mxu0
    %v4351 = vadd.f32 0.0, %v4350
    %v4352 = vpop.f32.mrb[0].mxu0
    %v4353 = vpop.f32.mrb[0].mxu0
    %v4354 = vadd.f32 0.0, %v4353
    %v4355 = vpop.f32.mrb[0].mxu0
    %4356 = vmatprep.mubr.bf16.mxu0 0
    %4357 = vmatmul.mubr.bf16.gmra.mrb[0].mxu0 %v4298
    %v4358 = vpop.f32.mrb[0].mxu0
    %v4359 = vadd.f32 0.0, %v4358
    %v4360 = vpop.f32.mrb[0].mxu0
    %v4361 = vpop.f32.mrb[0].mxu0
    %v4362 = vadd.f32 0.0, %v4361
    %v4363 = vpop.f32.mrb[0].mxu0
    %4364 = vdwg.mxu0
    %v4365 = vadd.f32 %v4286, %v4335
    %v4366 = vadd.f32 %v4287, %v4338
    %v4367 = vadd.f32 %v4288, %v4343
    %v4368 = vadd.f32 %v4289, %v4346
    %v4369 = vadd.f32 %v4290, %v4351
    %v4370 = vadd.f32 %v4291, %v4354
    %v4371 = vadd.f32 %v4292, %v4359
    %v4372 = vadd.f32 %v4293, %v4362
    %v4373 = vsel %vm134, %v4365, 0.0
    %v4374 = vsel %vm134, %v4366, 0.0
    %v4375 = vadd.f32 %v4373, %v4374
    %v4376 = vsel %vm134, %v4367, 0.0
    %v4377 = vadd.f32 %v4375, %v4376
    %v4378 = vsel %vm134, %v4368, 0.0
    %v4379 = vadd.f32 %v4377, %v4378
    %v4380 = vsel %vm134, %v4369, 0.0
    %v4381 = vadd.f32 %v4379, %v4380
    %v4382 = vsel %vm134, %v4370, 0.0
    %v4383 = vadd.f32 %v4381, %v4382
    %v4384 = vsel %vm134, %v4371, 0.0
    %v4385 = vadd.f32 %v4383, %v4384
    %v4386 = vsel %vm134, %v4372, 0.0
    %v4387 = vadd.f32 %v4385, %v4386
    %v4388 = vrot.slane %v4387, 4
    %v4389 = vadd.f32 %v4387, %v4388
    %v4390 = vrot.slane %v4389, 2
    %v4391 = vadd.f32 %v4389, %v4390
    %v4392 = vrot.slane %v4391, 1
    %v4393 = vadd.f32 %v4391, %v4392
    %v4394 = vmul.f32 %v4393, 0.015625
    %v4395 = vsub.f32 %v4365, %v4394
    %v4396 = vsub.f32 %v4366, %v4394
    %v4397 = vsub.f32 %v4367, %v4394
    %v4398 = vsub.f32 %v4368, %v4394
    %v4399 = vsub.f32 %v4369, %v4394
    %v4400 = vsub.f32 %v4370, %v4394
    %v4401 = vsub.f32 %v4371, %v4394
    %v4402 = vsub.f32 %v4372, %v4394
    %v4403 = vmul.f32 %v4395, %v4395
    %v4404 = vmul.f32 %v4396, %v4396
    %v4405 = vmul.f32 %v4397, %v4397
    %v4406 = vmul.f32 %v4398, %v4398
    %v4407 = vmul.f32 %v4399, %v4399
    %v4408 = vmul.f32 %v4400, %v4400
    %v4409 = vmul.f32 %v4401, %v4401
    %v4410 = vmul.f32 %v4402, %v4402
    %v4411 = vsel %vm134, %v4403, 0.0
    %v4412 = vsel %vm134, %v4404, 0.0
    %v4413 = vadd.f32 %v4411, %v4412
    %v4414 = vsel %vm134, %v4405, 0.0
    %v4415 = vadd.f32 %v4413, %v4414
    %v4416 = vsel %vm134, %v4406, 0.0
    %v4417 = vadd.f32 %v4415, %v4416
    %v4418 = vsel %vm134, %v4407, 0.0
    %v4419 = vadd.f32 %v4417, %v4418
    %v4420 = vsel %vm134, %v4408, 0.0
    %v4421 = vadd.f32 %v4419, %v4420
    %v4422 = vsel %vm134, %v4409, 0.0
    %v4423 = vadd.f32 %v4421, %v4422
    %v4424 = vsel %vm134, %v4410, 0.0
    %v4425 = vadd.f32 %v4423, %v4424
    %v4426 = vrot.slane %v4425, 4
    %v4427 = vadd.f32 %v4425, %v4426
    %v4428 = vrot.slane %v4427, 2
    %v4429 = vadd.f32 %v4427, %v4428
    %v4430 = vrot.slane %v4429, 1
    %v4431 = vadd.f32 %v4429, %v4430
    %v4432 = vmul.f32 %v4431, 0.015625
    %v4433 = vadd.f32 %v4432, 1e-05
    %v4434 = vrsqrt.pop %v4433
    %v4435 = vmul.f32 %v4395, %v4434
    %v4436 = vmul.f32 %v4396, %v4434
    %v4437 = vmul.f32 %v4397, %v4434
    %v4438 = vmul.f32 %v4398, %v4434
    %v4439 = vmul.f32 %v4399, %v4434
    %v4440 = vmul.f32 %v4400, %v4434
    %v4441 = vmul.f32 %v4401, %v4434
    %v4442 = vmul.f32 %v4402, %v4434
    %v4443 = vmul.f32 %v4435, %v2319
    %v4444 = vmul.f32 %v4436, %v2319
    %v4445 = vmul.f32 %v4437, %v2319
    %v4446 = vmul.f32 %v4438, %v2319
    %v4447 = vmul.f32 %v4439, %v2319
    %v4448 = vmul.f32 %v4440, %v2319
    %v4449 = vmul.f32 %v4441, %v2319
    %v4450 = vmul.f32 %v4442, %v2319
    %v4451 = vadd.f32 %v4443, %v2333
    %v4452 = vadd.f32 %v4444, %v2333
    %v4453 = vadd.f32 %v4445, %v2333
    %v4454 = vadd.f32 %v4446, %v2333
    %v4455 = vadd.f32 %v4447, %v2333
    %v4456 = vadd.f32 %v4448, %v2333
    %v4457 = vadd.f32 %v4449, %v2333
    %v4458 = vadd.f32 %v4450, %v2333
    %v4459 = vmax.f32 %v4451, 0.0
    %v4460 = vmax.f32 %v4452, 0.0
    %v4461 = vmax.f32 %v4453, 0.0
    %v4462 = vmax.f32 %v4454, 0.0
    %v4463 = vmax.f32 %v4455, 0.0
    %v4464 = vmax.f32 %v4456, 0.0
    %v4465 = vmax.f32 %v4457, 0.0
    %v4466 = vmax.f32 %v4458, 0.0
    %v4475 = vunpack.c.l.b16 %v2485
    %v4476 = vunpack.c.l.b16 %v2486
    %v4477 = vunpack.c.l.b16 %v2487
    %v4478 = vunpack.c.l.b16 %v2488
    %v4479 = vunpack.c.l.b16 %v2489
    %v4480 = vunpack.c.l.b16 %v2490
    %v4481 = vunpack.c.l.b16 %v2491
    %v4482 = vunpack.c.l.b16 %v2492
    %v4483 = vpack.c.b16 %v4476, %v4475
    %v4484 = vpack.c.b16 %v4478, %v4477
    %v4485 = vpack.c.b16 %v4480, %v4479
    %v4486 = vpack.c.b16 %v4482, %v4481
    %v4488 = vsel %vm106, %v4483, 0
    %v4491 = vsel %vm106, %v4484, 0
    %v4494 = vsel %vm106, %v4485, 0
    %v4497 = vsel %vm106, %v4486, 0
    %4499 = vmatprep.subr.bf16.mxu0 0
    %4500 = vmatpush1.bf16.msra.mxu0 %v2381
    %4501 = vmatprep.subr.bf16.mxu0 0
    %4502 = vmatpush1.bf16.msra.mxu0 0
    %4503 = vmatprep.subr.bf16.mxu0 0
    %4504 = vmatpush1.bf16.msra.mxu0 0
    %4505 = vmatprep.subr.bf16.mxu0 0
    %4506 = vmatpush1.bf16.msra.mxu0 0
    %4507 = vmatprep.subr.bf16.mxu0 0
    %4508 = vmatpush1.bf16.msra.mxu0 0
    %4509 = vmatprep.subr.bf16.mxu0 0
    %4510 = vmatpush1.bf16.msra.mxu0 0
    %4511 = vmatprep.subr.bf16.mxu0 0
    %4512 = vmatpush1.bf16.msra.mxu0 0
    %4513 = vmatprep.subr.bf16.mxu0 0
    %4514 = vmatpush1.bf16.msra.mxu0 0
    %4515 = vmatprep.subr.bf16.mxu0 0
    %4516 = vmatpush1.bf16.msra.mxu0 0
    %4517 = vmatprep.subr.bf16.mxu0 0
    %4518 = vmatpush1.bf16.msra.mxu0 0
    %4519 = vmatprep.subr.bf16.mxu0 0
    %4520 = vmatpush1.bf16.msra.mxu0 0
    %4521 = vmatprep.subr.bf16.mxu0 0
    %4522 = vmatpush1.bf16.msra.mxu0 0
    %4523 = vmatprep.subr.bf16.mxu0 0
    %4524 = vmatpush1.bf16.msra.mxu0 0
    %4525 = vmatprep.subr.bf16.mxu0 0
    %4526 = vmatpush1.bf16.msra.mxu0 0
    %4527 = vmatprep.subr.bf16.mxu0 0
    %4528 = vmatpush1.bf16.msra.mxu0 0
    %4529 = vmatprep.subr.bf16.mxu0 0
    %4530 = vmatpush1.bf16.msra.mxu0 0
    %4531 = vmatprep.mubr.bf16.mxu0 0
    %4532 = vmatmul.mubr.bf16.gmra.mrb[0].mxu0 %v4488
    %v4533 = vpop.f32.mrb[0].mxu0
    %v4534 = vadd.f32 %v2355, %v4533
    %v4535 = vpop.f32.mrb[0].mxu0
    %v4536 = vpop.f32.mrb[0].mxu0
    %v4537 = vadd.f32 %v2355, %v4536
    %v4538 = vpop.f32.mrb[0].mxu0
    %4539 = vmatprep.mubr.bf16.mxu0 0
    %4540 = vmatmul.mubr.bf16.gmra.mrb[0].mxu0 %v4491
    %v4541 = vpop.f32.mrb[0].mxu0
    %v4542 = vadd.f32 %v2355, %v4541
    %v4543 = vpop.f32.mrb[0].mxu0
    %v4544 = vpop.f32.mrb[0].mxu0
    %v4545 = vadd.f32 %v2355, %v4544
    %v4546 = vpop.f32.mrb[0].mxu0
    %4547 = vmatprep.mubr.bf16.mxu0 0
    %4548 = vmatmul.mubr.bf16.gmra.mrb[0].mxu0 %v4494
    %v4549 = vpop.f32.mrb[0].mxu0
    %v4550 = vadd.f32 %v2355, %v4549
    %v4551 = vpop.f32.mrb[0].mxu0
    %v4552 = vpop.f32.mrb[0].mxu0
    %v4553 = vadd.f32 %v2355, %v4552
    %v4554 = vpop.f32.mrb[0].mxu0
    %4555 = vmatprep.mubr.bf16.mxu0 0
    %4556 = vmatmul.mubr.bf16.gmra.mrb[0].mxu0 %v4497
    %v4557 = vpop.f32.mrb[0].mxu0
    %v4558 = vadd.f32 %v2355, %v4557
    %v4559 = vpop.f32.mrb[0].mxu0
    %v4560 = vpop.f32.mrb[0].mxu0
    %v4561 = vadd.f32 %v2355, %v4560
    %v4562 = vpop.f32.mrb[0].mxu0
    %4563 = vdwg.mxu0
    %v4564 = vadd.f32 %v4459, %v4534
    %v4565 = vadd.f32 %v4460, %v4537
    %v4566 = vadd.f32 %v4461, %v4542
    %v4567 = vadd.f32 %v4462, %v4545
    %v4568 = vadd.f32 %v4463, %v4550
    %v4569 = vadd.f32 %v4464, %v4553
    %v4570 = vadd.f32 %v4465, %v4558
    %v4571 = vadd.f32 %v4466, %v4561
    %s4572 = scalar_lea.vmem [#allocation4], 64
    %4573 = vst.msk [vmem:[%s4572] sm:$0xff] %vm134, %v4564
    %4574 = vst.msk [vmem:[%s4572 + $0x8] sm:$0xff] %vm134, %v4565
    %4575 = vst.msk [vmem:[%s4572 + $0x10] sm:$0xff] %vm134, %v4566
    %4576 = vst.msk [vmem:[%s4572 + $0x18] sm:$0xff] %vm134, %v4567
    %4577 = vst.msk [vmem:[%s4572 + $0x20] sm:$0xff] %vm134, %v4568
    %4578 = vst.msk [vmem:[%s4572 + $0x28] sm:$0xff] %vm134, %v4569
    %4579 = vst.msk [vmem:[%s4572 + $0x30] sm:$0xff] %vm134, %v4570
    %4580 = vst.msk [vmem:[%s4572 + $0x38] sm:$0xff] %vm134, %v4571
    // Predicated region
    $region50: #{tpu_custom_call.1} parent=1 // pred_check
      _
    $region51: #{tpu_custom_call.1} parent=1 // pred_check_branch
      %4582 = sbr.rel (0) target = $region53
    $region52: #{tpu_custom_call.1} parent=1 // pred_region
      %s4584 = ssub.s32 2048, 2048
      %4585 = vsyncadd [#allocation5], %s4584
      %s4586 = sshll.u32 [#allocation4], 4
      %s4587 = int_to_ptr.vmem [resolvable:$true] %s4586
      %4592 = dma.vmem_to_hbm [thread:$0]  %s4587, 2048, %s12, [#allocation5], 128, 128, 8
    $region53: #{tpu_custom_call.1} parent=1 // pred_fallthru
      _
    // Predicated region
    $region54: #{tpu_custom_call.1} parent=1 // pred_check
      _
    $region55: #{tpu_custom_call.1} parent=1 // pred_check_branch
      %4594 = sbr.rel (0) target = $region57
    $region56: #{tpu_custom_call.1} parent=1 // pred_region
      %4595 = dma.done [#allocation5], 2048
    $region57: #{tpu_custom_call.1} parent=1 // pred_fallthru
      _
    %4596 = vsyncpa [#allocation5], 1

</llo_original>
